<compile_context>
chip_gen: v5e
topology: v5e:2x2
jax: 0.10.0
libtpu: 0.0.40
codegen_flags: <defaults>
</compile_context>

<pallas_src>
import functools

import jax
import jax.numpy as jnp
import numpy as np
from jax.experimental import pallas as pl
from jax.experimental.pallas import tpu as pltpu


# --------------------------- in-kernel building blocks ----------------------

def _conv3x3_relu_wide(src, w_ref, b_ref, *, pitch, m_out):
    """VALID 3x3 conv + bias + ReLU in the wide (C, R) layout.

    src    : (Cin, R) value, column r = h*pitch + w.  Requires
             R >= 2*pitch + 2 + m_out.
    w_ref  : (9, Cout, Cin) ref, tap k = dy*3 + dx.
    b_ref  : (Cout, 1) ref.
    Returns a (Cout, m_out) f32 value with the same pitch; columns whose
    within-row position is >= pitch-2 are junk (never read by valid
    consumers downstream).
    """
    acc = None
    for dy in range(3):
        for dx in range(3):
            k = dy * 3 + dx
            off = dy * pitch + dx
            slab = src[:, off:off + m_out]                       # (Cin, m_out)
            part = jnp.dot(w_ref[k], slab,
                           preferred_element_type=jnp.float32)   # (Cout, m_out)
            acc = part if acc is None else acc + part
    acc = acc + b_ref[...]                                       # (Cout, 1) bcast
    return jnp.maximum(acc, 0.0)


def _maxpool2x2_to_dense(val, *, pitch, h_valid, w_valid, out_ref):
    """2x2/stride-2 max pool of a wide-layout value, written densely.

    val holds at least h_valid*pitch columns; valid region is rows
    0..h_valid-1, cols 0..w_valid-1 (w.r.t. `pitch`).  Writes the pooled
    (C, hp*wp) result densely into out_ref[:, :hp*wp].
    """
    hp, wp = h_valid // 2, w_valid // 2
    r = h_valid * pitch
    vm = jnp.maximum(val[:, 0:r - pitch], val[:, pitch:r])         # vertical
    hm = jnp.maximum(vm[:, 0:r - pitch - 1], vm[:, 1:r - pitch])   # + horizontal
    # hm[:, 2*y*pitch + 2*x] is the 2x2 max for output pixel (y, x).  A tiny
    # 0/1 selection matmul per output row picks the even columns and thereby
    # compacts the wide layout into a dense one (only valid columns are ever
    # contracted, so no junk leaks in).
    jj = jax.lax.broadcasted_iota(jnp.int32, (w_valid - 1, wp), 0)
    xx = jax.lax.broadcasted_iota(jnp.int32, (w_valid - 1, wp), 1)
    sel = (jj == 2 * xx).astype(jnp.float32)                       # (w_valid-1, wp)
    for y in range(hp):
        hs = hm[:, 2 * y * pitch: 2 * y * pitch + w_valid - 1]     # (C, w_valid-1)
        out_ref[:, y * wp:(y + 1) * wp] = jnp.dot(
            hs, sel, preferred_element_type=jnp.float32)
    return hp, wp


def _tinyvgg_kernel(x_ref, w0, b0, w1, b1, w2, b2, w3, b3, w4, b4, w5, b5,
                    wl_ref, bl_ref, o_ref, buf, *, spatial):
    # Make every "junk" value in the wide layout a well-defined finite number
    # (junk is never read for valid outputs, this is just hygiene).
    buf[...] = jnp.zeros(buf.shape, buf.dtype)

    conv_params = ((w0, b0), (w1, b1), (w2, b2), (w3, b3), (w4, b4), (w5, b5))

    src = x_ref[0].astype(jnp.float32)      # (Cin, H*W + pad), pitch = W
    cur_h = cur_w = spatial
    for blk in range(3):
        wa, ba = conv_params[2 * blk]
        wb, bb = conv_params[2 * blk + 1]
        ho_a, ho_b = cur_h - 2, cur_h - 4
        # conv -> ReLU  (2 extra columns so the next conv can slice to the end)
        a = _conv3x3_relu_wide(src, wa, ba, pitch=cur_w,
                               m_out=ho_a * cur_w + 2)
        # conv -> ReLU
        bv = _conv3x3_relu_wide(a, wb, bb, pitch=cur_w,
                                m_out=ho_b * cur_w)
        # 2x2 max-pool -> dense layout in the VMEM scratch
        hp, wp = _maxpool2x2_to_dense(bv, pitch=cur_w, h_valid=ho_b,
                                      w_valid=cur_w - 4, out_ref=buf)
        cur_h, cur_w = hp, wp
        src = buf[...]                      # valid columns: 0 .. cur_h*cur_w-1

    # Final feature map: (C, 4) with column index hw = 2*h + w, matching the
    # PyTorch NCHW Flatten order (flat index = c*4 + hw).
    feat = src[:, 0:4]
    logits = bl_ref[...].astype(jnp.float32)                 # (OUT, 1)
    for hw in range(4):
        logits = logits + jnp.dot(wl_ref[hw], feat[:, hw:hw + 1],
                                  preferred_element_type=jnp.float32)
    o_ref[0] = logits.astype(o_ref.dtype)


# ------------------------------- host wrappers -------------------------------

_BUF_COLS = 512  # >= max pooled extent (400) + 4 slack for the next conv slabs


def _prepare_params(params):
    """One-time rearrangement of PyTorch-layout params into kernel layouts."""
    prep = {}
    for i in range(6):
        w = params[f"conv{i}_w"]                                # (Cout, Cin, 3, 3)
        cout, cin = w.shape[0], w.shape[1]
        prep[f"w{i}"] = jnp.transpose(w, (2, 3, 0, 1)).reshape(9, cout, cin)
        prep[f"b{i}"] = params[f"conv{i}_b"].reshape(cout, 1)
    wl = params["lin_w"]                                        # (OUT, C*2*2)
    out_dim = wl.shape[0]
    c = params["conv5_w"].shape[0]
    prep["wl"] = wl.reshape(out_dim, c, 4).transpose(2, 0, 1)   # (4, OUT, C)
    prep["bl"] = params["lin_b"].reshape(out_dim, 1)
    return prep


@jax.jit
def tinyvgg_forward(prep, x_nchw):
    b, cin, hh, ww = x_nchw.shape
    assert hh == ww, "square inputs only"
    spatial = hh
    hidden = prep["b0"].shape[0]
    out_dim = prep["bl"].shape[0]
    rx = spatial * spatial + 8                                  # slack for slabs

    x2 = x_nchw.reshape(b, cin, spatial * spatial).astype(jnp.float32)
    x2 = jnp.pad(x2, ((0, 0), (0, 0), (0, rx - spatial * spatial)))

    kernel = functools.partial(_tinyvgg_kernel, spatial=spatial)

    in_specs = [pl.BlockSpec((1, cin, rx), lambda i: (i, 0, 0))]
    operands = [x2]
    for li in range(6):
        wi, bi = prep[f"w{li}"], prep[f"b{li}"]
        in_specs.append(pl.BlockSpec(wi.shape, lambda i: (0, 0, 0)))
        in_specs.append(pl.BlockSpec(bi.shape, lambda i: (0, 0)))
        operands += [wi, bi]
    in_specs.append(pl.BlockSpec(prep["wl"].shape, lambda i: (0, 0, 0)))
    in_specs.append(pl.BlockSpec(prep["bl"].shape, lambda i: (0, 0)))
    operands += [prep["wl"], prep["bl"]]

    out = pl.pallas_call(
        kernel,
        out_shape=jax.ShapeDtypeStruct((b, out_dim, 1), jnp.float32),
        grid=(b,),
        in_specs=in_specs,
        out_specs=pl.BlockSpec((1, out_dim, 1), lambda i: (i, 0, 0)),
        scratch_shapes=[pltpu.VMEM((hidden, _BUF_COLS), jnp.float32)],
        compiler_params=pltpu.CompilerParams(
            dimension_semantics=("parallel",)),   # batch across TCs on v7x
    )(*operands)
    return out.reshape(b, out_dim)


# ---------------------------- params / reference -----------------------------

def init_params(key, in_channels, hidden_units, output_shape):
    def uinit(k, shape, fan_in):
        bound = 1.0 / jnp.sqrt(jnp.float32(fan_in))
        return jax.random.uniform(k, shape, jnp.float32, -bound, bound)

    ks = jax.random.split(key, 14)
    p = {}
    cins = [in_channels, hidden_units, hidden_units,
            hidden_units, hidden_units, hidden_units]
    for i, cin in enumerate(cins):
        p[f"conv{i}_w"] = uinit(ks[2 * i], (hidden_units, cin, 3, 3), cin * 9)
        p[f"conv{i}_b"] = uinit(ks[2 * i + 1], (hidden_units,), cin * 9)
    lin_in = hidden_units * 2 * 2
    p["lin_w"] = uinit(ks[12], (output_shape, lin_in), lin_in)  # PyTorch (out,in)
    p["lin_b"] = uinit(ks[13], (output_shape,), lin_in)
    return p


def reference_forward(params, x_nchw):
    """Pure-JAX (non-Pallas) reference matching the PyTorch module."""
    def conv(h, w, b):
        y = jax.lax.conv_general_dilated(
            h, w, window_strides=(1, 1), padding="VALID",
            dimension_numbers=("NCHW", "OIHW", "NCHW"))
        return jax.nn.relu(y + b[None, :, None, None])

    def pool(h):
        return jax.lax.reduce_window(h, -jnp.inf, jax.lax.max,
                                     (1, 1, 2, 2), (1, 1, 2, 2), "VALID")

    h = x_nchw
    for i in range(6):
        h = conv(h, params[f"conv{i}_w"], params[f"conv{i}_b"])
        if i % 2 == 1:
            h = pool(h)
    flat = h.reshape(h.shape[0], -1)           # PyTorch NCHW flatten order
    return flat @ params["lin_w"].T + params["lin_b"]


if __name__ == "__main__":
    key = jax.random.PRNGKey(0)
    k_param, k_x = jax.random.split(key)

    in_channels, hidden_units, output_shape = 3, 8, 10
    batch = 2
    spatial = 44  # required so the final feature map is 2x2 (hidden*2*2 Linear)

    params = init_params(k_param, in_channels, hidden_units, output_shape)
    prep = _prepare_params(params)
    x = jax.random.normal(k_x, (batch, in_channels, spatial, spatial),
                          dtype=jnp.float32)

    logits = tinyvgg_forward(prep, x)
    logits = jax.block_until_ready(logits)
    assert logits.shape == (batch, output_shape)

    ref = reference_forward(params, x)
    np.testing.assert_allclose(np.asarray(logits), np.asarray(ref),
                               rtol=2e-2, atol=2e-2)
    print("KERNEL_OK")
</pallas_src>

<mosaic_0001>
module attributes {stable_mosaic.version = 11 : i64} {
  func.func @_tinyvgg_kernel(%arg0: i32, %arg1: memref<1x3x1944xf32, #tpu.memory_space<vmem>>, %arg2: memref<9x8x3xf32, #tpu.memory_space<vmem>>, %arg3: memref<8x1xf32, #tpu.memory_space<vmem>>, %arg4: memref<9x8x8xf32, #tpu.memory_space<vmem>>, %arg5: memref<8x1xf32, #tpu.memory_space<vmem>>, %arg6: memref<9x8x8xf32, #tpu.memory_space<vmem>>, %arg7: memref<8x1xf32, #tpu.memory_space<vmem>>, %arg8: memref<9x8x8xf32, #tpu.memory_space<vmem>>, %arg9: memref<8x1xf32, #tpu.memory_space<vmem>>, %arg10: memref<9x8x8xf32, #tpu.memory_space<vmem>>, %arg11: memref<8x1xf32, #tpu.memory_space<vmem>>, %arg12: memref<9x8x8xf32, #tpu.memory_space<vmem>>, %arg13: memref<8x1xf32, #tpu.memory_space<vmem>>, %arg14: memref<4x10x8xf32, #tpu.memory_space<vmem>>, %arg15: memref<10x1xf32, #tpu.memory_space<vmem>>, %arg16: memref<1x10x1xf32, #tpu.memory_space<vmem>>, %arg17: memref<8x512xf32, #tpu.memory_space<vmem>>) attributes {dimension_semantics = [#tpu.dimension_semantics<parallel>], iteration_bounds = array<i64: 2>, scalar_prefetch = 0 : i64, scratch_operands = 1 : i64, tpu.core_type = #tpu.core_type<tc>, window_params = [{transform_indices = @transform_0, window_bounds = array<i64: 1, 3, 1944>}, {pipeline_mode = #tpu.pipeline_mode<synchronous>, transform_indices = @transform_1, window_bounds = array<i64: 9, 8, 3>}, {pipeline_mode = #tpu.pipeline_mode<synchronous>, transform_indices = @transform_2, window_bounds = array<i64: 8, 1>}, {pipeline_mode = #tpu.pipeline_mode<synchronous>, transform_indices = @transform_3, window_bounds = array<i64: 9, 8, 8>}, {pipeline_mode = #tpu.pipeline_mode<synchronous>, transform_indices = @transform_4, window_bounds = array<i64: 8, 1>}, {pipeline_mode = #tpu.pipeline_mode<synchronous>, transform_indices = @transform_5, window_bounds = array<i64: 9, 8, 8>}, {pipeline_mode = #tpu.pipeline_mode<synchronous>, transform_indices = @transform_6, window_bounds = array<i64: 8, 1>}, {pipeline_mode = #tpu.pipeline_mode<synchronous>, transform_indices = @transform_7, window_bounds = array<i64: 9, 8, 8>}, {pipeline_mode = #tpu.pipeline_mode<synchronous>, transform_indices = @transform_8, window_bounds = array<i64: 8, 1>}, {pipeline_mode = #tpu.pipeline_mode<synchronous>, transform_indices = @transform_9, window_bounds = array<i64: 9, 8, 8>}, {pipeline_mode = #tpu.pipeline_mode<synchronous>, transform_indices = @transform_10, window_bounds = array<i64: 8, 1>}, {pipeline_mode = #tpu.pipeline_mode<synchronous>, transform_indices = @transform_11, window_bounds = array<i64: 9, 8, 8>}, {pipeline_mode = #tpu.pipeline_mode<synchronous>, transform_indices = @transform_12, window_bounds = array<i64: 8, 1>}, {pipeline_mode = #tpu.pipeline_mode<synchronous>, transform_indices = @transform_13, window_bounds = array<i64: 4, 10, 8>}, {pipeline_mode = #tpu.pipeline_mode<synchronous>, transform_indices = @transform_14, window_bounds = array<i64: 10, 1>}, {transform_indices = @transform_15, window_bounds = array<i64: 1, 10, 1>}]} {
    %cst = arith.constant 0.000000e+00 : f32
    %0 = vector.broadcast %cst : f32 to vector<8x512xf32>
    %c0 = arith.constant 0 : index
    %c0_0 = arith.constant 0 : index
    %1 = vector.load %arg17[%c0, %c0_0] : memref<8x512xf32, #tpu.memory_space<vmem>>, vector<8x512xf32>
    tpu.vector_store %arg17[%c0, %c0_0], %0 {strides = array<i32>} : memref<8x512xf32, #tpu.memory_space<vmem>>, vector<8x512xf32>,
    %c0_1 = arith.constant 0 : index
    %c0_2 = arith.constant 0 : index
    %c0_3 = arith.constant 0 : index
    %2 = vector.load %arg1[%c0_1, %c0_2, %c0_3] : memref<1x3x1944xf32, #tpu.memory_space<vmem>>, vector<1x3x1944xf32>
    %3 = vector.shape_cast %2 : vector<1x3x1944xf32> to vector<3x1944xf32>
    %4 = vector.extract_strided_slice %3 {offsets = [0, 0], sizes = [3, 1850], strides = [1, 1]} : vector<3x1944xf32> to vector<3x1850xf32>
    %c0_4 = arith.constant 0 : index
    %c0_5 = arith.constant 0 : index
    %c0_6 = arith.constant 0 : index
    %5 = vector.load %arg2[%c0_4, %c0_5, %c0_6] : memref<9x8x3xf32, #tpu.memory_space<vmem>>, vector<1x8x3xf32>
    %6 = vector.shape_cast %5 : vector<1x8x3xf32> to vector<8x3xf32>
    %cst_7 = arith.constant dense<0.000000e+00> : vector<8x1850xf32>
    %7 = tpu.matmul %6, %4, %cst_7 {dimension_numbers = #tpu.dot_dimension_numbers<[1], [0], [0], [1], [0, 0, 1, 1], [], []>} : vector<8x3xf32>, vector<3x1850xf32>, vector<8x1850xf32> -> vector<8x1850xf32>
    %8 = vector.extract_strided_slice %3 {offsets = [0, 1], sizes = [3, 1850], strides = [1, 1]} : vector<3x1944xf32> to vector<3x1850xf32>
    %c1 = arith.constant 1 : index
    %c0_8 = arith.constant 0 : index
    %c0_9 = arith.constant 0 : index
    %9 = vector.load %arg2[%c1, %c0_8, %c0_9] : memref<9x8x3xf32, #tpu.memory_space<vmem>>, vector<1x8x3xf32>
    %10 = vector.shape_cast %9 : vector<1x8x3xf32> to vector<8x3xf32>
    %cst_10 = arith.constant dense<0.000000e+00> : vector<8x1850xf32>
    %11 = tpu.matmul %10, %8, %cst_10 {dimension_numbers = #tpu.dot_dimension_numbers<[1], [0], [0], [1], [0, 0, 1, 1], [], []>} : vector<8x3xf32>, vector<3x1850xf32>, vector<8x1850xf32> -> vector<8x1850xf32>
    %12 = arith.addf %7, %11 : vector<8x1850xf32>
    %13 = vector.extract_strided_slice %3 {offsets = [0, 2], sizes = [3, 1850], strides = [1, 1]} : vector<3x1944xf32> to vector<3x1850xf32>
    %c2 = arith.constant 2 : index
    %c0_11 = arith.constant 0 : index
    %c0_12 = arith.constant 0 : index
    %14 = vector.load %arg2[%c2, %c0_11, %c0_12] : memref<9x8x3xf32, #tpu.memory_space<vmem>>, vector<1x8x3xf32>
    %15 = vector.shape_cast %14 : vector<1x8x3xf32> to vector<8x3xf32>
    %cst_13 = arith.constant dense<0.000000e+00> : vector<8x1850xf32>
    %16 = tpu.matmul %15, %13, %cst_13 {dimension_numbers = #tpu.dot_dimension_numbers<[1], [0], [0], [1], [0, 0, 1, 1], [], []>} : vector<8x3xf32>, vector<3x1850xf32>, vector<8x1850xf32> -> vector<8x1850xf32>
    %17 = arith.addf %12, %16 : vector<8x1850xf32>
    %18 = vector.extract_strided_slice %3 {offsets = [0, 44], sizes = [3, 1850], strides = [1, 1]} : vector<3x1944xf32> to vector<3x1850xf32>
    %c3 = arith.constant 3 : index
    %c0_14 = arith.constant 0 : index
    %c0_15 = arith.constant 0 : index
    %19 = vector.load %arg2[%c3, %c0_14, %c0_15] : memref<9x8x3xf32, #tpu.memory_space<vmem>>, vector<1x8x3xf32>
    %20 = vector.shape_cast %19 : vector<1x8x3xf32> to vector<8x3xf32>
    %cst_16 = arith.constant dense<0.000000e+00> : vector<8x1850xf32>
    %21 = tpu.matmul %20, %18, %cst_16 {dimension_numbers = #tpu.dot_dimension_numbers<[1], [0], [0], [1], [0, 0, 1, 1], [], []>} : vector<8x3xf32>, vector<3x1850xf32>, vector<8x1850xf32> -> vector<8x1850xf32>
    %22 = arith.addf %17, %21 : vector<8x1850xf32>
    %23 = vector.extract_strided_slice %3 {offsets = [0, 45], sizes = [3, 1850], strides = [1, 1]} : vector<3x1944xf32> to vector<3x1850xf32>
    %c4 = arith.constant 4 : index
    %c0_17 = arith.constant 0 : index
    %c0_18 = arith.constant 0 : index
    %24 = vector.load %arg2[%c4, %c0_17, %c0_18] : memref<9x8x3xf32, #tpu.memory_space<vmem>>, vector<1x8x3xf32>
    %25 = vector.shape_cast %24 : vector<1x8x3xf32> to vector<8x3xf32>
    %cst_19 = arith.constant dense<0.000000e+00> : vector<8x1850xf32>
    %26 = tpu.matmul %25, %23, %cst_19 {dimension_numbers = #tpu.dot_dimension_numbers<[1], [0], [0], [1], [0, 0, 1, 1], [], []>} : vector<8x3xf32>, vector<3x1850xf32>, vector<8x1850xf32> -> vector<8x1850xf32>
    %27 = arith.addf %22, %26 : vector<8x1850xf32>
    %28 = vector.extract_strided_slice %3 {offsets = [0, 46], sizes = [3, 1850], strides = [1, 1]} : vector<3x1944xf32> to vector<3x1850xf32>
    %c5 = arith.constant 5 : index
    %c0_20 = arith.constant 0 : index
    %c0_21 = arith.constant 0 : index
    %29 = vector.load %arg2[%c5, %c0_20, %c0_21] : memref<9x8x3xf32, #tpu.memory_space<vmem>>, vector<1x8x3xf32>
    %30 = vector.shape_cast %29 : vector<1x8x3xf32> to vector<8x3xf32>
    %cst_22 = arith.constant dense<0.000000e+00> : vector<8x1850xf32>
    %31 = tpu.matmul %30, %28, %cst_22 {dimension_numbers = #tpu.dot_dimension_numbers<[1], [0], [0], [1], [0, 0, 1, 1], [], []>} : vector<8x3xf32>, vector<3x1850xf32>, vector<8x1850xf32> -> vector<8x1850xf32>
    %32 = arith.addf %27, %31 : vector<8x1850xf32>
    %33 = vector.extract_strided_slice %3 {offsets = [0, 88], sizes = [3, 1850], strides = [1, 1]} : vector<3x1944xf32> to vector<3x1850xf32>
    %c6 = arith.constant 6 : index
    %c0_23 = arith.constant 0 : index
    %c0_24 = arith.constant 0 : index
    %34 = vector.load %arg2[%c6, %c0_23, %c0_24] : memref<9x8x3xf32, #tpu.memory_space<vmem>>, vector<1x8x3xf32>
    %35 = vector.shape_cast %34 : vector<1x8x3xf32> to vector<8x3xf32>
    %cst_25 = arith.constant dense<0.000000e+00> : vector<8x1850xf32>
    %36 = tpu.matmul %35, %33, %cst_25 {dimension_numbers = #tpu.dot_dimension_numbers<[1], [0], [0], [1], [0, 0, 1, 1], [], []>} : vector<8x3xf32>, vector<3x1850xf32>, vector<8x1850xf32> -> vector<8x1850xf32>
    %37 = arith.addf %32, %36 : vector<8x1850xf32>
    %38 = vector.extract_strided_slice %3 {offsets = [0, 89], sizes = [3, 1850], strides = [1, 1]} : vector<3x1944xf32> to vector<3x1850xf32>
    %c7 = arith.constant 7 : index
    %c0_26 = arith.constant 0 : index
    %c0_27 = arith.constant 0 : index
    %39 = vector.load %arg2[%c7, %c0_26, %c0_27] : memref<9x8x3xf32, #tpu.memory_space<vmem>>, vector<1x8x3xf32>
    %40 = vector.shape_cast %39 : vector<1x8x3xf32> to vector<8x3xf32>
    %cst_28 = arith.constant dense<0.000000e+00> : vector<8x1850xf32>
    %41 = tpu.matmul %40, %38, %cst_28 {dimension_numbers = #tpu.dot_dimension_numbers<[1], [0], [0], [1], [0, 0, 1, 1], [], []>} : vector<8x3xf32>, vector<3x1850xf32>, vector<8x1850xf32> -> vector<8x1850xf32>
    %42 = arith.addf %37, %41 : vector<8x1850xf32>
    %43 = vector.extract_strided_slice %3 {offsets = [0, 90], sizes = [3, 1850], strides = [1, 1]} : vector<3x1944xf32> to vector<3x1850xf32>
    %c8 = arith.constant 8 : index
    %c0_29 = arith.constant 0 : index
    %c0_30 = arith.constant 0 : index
    %44 = vector.load %arg2[%c8, %c0_29, %c0_30] : memref<9x8x3xf32, #tpu.memory_space<vmem>>, vector<1x8x3xf32>
    %45 = vector.shape_cast %44 : vector<1x8x3xf32> to vector<8x3xf32>
    %cst_31 = arith.constant dense<0.000000e+00> : vector<8x1850xf32>
    %46 = tpu.matmul %45, %43, %cst_31 {dimension_numbers = #tpu.dot_dimension_numbers<[1], [0], [0], [1], [0, 0, 1, 1], [], []>} : vector<8x3xf32>, vector<3x1850xf32>, vector<8x1850xf32> -> vector<8x1850xf32>
    %47 = arith.addf %42, %46 : vector<8x1850xf32>
    %c0_32 = arith.constant 0 : index
    %c0_33 = arith.constant 0 : index
    %48 = vector.load %arg3[%c0_32, %c0_33] : memref<8x1xf32, #tpu.memory_space<vmem>>, vector<8x1xf32>
    %49 = vector.broadcast %48 : vector<8x1xf32> to vector<8x1850xf32>
    %50 = arith.addf %47, %49 : vector<8x1850xf32>
    %cst_34 = arith.constant 0.000000e+00 : f32
    %51 = vector.broadcast %cst_34 : f32 to vector<8x1850xf32>
    %52 = arith.maximumf %50, %51 : vector<8x1850xf32>
    %53 = vector.extract_strided_slice %52 {offsets = [0, 0], sizes = [8, 1760], strides = [1, 1]} : vector<8x1850xf32> to vector<8x1760xf32>
    %c0_35 = arith.constant 0 : index
    %c0_36 = arith.constant 0 : index
    %c0_37 = arith.constant 0 : index
    %54 = vector.load %arg4[%c0_35, %c0_36, %c0_37] : memref<9x8x8xf32, #tpu.memory_space<vmem>>, vector<1x8x8xf32>
    %55 = vector.shape_cast %54 : vector<1x8x8xf32> to vector<8x8xf32>
    %cst_38 = arith.constant dense<0.000000e+00> : vector<8x1760xf32>
    %56 = tpu.matmul %55, %53, %cst_38 {dimension_numbers = #tpu.dot_dimension_numbers<[1], [0], [0], [1], [0, 0, 1, 1], [], []>} : vector<8x8xf32>, vector<8x1760xf32>, vector<8x1760xf32> -> vector<8x1760xf32>
    %57 = vector.extract_strided_slice %52 {offsets = [0, 1], sizes = [8, 1760], strides = [1, 1]} : vector<8x1850xf32> to vector<8x1760xf32>
    %c1_39 = arith.constant 1 : index
    %c0_40 = arith.constant 0 : index
    %c0_41 = arith.constant 0 : index
    %58 = vector.load %arg4[%c1_39, %c0_40, %c0_41] : memref<9x8x8xf32, #tpu.memory_space<vmem>>, vector<1x8x8xf32>
    %59 = vector.shape_cast %58 : vector<1x8x8xf32> to vector<8x8xf32>
    %cst_42 = arith.constant dense<0.000000e+00> : vector<8x1760xf32>
    %60 = tpu.matmul %59, %57, %cst_42 {dimension_numbers = #tpu.dot_dimension_numbers<[1], [0], [0], [1], [0, 0, 1, 1], [], []>} : vector<8x8xf32>, vector<8x1760xf32>, vector<8x1760xf32> -> vector<8x1760xf32>
    %61 = arith.addf %56, %60 : vector<8x1760xf32>
    %62 = vector.extract_strided_slice %52 {offsets = [0, 2], sizes = [8, 1760], strides = [1, 1]} : vector<8x1850xf32> to vector<8x1760xf32>
    %c2_43 = arith.constant 2 : index
    %c0_44 = arith.constant 0 : index
    %c0_45 = arith.constant 0 : index
    %63 = vector.load %arg4[%c2_43, %c0_44, %c0_45] : memref<9x8x8xf32, #tpu.memory_space<vmem>>, vector<1x8x8xf32>
    %64 = vector.shape_cast %63 : vector<1x8x8xf32> to vector<8x8xf32>
    %cst_46 = arith.constant dense<0.000000e+00> : vector<8x1760xf32>
    %65 = tpu.matmul %64, %62, %cst_46 {dimension_numbers = #tpu.dot_dimension_numbers<[1], [0], [0], [1], [0, 0, 1, 1], [], []>} : vector<8x8xf32>, vector<8x1760xf32>, vector<8x1760xf32> -> vector<8x1760xf32>
    %66 = arith.addf %61, %65 : vector<8x1760xf32>
    %67 = vector.extract_strided_slice %52 {offsets = [0, 44], sizes = [8, 1760], strides = [1, 1]} : vector<8x1850xf32> to vector<8x1760xf32>
    %c3_47 = arith.constant 3 : index
    %c0_48 = arith.constant 0 : index
    %c0_49 = arith.constant 0 : index
    %68 = vector.load %arg4[%c3_47, %c0_48, %c0_49] : memref<9x8x8xf32, #tpu.memory_space<vmem>>, vector<1x8x8xf32>
    %69 = vector.shape_cast %68 : vector<1x8x8xf32> to vector<8x8xf32>
    %cst_50 = arith.constant dense<0.000000e+00> : vector<8x1760xf32>
    %70 = tpu.matmul %69, %67, %cst_50 {dimension_numbers = #tpu.dot_dimension_numbers<[1], [0], [0], [1], [0, 0, 1, 1], [], []>} : vector<8x8xf32>, vector<8x1760xf32>, vector<8x1760xf32> -> vector<8x1760xf32>
    %71 = arith.addf %66, %70 : vector<8x1760xf32>
    %72 = vector.extract_strided_slice %52 {offsets = [0, 45], sizes = [8, 1760], strides = [1, 1]} : vector<8x1850xf32> to vector<8x1760xf32>
    %c4_51 = arith.constant 4 : index
    %c0_52 = arith.constant 0 : index
    %c0_53 = arith.constant 0 : index
    %73 = vector.load %arg4[%c4_51, %c0_52, %c0_53] : memref<9x8x8xf32, #tpu.memory_space<vmem>>, vector<1x8x8xf32>
    %74 = vector.shape_cast %73 : vector<1x8x8xf32> to vector<8x8xf32>
    %cst_54 = arith.constant dense<0.000000e+00> : vector<8x1760xf32>
    %75 = tpu.matmul %74, %72, %cst_54 {dimension_numbers = #tpu.dot_dimension_numbers<[1], [0], [0], [1], [0, 0, 1, 1], [], []>} : vector<8x8xf32>, vector<8x1760xf32>, vector<8x1760xf32> -> vector<8x1760xf32>
    %76 = arith.addf %71, %75 : vector<8x1760xf32>
    %77 = vector.extract_strided_slice %52 {offsets = [0, 46], sizes = [8, 1760], strides = [1, 1]} : vector<8x1850xf32> to vector<8x1760xf32>
    %c5_55 = arith.constant 5 : index
    %c0_56 = arith.constant 0 : index
    %c0_57 = arith.constant 0 : index
    %78 = vector.load %arg4[%c5_55, %c0_56, %c0_57] : memref<9x8x8xf32, #tpu.memory_space<vmem>>, vector<1x8x8xf32>
    %79 = vector.shape_cast %78 : vector<1x8x8xf32> to vector<8x8xf32>
    %cst_58 = arith.constant dense<0.000000e+00> : vector<8x1760xf32>
    %80 = tpu.matmul %79, %77, %cst_58 {dimension_numbers = #tpu.dot_dimension_numbers<[1], [0], [0], [1], [0, 0, 1, 1], [], []>} : vector<8x8xf32>, vector<8x1760xf32>, vector<8x1760xf32> -> vector<8x1760xf32>
    %81 = arith.addf %76, %80 : vector<8x1760xf32>
    %82 = vector.extract_strided_slice %52 {offsets = [0, 88], sizes = [8, 1760], strides = [1, 1]} : vector<8x1850xf32> to vector<8x1760xf32>
    %c6_59 = arith.constant 6 : index
    %c0_60 = arith.constant 0 : index
    %c0_61 = arith.constant 0 : index
    %83 = vector.load %arg4[%c6_59, %c0_60, %c0_61] : memref<9x8x8xf32, #tpu.memory_space<vmem>>, vector<1x8x8xf32>
    %84 = vector.shape_cast %83 : vector<1x8x8xf32> to vector<8x8xf32>
    %cst_62 = arith.constant dense<0.000000e+00> : vector<8x1760xf32>
    %85 = tpu.matmul %84, %82, %cst_62 {dimension_numbers = #tpu.dot_dimension_numbers<[1], [0], [0], [1], [0, 0, 1, 1], [], []>} : vector<8x8xf32>, vector<8x1760xf32>, vector<8x1760xf32> -> vector<8x1760xf32>
    %86 = arith.addf %81, %85 : vector<8x1760xf32>
    %87 = vector.extract_strided_slice %52 {offsets = [0, 89], sizes = [8, 1760], strides = [1, 1]} : vector<8x1850xf32> to vector<8x1760xf32>
    %c7_63 = arith.constant 7 : index
    %c0_64 = arith.constant 0 : index
    %c0_65 = arith.constant 0 : index
    %88 = vector.load %arg4[%c7_63, %c0_64, %c0_65] : memref<9x8x8xf32, #tpu.memory_space<vmem>>, vector<1x8x8xf32>
    %89 = vector.shape_cast %88 : vector<1x8x8xf32> to vector<8x8xf32>
    %cst_66 = arith.constant dense<0.000000e+00> : vector<8x1760xf32>
    %90 = tpu.matmul %89, %87, %cst_66 {dimension_numbers = #tpu.dot_dimension_numbers<[1], [0], [0], [1], [0, 0, 1, 1], [], []>} : vector<8x8xf32>, vector<8x1760xf32>, vector<8x1760xf32> -> vector<8x1760xf32>
    %91 = arith.addf %86, %90 : vector<8x1760xf32>
    %92 = vector.extract_strided_slice %52 {offsets = [0, 90], sizes = [8, 1760], strides = [1, 1]} : vector<8x1850xf32> to vector<8x1760xf32>
    %c8_67 = arith.constant 8 : index
    %c0_68 = arith.constant 0 : index
    %c0_69 = arith.constant 0 : index
    %93 = vector.load %arg4[%c8_67, %c0_68, %c0_69] : memref<9x8x8xf32, #tpu.memory_space<vmem>>, vector<1x8x8xf32>
    %94 = vector.shape_cast %93 : vector<1x8x8xf32> to vector<8x8xf32>
    %cst_70 = arith.constant dense<0.000000e+00> : vector<8x1760xf32>
    %95 = tpu.matmul %94, %92, %cst_70 {dimension_numbers = #tpu.dot_dimension_numbers<[1], [0], [0], [1], [0, 0, 1, 1], [], []>} : vector<8x8xf32>, vector<8x1760xf32>, vector<8x1760xf32> -> vector<8x1760xf32>
    %96 = arith.addf %91, %95 : vector<8x1760xf32>
    %c0_71 = arith.constant 0 : index
    %c0_72 = arith.constant 0 : index
    %97 = vector.load %arg5[%c0_71, %c0_72] : memref<8x1xf32, #tpu.memory_space<vmem>>, vector<8x1xf32>
    %98 = vector.broadcast %97 : vector<8x1xf32> to vector<8x1760xf32>
    %99 = arith.addf %96, %98 : vector<8x1760xf32>
    %cst_73 = arith.constant 0.000000e+00 : f32
    %100 = vector.broadcast %cst_73 : f32 to vector<8x1760xf32>
    %101 = arith.maximumf %99, %100 : vector<8x1760xf32>
    %102 = vector.extract_strided_slice %101 {offsets = [0, 0], sizes = [8, 1716], strides = [1, 1]} : vector<8x1760xf32> to vector<8x1716xf32>
    %103 = vector.extract_strided_slice %101 {offsets = [0, 44], sizes = [8, 1716], strides = [1, 1]} : vector<8x1760xf32> to vector<8x1716xf32>
    %104 = arith.maximumf %102, %103 : vector<8x1716xf32>
    %105 = vector.extract_strided_slice %104 {offsets = [0, 0], sizes = [8, 1715], strides = [1, 1]} : vector<8x1716xf32> to vector<8x1715xf32>
    %106 = vector.extract_strided_slice %104 {offsets = [0, 1], sizes = [8, 1715], strides = [1, 1]} : vector<8x1716xf32> to vector<8x1715xf32>
    %107 = arith.maximumf %105, %106 : vector<8x1715xf32>
    %108 = tpu.iota {dimensions = array<i32: 0>} : vector<39x20xi32>
    %109 = tpu.iota {dimensions = array<i32: 1>} : vector<39x20xi32>
    %c2_i32 = arith.constant 2 : i32
    %110 = vector.broadcast %c2_i32 : i32 to vector<39x20xi32>
    %111 = arith.muli %110, %109 : vector<39x20xi32>
    %112 = arith.cmpi eq, %108, %111 : vector<39x20xi32>
    %113 = arith.extui %112 : vector<39x20xi1> to vector<39x20xi32>
    %114 = arith.sitofp %113 : vector<39x20xi32> to vector<39x20xf32>
    %115 = vector.extract_strided_slice %107 {offsets = [0, 0], sizes = [8, 39], strides = [1, 1]} : vector<8x1715xf32> to vector<8x39xf32>
    %cst_74 = arith.constant dense<0.000000e+00> : vector<8x20xf32>
    %116 = tpu.matmul %115, %114, %cst_74 {dimension_numbers = #tpu.dot_dimension_numbers<[1], [0], [0], [1], [0, 0, 1, 1], [], []>} : vector<8x39xf32>, vector<39x20xf32>, vector<8x20xf32> -> vector<8x20xf32>
    %c0_75 = arith.constant 0 : index
    %c0_76 = arith.constant 0 : index
    %117 = vector.load %arg17[%c0_75, %c0_76] : memref<8x512xf32, #tpu.memory_space<vmem>>, vector<8x20xf32>
    tpu.vector_store %arg17[%c0_75, %c0_76], %116 {strides = array<i32>} : memref<8x512xf32, #tpu.memory_space<vmem>>, vector<8x20xf32>,
    %118 = vector.extract_strided_slice %107 {offsets = [0, 88], sizes = [8, 39], strides = [1, 1]} : vector<8x1715xf32> to vector<8x39xf32>
    %cst_77 = arith.constant dense<0.000000e+00> : vector<8x20xf32>
    %119 = tpu.matmul %118, %114, %cst_77 {dimension_numbers = #tpu.dot_dimension_numbers<[1], [0], [0], [1], [0, 0, 1, 1], [], []>} : vector<8x39xf32>, vector<39x20xf32>, vector<8x20xf32> -> vector<8x20xf32>
    %c0_78 = arith.constant 0 : index
    %c20 = arith.constant 20 : index
    %120 = vector.load %arg17[%c0_78, %c20] : memref<8x512xf32, #tpu.memory_space<vmem>>, vector<8x20xf32>
    tpu.vector_store %arg17[%c0_78, %c20], %119 {strides = array<i32>} : memref<8x512xf32, #tpu.memory_space<vmem>>, vector<8x20xf32>,
    %121 = vector.extract_strided_slice %107 {offsets = [0, 176], sizes = [8, 39], strides = [1, 1]} : vector<8x1715xf32> to vector<8x39xf32>
    %cst_79 = arith.constant dense<0.000000e+00> : vector<8x20xf32>
    %122 = tpu.matmul %121, %114, %cst_79 {dimension_numbers = #tpu.dot_dimension_numbers<[1], [0], [0], [1], [0, 0, 1, 1], [], []>} : vector<8x39xf32>, vector<39x20xf32>, vector<8x20xf32> -> vector<8x20xf32>
    %c0_80 = arith.constant 0 : index
    %c40 = arith.constant 40 : index
    %123 = vector.load %arg17[%c0_80, %c40] : memref<8x512xf32, #tpu.memory_space<vmem>>, vector<8x20xf32>
    tpu.vector_store %arg17[%c0_80, %c40], %122 {strides = array<i32>} : memref<8x512xf32, #tpu.memory_space<vmem>>, vector<8x20xf32>,
    %124 = vector.extract_strided_slice %107 {offsets = [0, 264], sizes = [8, 39], strides = [1, 1]} : vector<8x1715xf32> to vector<8x39xf32>
    %cst_81 = arith.constant dense<0.000000e+00> : vector<8x20xf32>
    %125 = tpu.matmul %124, %114, %cst_81 {dimension_numbers = #tpu.dot_dimension_numbers<[1], [0], [0], [1], [0, 0, 1, 1], [], []>} : vector<8x39xf32>, vector<39x20xf32>, vector<8x20xf32> -> vector<8x20xf32>
    %c0_82 = arith.constant 0 : index
    %c60 = arith.constant 60 : index
    %126 = vector.load %arg17[%c0_82, %c60] : memref<8x512xf32, #tpu.memory_space<vmem>>, vector<8x20xf32>
    tpu.vector_store %arg17[%c0_82, %c60], %125 {strides = array<i32>} : memref<8x512xf32, #tpu.memory_space<vmem>>, vector<8x20xf32>,
    %127 = vector.extract_strided_slice %107 {offsets = [0, 352], sizes = [8, 39], strides = [1, 1]} : vector<8x1715xf32> to vector<8x39xf32>
    %cst_83 = arith.constant dense<0.000000e+00> : vector<8x20xf32>
    %128 = tpu.matmul %127, %114, %cst_83 {dimension_numbers = #tpu.dot_dimension_numbers<[1], [0], [0], [1], [0, 0, 1, 1], [], []>} : vector<8x39xf32>, vector<39x20xf32>, vector<8x20xf32> -> vector<8x20xf32>
    %c0_84 = arith.constant 0 : index
    %c80 = arith.constant 80 : index
    %129 = vector.load %arg17[%c0_84, %c80] : memref<8x512xf32, #tpu.memory_space<vmem>>, vector<8x20xf32>
    tpu.vector_store %arg17[%c0_84, %c80], %128 {strides = array<i32>} : memref<8x512xf32, #tpu.memory_space<vmem>>, vector<8x20xf32>,
    %130 = vector.extract_strided_slice %107 {offsets = [0, 440], sizes = [8, 39], strides = [1, 1]} : vector<8x1715xf32> to vector<8x39xf32>
    %cst_85 = arith.constant dense<0.000000e+00> : vector<8x20xf32>
    %131 = tpu.matmul %130, %114, %cst_85 {dimension_numbers = #tpu.dot_dimension_numbers<[1], [0], [0], [1], [0, 0, 1, 1], [], []>} : vector<8x39xf32>, vector<39x20xf32>, vector<8x20xf32> -> vector<8x20xf32>
    %c0_86 = arith.constant 0 : index
    %c100 = arith.constant 100 : index
    %132 = vector.load %arg17[%c0_86, %c100] : memref<8x512xf32, #tpu.memory_space<vmem>>, vector<8x20xf32>
    tpu.vector_store %arg17[%c0_86, %c100], %131 {strides = array<i32>} : memref<8x512xf32, #tpu.memory_space<vmem>>, vector<8x20xf32>,
    %133 = vector.extract_strided_slice %107 {offsets = [0, 528], sizes = [8, 39], strides = [1, 1]} : vector<8x1715xf32> to vector<8x39xf32>
    %cst_87 = arith.constant dense<0.000000e+00> : vector<8x20xf32>
    %134 = tpu.matmul %133, %114, %cst_87 {dimension_numbers = #tpu.dot_dimension_numbers<[1], [0], [0], [1], [0, 0, 1, 1], [], []>} : vector<8x39xf32>, vector<39x20xf32>, vector<8x20xf32> -> vector<8x20xf32>
    %c0_88 = arith.constant 0 : index
    %c120 = arith.constant 120 : index
    %135 = vector.load %arg17[%c0_88, %c120] : memref<8x512xf32, #tpu.memory_space<vmem>>, vector<8x20xf32>
    tpu.vector_store %arg17[%c0_88, %c120], %134 {strides = array<i32>} : memref<8x512xf32, #tpu.memory_space<vmem>>, vector<8x20xf32>,
    %136 = vector.extract_strided_slice %107 {offsets = [0, 616], sizes = [8, 39], strides = [1, 1]} : vector<8x1715xf32> to vector<8x39xf32>
    %cst_89 = arith.constant dense<0.000000e+00> : vector<8x20xf32>
    %137 = tpu.matmul %136, %114, %cst_89 {dimension_numbers = #tpu.dot_dimension_numbers<[1], [0], [0], [1], [0, 0, 1, 1], [], []>} : vector<8x39xf32>, vector<39x20xf32>, vector<8x20xf32> -> vector<8x20xf32>
    %c0_90 = arith.constant 0 : index
    %c140 = arith.constant 140 : index
    %138 = vector.load %arg17[%c0_90, %c140] : memref<8x512xf32, #tpu.memory_space<vmem>>, vector<8x20xf32>
    tpu.vector_store %arg17[%c0_90, %c140], %137 {strides = array<i32>} : memref<8x512xf32, #tpu.memory_space<vmem>>, vector<8x20xf32>,
    %139 = vector.extract_strided_slice %107 {offsets = [0, 704], sizes = [8, 39], strides = [1, 1]} : vector<8x1715xf32> to vector<8x39xf32>
    %cst_91 = arith.constant dense<0.000000e+00> : vector<8x20xf32>
    %140 = tpu.matmul %139, %114, %cst_91 {dimension_numbers = #tpu.dot_dimension_numbers<[1], [0], [0], [1], [0, 0, 1, 1], [], []>} : vector<8x39xf32>, vector<39x20xf32>, vector<8x20xf32> -> vector<8x20xf32>
    %c0_92 = arith.constant 0 : index
    %c160 = arith.constant 160 : index
    %141 = vector.load %arg17[%c0_92, %c160] : memref<8x512xf32, #tpu.memory_space<vmem>>, vector<8x20xf32>
    tpu.vector_store %arg17[%c0_92, %c160], %140 {strides = array<i32>} : memref<8x512xf32, #tpu.memory_space<vmem>>, vector<8x20xf32>,
    %142 = vector.extract_strided_slice %107 {offsets = [0, 792], sizes = [8, 39], strides = [1, 1]} : vector<8x1715xf32> to vector<8x39xf32>
    %cst_93 = arith.constant dense<0.000000e+00> : vector<8x20xf32>
    %143 = tpu.matmul %142, %114, %cst_93 {dimension_numbers = #tpu.dot_dimension_numbers<[1], [0], [0], [1], [0, 0, 1, 1], [], []>} : vector<8x39xf32>, vector<39x20xf32>, vector<8x20xf32> -> vector<8x20xf32>
    %c0_94 = arith.constant 0 : index
    %c180 = arith.constant 180 : index
    %144 = vector.load %arg17[%c0_94, %c180] : memref<8x512xf32, #tpu.memory_space<vmem>>, vector<8x20xf32>
    tpu.vector_store %arg17[%c0_94, %c180], %143 {strides = array<i32>} : memref<8x512xf32, #tpu.memory_space<vmem>>, vector<8x20xf32>,
    %145 = vector.extract_strided_slice %107 {offsets = [0, 880], sizes = [8, 39], strides = [1, 1]} : vector<8x1715xf32> to vector<8x39xf32>
    %cst_95 = arith.constant dense<0.000000e+00> : vector<8x20xf32>
    %146 = tpu.matmul %145, %114, %cst_95 {dimension_numbers = #tpu.dot_dimension_numbers<[1], [0], [0], [1], [0, 0, 1, 1], [], []>} : vector<8x39xf32>, vector<39x20xf32>, vector<8x20xf32> -> vector<8x20xf32>
    %c0_96 = arith.constant 0 : index
    %c200 = arith.constant 200 : index
    %147 = vector.load %arg17[%c0_96, %c200] : memref<8x512xf32, #tpu.memory_space<vmem>>, vector<8x20xf32>
    tpu.vector_store %arg17[%c0_96, %c200], %146 {strides = array<i32>} : memref<8x512xf32, #tpu.memory_space<vmem>>, vector<8x20xf32>,
    %148 = vector.extract_strided_slice %107 {offsets = [0, 968], sizes = [8, 39], strides = [1, 1]} : vector<8x1715xf32> to vector<8x39xf32>
    %cst_97 = arith.constant dense<0.000000e+00> : vector<8x20xf32>
    %149 = tpu.matmul %148, %114, %cst_97 {dimension_numbers = #tpu.dot_dimension_numbers<[1], [0], [0], [1], [0, 0, 1, 1], [], []>} : vector<8x39xf32>, vector<39x20xf32>, vector<8x20xf32> -> vector<8x20xf32>
    %c0_98 = arith.constant 0 : index
    %c220 = arith.constant 220 : index
    %150 = vector.load %arg17[%c0_98, %c220] : memref<8x512xf32, #tpu.memory_space<vmem>>, vector<8x20xf32>
    tpu.vector_store %arg17[%c0_98, %c220], %149 {strides = array<i32>} : memref<8x512xf32, #tpu.memory_space<vmem>>, vector<8x20xf32>,
    %151 = vector.extract_strided_slice %107 {offsets = [0, 1056], sizes = [8, 39], strides = [1, 1]} : vector<8x1715xf32> to vector<8x39xf32>
    %cst_99 = arith.constant dense<0.000000e+00> : vector<8x20xf32>
    %152 = tpu.matmul %151, %114, %cst_99 {dimension_numbers = #tpu.dot_dimension_numbers<[1], [0], [0], [1], [0, 0, 1, 1], [], []>} : vector<8x39xf32>, vector<39x20xf32>, vector<8x20xf32> -> vector<8x20xf32>
    %c0_100 = arith.constant 0 : index
    %c240 = arith.constant 240 : index
    %153 = vector.load %arg17[%c0_100, %c240] : memref<8x512xf32, #tpu.memory_space<vmem>>, vector<8x20xf32>
    tpu.vector_store %arg17[%c0_100, %c240], %152 {strides = array<i32>} : memref<8x512xf32, #tpu.memory_space<vmem>>, vector<8x20xf32>,
    %154 = vector.extract_strided_slice %107 {offsets = [0, 1144], sizes = [8, 39], strides = [1, 1]} : vector<8x1715xf32> to vector<8x39xf32>
    %cst_101 = arith.constant dense<0.000000e+00> : vector<8x20xf32>
    %155 = tpu.matmul %154, %114, %cst_101 {dimension_numbers = #tpu.dot_dimension_numbers<[1], [0], [0], [1], [0, 0, 1, 1], [], []>} : vector<8x39xf32>, vector<39x20xf32>, vector<8x20xf32> -> vector<8x20xf32>
    %c0_102 = arith.constant 0 : index
    %c260 = arith.constant 260 : index
    %156 = vector.load %arg17[%c0_102, %c260] : memref<8x512xf32, #tpu.memory_space<vmem>>, vector<8x20xf32>
    tpu.vector_store %arg17[%c0_102, %c260], %155 {strides = array<i32>} : memref<8x512xf32, #tpu.memory_space<vmem>>, vector<8x20xf32>,
    %157 = vector.extract_strided_slice %107 {offsets = [0, 1232], sizes = [8, 39], strides = [1, 1]} : vector<8x1715xf32> to vector<8x39xf32>
    %cst_103 = arith.constant dense<0.000000e+00> : vector<8x20xf32>
    %158 = tpu.matmul %157, %114, %cst_103 {dimension_numbers = #tpu.dot_dimension_numbers<[1], [0], [0], [1], [0, 0, 1, 1], [], []>} : vector<8x39xf32>, vector<39x20xf32>, vector<8x20xf32> -> vector<8x20xf32>
    %c0_104 = arith.constant 0 : index
    %c280 = arith.constant 280 : index
    %159 = vector.load %arg17[%c0_104, %c280] : memref<8x512xf32, #tpu.memory_space<vmem>>, vector<8x20xf32>
    tpu.vector_store %arg17[%c0_104, %c280], %158 {strides = array<i32>} : memref<8x512xf32, #tpu.memory_space<vmem>>, vector<8x20xf32>,
    %160 = vector.extract_strided_slice %107 {offsets = [0, 1320], sizes = [8, 39], strides = [1, 1]} : vector<8x1715xf32> to vector<8x39xf32>
    %cst_105 = arith.constant dense<0.000000e+00> : vector<8x20xf32>
    %161 = tpu.matmul %160, %114, %cst_105 {dimension_numbers = #tpu.dot_dimension_numbers<[1], [0], [0], [1], [0, 0, 1, 1], [], []>} : vector<8x39xf32>, vector<39x20xf32>, vector<8x20xf32> -> vector<8x20xf32>
    %c0_106 = arith.constant 0 : index
    %c300 = arith.constant 300 : index
    %162 = vector.load %arg17[%c0_106, %c300] : memref<8x512xf32, #tpu.memory_space<vmem>>, vector<8x20xf32>
    tpu.vector_store %arg17[%c0_106, %c300], %161 {strides = array<i32>} : memref<8x512xf32, #tpu.memory_space<vmem>>, vector<8x20xf32>,
    %163 = vector.extract_strided_slice %107 {offsets = [0, 1408], sizes = [8, 39], strides = [1, 1]} : vector<8x1715xf32> to vector<8x39xf32>
    %cst_107 = arith.constant dense<0.000000e+00> : vector<8x20xf32>
    %164 = tpu.matmul %163, %114, %cst_107 {dimension_numbers = #tpu.dot_dimension_numbers<[1], [0], [0], [1], [0, 0, 1, 1], [], []>} : vector<8x39xf32>, vector<39x20xf32>, vector<8x20xf32> -> vector<8x20xf32>
    %c0_108 = arith.constant 0 : index
    %c320 = arith.constant 320 : index
    %165 = vector.load %arg17[%c0_108, %c320] : memref<8x512xf32, #tpu.memory_space<vmem>>, vector<8x20xf32>
    tpu.vector_store %arg17[%c0_108, %c320], %164 {strides = array<i32>} : memref<8x512xf32, #tpu.memory_space<vmem>>, vector<8x20xf32>,
    %166 = vector.extract_strided_slice %107 {offsets = [0, 1496], sizes = [8, 39], strides = [1, 1]} : vector<8x1715xf32> to vector<8x39xf32>
    %cst_109 = arith.constant dense<0.000000e+00> : vector<8x20xf32>
    %167 = tpu.matmul %166, %114, %cst_109 {dimension_numbers = #tpu.dot_dimension_numbers<[1], [0], [0], [1], [0, 0, 1, 1], [], []>} : vector<8x39xf32>, vector<39x20xf32>, vector<8x20xf32> -> vector<8x20xf32>
    %c0_110 = arith.constant 0 : index
    %c340 = arith.constant 340 : index
    %168 = vector.load %arg17[%c0_110, %c340] : memref<8x512xf32, #tpu.memory_space<vmem>>, vector<8x20xf32>
    tpu.vector_store %arg17[%c0_110, %c340], %167 {strides = array<i32>} : memref<8x512xf32, #tpu.memory_space<vmem>>, vector<8x20xf32>,
    %169 = vector.extract_strided_slice %107 {offsets = [0, 1584], sizes = [8, 39], strides = [1, 1]} : vector<8x1715xf32> to vector<8x39xf32>
    %cst_111 = arith.constant dense<0.000000e+00> : vector<8x20xf32>
    %170 = tpu.matmul %169, %114, %cst_111 {dimension_numbers = #tpu.dot_dimension_numbers<[1], [0], [0], [1], [0, 0, 1, 1], [], []>} : vector<8x39xf32>, vector<39x20xf32>, vector<8x20xf32> -> vector<8x20xf32>
    %c0_112 = arith.constant 0 : index
    %c360 = arith.constant 360 : index
    %171 = vector.load %arg17[%c0_112, %c360] : memref<8x512xf32, #tpu.memory_space<vmem>>, vector<8x20xf32>
    tpu.vector_store %arg17[%c0_112, %c360], %170 {strides = array<i32>} : memref<8x512xf32, #tpu.memory_space<vmem>>, vector<8x20xf32>,
    %172 = vector.extract_strided_slice %107 {offsets = [0, 1672], sizes = [8, 39], strides = [1, 1]} : vector<8x1715xf32> to vector<8x39xf32>
    %cst_113 = arith.constant dense<0.000000e+00> : vector<8x20xf32>
    %173 = tpu.matmul %172, %114, %cst_113 {dimension_numbers = #tpu.dot_dimension_numbers<[1], [0], [0], [1], [0, 0, 1, 1], [], []>} : vector<8x39xf32>, vector<39x20xf32>, vector<8x20xf32> -> vector<8x20xf32>
    %c0_114 = arith.constant 0 : index
    %c380 = arith.constant 380 : index
    %174 = vector.load %arg17[%c0_114, %c380] : memref<8x512xf32, #tpu.memory_space<vmem>>, vector<8x20xf32>
    tpu.vector_store %arg17[%c0_114, %c380], %173 {strides = array<i32>} : memref<8x512xf32, #tpu.memory_space<vmem>>, vector<8x20xf32>,
    %c0_115 = arith.constant 0 : index
    %c0_116 = arith.constant 0 : index
    %175 = vector.load %arg17[%c0_115, %c0_116] : memref<8x512xf32, #tpu.memory_space<vmem>>, vector<8x512xf32>
    %176 = vector.extract_strided_slice %175 {offsets = [0, 0], sizes = [8, 362], strides = [1, 1]} : vector<8x512xf32> to vector<8x362xf32>
    %c0_117 = arith.constant 0 : index
    %c0_118 = arith.constant 0 : index
    %c0_119 = arith.constant 0 : index
    %177 = vector.load %arg6[%c0_117, %c0_118, %c0_119] : memref<9x8x8xf32, #tpu.memory_space<vmem>>, vector<1x8x8xf32>
    %178 = vector.shape_cast %177 : vector<1x8x8xf32> to vector<8x8xf32>
    %cst_120 = arith.constant dense<0.000000e+00> : vector<8x362xf32>
    %179 = tpu.matmul %178, %176, %cst_120 {dimension_numbers = #tpu.dot_dimension_numbers<[1], [0], [0], [1], [0, 0, 1, 1], [], []>} : vector<8x8xf32>, vector<8x362xf32>, vector<8x362xf32> -> vector<8x362xf32>
    %180 = vector.extract_strided_slice %175 {offsets = [0, 1], sizes = [8, 362], strides = [1, 1]} : vector<8x512xf32> to vector<8x362xf32>
    %c1_121 = arith.constant 1 : index
    %c0_122 = arith.constant 0 : index
    %c0_123 = arith.constant 0 : index
    %181 = vector.load %arg6[%c1_121, %c0_122, %c0_123] : memref<9x8x8xf32, #tpu.memory_space<vmem>>, vector<1x8x8xf32>
    %182 = vector.shape_cast %181 : vector<1x8x8xf32> to vector<8x8xf32>
    %cst_124 = arith.constant dense<0.000000e+00> : vector<8x362xf32>
    %183 = tpu.matmul %182, %180, %cst_124 {dimension_numbers = #tpu.dot_dimension_numbers<[1], [0], [0], [1], [0, 0, 1, 1], [], []>} : vector<8x8xf32>, vector<8x362xf32>, vector<8x362xf32> -> vector<8x362xf32>
    %184 = arith.addf %179, %183 : vector<8x362xf32>
    %185 = vector.extract_strided_slice %175 {offsets = [0, 2], sizes = [8, 362], strides = [1, 1]} : vector<8x512xf32> to vector<8x362xf32>
    %c2_125 = arith.constant 2 : index
    %c0_126 = arith.constant 0 : index
    %c0_127 = arith.constant 0 : index
    %186 = vector.load %arg6[%c2_125, %c0_126, %c0_127] : memref<9x8x8xf32, #tpu.memory_space<vmem>>, vector<1x8x8xf32>
    %187 = vector.shape_cast %186 : vector<1x8x8xf32> to vector<8x8xf32>
    %cst_128 = arith.constant dense<0.000000e+00> : vector<8x362xf32>
    %188 = tpu.matmul %187, %185, %cst_128 {dimension_numbers = #tpu.dot_dimension_numbers<[1], [0], [0], [1], [0, 0, 1, 1], [], []>} : vector<8x8xf32>, vector<8x362xf32>, vector<8x362xf32> -> vector<8x362xf32>
    %189 = arith.addf %184, %188 : vector<8x362xf32>
    %190 = vector.extract_strided_slice %175 {offsets = [0, 20], sizes = [8, 362], strides = [1, 1]} : vector<8x512xf32> to vector<8x362xf32>
    %c3_129 = arith.constant 3 : index
    %c0_130 = arith.constant 0 : index
    %c0_131 = arith.constant 0 : index
    %191 = vector.load %arg6[%c3_129, %c0_130, %c0_131] : memref<9x8x8xf32, #tpu.memory_space<vmem>>, vector<1x8x8xf32>
    %192 = vector.shape_cast %191 : vector<1x8x8xf32> to vector<8x8xf32>
    %cst_132 = arith.constant dense<0.000000e+00> : vector<8x362xf32>
    %193 = tpu.matmul %192, %190, %cst_132 {dimension_numbers = #tpu.dot_dimension_numbers<[1], [0], [0], [1], [0, 0, 1, 1], [], []>} : vector<8x8xf32>, vector<8x362xf32>, vector<8x362xf32> -> vector<8x362xf32>
    %194 = arith.addf %189, %193 : vector<8x362xf32>
    %195 = vector.extract_strided_slice %175 {offsets = [0, 21], sizes = [8, 362], strides = [1, 1]} : vector<8x512xf32> to vector<8x362xf32>
    %c4_133 = arith.constant 4 : index
    %c0_134 = arith.constant 0 : index
    %c0_135 = arith.constant 0 : index
    %196 = vector.load %arg6[%c4_133, %c0_134, %c0_135] : memref<9x8x8xf32, #tpu.memory_space<vmem>>, vector<1x8x8xf32>
    %197 = vector.shape_cast %196 : vector<1x8x8xf32> to vector<8x8xf32>
    %cst_136 = arith.constant dense<0.000000e+00> : vector<8x362xf32>
    %198 = tpu.matmul %197, %195, %cst_136 {dimension_numbers = #tpu.dot_dimension_numbers<[1], [0], [0], [1], [0, 0, 1, 1], [], []>} : vector<8x8xf32>, vector<8x362xf32>, vector<8x362xf32> -> vector<8x362xf32>
    %199 = arith.addf %194, %198 : vector<8x362xf32>
    %200 = vector.extract_strided_slice %175 {offsets = [0, 22], sizes = [8, 362], strides = [1, 1]} : vector<8x512xf32> to vector<8x362xf32>
    %c5_137 = arith.constant 5 : index
    %c0_138 = arith.constant 0 : index
    %c0_139 = arith.constant 0 : index
    %201 = vector.load %arg6[%c5_137, %c0_138, %c0_139] : memref<9x8x8xf32, #tpu.memory_space<vmem>>, vector<1x8x8xf32>
    %202 = vector.shape_cast %201 : vector<1x8x8xf32> to vector<8x8xf32>
    %cst_140 = arith.constant dense<0.000000e+00> : vector<8x362xf32>
    %203 = tpu.matmul %202, %200, %cst_140 {dimension_numbers = #tpu.dot_dimension_numbers<[1], [0], [0], [1], [0, 0, 1, 1], [], []>} : vector<8x8xf32>, vector<8x362xf32>, vector<8x362xf32> -> vector<8x362xf32>
    %204 = arith.addf %199, %203 : vector<8x362xf32>
    %205 = vector.extract_strided_slice %175 {offsets = [0, 40], sizes = [8, 362], strides = [1, 1]} : vector<8x512xf32> to vector<8x362xf32>
    %c6_141 = arith.constant 6 : index
    %c0_142 = arith.constant 0 : index
    %c0_143 = arith.constant 0 : index
    %206 = vector.load %arg6[%c6_141, %c0_142, %c0_143] : memref<9x8x8xf32, #tpu.memory_space<vmem>>, vector<1x8x8xf32>
    %207 = vector.shape_cast %206 : vector<1x8x8xf32> to vector<8x8xf32>
    %cst_144 = arith.constant dense<0.000000e+00> : vector<8x362xf32>
    %208 = tpu.matmul %207, %205, %cst_144 {dimension_numbers = #tpu.dot_dimension_numbers<[1], [0], [0], [1], [0, 0, 1, 1], [], []>} : vector<8x8xf32>, vector<8x362xf32>, vector<8x362xf32> -> vector<8x362xf32>
    %209 = arith.addf %204, %208 : vector<8x362xf32>
    %210 = vector.extract_strided_slice %175 {offsets = [0, 41], sizes = [8, 362], strides = [1, 1]} : vector<8x512xf32> to vector<8x362xf32>
    %c7_145 = arith.constant 7 : index
    %c0_146 = arith.constant 0 : index
    %c0_147 = arith.constant 0 : index
    %211 = vector.load %arg6[%c7_145, %c0_146, %c0_147] : memref<9x8x8xf32, #tpu.memory_space<vmem>>, vector<1x8x8xf32>
    %212 = vector.shape_cast %211 : vector<1x8x8xf32> to vector<8x8xf32>
    %cst_148 = arith.constant dense<0.000000e+00> : vector<8x362xf32>
    %213 = tpu.matmul %212, %210, %cst_148 {dimension_numbers = #tpu.dot_dimension_numbers<[1], [0], [0], [1], [0, 0, 1, 1], [], []>} : vector<8x8xf32>, vector<8x362xf32>, vector<8x362xf32> -> vector<8x362xf32>
    %214 = arith.addf %209, %213 : vector<8x362xf32>
    %215 = vector.extract_strided_slice %175 {offsets = [0, 42], sizes = [8, 362], strides = [1, 1]} : vector<8x512xf32> to vector<8x362xf32>
    %c8_149 = arith.constant 8 : index
    %c0_150 = arith.constant 0 : index
    %c0_151 = arith.constant 0 : index
    %216 = vector.load %arg6[%c8_149, %c0_150, %c0_151] : memref<9x8x8xf32, #tpu.memory_space<vmem>>, vector<1x8x8xf32>
    %217 = vector.shape_cast %216 : vector<1x8x8xf32> to vector<8x8xf32>
    %cst_152 = arith.constant dense<0.000000e+00> : vector<8x362xf32>
    %218 = tpu.matmul %217, %215, %cst_152 {dimension_numbers = #tpu.dot_dimension_numbers<[1], [0], [0], [1], [0, 0, 1, 1], [], []>} : vector<8x8xf32>, vector<8x362xf32>, vector<8x362xf32> -> vector<8x362xf32>
    %219 = arith.addf %214, %218 : vector<8x362xf32>
    %c0_153 = arith.constant 0 : index
    %c0_154 = arith.constant 0 : index
    %220 = vector.load %arg7[%c0_153, %c0_154] : memref<8x1xf32, #tpu.memory_space<vmem>>, vector<8x1xf32>
    %221 = vector.broadcast %220 : vector<8x1xf32> to vector<8x362xf32>
    %222 = arith.addf %219, %221 : vector<8x362xf32>
    %cst_155 = arith.constant 0.000000e+00 : f32
    %223 = vector.broadcast %cst_155 : f32 to vector<8x362xf32>
    %224 = arith.maximumf %222, %223 : vector<8x362xf32>
    %225 = vector.extract_strided_slice %224 {offsets = [0, 0], sizes = [8, 320], strides = [1, 1]} : vector<8x362xf32> to vector<8x320xf32>
    %c0_156 = arith.constant 0 : index
    %c0_157 = arith.constant 0 : index
    %c0_158 = arith.constant 0 : index
    %226 = vector.load %arg8[%c0_156, %c0_157, %c0_158] : memref<9x8x8xf32, #tpu.memory_space<vmem>>, vector<1x8x8xf32>
    %227 = vector.shape_cast %226 : vector<1x8x8xf32> to vector<8x8xf32>
    %cst_159 = arith.constant dense<0.000000e+00> : vector<8x320xf32>
    %228 = tpu.matmul %227, %225, %cst_159 {dimension_numbers = #tpu.dot_dimension_numbers<[1], [0], [0], [1], [0, 0, 1, 1], [], []>} : vector<8x8xf32>, vector<8x320xf32>, vector<8x320xf32> -> vector<8x320xf32>
    %229 = vector.extract_strided_slice %224 {offsets = [0, 1], sizes = [8, 320], strides = [1, 1]} : vector<8x362xf32> to vector<8x320xf32>
    %c1_160 = arith.constant 1 : index
    %c0_161 = arith.constant 0 : index
    %c0_162 = arith.constant 0 : index
    %230 = vector.load %arg8[%c1_160, %c0_161, %c0_162] : memref<9x8x8xf32, #tpu.memory_space<vmem>>, vector<1x8x8xf32>
    %231 = vector.shape_cast %230 : vector<1x8x8xf32> to vector<8x8xf32>
    %cst_163 = arith.constant dense<0.000000e+00> : vector<8x320xf32>
    %232 = tpu.matmul %231, %229, %cst_163 {dimension_numbers = #tpu.dot_dimension_numbers<[1], [0], [0], [1], [0, 0, 1, 1], [], []>} : vector<8x8xf32>, vector<8x320xf32>, vector<8x320xf32> -> vector<8x320xf32>
    %233 = arith.addf %228, %232 : vector<8x320xf32>
    %234 = vector.extract_strided_slice %224 {offsets = [0, 2], sizes = [8, 320], strides = [1, 1]} : vector<8x362xf32> to vector<8x320xf32>
    %c2_164 = arith.constant 2 : index
    %c0_165 = arith.constant 0 : index
    %c0_166 = arith.constant 0 : index
    %235 = vector.load %arg8[%c2_164, %c0_165, %c0_166] : memref<9x8x8xf32, #tpu.memory_space<vmem>>, vector<1x8x8xf32>
    %236 = vector.shape_cast %235 : vector<1x8x8xf32> to vector<8x8xf32>
    %cst_167 = arith.constant dense<0.000000e+00> : vector<8x320xf32>
    %237 = tpu.matmul %236, %234, %cst_167 {dimension_numbers = #tpu.dot_dimension_numbers<[1], [0], [0], [1], [0, 0, 1, 1], [], []>} : vector<8x8xf32>, vector<8x320xf32>, vector<8x320xf32> -> vector<8x320xf32>
    %238 = arith.addf %233, %237 : vector<8x320xf32>
    %239 = vector.extract_strided_slice %224 {offsets = [0, 20], sizes = [8, 320], strides = [1, 1]} : vector<8x362xf32> to vector<8x320xf32>
    %c3_168 = arith.constant 3 : index
    %c0_169 = arith.constant 0 : index
    %c0_170 = arith.constant 0 : index
    %240 = vector.load %arg8[%c3_168, %c0_169, %c0_170] : memref<9x8x8xf32, #tpu.memory_space<vmem>>, vector<1x8x8xf32>
    %241 = vector.shape_cast %240 : vector<1x8x8xf32> to vector<8x8xf32>
    %cst_171 = arith.constant dense<0.000000e+00> : vector<8x320xf32>
    %242 = tpu.matmul %241, %239, %cst_171 {dimension_numbers = #tpu.dot_dimension_numbers<[1], [0], [0], [1], [0, 0, 1, 1], [], []>} : vector<8x8xf32>, vector<8x320xf32>, vector<8x320xf32> -> vector<8x320xf32>
    %243 = arith.addf %238, %242 : vector<8x320xf32>
    %244 = vector.extract_strided_slice %224 {offsets = [0, 21], sizes = [8, 320], strides = [1, 1]} : vector<8x362xf32> to vector<8x320xf32>
    %c4_172 = arith.constant 4 : index
    %c0_173 = arith.constant 0 : index
    %c0_174 = arith.constant 0 : index
    %245 = vector.load %arg8[%c4_172, %c0_173, %c0_174] : memref<9x8x8xf32, #tpu.memory_space<vmem>>, vector<1x8x8xf32>
    %246 = vector.shape_cast %245 : vector<1x8x8xf32> to vector<8x8xf32>
    %cst_175 = arith.constant dense<0.000000e+00> : vector<8x320xf32>
    %247 = tpu.matmul %246, %244, %cst_175 {dimension_numbers = #tpu.dot_dimension_numbers<[1], [0], [0], [1], [0, 0, 1, 1], [], []>} : vector<8x8xf32>, vector<8x320xf32>, vector<8x320xf32> -> vector<8x320xf32>
    %248 = arith.addf %243, %247 : vector<8x320xf32>
    %249 = vector.extract_strided_slice %224 {offsets = [0, 22], sizes = [8, 320], strides = [1, 1]} : vector<8x362xf32> to vector<8x320xf32>
    %c5_176 = arith.constant 5 : index
    %c0_177 = arith.constant 0 : index
    %c0_178 = arith.constant 0 : index
    %250 = vector.load %arg8[%c5_176, %c0_177, %c0_178] : memref<9x8x8xf32, #tpu.memory_space<vmem>>, vector<1x8x8xf32>
    %251 = vector.shape_cast %250 : vector<1x8x8xf32> to vector<8x8xf32>
    %cst_179 = arith.constant dense<0.000000e+00> : vector<8x320xf32>
    %252 = tpu.matmul %251, %249, %cst_179 {dimension_numbers = #tpu.dot_dimension_numbers<[1], [0], [0], [1], [0, 0, 1, 1], [], []>} : vector<8x8xf32>, vector<8x320xf32>, vector<8x320xf32> -> vector<8x320xf32>
    %253 = arith.addf %248, %252 : vector<8x320xf32>
    %254 = vector.extract_strided_slice %224 {offsets = [0, 40], sizes = [8, 320], strides = [1, 1]} : vector<8x362xf32> to vector<8x320xf32>
    %c6_180 = arith.constant 6 : index
    %c0_181 = arith.constant 0 : index
    %c0_182 = arith.constant 0 : index
    %255 = vector.load %arg8[%c6_180, %c0_181, %c0_182] : memref<9x8x8xf32, #tpu.memory_space<vmem>>, vector<1x8x8xf32>
    %256 = vector.shape_cast %255 : vector<1x8x8xf32> to vector<8x8xf32>
    %cst_183 = arith.constant dense<0.000000e+00> : vector<8x320xf32>
    %257 = tpu.matmul %256, %254, %cst_183 {dimension_numbers = #tpu.dot_dimension_numbers<[1], [0], [0], [1], [0, 0, 1, 1], [], []>} : vector<8x8xf32>, vector<8x320xf32>, vector<8x320xf32> -> vector<8x320xf32>
    %258 = arith.addf %253, %257 : vector<8x320xf32>
    %259 = vector.extract_strided_slice %224 {offsets = [0, 41], sizes = [8, 320], strides = [1, 1]} : vector<8x362xf32> to vector<8x320xf32>
    %c7_184 = arith.constant 7 : index
    %c0_185 = arith.constant 0 : index
    %c0_186 = arith.constant 0 : index
    %260 = vector.load %arg8[%c7_184, %c0_185, %c0_186] : memref<9x8x8xf32, #tpu.memory_space<vmem>>, vector<1x8x8xf32>
    %261 = vector.shape_cast %260 : vector<1x8x8xf32> to vector<8x8xf32>
    %cst_187 = arith.constant dense<0.000000e+00> : vector<8x320xf32>
    %262 = tpu.matmul %261, %259, %cst_187 {dimension_numbers = #tpu.dot_dimension_numbers<[1], [0], [0], [1], [0, 0, 1, 1], [], []>} : vector<8x8xf32>, vector<8x320xf32>, vector<8x320xf32> -> vector<8x320xf32>
    %263 = arith.addf %258, %262 : vector<8x320xf32>
    %264 = vector.extract_strided_slice %224 {offsets = [0, 42], sizes = [8, 320], strides = [1, 1]} : vector<8x362xf32> to vector<8x320xf32>
    %c8_188 = arith.constant 8 : index
    %c0_189 = arith.constant 0 : index
    %c0_190 = arith.constant 0 : index
    %265 = vector.load %arg8[%c8_188, %c0_189, %c0_190] : memref<9x8x8xf32, #tpu.memory_space<vmem>>, vector<1x8x8xf32>
    %266 = vector.shape_cast %265 : vector<1x8x8xf32> to vector<8x8xf32>
    %cst_191 = arith.constant dense<0.000000e+00> : vector<8x320xf32>
    %267 = tpu.matmul %266, %264, %cst_191 {dimension_numbers = #tpu.dot_dimension_numbers<[1], [0], [0], [1], [0, 0, 1, 1], [], []>} : vector<8x8xf32>, vector<8x320xf32>, vector<8x320xf32> -> vector<8x320xf32>
    %268 = arith.addf %263, %267 : vector<8x320xf32>
    %c0_192 = arith.constant 0 : index
    %c0_193 = arith.constant 0 : index
    %269 = vector.load %arg9[%c0_192, %c0_193] : memref<8x1xf32, #tpu.memory_space<vmem>>, vector<8x1xf32>
    %270 = vector.broadcast %269 : vector<8x1xf32> to vector<8x320xf32>
    %271 = arith.addf %268, %270 : vector<8x320xf32>
    %cst_194 = arith.constant 0.000000e+00 : f32
    %272 = vector.broadcast %cst_194 : f32 to vector<8x320xf32>
    %273 = arith.maximumf %271, %272 : vector<8x320xf32>
    %274 = vector.extract_strided_slice %273 {offsets = [0, 0], sizes = [8, 300], strides = [1, 1]} : vector<8x320xf32> to vector<8x300xf32>
    %275 = vector.extract_strided_slice %273 {offsets = [0, 20], sizes = [8, 300], strides = [1, 1]} : vector<8x320xf32> to vector<8x300xf32>
    %276 = arith.maximumf %274, %275 : vector<8x300xf32>
    %277 = vector.extract_strided_slice %276 {offsets = [0, 0], sizes = [8, 299], strides = [1, 1]} : vector<8x300xf32> to vector<8x299xf32>
    %278 = vector.extract_strided_slice %276 {offsets = [0, 1], sizes = [8, 299], strides = [1, 1]} : vector<8x300xf32> to vector<8x299xf32>
    %279 = arith.maximumf %277, %278 : vector<8x299xf32>
    %280 = tpu.iota {dimensions = array<i32: 0>} : vector<15x8xi32>
    %281 = tpu.iota {dimensions = array<i32: 1>} : vector<15x8xi32>
    %c2_i32_195 = arith.constant 2 : i32
    %282 = vector.broadcast %c2_i32_195 : i32 to vector<15x8xi32>
    %283 = arith.muli %282, %281 : vector<15x8xi32>
    %284 = arith.cmpi eq, %280, %283 : vector<15x8xi32>
    %285 = arith.extui %284 : vector<15x8xi1> to vector<15x8xi32>
    %286 = arith.sitofp %285 : vector<15x8xi32> to vector<15x8xf32>
    %287 = vector.extract_strided_slice %279 {offsets = [0, 0], sizes = [8, 15], strides = [1, 1]} : vector<8x299xf32> to vector<8x15xf32>
    %cst_196 = arith.constant dense<0.000000e+00> : vector<8x8xf32>
    %288 = tpu.matmul %287, %286, %cst_196 {dimension_numbers = #tpu.dot_dimension_numbers<[1], [0], [0], [1], [0, 0, 1, 1], [], []>} : vector<8x15xf32>, vector<15x8xf32>, vector<8x8xf32> -> vector<8x8xf32>
    %c0_197 = arith.constant 0 : index
    %c0_198 = arith.constant 0 : index
    %289 = vector.load %arg17[%c0_197, %c0_198] : memref<8x512xf32, #tpu.memory_space<vmem>>, vector<8x8xf32>
    tpu.vector_store %arg17[%c0_197, %c0_198], %288 {strides = array<i32>} : memref<8x512xf32, #tpu.memory_space<vmem>>, vector<8x8xf32>,
    %290 = vector.extract_strided_slice %279 {offsets = [0, 40], sizes = [8, 15], strides = [1, 1]} : vector<8x299xf32> to vector<8x15xf32>
    %cst_199 = arith.constant dense<0.000000e+00> : vector<8x8xf32>
    %291 = tpu.matmul %290, %286, %cst_199 {dimension_numbers = #tpu.dot_dimension_numbers<[1], [0], [0], [1], [0, 0, 1, 1], [], []>} : vector<8x15xf32>, vector<15x8xf32>, vector<8x8xf32> -> vector<8x8xf32>
    %c0_200 = arith.constant 0 : index
    %c8_201 = arith.constant 8 : index
    %292 = vector.load %arg17[%c0_200, %c8_201] : memref<8x512xf32, #tpu.memory_space<vmem>>, vector<8x8xf32>
    tpu.vector_store %arg17[%c0_200, %c8_201], %291 {strides = array<i32>} : memref<8x512xf32, #tpu.memory_space<vmem>>, vector<8x8xf32>,
    %293 = vector.extract_strided_slice %279 {offsets = [0, 80], sizes = [8, 15], strides = [1, 1]} : vector<8x299xf32> to vector<8x15xf32>
    %cst_202 = arith.constant dense<0.000000e+00> : vector<8x8xf32>
    %294 = tpu.matmul %293, %286, %cst_202 {dimension_numbers = #tpu.dot_dimension_numbers<[1], [0], [0], [1], [0, 0, 1, 1], [], []>} : vector<8x15xf32>, vector<15x8xf32>, vector<8x8xf32> -> vector<8x8xf32>
    %c0_203 = arith.constant 0 : index
    %c16 = arith.constant 16 : index
    %295 = vector.load %arg17[%c0_203, %c16] : memref<8x512xf32, #tpu.memory_space<vmem>>, vector<8x8xf32>
    tpu.vector_store %arg17[%c0_203, %c16], %294 {strides = array<i32>} : memref<8x512xf32, #tpu.memory_space<vmem>>, vector<8x8xf32>,
    %296 = vector.extract_strided_slice %279 {offsets = [0, 120], sizes = [8, 15], strides = [1, 1]} : vector<8x299xf32> to vector<8x15xf32>
    %cst_204 = arith.constant dense<0.000000e+00> : vector<8x8xf32>
    %297 = tpu.matmul %296, %286, %cst_204 {dimension_numbers = #tpu.dot_dimension_numbers<[1], [0], [0], [1], [0, 0, 1, 1], [], []>} : vector<8x15xf32>, vector<15x8xf32>, vector<8x8xf32> -> vector<8x8xf32>
    %c0_205 = arith.constant 0 : index
    %c24 = arith.constant 24 : index
    %298 = vector.load %arg17[%c0_205, %c24] : memref<8x512xf32, #tpu.memory_space<vmem>>, vector<8x8xf32>
    tpu.vector_store %arg17[%c0_205, %c24], %297 {strides = array<i32>} : memref<8x512xf32, #tpu.memory_space<vmem>>, vector<8x8xf32>,
    %299 = vector.extract_strided_slice %279 {offsets = [0, 160], sizes = [8, 15], strides = [1, 1]} : vector<8x299xf32> to vector<8x15xf32>
    %cst_206 = arith.constant dense<0.000000e+00> : vector<8x8xf32>
    %300 = tpu.matmul %299, %286, %cst_206 {dimension_numbers = #tpu.dot_dimension_numbers<[1], [0], [0], [1], [0, 0, 1, 1], [], []>} : vector<8x15xf32>, vector<15x8xf32>, vector<8x8xf32> -> vector<8x8xf32>
    %c0_207 = arith.constant 0 : index
    %c32 = arith.constant 32 : index
    %301 = vector.load %arg17[%c0_207, %c32] : memref<8x512xf32, #tpu.memory_space<vmem>>, vector<8x8xf32>
    tpu.vector_store %arg17[%c0_207, %c32], %300 {strides = array<i32>} : memref<8x512xf32, #tpu.memory_space<vmem>>, vector<8x8xf32>,
    %302 = vector.extract_strided_slice %279 {offsets = [0, 200], sizes = [8, 15], strides = [1, 1]} : vector<8x299xf32> to vector<8x15xf32>
    %cst_208 = arith.constant dense<0.000000e+00> : vector<8x8xf32>
    %303 = tpu.matmul %302, %286, %cst_208 {dimension_numbers = #tpu.dot_dimension_numbers<[1], [0], [0], [1], [0, 0, 1, 1], [], []>} : vector<8x15xf32>, vector<15x8xf32>, vector<8x8xf32> -> vector<8x8xf32>
    %c0_209 = arith.constant 0 : index
    %c40_210 = arith.constant 40 : index
    %304 = vector.load %arg17[%c0_209, %c40_210] : memref<8x512xf32, #tpu.memory_space<vmem>>, vector<8x8xf32>
    tpu.vector_store %arg17[%c0_209, %c40_210], %303 {strides = array<i32>} : memref<8x512xf32, #tpu.memory_space<vmem>>, vector<8x8xf32>,
    %305 = vector.extract_strided_slice %279 {offsets = [0, 240], sizes = [8, 15], strides = [1, 1]} : vector<8x299xf32> to vector<8x15xf32>
    %cst_211 = arith.constant dense<0.000000e+00> : vector<8x8xf32>
    %306 = tpu.matmul %305, %286, %cst_211 {dimension_numbers = #tpu.dot_dimension_numbers<[1], [0], [0], [1], [0, 0, 1, 1], [], []>} : vector<8x15xf32>, vector<15x8xf32>, vector<8x8xf32> -> vector<8x8xf32>
    %c0_212 = arith.constant 0 : index
    %c48 = arith.constant 48 : index
    %307 = vector.load %arg17[%c0_212, %c48] : memref<8x512xf32, #tpu.memory_space<vmem>>, vector<8x8xf32>
    tpu.vector_store %arg17[%c0_212, %c48], %306 {strides = array<i32>} : memref<8x512xf32, #tpu.memory_space<vmem>>, vector<8x8xf32>,
    %308 = vector.extract_strided_slice %279 {offsets = [0, 280], sizes = [8, 15], strides = [1, 1]} : vector<8x299xf32> to vector<8x15xf32>
    %cst_213 = arith.constant dense<0.000000e+00> : vector<8x8xf32>
    %309 = tpu.matmul %308, %286, %cst_213 {dimension_numbers = #tpu.dot_dimension_numbers<[1], [0], [0], [1], [0, 0, 1, 1], [], []>} : vector<8x15xf32>, vector<15x8xf32>, vector<8x8xf32> -> vector<8x8xf32>
    %c0_214 = arith.constant 0 : index
    %c56 = arith.constant 56 : index
    %310 = vector.load %arg17[%c0_214, %c56] : memref<8x512xf32, #tpu.memory_space<vmem>>, vector<8x8xf32>
    tpu.vector_store %arg17[%c0_214, %c56], %309 {strides = array<i32>} : memref<8x512xf32, #tpu.memory_space<vmem>>, vector<8x8xf32>,
    %c0_215 = arith.constant 0 : index
    %c0_216 = arith.constant 0 : index
    %311 = vector.load %arg17[%c0_215, %c0_216] : memref<8x512xf32, #tpu.memory_space<vmem>>, vector<8x512xf32>
    %312 = vector.extract_strided_slice %311 {offsets = [0, 0], sizes = [8, 50], strides = [1, 1]} : vector<8x512xf32> to vector<8x50xf32>
    %c0_217 = arith.constant 0 : index
    %c0_218 = arith.constant 0 : index
    %c0_219 = arith.constant 0 : index
    %313 = vector.load %arg10[%c0_217, %c0_218, %c0_219] : memref<9x8x8xf32, #tpu.memory_space<vmem>>, vector<1x8x8xf32>
    %314 = vector.shape_cast %313 : vector<1x8x8xf32> to vector<8x8xf32>
    %cst_220 = arith.constant dense<0.000000e+00> : vector<8x50xf32>
    %315 = tpu.matmul %314, %312, %cst_220 {dimension_numbers = #tpu.dot_dimension_numbers<[1], [0], [0], [1], [0, 0, 1, 1], [], []>} : vector<8x8xf32>, vector<8x50xf32>, vector<8x50xf32> -> vector<8x50xf32>
    %316 = vector.extract_strided_slice %311 {offsets = [0, 1], sizes = [8, 50], strides = [1, 1]} : vector<8x512xf32> to vector<8x50xf32>
    %c1_221 = arith.constant 1 : index
    %c0_222 = arith.constant 0 : index
    %c0_223 = arith.constant 0 : index
    %317 = vector.load %arg10[%c1_221, %c0_222, %c0_223] : memref<9x8x8xf32, #tpu.memory_space<vmem>>, vector<1x8x8xf32>
    %318 = vector.shape_cast %317 : vector<1x8x8xf32> to vector<8x8xf32>
    %cst_224 = arith.constant dense<0.000000e+00> : vector<8x50xf32>
    %319 = tpu.matmul %318, %316, %cst_224 {dimension_numbers = #tpu.dot_dimension_numbers<[1], [0], [0], [1], [0, 0, 1, 1], [], []>} : vector<8x8xf32>, vector<8x50xf32>, vector<8x50xf32> -> vector<8x50xf32>
    %320 = arith.addf %315, %319 : vector<8x50xf32>
    %321 = vector.extract_strided_slice %311 {offsets = [0, 2], sizes = [8, 50], strides = [1, 1]} : vector<8x512xf32> to vector<8x50xf32>
    %c2_225 = arith.constant 2 : index
    %c0_226 = arith.constant 0 : index
    %c0_227 = arith.constant 0 : index
    %322 = vector.load %arg10[%c2_225, %c0_226, %c0_227] : memref<9x8x8xf32, #tpu.memory_space<vmem>>, vector<1x8x8xf32>
    %323 = vector.shape_cast %322 : vector<1x8x8xf32> to vector<8x8xf32>
    %cst_228 = arith.constant dense<0.000000e+00> : vector<8x50xf32>
    %324 = tpu.matmul %323, %321, %cst_228 {dimension_numbers = #tpu.dot_dimension_numbers<[1], [0], [0], [1], [0, 0, 1, 1], [], []>} : vector<8x8xf32>, vector<8x50xf32>, vector<8x50xf32> -> vector<8x50xf32>
    %325 = arith.addf %320, %324 : vector<8x50xf32>
    %326 = vector.extract_strided_slice %311 {offsets = [0, 8], sizes = [8, 50], strides = [1, 1]} : vector<8x512xf32> to vector<8x50xf32>
    %c3_229 = arith.constant 3 : index
    %c0_230 = arith.constant 0 : index
    %c0_231 = arith.constant 0 : index
    %327 = vector.load %arg10[%c3_229, %c0_230, %c0_231] : memref<9x8x8xf32, #tpu.memory_space<vmem>>, vector<1x8x8xf32>
    %328 = vector.shape_cast %327 : vector<1x8x8xf32> to vector<8x8xf32>
    %cst_232 = arith.constant dense<0.000000e+00> : vector<8x50xf32>
    %329 = tpu.matmul %328, %326, %cst_232 {dimension_numbers = #tpu.dot_dimension_numbers<[1], [0], [0], [1], [0, 0, 1, 1], [], []>} : vector<8x8xf32>, vector<8x50xf32>, vector<8x50xf32> -> vector<8x50xf32>
    %330 = arith.addf %325, %329 : vector<8x50xf32>
    %331 = vector.extract_strided_slice %311 {offsets = [0, 9], sizes = [8, 50], strides = [1, 1]} : vector<8x512xf32> to vector<8x50xf32>
    %c4_233 = arith.constant 4 : index
    %c0_234 = arith.constant 0 : index
    %c0_235 = arith.constant 0 : index
    %332 = vector.load %arg10[%c4_233, %c0_234, %c0_235] : memref<9x8x8xf32, #tpu.memory_space<vmem>>, vector<1x8x8xf32>
    %333 = vector.shape_cast %332 : vector<1x8x8xf32> to vector<8x8xf32>
    %cst_236 = arith.constant dense<0.000000e+00> : vector<8x50xf32>
    %334 = tpu.matmul %333, %331, %cst_236 {dimension_numbers = #tpu.dot_dimension_numbers<[1], [0], [0], [1], [0, 0, 1, 1], [], []>} : vector<8x8xf32>, vector<8x50xf32>, vector<8x50xf32> -> vector<8x50xf32>
    %335 = arith.addf %330, %334 : vector<8x50xf32>
    %336 = vector.extract_strided_slice %311 {offsets = [0, 10], sizes = [8, 50], strides = [1, 1]} : vector<8x512xf32> to vector<8x50xf32>
    %c5_237 = arith.constant 5 : index
    %c0_238 = arith.constant 0 : index
    %c0_239 = arith.constant 0 : index
    %337 = vector.load %arg10[%c5_237, %c0_238, %c0_239] : memref<9x8x8xf32, #tpu.memory_space<vmem>>, vector<1x8x8xf32>
    %338 = vector.shape_cast %337 : vector<1x8x8xf32> to vector<8x8xf32>
    %cst_240 = arith.constant dense<0.000000e+00> : vector<8x50xf32>
    %339 = tpu.matmul %338, %336, %cst_240 {dimension_numbers = #tpu.dot_dimension_numbers<[1], [0], [0], [1], [0, 0, 1, 1], [], []>} : vector<8x8xf32>, vector<8x50xf32>, vector<8x50xf32> -> vector<8x50xf32>
    %340 = arith.addf %335, %339 : vector<8x50xf32>
    %341 = vector.extract_strided_slice %311 {offsets = [0, 16], sizes = [8, 50], strides = [1, 1]} : vector<8x512xf32> to vector<8x50xf32>
    %c6_241 = arith.constant 6 : index
    %c0_242 = arith.constant 0 : index
    %c0_243 = arith.constant 0 : index
    %342 = vector.load %arg10[%c6_241, %c0_242, %c0_243] : memref<9x8x8xf32, #tpu.memory_space<vmem>>, vector<1x8x8xf32>
    %343 = vector.shape_cast %342 : vector<1x8x8xf32> to vector<8x8xf32>
    %cst_244 = arith.constant dense<0.000000e+00> : vector<8x50xf32>
    %344 = tpu.matmul %343, %341, %cst_244 {dimension_numbers = #tpu.dot_dimension_numbers<[1], [0], [0], [1], [0, 0, 1, 1], [], []>} : vector<8x8xf32>, vector<8x50xf32>, vector<8x50xf32> -> vector<8x50xf32>
    %345 = arith.addf %340, %344 : vector<8x50xf32>
    %346 = vector.extract_strided_slice %311 {offsets = [0, 17], sizes = [8, 50], strides = [1, 1]} : vector<8x512xf32> to vector<8x50xf32>
    %c7_245 = arith.constant 7 : index
    %c0_246 = arith.constant 0 : index
    %c0_247 = arith.constant 0 : index
    %347 = vector.load %arg10[%c7_245, %c0_246, %c0_247] : memref<9x8x8xf32, #tpu.memory_space<vmem>>, vector<1x8x8xf32>
    %348 = vector.shape_cast %347 : vector<1x8x8xf32> to vector<8x8xf32>
    %cst_248 = arith.constant dense<0.000000e+00> : vector<8x50xf32>
    %349 = tpu.matmul %348, %346, %cst_248 {dimension_numbers = #tpu.dot_dimension_numbers<[1], [0], [0], [1], [0, 0, 1, 1], [], []>} : vector<8x8xf32>, vector<8x50xf32>, vector<8x50xf32> -> vector<8x50xf32>
    %350 = arith.addf %345, %349 : vector<8x50xf32>
    %351 = vector.extract_strided_slice %311 {offsets = [0, 18], sizes = [8, 50], strides = [1, 1]} : vector<8x512xf32> to vector<8x50xf32>
    %c8_249 = arith.constant 8 : index
    %c0_250 = arith.constant 0 : index
    %c0_251 = arith.constant 0 : index
    %352 = vector.load %arg10[%c8_249, %c0_250, %c0_251] : memref<9x8x8xf32, #tpu.memory_space<vmem>>, vector<1x8x8xf32>
    %353 = vector.shape_cast %352 : vector<1x8x8xf32> to vector<8x8xf32>
    %cst_252 = arith.constant dense<0.000000e+00> : vector<8x50xf32>
    %354 = tpu.matmul %353, %351, %cst_252 {dimension_numbers = #tpu.dot_dimension_numbers<[1], [0], [0], [1], [0, 0, 1, 1], [], []>} : vector<8x8xf32>, vector<8x50xf32>, vector<8x50xf32> -> vector<8x50xf32>
    %355 = arith.addf %350, %354 : vector<8x50xf32>
    %c0_253 = arith.constant 0 : index
    %c0_254 = arith.constant 0 : index
    %356 = vector.load %arg11[%c0_253, %c0_254] : memref<8x1xf32, #tpu.memory_space<vmem>>, vector<8x1xf32>
    %357 = vector.broadcast %356 : vector<8x1xf32> to vector<8x50xf32>
    %358 = arith.addf %355, %357 : vector<8x50xf32>
    %cst_255 = arith.constant 0.000000e+00 : f32
    %359 = vector.broadcast %cst_255 : f32 to vector<8x50xf32>
    %360 = arith.maximumf %358, %359 : vector<8x50xf32>
    %361 = vector.extract_strided_slice %360 {offsets = [0, 0], sizes = [8, 32], strides = [1, 1]} : vector<8x50xf32> to vector<8x32xf32>
    %c0_256 = arith.constant 0 : index
    %c0_257 = arith.constant 0 : index
    %c0_258 = arith.constant 0 : index
    %362 = vector.load %arg12[%c0_256, %c0_257, %c0_258] : memref<9x8x8xf32, #tpu.memory_space<vmem>>, vector<1x8x8xf32>
    %363 = vector.shape_cast %362 : vector<1x8x8xf32> to vector<8x8xf32>
    %cst_259 = arith.constant dense<0.000000e+00> : vector<8x32xf32>
    %364 = tpu.matmul %363, %361, %cst_259 {dimension_numbers = #tpu.dot_dimension_numbers<[1], [0], [0], [1], [0, 0, 1, 1], [], []>} : vector<8x8xf32>, vector<8x32xf32>, vector<8x32xf32> -> vector<8x32xf32>
    %365 = vector.extract_strided_slice %360 {offsets = [0, 1], sizes = [8, 32], strides = [1, 1]} : vector<8x50xf32> to vector<8x32xf32>
    %c1_260 = arith.constant 1 : index
    %c0_261 = arith.constant 0 : index
    %c0_262 = arith.constant 0 : index
    %366 = vector.load %arg12[%c1_260, %c0_261, %c0_262] : memref<9x8x8xf32, #tpu.memory_space<vmem>>, vector<1x8x8xf32>
    %367 = vector.shape_cast %366 : vector<1x8x8xf32> to vector<8x8xf32>
    %cst_263 = arith.constant dense<0.000000e+00> : vector<8x32xf32>
    %368 = tpu.matmul %367, %365, %cst_263 {dimension_numbers = #tpu.dot_dimension_numbers<[1], [0], [0], [1], [0, 0, 1, 1], [], []>} : vector<8x8xf32>, vector<8x32xf32>, vector<8x32xf32> -> vector<8x32xf32>
    %369 = arith.addf %364, %368 : vector<8x32xf32>
    %370 = vector.extract_strided_slice %360 {offsets = [0, 2], sizes = [8, 32], strides = [1, 1]} : vector<8x50xf32> to vector<8x32xf32>
    %c2_264 = arith.constant 2 : index
    %c0_265 = arith.constant 0 : index
    %c0_266 = arith.constant 0 : index
    %371 = vector.load %arg12[%c2_264, %c0_265, %c0_266] : memref<9x8x8xf32, #tpu.memory_space<vmem>>, vector<1x8x8xf32>
    %372 = vector.shape_cast %371 : vector<1x8x8xf32> to vector<8x8xf32>
    %cst_267 = arith.constant dense<0.000000e+00> : vector<8x32xf32>
    %373 = tpu.matmul %372, %370, %cst_267 {dimension_numbers = #tpu.dot_dimension_numbers<[1], [0], [0], [1], [0, 0, 1, 1], [], []>} : vector<8x8xf32>, vector<8x32xf32>, vector<8x32xf32> -> vector<8x32xf32>
    %374 = arith.addf %369, %373 : vector<8x32xf32>
    %375 = vector.extract_strided_slice %360 {offsets = [0, 8], sizes = [8, 32], strides = [1, 1]} : vector<8x50xf32> to vector<8x32xf32>
    %c3_268 = arith.constant 3 : index
    %c0_269 = arith.constant 0 : index
    %c0_270 = arith.constant 0 : index
    %376 = vector.load %arg12[%c3_268, %c0_269, %c0_270] : memref<9x8x8xf32, #tpu.memory_space<vmem>>, vector<1x8x8xf32>
    %377 = vector.shape_cast %376 : vector<1x8x8xf32> to vector<8x8xf32>
    %cst_271 = arith.constant dense<0.000000e+00> : vector<8x32xf32>
    %378 = tpu.matmul %377, %375, %cst_271 {dimension_numbers = #tpu.dot_dimension_numbers<[1], [0], [0], [1], [0, 0, 1, 1], [], []>} : vector<8x8xf32>, vector<8x32xf32>, vector<8x32xf32> -> vector<8x32xf32>
    %379 = arith.addf %374, %378 : vector<8x32xf32>
    %380 = vector.extract_strided_slice %360 {offsets = [0, 9], sizes = [8, 32], strides = [1, 1]} : vector<8x50xf32> to vector<8x32xf32>
    %c4_272 = arith.constant 4 : index
    %c0_273 = arith.constant 0 : index
    %c0_274 = arith.constant 0 : index
    %381 = vector.load %arg12[%c4_272, %c0_273, %c0_274] : memref<9x8x8xf32, #tpu.memory_space<vmem>>, vector<1x8x8xf32>
    %382 = vector.shape_cast %381 : vector<1x8x8xf32> to vector<8x8xf32>
    %cst_275 = arith.constant dense<0.000000e+00> : vector<8x32xf32>
    %383 = tpu.matmul %382, %380, %cst_275 {dimension_numbers = #tpu.dot_dimension_numbers<[1], [0], [0], [1], [0, 0, 1, 1], [], []>} : vector<8x8xf32>, vector<8x32xf32>, vector<8x32xf32> -> vector<8x32xf32>
    %384 = arith.addf %379, %383 : vector<8x32xf32>
    %385 = vector.extract_strided_slice %360 {offsets = [0, 10], sizes = [8, 32], strides = [1, 1]} : vector<8x50xf32> to vector<8x32xf32>
    %c5_276 = arith.constant 5 : index
    %c0_277 = arith.constant 0 : index
    %c0_278 = arith.constant 0 : index
    %386 = vector.load %arg12[%c5_276, %c0_277, %c0_278] : memref<9x8x8xf32, #tpu.memory_space<vmem>>, vector<1x8x8xf32>
    %387 = vector.shape_cast %386 : vector<1x8x8xf32> to vector<8x8xf32>
    %cst_279 = arith.constant dense<0.000000e+00> : vector<8x32xf32>
    %388 = tpu.matmul %387, %385, %cst_279 {dimension_numbers = #tpu.dot_dimension_numbers<[1], [0], [0], [1], [0, 0, 1, 1], [], []>} : vector<8x8xf32>, vector<8x32xf32>, vector<8x32xf32> -> vector<8x32xf32>
    %389 = arith.addf %384, %388 : vector<8x32xf32>
    %390 = vector.extract_strided_slice %360 {offsets = [0, 16], sizes = [8, 32], strides = [1, 1]} : vector<8x50xf32> to vector<8x32xf32>
    %c6_280 = arith.constant 6 : index
    %c0_281 = arith.constant 0 : index
    %c0_282 = arith.constant 0 : index
    %391 = vector.load %arg12[%c6_280, %c0_281, %c0_282] : memref<9x8x8xf32, #tpu.memory_space<vmem>>, vector<1x8x8xf32>
    %392 = vector.shape_cast %391 : vector<1x8x8xf32> to vector<8x8xf32>
    %cst_283 = arith.constant dense<0.000000e+00> : vector<8x32xf32>
    %393 = tpu.matmul %392, %390, %cst_283 {dimension_numbers = #tpu.dot_dimension_numbers<[1], [0], [0], [1], [0, 0, 1, 1], [], []>} : vector<8x8xf32>, vector<8x32xf32>, vector<8x32xf32> -> vector<8x32xf32>
    %394 = arith.addf %389, %393 : vector<8x32xf32>
    %395 = vector.extract_strided_slice %360 {offsets = [0, 17], sizes = [8, 32], strides = [1, 1]} : vector<8x50xf32> to vector<8x32xf32>
    %c7_284 = arith.constant 7 : index
    %c0_285 = arith.constant 0 : index
    %c0_286 = arith.constant 0 : index
    %396 = vector.load %arg12[%c7_284, %c0_285, %c0_286] : memref<9x8x8xf32, #tpu.memory_space<vmem>>, vector<1x8x8xf32>
    %397 = vector.shape_cast %396 : vector<1x8x8xf32> to vector<8x8xf32>
    %cst_287 = arith.constant dense<0.000000e+00> : vector<8x32xf32>
    %398 = tpu.matmul %397, %395, %cst_287 {dimension_numbers = #tpu.dot_dimension_numbers<[1], [0], [0], [1], [0, 0, 1, 1], [], []>} : vector<8x8xf32>, vector<8x32xf32>, vector<8x32xf32> -> vector<8x32xf32>
    %399 = arith.addf %394, %398 : vector<8x32xf32>
    %400 = vector.extract_strided_slice %360 {offsets = [0, 18], sizes = [8, 32], strides = [1, 1]} : vector<8x50xf32> to vector<8x32xf32>
    %c8_288 = arith.constant 8 : index
    %c0_289 = arith.constant 0 : index
    %c0_290 = arith.constant 0 : index
    %401 = vector.load %arg12[%c8_288, %c0_289, %c0_290] : memref<9x8x8xf32, #tpu.memory_space<vmem>>, vector<1x8x8xf32>
    %402 = vector.shape_cast %401 : vector<1x8x8xf32> to vector<8x8xf32>
    %cst_291 = arith.constant dense<0.000000e+00> : vector<8x32xf32>
    %403 = tpu.matmul %402, %400, %cst_291 {dimension_numbers = #tpu.dot_dimension_numbers<[1], [0], [0], [1], [0, 0, 1, 1], [], []>} : vector<8x8xf32>, vector<8x32xf32>, vector<8x32xf32> -> vector<8x32xf32>
    %404 = arith.addf %399, %403 : vector<8x32xf32>
    %c0_292 = arith.constant 0 : index
    %c0_293 = arith.constant 0 : index
    %405 = vector.load %arg13[%c0_292, %c0_293] : memref<8x1xf32, #tpu.memory_space<vmem>>, vector<8x1xf32>
    %406 = vector.broadcast %405 : vector<8x1xf32> to vector<8x32xf32>
    %407 = arith.addf %404, %406 : vector<8x32xf32>
    %cst_294 = arith.constant 0.000000e+00 : f32
    %408 = vector.broadcast %cst_294 : f32 to vector<8x32xf32>
    %409 = arith.maximumf %407, %408 : vector<8x32xf32>
    %410 = vector.extract_strided_slice %409 {offsets = [0, 0], sizes = [8, 24], strides = [1, 1]} : vector<8x32xf32> to vector<8x24xf32>
    %411 = vector.extract_strided_slice %409 {offsets = [0, 8], sizes = [8, 24], strides = [1, 1]} : vector<8x32xf32> to vector<8x24xf32>
    %412 = arith.maximumf %410, %411 : vector<8x24xf32>
    %413 = vector.extract_strided_slice %412 {offsets = [0, 0], sizes = [8, 23], strides = [1, 1]} : vector<8x24xf32> to vector<8x23xf32>
    %414 = vector.extract_strided_slice %412 {offsets = [0, 1], sizes = [8, 23], strides = [1, 1]} : vector<8x24xf32> to vector<8x23xf32>
    %415 = arith.maximumf %413, %414 : vector<8x23xf32>
    %416 = tpu.iota {dimensions = array<i32: 0>} : vector<3x2xi32>
    %417 = tpu.iota {dimensions = array<i32: 1>} : vector<3x2xi32>
    %c2_i32_295 = arith.constant 2 : i32
    %418 = vector.broadcast %c2_i32_295 : i32 to vector<3x2xi32>
    %419 = arith.muli %418, %417 : vector<3x2xi32>
    %420 = arith.cmpi eq, %416, %419 : vector<3x2xi32>
    %421 = arith.extui %420 : vector<3x2xi1> to vector<3x2xi32>
    %422 = arith.sitofp %421 : vector<3x2xi32> to vector<3x2xf32>
    %423 = vector.extract_strided_slice %415 {offsets = [0, 0], sizes = [8, 3], strides = [1, 1]} : vector<8x23xf32> to vector<8x3xf32>
    %cst_296 = arith.constant dense<0.000000e+00> : vector<8x2xf32>
    %424 = tpu.matmul %423, %422, %cst_296 {dimension_numbers = #tpu.dot_dimension_numbers<[1], [0], [0], [1], [0, 0, 1, 1], [], []>} : vector<8x3xf32>, vector<3x2xf32>, vector<8x2xf32> -> vector<8x2xf32>
    %c0_297 = arith.constant 0 : index
    %c0_298 = arith.constant 0 : index
    %425 = vector.load %arg17[%c0_297, %c0_298] : memref<8x512xf32, #tpu.memory_space<vmem>>, vector<8x2xf32>
    tpu.vector_store %arg17[%c0_297, %c0_298], %424 {strides = array<i32>} : memref<8x512xf32, #tpu.memory_space<vmem>>, vector<8x2xf32>,
    %426 = vector.extract_strided_slice %415 {offsets = [0, 16], sizes = [8, 3], strides = [1, 1]} : vector<8x23xf32> to vector<8x3xf32>
    %cst_299 = arith.constant dense<0.000000e+00> : vector<8x2xf32>
    %427 = tpu.matmul %426, %422, %cst_299 {dimension_numbers = #tpu.dot_dimension_numbers<[1], [0], [0], [1], [0, 0, 1, 1], [], []>} : vector<8x3xf32>, vector<3x2xf32>, vector<8x2xf32> -> vector<8x2xf32>
    %c0_300 = arith.constant 0 : index
    %c2_301 = arith.constant 2 : index
    %428 = vector.load %arg17[%c0_300, %c2_301] : memref<8x512xf32, #tpu.memory_space<vmem>>, vector<8x2xf32>
    tpu.vector_store %arg17[%c0_300, %c2_301], %427 {strides = array<i32>} : memref<8x512xf32, #tpu.memory_space<vmem>>, vector<8x2xf32>,
    %c0_302 = arith.constant 0 : index
    %c0_303 = arith.constant 0 : index
    %429 = vector.load %arg17[%c0_302, %c0_303] : memref<8x512xf32, #tpu.memory_space<vmem>>, vector<8x512xf32>
    %430 = vector.extract_strided_slice %429 {offsets = [0, 0], sizes = [8, 4], strides = [1, 1]} : vector<8x512xf32> to vector<8x4xf32>
    %c0_304 = arith.constant 0 : index
    %c0_305 = arith.constant 0 : index
    %431 = vector.load %arg15[%c0_304, %c0_305] : memref<10x1xf32, #tpu.memory_space<vmem>>, vector<10x1xf32>
    %c0_306 = arith.constant 0 : index
    %c0_307 = arith.constant 0 : index
    %c0_308 = arith.constant 0 : index
    %432 = vector.load %arg14[%c0_306, %c0_307, %c0_308] : memref<4x10x8xf32, #tpu.memory_space<vmem>>, vector<1x10x8xf32>
    %433 = vector.shape_cast %432 : vector<1x10x8xf32> to vector<10x8xf32>
    %434 = vector.extract_strided_slice %430 {offsets = [0, 0], sizes = [8, 1], strides = [1, 1]} : vector<8x4xf32> to vector<8x1xf32>
    %cst_309 = arith.constant dense<0.000000e+00> : vector<10x1xf32>
    %435 = tpu.matmul %433, %434, %cst_309 {dimension_numbers = #tpu.dot_dimension_numbers<[1], [0], [0], [1], [0, 0, 1, 1], [], []>} : vector<10x8xf32>, vector<8x1xf32>, vector<10x1xf32> -> vector<10x1xf32>
    %436 = arith.addf %431, %435 : vector<10x1xf32>
    %c1_310 = arith.constant 1 : index
    %c0_311 = arith.constant 0 : index
    %c0_312 = arith.constant 0 : index
    %437 = vector.load %arg14[%c1_310, %c0_311, %c0_312] : memref<4x10x8xf32, #tpu.memory_space<vmem>>, vector<1x10x8xf32>
    %438 = vector.shape_cast %437 : vector<1x10x8xf32> to vector<10x8xf32>
    %439 = vector.extract_strided_slice %430 {offsets = [0, 1], sizes = [8, 1], strides = [1, 1]} : vector<8x4xf32> to vector<8x1xf32>
    %cst_313 = arith.constant dense<0.000000e+00> : vector<10x1xf32>
    %440 = tpu.matmul %438, %439, %cst_313 {dimension_numbers = #tpu.dot_dimension_numbers<[1], [0], [0], [1], [0, 0, 1, 1], [], []>} : vector<10x8xf32>, vector<8x1xf32>, vector<10x1xf32> -> vector<10x1xf32>
    %441 = arith.addf %436, %440 : vector<10x1xf32>
    %c2_314 = arith.constant 2 : index
    %c0_315 = arith.constant 0 : index
    %c0_316 = arith.constant 0 : index
    %442 = vector.load %arg14[%c2_314, %c0_315, %c0_316] : memref<4x10x8xf32, #tpu.memory_space<vmem>>, vector<1x10x8xf32>
    %443 = vector.shape_cast %442 : vector<1x10x8xf32> to vector<10x8xf32>
    %444 = vector.extract_strided_slice %430 {offsets = [0, 2], sizes = [8, 1], strides = [1, 1]} : vector<8x4xf32> to vector<8x1xf32>
    %cst_317 = arith.constant dense<0.000000e+00> : vector<10x1xf32>
    %445 = tpu.matmul %443, %444, %cst_317 {dimension_numbers = #tpu.dot_dimension_numbers<[1], [0], [0], [1], [0, 0, 1, 1], [], []>} : vector<10x8xf32>, vector<8x1xf32>, vector<10x1xf32> -> vector<10x1xf32>
    %446 = arith.addf %441, %445 : vector<10x1xf32>
    %c3_318 = arith.constant 3 : index
    %c0_319 = arith.constant 0 : index
    %c0_320 = arith.constant 0 : index
    %447 = vector.load %arg14[%c3_318, %c0_319, %c0_320] : memref<4x10x8xf32, #tpu.memory_space<vmem>>, vector<1x10x8xf32>
    %448 = vector.shape_cast %447 : vector<1x10x8xf32> to vector<10x8xf32>
    %449 = vector.extract_strided_slice %430 {offsets = [0, 3], sizes = [8, 1], strides = [1, 1]} : vector<8x4xf32> to vector<8x1xf32>
    %cst_321 = arith.constant dense<0.000000e+00> : vector<10x1xf32>
    %450 = tpu.matmul %448, %449, %cst_321 {dimension_numbers = #tpu.dot_dimension_numbers<[1], [0], [0], [1], [0, 0, 1, 1], [], []>} : vector<10x8xf32>, vector<8x1xf32>, vector<10x1xf32> -> vector<10x1xf32>
    %451 = arith.addf %446, %450 : vector<10x1xf32>
    %c0_322 = arith.constant 0 : index
    %c0_323 = arith.constant 0 : index
    %c0_324 = arith.constant 0 : index
    %452 = vector.load %arg16[%c0_322, %c0_323, %c0_324] : memref<1x10x1xf32, #tpu.memory_space<vmem>>, vector<1x10x1xf32>
    %453 = vector.shape_cast %452 : vector<1x10x1xf32> to vector<10x1xf32>
    %454 = vector.shape_cast %451 : vector<10x1xf32> to vector<1x10x1xf32>
    tpu.vector_store %arg16[%c0_322, %c0_323, %c0_324], %454 {strides = array<i32>} : memref<1x10x1xf32, #tpu.memory_space<vmem>>, vector<1x10x1xf32>,
    return
  }
  func.func @transform_0(%arg0: i32) -> (i32, i32, i32) {
    %c0_i32 = arith.constant 0 : i32
    %c0_i32_0 = arith.constant 0 : i32
    %c0_i32_1 = arith.constant 0 : i32
    return %arg0, %c0_i32, %c0_i32_0 : i32, i32, i32
  }
  func.func @transform_1(%arg0: i32) -> (i32, i32, i32) {
    %c0_i32 = arith.constant 0 : i32
    %c0_i32_0 = arith.constant 0 : i32
    %c0_i32_1 = arith.constant 0 : i32
    %c0_i32_2 = arith.constant 0 : i32
    return %c0_i32, %c0_i32_0, %c0_i32_1 : i32, i32, i32
  }
  func.func @transform_2(%arg0: i32) -> (i32, i32) {
    %c0_i32 = arith.constant 0 : i32
    %c0_i32_0 = arith.constant 0 : i32
    %c0_i32_1 = arith.constant 0 : i32
    return %c0_i32, %c0_i32_0 : i32, i32
  }
  func.func @transform_3(%arg0: i32) -> (i32, i32, i32) {
    %c0_i32 = arith.constant 0 : i32
    %c0_i32_0 = arith.constant 0 : i32
    %c0_i32_1 = arith.constant 0 : i32
    %c0_i32_2 = arith.constant 0 : i32
    return %c0_i32, %c0_i32_0, %c0_i32_1 : i32, i32, i32
  }
  func.func @transform_4(%arg0: i32) -> (i32, i32) {
    %c0_i32 = arith.constant 0 : i32
    %c0_i32_0 = arith.constant 0 : i32
    %c0_i32_1 = arith.constant 0 : i32
    return %c0_i32, %c0_i32_0 : i32, i32
  }
  func.func @transform_5(%arg0: i32) -> (i32, i32, i32) {
    %c0_i32 = arith.constant 0 : i32
    %c0_i32_0 = arith.constant 0 : i32
    %c0_i32_1 = arith.constant 0 : i32
    %c0_i32_2 = arith.constant 0 : i32
    return %c0_i32, %c0_i32_0, %c0_i32_1 : i32, i32, i32
  }
  func.func @transform_6(%arg0: i32) -> (i32, i32) {
    %c0_i32 = arith.constant 0 : i32
    %c0_i32_0 = arith.constant 0 : i32
    %c0_i32_1 = arith.constant 0 : i32
    return %c0_i32, %c0_i32_0 : i32, i32
  }
  func.func @transform_7(%arg0: i32) -> (i32, i32, i32) {
    %c0_i32 = arith.constant 0 : i32
    %c0_i32_0 = arith.constant 0 : i32
    %c0_i32_1 = arith.constant 0 : i32
    %c0_i32_2 = arith.constant 0 : i32
    return %c0_i32, %c0_i32_0, %c0_i32_1 : i32, i32, i32
  }
  func.func @transform_8(%arg0: i32) -> (i32, i32) {
    %c0_i32 = arith.constant 0 : i32
    %c0_i32_0 = arith.constant 0 : i32
    %c0_i32_1 = arith.constant 0 : i32
    return %c0_i32, %c0_i32_0 : i32, i32
  }
  func.func @transform_9(%arg0: i32) -> (i32, i32, i32) {
    %c0_i32 = arith.constant 0 : i32
    %c0_i32_0 = arith.constant 0 : i32
    %c0_i32_1 = arith.constant 0 : i32
    %c0_i32_2 = arith.constant 0 : i32
    return %c0_i32, %c0_i32_0, %c0_i32_1 : i32, i32, i32
  }
  func.func @transform_10(%arg0: i32) -> (i32, i32) {
    %c0_i32 = arith.constant 0 : i32
    %c0_i32_0 = arith.constant 0 : i32
    %c0_i32_1 = arith.constant 0 : i32
    return %c0_i32, %c0_i32_0 : i32, i32
  }
  func.func @transform_11(%arg0: i32) -> (i32, i32, i32) {
    %c0_i32 = arith.constant 0 : i32
    %c0_i32_0 = arith.constant 0 : i32
    %c0_i32_1 = arith.constant 0 : i32
    %c0_i32_2 = arith.constant 0 : i32
    return %c0_i32, %c0_i32_0, %c0_i32_1 : i32, i32, i32
  }
  func.func @transform_12(%arg0: i32) -> (i32, i32) {
    %c0_i32 = arith.constant 0 : i32
    %c0_i32_0 = arith.constant 0 : i32
    %c0_i32_1 = arith.constant 0 : i32
    return %c0_i32, %c0_i32_0 : i32, i32
  }
  func.func @transform_13(%arg0: i32) -> (i32, i32, i32) {
    %c0_i32 = arith.constant 0 : i32
    %c0_i32_0 = arith.constant 0 : i32
    %c0_i32_1 = arith.constant 0 : i32
    %c0_i32_2 = arith.constant 0 : i32
    return %c0_i32, %c0_i32_0, %c0_i32_1 : i32, i32, i32
  }
  func.func @transform_14(%arg0: i32) -> (i32, i32) {
    %c0_i32 = arith.constant 0 : i32
    %c0_i32_0 = arith.constant 0 : i32
    %c0_i32_1 = arith.constant 0 : i32
    return %c0_i32, %c0_i32_0 : i32, i32
  }
  func.func @transform_15(%arg0: i32) -> (i32, i32, i32) {
    %c0_i32 = arith.constant 0 : i32
    %c0_i32_0 = arith.constant 0 : i32
    %c0_i32_1 = arith.constant 0 : i32
    return %arg0, %c0_i32, %c0_i32_0 : i32, i32, i32
  }
}

</mosaic_0001>

<llo_original>
// kernel: tinyvgg_forward.1
$region0: #{tinyvgg_forward.1}
  #allocation0 [shape = 'u32[]', space=smem, size = 0x4, offset = 0x4, fixed_abs, tag = 'smem constant byte address 0x4 - core index']
  #allocation1 [shape = 'u32[72,128]{1,0:T(1,128)}', space=vmem, size = 0x9000, scoped, tag = 'internal scratch']
  #allocation2 [shape = 'f32[8,512]{1,0:T(8,128)}', space=vmem, size = 0x4000, scoped, tag = 'scratch operand']
  %s0 = inlined_call_operand.vmem [shape: f32[2,3,1944], index: 0, kind: input, shape index: {}]
  %s1 = inlined_call_operand.vmem [shape: f32[9,8,3], index: 1, kind: input, shape index: {}]
  %s2 = inlined_call_operand.vmem [shape: f32[8,1], index: 2, kind: input, shape index: {}]
  %s3 = inlined_call_operand.vmem [shape: f32[9,8,8], index: 3, kind: input, shape index: {}]
  %s4 = inlined_call_operand.vmem [shape: f32[8,1], index: 4, kind: input, shape index: {}]
  %s5 = inlined_call_operand.vmem [shape: f32[9,8,8], index: 5, kind: input, shape index: {}]
  %s6 = inlined_call_operand.vmem [shape: f32[8,1], index: 6, kind: input, shape index: {}]
  %s7 = inlined_call_operand.vmem [shape: f32[9,8,8], index: 7, kind: input, shape index: {}]
  %s8 = inlined_call_operand.vmem [shape: f32[8,1], index: 8, kind: input, shape index: {}]
  %s9 = inlined_call_operand.vmem [shape: f32[9,8,8], index: 9, kind: input, shape index: {}]
  %s10 = inlined_call_operand.vmem [shape: f32[8,1], index: 10, kind: input, shape index: {}]
  %s11 = inlined_call_operand.vmem [shape: f32[9,8,8], index: 11, kind: input, shape index: {}]
  %s12 = inlined_call_operand.vmem [shape: f32[8,1], index: 12, kind: input, shape index: {}]
  %s13 = inlined_call_operand.vmem [shape: f32[4,10,8], index: 13, kind: input, shape index: {}]
  %s14 = inlined_call_operand.vmem [shape: f32[10,1], index: 14, kind: input, shape index: {}]
  %s15 = inlined_call_operand.vmem [shape: f32[2,10,1], index: 15, kind: output, shape index: {}]
  %s16 = sld [smem:[#allocation0]]
  $region93: #{tinyvgg_forward.1} parent=0
    _
  %s18 = ssub.s32 1, %s16
  %s19 = scalar_select 0, %s18, %s16
  loop: start=0, step=1, limit=4
  $region2: #{tinyvgg_forward.1} parent=0 // loop_pre_header
    _
  $region3: #{tinyvgg_forward.1} parent=0 // loop_header
    %s21 = sphi 0, %s25
    %p22 = scmp.ge.s32.totalorder %s21, 4
    %s31 = sphi 0, %s33
    %s34 = sphi 0, %s31
    %s35 = sphi 0, %s34
    %s51 = sphi 0, %s35
    %s55 = sphi 0, %s55
    %s57 = sphi 0, %s55
    %s58 = sphi 0, %s57
    %s72 = sphi 0, %s58
    %s76 = sphi 0, %s76
    %s78 = sphi 0, %s76
    %s79 = sphi 0, %s78
    %s93 = sphi 0, %s79
    %s97 = sphi 0, %s97
    %s99 = sphi 0, %s97
    %s100 = sphi 0, %s99
    %s114 = sphi 0, %s100
    %s118 = sphi 0, %s118
    %s120 = sphi 0, %s118
    %s121 = sphi 0, %s120
    %s135 = sphi 0, %s121
    %s139 = sphi 0, %s139
    %s141 = sphi 0, %s139
    %s142 = sphi 0, %s141
    %s156 = sphi 0, %s142
    %s160 = sphi 0, %s160
    %s162 = sphi 0, %s160
    %s163 = sphi 0, %s162
    %s177 = sphi 0, %s163
    %s181 = sphi 0, %s181
    %s183 = sphi 0, %s181
    %s184 = sphi 0, %s183
    %s198 = sphi 0, %s184
    %s202 = sphi 0, %s202
    %s204 = sphi 0, %s202
    %s205 = sphi 0, %s204
    %s219 = sphi 0, %s205
    %s223 = sphi 0, %s223
    %s225 = sphi 0, %s223
    %s226 = sphi 0, %s225
    %s240 = sphi 0, %s226
    %s244 = sphi 0, %s244
    %s246 = sphi 0, %s244
    %s247 = sphi 0, %s246
    %s261 = sphi 0, %s247
    %s265 = sphi 0, %s265
    %s267 = sphi 0, %s265
    %s268 = sphi 0, %s267
    %s282 = sphi 0, %s268
    %s286 = sphi 0, %s286
    %s288 = sphi 0, %s286
    %s289 = sphi 0, %s288
    %s303 = sphi 0, %s289
    %s307 = sphi 0, %s307
    %s309 = sphi 0, %s307
    %s310 = sphi 0, %s309
    %s324 = sphi 0, %s310
    %s328 = sphi 0, %s328
    %s330 = sphi 0, %s328
    %s331 = sphi 0, %s330
    %s345 = sphi 0, %s331
    %s351 = sphi 0, %s353
    %s354 = sphi 0, %s351
    %s355 = sphi 0, %s354
    %s371 = sphi 0, %s355
  $region4: #{tinyvgg_forward.1} parent=0 // loop_header_branch
    %24 = sbr.rel (%p22) target = $region8
  $region5: #{tinyvgg_forward.1} parent=0 // loop_body
    %s26 = ssub.s32 %s21, 1
    %s27 = ssub.s32 %s21, 2
    %s28 = sadd.s32 %s21, 1
    %s29 = ssub.s32 %s21, %s28
    %p30 = scmp.eq.s32.totalorder %s29, 0
    %s32 = sadd.s32 %s31, 1
    %s33 = scalar_select %p30, %s31, %s32
    %p36 = pneg %p30
    %p37 = scmp.eq.s32.totalorder %s21, 1
    %p38 = por %p36, %p37
    %p39 = scmp.ne.s32.totalorder %s31, %s34
    %p40 = scmp.eq.s32.totalorder %s21, 0
    %p41 = por %p39, %p40
    %p42 = scmp.ne.s32.totalorder %s31, %s34
    %p43 = scmp.eq.s32.totalorder %s26, 1
    %p44 = por %p42, %p43
    %p45 = scmp.ne.s32.totalorder %s34, %s35
    %p46 = scmp.eq.s32.totalorder %s26, 0
    %p47 = por %p45, %p46
    %p48 = scmp.ne.s32.totalorder %s34, %s35
    %p49 = scmp.eq.s32.totalorder %s27, 1
    %p50 = por %p48, %p49
    %p52 = scmp.ne.s32.totalorder %s35, %s51
    %p53 = scmp.eq.s32.totalorder %s27, 0
    %p54 = por %p52, %p53
    %s56 = sadd.s32 %s55, 1
    %p59 = scmp.eq.s32.totalorder %s21, 1
    %p60 = scmp.ne.s32.totalorder %s55, %s57
    %p61 = scmp.eq.s32.totalorder %s21, 0
    %p62 = por %p60, %p61
    %p63 = scmp.ne.s32.totalorder %s55, %s57
    %p64 = scmp.eq.s32.totalorder %s26, 1
    %p65 = por %p63, %p64
    %p66 = scmp.ne.s32.totalorder %s57, %s58
    %p67 = scmp.eq.s32.totalorder %s26, 0
    %p68 = por %p66, %p67
    %p69 = scmp.ne.s32.totalorder %s57, %s58
    %p70 = scmp.eq.s32.totalorder %s27, 1
    %p71 = por %p69, %p70
    %p73 = scmp.ne.s32.totalorder %s58, %s72
    %p74 = scmp.eq.s32.totalorder %s27, 0
    %p75 = por %p73, %p74
    %s77 = sadd.s32 %s76, 1
    %p80 = scmp.eq.s32.totalorder %s21, 1
    %p81 = scmp.ne.s32.totalorder %s76, %s78
    %p82 = scmp.eq.s32.totalorder %s21, 0
    %p83 = por %p81, %p82
    %p84 = scmp.ne.s32.totalorder %s76, %s78
    %p85 = scmp.eq.s32.totalorder %s26, 1
    %p86 = por %p84, %p85
    %p87 = scmp.ne.s32.totalorder %s78, %s79
    %p88 = scmp.eq.s32.totalorder %s26, 0
    %p89 = por %p87, %p88
    %p90 = scmp.ne.s32.totalorder %s78, %s79
    %p91 = scmp.eq.s32.totalorder %s27, 1
    %p92 = por %p90, %p91
    %p94 = scmp.ne.s32.totalorder %s79, %s93
    %p95 = scmp.eq.s32.totalorder %s27, 0
    %p96 = por %p94, %p95
    %s98 = sadd.s32 %s97, 1
    %p101 = scmp.eq.s32.totalorder %s21, 1
    %p102 = scmp.ne.s32.totalorder %s97, %s99
    %p103 = scmp.eq.s32.totalorder %s21, 0
    %p104 = por %p102, %p103
    %p105 = scmp.ne.s32.totalorder %s97, %s99
    %p106 = scmp.eq.s32.totalorder %s26, 1
    %p107 = por %p105, %p106
    %p108 = scmp.ne.s32.totalorder %s99, %s100
    %p109 = scmp.eq.s32.totalorder %s26, 0
    %p110 = por %p108, %p109
    %p111 = scmp.ne.s32.totalorder %s99, %s100
    %p112 = scmp.eq.s32.totalorder %s27, 1
    %p113 = por %p111, %p112
    %p115 = scmp.ne.s32.totalorder %s100, %s114
    %p116 = scmp.eq.s32.totalorder %s27, 0
    %p117 = por %p115, %p116
    %s119 = sadd.s32 %s118, 1
    %p122 = scmp.eq.s32.totalorder %s21, 1
    %p123 = scmp.ne.s32.totalorder %s118, %s120
    %p124 = scmp.eq.s32.totalorder %s21, 0
    %p125 = por %p123, %p124
    %p126 = scmp.ne.s32.totalorder %s118, %s120
    %p127 = scmp.eq.s32.totalorder %s26, 1
    %p128 = por %p126, %p127
    %p129 = scmp.ne.s32.totalorder %s120, %s121
    %p130 = scmp.eq.s32.totalorder %s26, 0
    %p131 = por %p129, %p130
    %p132 = scmp.ne.s32.totalorder %s120, %s121
    %p133 = scmp.eq.s32.totalorder %s27, 1
    %p134 = por %p132, %p133
    %p136 = scmp.ne.s32.totalorder %s121, %s135
    %p137 = scmp.eq.s32.totalorder %s27, 0
    %p138 = por %p136, %p137
    %s140 = sadd.s32 %s139, 1
    %p143 = scmp.eq.s32.totalorder %s21, 1
    %p144 = scmp.ne.s32.totalorder %s139, %s141
    %p145 = scmp.eq.s32.totalorder %s21, 0
    %p146 = por %p144, %p145
    %p147 = scmp.ne.s32.totalorder %s139, %s141
    %p148 = scmp.eq.s32.totalorder %s26, 1
    %p149 = por %p147, %p148
    %p150 = scmp.ne.s32.totalorder %s141, %s142
    %p151 = scmp.eq.s32.totalorder %s26, 0
    %p152 = por %p150, %p151
    %p153 = scmp.ne.s32.totalorder %s141, %s142
    %p154 = scmp.eq.s32.totalorder %s27, 1
    %p155 = por %p153, %p154
    %p157 = scmp.ne.s32.totalorder %s142, %s156
    %p158 = scmp.eq.s32.totalorder %s27, 0
    %p159 = por %p157, %p158
    %s161 = sadd.s32 %s160, 1
    %p164 = scmp.eq.s32.totalorder %s21, 1
    %p165 = scmp.ne.s32.totalorder %s160, %s162
    %p166 = scmp.eq.s32.totalorder %s21, 0
    %p167 = por %p165, %p166
    %p168 = scmp.ne.s32.totalorder %s160, %s162
    %p169 = scmp.eq.s32.totalorder %s26, 1
    %p170 = por %p168, %p169
    %p171 = scmp.ne.s32.totalorder %s162, %s163
    %p172 = scmp.eq.s32.totalorder %s26, 0
    %p173 = por %p171, %p172
    %p174 = scmp.ne.s32.totalorder %s162, %s163
    %p175 = scmp.eq.s32.totalorder %s27, 1
    %p176 = por %p174, %p175
    %p178 = scmp.ne.s32.totalorder %s163, %s177
    %p179 = scmp.eq.s32.totalorder %s27, 0
    %p180 = por %p178, %p179
    %s182 = sadd.s32 %s181, 1
    %p185 = scmp.eq.s32.totalorder %s21, 1
    %p186 = scmp.ne.s32.totalorder %s181, %s183
    %p187 = scmp.eq.s32.totalorder %s21, 0
    %p188 = por %p186, %p187
    %p189 = scmp.ne.s32.totalorder %s181, %s183
    %p190 = scmp.eq.s32.totalorder %s26, 1
    %p191 = por %p189, %p190
    %p192 = scmp.ne.s32.totalorder %s183, %s184
    %p193 = scmp.eq.s32.totalorder %s26, 0
    %p194 = por %p192, %p193
    %p195 = scmp.ne.s32.totalorder %s183, %s184
    %p196 = scmp.eq.s32.totalorder %s27, 1
    %p197 = por %p195, %p196
    %p199 = scmp.ne.s32.totalorder %s184, %s198
    %p200 = scmp.eq.s32.totalorder %s27, 0
    %p201 = por %p199, %p200
    %s203 = sadd.s32 %s202, 1
    %p206 = scmp.eq.s32.totalorder %s21, 1
    %p207 = scmp.ne.s32.totalorder %s202, %s204
    %p208 = scmp.eq.s32.totalorder %s21, 0
    %p209 = por %p207, %p208
    %p210 = scmp.ne.s32.totalorder %s202, %s204
    %p211 = scmp.eq.s32.totalorder %s26, 1
    %p212 = por %p210, %p211
    %p213 = scmp.ne.s32.totalorder %s204, %s205
    %p214 = scmp.eq.s32.totalorder %s26, 0
    %p215 = por %p213, %p214
    %p216 = scmp.ne.s32.totalorder %s204, %s205
    %p217 = scmp.eq.s32.totalorder %s27, 1
    %p218 = por %p216, %p217
    %p220 = scmp.ne.s32.totalorder %s205, %s219
    %p221 = scmp.eq.s32.totalorder %s27, 0
    %p222 = por %p220, %p221
    %s224 = sadd.s32 %s223, 1
    %p227 = scmp.eq.s32.totalorder %s21, 1
    %p228 = scmp.ne.s32.totalorder %s223, %s225
    %p229 = scmp.eq.s32.totalorder %s21, 0
    %p230 = por %p228, %p229
    %p231 = scmp.ne.s32.totalorder %s223, %s225
    %p232 = scmp.eq.s32.totalorder %s26, 1
    %p233 = por %p231, %p232
    %p234 = scmp.ne.s32.totalorder %s225, %s226
    %p235 = scmp.eq.s32.totalorder %s26, 0
    %p236 = por %p234, %p235
    %p237 = scmp.ne.s32.totalorder %s225, %s226
    %p238 = scmp.eq.s32.totalorder %s27, 1
    %p239 = por %p237, %p238
    %p241 = scmp.ne.s32.totalorder %s226, %s240
    %p242 = scmp.eq.s32.totalorder %s27, 0
    %p243 = por %p241, %p242
    %s245 = sadd.s32 %s244, 1
    %p248 = scmp.eq.s32.totalorder %s21, 1
    %p249 = scmp.ne.s32.totalorder %s244, %s246
    %p250 = scmp.eq.s32.totalorder %s21, 0
    %p251 = por %p249, %p250
    %p252 = scmp.ne.s32.totalorder %s244, %s246
    %p253 = scmp.eq.s32.totalorder %s26, 1
    %p254 = por %p252, %p253
    %p255 = scmp.ne.s32.totalorder %s246, %s247
    %p256 = scmp.eq.s32.totalorder %s26, 0
    %p257 = por %p255, %p256
    %p258 = scmp.ne.s32.totalorder %s246, %s247
    %p259 = scmp.eq.s32.totalorder %s27, 1
    %p260 = por %p258, %p259
    %p262 = scmp.ne.s32.totalorder %s247, %s261
    %p263 = scmp.eq.s32.totalorder %s27, 0
    %p264 = por %p262, %p263
    %s266 = sadd.s32 %s265, 1
    %p269 = scmp.eq.s32.totalorder %s21, 1
    %p270 = scmp.ne.s32.totalorder %s265, %s267
    %p271 = scmp.eq.s32.totalorder %s21, 0
    %p272 = por %p270, %p271
    %p273 = scmp.ne.s32.totalorder %s265, %s267
    %p274 = scmp.eq.s32.totalorder %s26, 1
    %p275 = por %p273, %p274
    %p276 = scmp.ne.s32.totalorder %s267, %s268
    %p277 = scmp.eq.s32.totalorder %s26, 0
    %p278 = por %p276, %p277
    %p279 = scmp.ne.s32.totalorder %s267, %s268
    %p280 = scmp.eq.s32.totalorder %s27, 1
    %p281 = por %p279, %p280
    %p283 = scmp.ne.s32.totalorder %s268, %s282
    %p284 = scmp.eq.s32.totalorder %s27, 0
    %p285 = por %p283, %p284
    %s287 = sadd.s32 %s286, 1
    %p290 = scmp.eq.s32.totalorder %s21, 1
    %p291 = scmp.ne.s32.totalorder %s286, %s288
    %p292 = scmp.eq.s32.totalorder %s21, 0
    %p293 = por %p291, %p292
    %p294 = scmp.ne.s32.totalorder %s286, %s288
    %p295 = scmp.eq.s32.totalorder %s26, 1
    %p296 = por %p294, %p295
    %p297 = scmp.ne.s32.totalorder %s288, %s289
    %p298 = scmp.eq.s32.totalorder %s26, 0
    %p299 = por %p297, %p298
    %p300 = scmp.ne.s32.totalorder %s288, %s289
    %p301 = scmp.eq.s32.totalorder %s27, 1
    %p302 = por %p300, %p301
    %p304 = scmp.ne.s32.totalorder %s289, %s303
    %p305 = scmp.eq.s32.totalorder %s27, 0
    %p306 = por %p304, %p305
    %s308 = sadd.s32 %s307, 1
    %p311 = scmp.eq.s32.totalorder %s21, 1
    %p312 = scmp.ne.s32.totalorder %s307, %s309
    %p313 = scmp.eq.s32.totalorder %s21, 0
    %p314 = por %p312, %p313
    %p315 = scmp.ne.s32.totalorder %s307, %s309
    %p316 = scmp.eq.s32.totalorder %s26, 1
    %p317 = por %p315, %p316
    %p318 = scmp.ne.s32.totalorder %s309, %s310
    %p319 = scmp.eq.s32.totalorder %s26, 0
    %p320 = por %p318, %p319
    %p321 = scmp.ne.s32.totalorder %s309, %s310
    %p322 = scmp.eq.s32.totalorder %s27, 1
    %p323 = por %p321, %p322
    %p325 = scmp.ne.s32.totalorder %s310, %s324
    %p326 = scmp.eq.s32.totalorder %s27, 0
    %p327 = por %p325, %p326
    %s329 = sadd.s32 %s328, 1
    %p332 = scmp.eq.s32.totalorder %s21, 1
    %p333 = scmp.ne.s32.totalorder %s328, %s330
    %p334 = scmp.eq.s32.totalorder %s21, 0
    %p335 = por %p333, %p334
    %p336 = scmp.ne.s32.totalorder %s328, %s330
    %p337 = scmp.eq.s32.totalorder %s26, 1
    %p338 = por %p336, %p337
    %p339 = scmp.ne.s32.totalorder %s330, %s331
    %p340 = scmp.eq.s32.totalorder %s26, 0
    %p341 = por %p339, %p340
    %p342 = scmp.ne.s32.totalorder %s330, %s331
    %p343 = scmp.eq.s32.totalorder %s27, 1
    %p344 = por %p342, %p343
    %p346 = scmp.ne.s32.totalorder %s331, %s345
    %p347 = scmp.eq.s32.totalorder %s27, 0
    %p348 = por %p346, %p347
    %s349 = ssub.s32 %s21, %s28
    %p350 = scmp.eq.s32.totalorder %s349, 0
    %s352 = sadd.s32 %s351, 1
    %s353 = scalar_select %p350, %s351, %s352
    %p356 = pneg %p350
    %p357 = scmp.eq.s32.totalorder %s21, 1
    %p358 = por %p356, %p357
    %p359 = scmp.ne.s32.totalorder %s351, %s354
    %p360 = scmp.eq.s32.totalorder %s21, 0
    %p361 = por %p359, %p360
    %p362 = scmp.ne.s32.totalorder %s351, %s354
    %p363 = scmp.eq.s32.totalorder %s26, 1
    %p364 = por %p362, %p363
    %p365 = scmp.ne.s32.totalorder %s354, %s355
    %p366 = scmp.eq.s32.totalorder %s26, 0
    %p367 = por %p365, %p366
    %p368 = scmp.ne.s32.totalorder %s354, %s355
    %p369 = scmp.eq.s32.totalorder %s27, 1
    %p370 = por %p368, %p369
    %p372 = scmp.ne.s32.totalorder %s355, %s371
    %p373 = scmp.eq.s32.totalorder %s27, 0
    %p374 = por %p372, %p373
    %p375 = scmp.le.s32.totalorder 1, %s21
    %p376 = scmp.lt.s32.totalorder %s21, 3
    %p377 = pnand %p375, %p376
    %p378 = pneg %p377
    // Predicated region
    $region9: #{tinyvgg_forward.1} parent=5 // pred_check
      _
    $region10: #{tinyvgg_forward.1} parent=5 // pred_check_branch
      %380 = sbr.rel (%p377) target = $region12
    $region11: #{tinyvgg_forward.1} parent=5 // pred_region
      %s381 = ssub.s32 %s21, 1
      // Predicated region
      $region13: #{tinyvgg_forward.1} parent=11 // pred_check
        %p382 = pneg %p68
      $region14: #{tinyvgg_forward.1} parent=11 // pred_check_branch
        %384 = sbr.rel (%p382) target = $region16
      $region15: #{tinyvgg_forward.1} parent=11 // pred_region
        _
      $region16: #{tinyvgg_forward.1} parent=11 // pred_fallthru
        _
      // Predicated region
      $region17: #{tinyvgg_forward.1} parent=11 // pred_check
        %p385 = pneg %p89
      $region18: #{tinyvgg_forward.1} parent=11 // pred_check_branch
        %387 = sbr.rel (%p385) target = $region20
      $region19: #{tinyvgg_forward.1} parent=11 // pred_region
        _
      $region20: #{tinyvgg_forward.1} parent=11 // pred_fallthru
        _
      // Predicated region
      $region21: #{tinyvgg_forward.1} parent=11 // pred_check
        %p388 = pneg %p110
      $region22: #{tinyvgg_forward.1} parent=11 // pred_check_branch
        %390 = sbr.rel (%p388) target = $region24
      $region23: #{tinyvgg_forward.1} parent=11 // pred_region
        _
      $region24: #{tinyvgg_forward.1} parent=11 // pred_fallthru
        _
      // Predicated region
      $region25: #{tinyvgg_forward.1} parent=11 // pred_check
        %p391 = pneg %p131
      $region26: #{tinyvgg_forward.1} parent=11 // pred_check_branch
        %393 = sbr.rel (%p391) target = $region28
      $region27: #{tinyvgg_forward.1} parent=11 // pred_region
        _
      $region28: #{tinyvgg_forward.1} parent=11 // pred_fallthru
        _
      // Predicated region
      $region29: #{tinyvgg_forward.1} parent=11 // pred_check
        %p394 = pneg %p152
      $region30: #{tinyvgg_forward.1} parent=11 // pred_check_branch
        %396 = sbr.rel (%p394) target = $region32
      $region31: #{tinyvgg_forward.1} parent=11 // pred_region
        _
      $region32: #{tinyvgg_forward.1} parent=11 // pred_fallthru
        _
      // Predicated region
      $region33: #{tinyvgg_forward.1} parent=11 // pred_check
        %p397 = pneg %p173
      $region34: #{tinyvgg_forward.1} parent=11 // pred_check_branch
        %399 = sbr.rel (%p397) target = $region36
      $region35: #{tinyvgg_forward.1} parent=11 // pred_region
        _
      $region36: #{tinyvgg_forward.1} parent=11 // pred_fallthru
        _
      // Predicated region
      $region37: #{tinyvgg_forward.1} parent=11 // pred_check
        %p400 = pneg %p194
      $region38: #{tinyvgg_forward.1} parent=11 // pred_check_branch
        %402 = sbr.rel (%p400) target = $region40
      $region39: #{tinyvgg_forward.1} parent=11 // pred_region
        _
      $region40: #{tinyvgg_forward.1} parent=11 // pred_fallthru
        _
      // Predicated region
      $region41: #{tinyvgg_forward.1} parent=11 // pred_check
        %p403 = pneg %p215
      $region42: #{tinyvgg_forward.1} parent=11 // pred_check_branch
        %405 = sbr.rel (%p403) target = $region44
      $region43: #{tinyvgg_forward.1} parent=11 // pred_region
        _
      $region44: #{tinyvgg_forward.1} parent=11 // pred_fallthru
        _
      // Predicated region
      $region45: #{tinyvgg_forward.1} parent=11 // pred_check
        %p406 = pneg %p236
      $region46: #{tinyvgg_forward.1} parent=11 // pred_check_branch
        %408 = sbr.rel (%p406) target = $region48
      $region47: #{tinyvgg_forward.1} parent=11 // pred_region
        _
      $region48: #{tinyvgg_forward.1} parent=11 // pred_fallthru
        _
      // Predicated region
      $region49: #{tinyvgg_forward.1} parent=11 // pred_check
        %p409 = pneg %p257
      $region50: #{tinyvgg_forward.1} parent=11 // pred_check_branch
        %411 = sbr.rel (%p409) target = $region52
      $region51: #{tinyvgg_forward.1} parent=11 // pred_region
        _
      $region52: #{tinyvgg_forward.1} parent=11 // pred_fallthru
        _
      // Predicated region
      $region53: #{tinyvgg_forward.1} parent=11 // pred_check
        %p412 = pneg %p278
      $region54: #{tinyvgg_forward.1} parent=11 // pred_check_branch
        %414 = sbr.rel (%p412) target = $region56
      $region55: #{tinyvgg_forward.1} parent=11 // pred_region
        _
      $region56: #{tinyvgg_forward.1} parent=11 // pred_fallthru
        _
      // Predicated region
      $region57: #{tinyvgg_forward.1} parent=11 // pred_check
        %p415 = pneg %p299
      $region58: #{tinyvgg_forward.1} parent=11 // pred_check_branch
        %417 = sbr.rel (%p415) target = $region60
      $region59: #{tinyvgg_forward.1} parent=11 // pred_region
        _
      $region60: #{tinyvgg_forward.1} parent=11 // pred_fallthru
        _
      // Predicated region
      $region61: #{tinyvgg_forward.1} parent=11 // pred_check
        %p418 = pneg %p320
      $region62: #{tinyvgg_forward.1} parent=11 // pred_check_branch
        %420 = sbr.rel (%p418) target = $region64
      $region63: #{tinyvgg_forward.1} parent=11 // pred_region
        _
      $region64: #{tinyvgg_forward.1} parent=11 // pred_fallthru
        _
      // Predicated region
      $region65: #{tinyvgg_forward.1} parent=11 // pred_check
        %p421 = pneg %p341
      $region66: #{tinyvgg_forward.1} parent=11 // pred_check_branch
        %423 = sbr.rel (%p421) target = $region68
      $region67: #{tinyvgg_forward.1} parent=11 // pred_region
        _
      $region68: #{tinyvgg_forward.1} parent=11 // pred_fallthru
        _
    $region12: #{tinyvgg_forward.1} parent=5 // pred_fallthru
      _
    %p424 = scmp.lt.s32.totalorder %s21, 2
    // Predicated region
    $region69: #{tinyvgg_forward.1} parent=5 // pred_check
      %p425 = pneg %p424
    $region70: #{tinyvgg_forward.1} parent=5 // pred_check_branch
      %427 = sbr.rel (%p425) target = $region72
    $region71: #{tinyvgg_forward.1} parent=5 // pred_region
      // Predicated region
      $region73: #{tinyvgg_forward.1} parent=71 // pred_check
        %p428 = pneg %p41
      $region74: #{tinyvgg_forward.1} parent=71 // pred_check_branch
        %430 = sbr.rel (%p428) target = $region76
      $region75: #{tinyvgg_forward.1} parent=71 // pred_region
        %p431 = scmp.lt.s32.totalorder %s21, 1
        %s432 = scalar_select %p431, %s21, 1
        %s433 = smul.addr %s432, 16
        %s434 = smul.addr %s433, 4
        %s435 = scalar_lea.vmem %s0, %s434
      $region76: #{tinyvgg_forward.1} parent=71 // pred_fallthru
        _
    $region72: #{tinyvgg_forward.1} parent=5 // pred_fallthru
      _
    %p436 = scmp.le.s32.totalorder 1, %s21
    %p437 = scmp.lt.s32.totalorder %s21, 3
    %p438 = pnand %p436, %p437
    %p439 = pneg %p438
    // Predicated region
    $region77: #{tinyvgg_forward.1} parent=5 // pred_check
      _
    $region78: #{tinyvgg_forward.1} parent=5 // pred_check_branch
      %441 = sbr.rel (%p438) target = $region80
    $region79: #{tinyvgg_forward.1} parent=5 // pred_region
      %s442 = ssub.s32 %s21, 1
      %p443 = scmp.lt.s32.totalorder %s26, 1
      %s444 = scalar_select %p443, %s26, 1
      %s445 = smul.addr %s444, 16
      %s446 = smul.addr %s445, 4
      %s447 = scalar_lea.vmem %s0, %s446
      %p448 = pneg %p47
      %p449 = pneg %p44
      %p450 = pneg %p68
      %p451 = pneg %p65
      %p452 = pneg %p89
      %p453 = pneg %p86
      %p454 = pneg %p110
      %p455 = pneg %p107
      %p456 = pneg %p131
      %p457 = pneg %p128
      %p458 = pneg %p152
      %p459 = pneg %p149
      %p460 = pneg %p173
      %p461 = pneg %p170
      %p462 = pneg %p194
      %p463 = pneg %p191
      %p464 = pneg %p215
      %p465 = pneg %p212
      %p466 = pneg %p236
      %p467 = pneg %p233
      %p468 = pneg %p257
      %p469 = pneg %p254
      %p470 = pneg %p278
      %p471 = pneg %p275
      %p472 = pneg %p299
      %p473 = pneg %p296
      %p474 = pneg %p320
      %p475 = pneg %p317
      %p476 = pneg %p341
      %p477 = pneg %p338
      %p478 = pneg %p367
      %p479 = pneg %p364
      %p480 = scmp.lt.s32.totalorder %s26, 1
      %s481 = scalar_select %p480, %s26, 1
      %s482 = smul.addr %s481, 2
      %s483 = smul.addr %s482, 8
      %s484 = scalar_lea.vmem %s15, %s483
      %p485 = scmp.lt.s32.totalorder %s26, 1
      %s486 = scalar_select %p485, %s26, 1
      %s487 = smul.addr %s486, 16
      %s488 = smul.addr %s487, 4
      %s489 = scalar_lea.vmem %s0, %s488
      %p490 = scmp.lt.s32.totalorder %s26, 1
      %s491 = scalar_select %p490, %s26, 1
      %s492 = smul.addr %s491, 2
      %s493 = smul.addr %s492, 8
      %s494 = scalar_lea.vmem %s15, %s493
      %495 = vst [vmem:[#allocation2] sm:$0xff] 0.0
      %496 = vst [vmem:[#allocation2 + $0x8] sm:$0xff] 0.0
      %497 = vst [vmem:[#allocation2 + $0x10] sm:$0xff] 0.0
      %498 = vst [vmem:[#allocation2 + $0x18] sm:$0xff] 0.0
      %v499 = vld [vmem:[%s489] sm:$0x77]
      %v500 = vld [vmem:[%s489 + $0x8] sm:$0x77]
      %v501 = vld [vmem:[%s489 + $0x10] sm:$0x77]
      %v502 = vld [vmem:[%s489 + $0x18] sm:$0x77]
      %v503 = vld [vmem:[%s489 + $0x20] sm:$0x77]
      %v504 = vld [vmem:[%s489 + $0x28] sm:$0x77]
      %v505 = vld [vmem:[%s489 + $0x30] sm:$0x77]
      %v506 = vld [vmem:[%s489 + $0x38] sm:$0x77]
      %v507 = vld [vmem:[%s1] sm:$0xff]
      %s508 = scalar_lea.vmem %s1, 8
      %v509 = vld [vmem:[%s508] sm:$0xff]
      %518 = vst [vmem:[#allocation1] ss:$2 sm:$0xff] %v499
      %s519 = scalar_lea.vmem [#allocation1], 16
      %520 = vst [vmem:[%s519] ss:$2 sm:$0xff] %v500
      %s521 = scalar_lea.vmem [#allocation1], 32
      %522 = vst [vmem:[%s521] ss:$2 sm:$0xff] %v501
      %s523 = scalar_lea.vmem [#allocation1], 48
      %524 = vst [vmem:[%s523] ss:$2 sm:$0xff] %v502
      %v525 = vld.sshfl [vmem:[#allocation1] sm:$0xff pattern:$0x75316420]
      %v526 = vld.sshfl [vmem:[#allocation1 + $0x8] sm:$0xff pattern:$0x75316420]
      %v527 = vld.sshfl [vmem:[#allocation1 + $0x10] sm:$0xff pattern:$0x75316420]
      %v528 = vld.sshfl [vmem:[#allocation1 + $0x18] sm:$0xff pattern:$0x75316420]
      %v529 = vld.sshfl [vmem:[#allocation1 + $0x20] sm:$0xff pattern:$0x75316420]
      %v530 = vld.sshfl [vmem:[#allocation1 + $0x28] sm:$0xff pattern:$0x75316420]
      %v531 = vld.sshfl [vmem:[#allocation1 + $0x30] sm:$0xff pattern:$0x75316420]
      %v532 = vld.sshfl [vmem:[#allocation1 + $0x38] sm:$0xff pattern:$0x75316420]
      %533 = vst [vmem:[#allocation1] ss:$2 sm:$0xff] %v503
      %534 = vst [vmem:[%s519] ss:$2 sm:$0xff] %v504
      %535 = vst [vmem:[%s521] ss:$2 sm:$0xff] %v505
      %536 = vst [vmem:[%s523] ss:$2 sm:$0xff] %v506
      %v537 = vld.sshfl [vmem:[#allocation1] sm:$0xff pattern:$0x75316420]
      %v538 = vld.sshfl [vmem:[#allocation1 + $0x8] sm:$0xff pattern:$0x75316420]
      %v539 = vld.sshfl [vmem:[#allocation1 + $0x10] sm:$0xff pattern:$0x75316420]
      %v540 = vld.sshfl [vmem:[#allocation1 + $0x18] sm:$0xff pattern:$0x75316420]
      %v541 = vld.sshfl [vmem:[#allocation1 + $0x20] sm:$0xff pattern:$0x75316420]
      %v542 = vld.sshfl [vmem:[#allocation1 + $0x28] sm:$0xff pattern:$0x75316420]
      %v543 = vld.sshfl [vmem:[#allocation1 + $0x30] sm:$0xff pattern:$0x75316420]
      %544 = vrot.lane.b32.xlu0 %v525, 127
      %v545 = vpop.permute.xlu0 %544
      %546 = vrot.lane.b32.xlu0 %v526, 127
      %v547 = vpop.permute.xlu0 %546
      %548 = vrot.lane.b32.xlu0 %v527, 127
      %v549 = vpop.permute.xlu0 %548
      %550 = vrot.lane.b32.xlu0 %v528, 127
      %v551 = vpop.permute.xlu0 %550
      %552 = vrot.lane.b32.xlu0 %v529, 127
      %v553 = vpop.permute.xlu0 %552
      %554 = vrot.lane.b32.xlu0 %v530, 127
      %v555 = vpop.permute.xlu0 %554
      %556 = vrot.lane.b32.xlu0 %v531, 127
      %v557 = vpop.permute.xlu0 %556
      %558 = vrot.lane.b32.xlu0 %v532, 127
      %v559 = vpop.permute.xlu0 %558
      %560 = vrot.lane.b32.xlu0 %v537, 127
      %v561 = vpop.permute.xlu0 %560
      %562 = vrot.lane.b32.xlu0 %v538, 127
      %v563 = vpop.permute.xlu0 %562
      %564 = vrot.lane.b32.xlu0 %v539, 127
      %v565 = vpop.permute.xlu0 %564
      %566 = vrot.lane.b32.xlu0 %v540, 127
      %v567 = vpop.permute.xlu0 %566
      %568 = vrot.lane.b32.xlu0 %v541, 127
      %v569 = vpop.permute.xlu0 %568
      %570 = vrot.lane.b32.xlu0 %v542, 127
      %v571 = vpop.permute.xlu0 %570
      %572 = vrot.lane.b32.xlu0 %v543, 127
      %v573 = vpop.permute.xlu0 %572
      %vm574 = vcmask 1039360
      %v575 = vsel %vm574, %v545, %v547
      %v576 = vsel %vm574, %v547, %v549
      %v577 = vsel %vm574, %v549, %v551
      %v578 = vsel %vm574, %v551, %v553
      %v579 = vsel %vm574, %v553, %v555
      %v580 = vsel %vm574, %v555, %v557
      %v581 = vsel %vm574, %v557, %v559
      %v582 = vsel %vm574, %v559, %v561
      %v583 = vsel %vm574, %v561, %v563
      %v584 = vsel %vm574, %v563, %v565
      %v585 = vsel %vm574, %v565, %v567
      %v586 = vsel %vm574, %v567, %v569
      %v587 = vsel %vm574, %v569, %v571
      %v588 = vsel %vm574, %v571, %v573
      %vm589 = vcmask 23552
      %v591 = vsel %vm589, %v509, 0
      %vm593 = vcmask 1042432
      %v594 = vsel %vm593, %v575, 0
      %v596 = vsel %vm593, %v576, 0
      %v598 = vsel %vm593, %v577, 0
      %v600 = vsel %vm593, %v578, 0
      %v602 = vsel %vm593, %v579, 0
      %v604 = vsel %vm593, %v580, 0
      %v606 = vsel %vm593, %v581, 0
      %v608 = vsel %vm593, %v582, 0
      %v610 = vsel %vm593, %v583, 0
      %v612 = vsel %vm593, %v584, 0
      %v614 = vsel %vm593, %v585, 0
      %v616 = vsel %vm593, %v586, 0
      %v618 = vsel %vm593, %v587, 0
      %v620 = vsel %vm593, %v588, 0
      %v622 = vsel %vm593, %v573, 0
      %624 = vmatpush.msra.mxu0 0.0
      %625 = vmatpush.msra.mxu0 0.0
      %626 = vmatpush.msra.mxu0 0.0
      %627 = vmatpush.msra.mxu0 0.0
      %628 = vmatpush.msra.mxu0 0.0
      %629 = vmatpush.msra.mxu0 0.0
      %630 = vmatpush.msra.mxu0 0.0
      %631 = vmatpush.msra.mxu0 0.0
      %632 = vmatpush.msra.mxu0 0.0
      %633 = vmatpush.msra.mxu0 0.0
      %634 = vmatpush.msra.mxu0 0.0
      %635 = vmatpush.msra.mxu0 0.0
      %636 = vmatpush.msra.mxu0 0.0
      %637 = vmatpush.msra.mxu0 0.0
      %638 = vmatpush.msra.mxu0 0.0
      %639 = vmatpush.msra.mxu0 %v594
      %640 = vmatmul.f32.gmra.mxu0 %v591
      %v641 = vpop.f32.mrf.mxu0
      %v642 = vadd.f32 0.0, %v641
      %643 = vdwg.mxu0
      %644 = vmatpush.msra.mxu0 0.0
      %645 = vmatpush.msra.mxu0 0.0
      %646 = vmatpush.msra.mxu0 0.0
      %647 = vmatpush.msra.mxu0 0.0
      %648 = vmatpush.msra.mxu0 0.0
      %649 = vmatpush.msra.mxu0 0.0
      %650 = vmatpush.msra.mxu0 0.0
      %651 = vmatpush.msra.mxu0 0.0
      %652 = vmatpush.msra.mxu0 0.0
      %653 = vmatpush.msra.mxu0 0.0
      %654 = vmatpush.msra.mxu0 0.0
      %655 = vmatpush.msra.mxu0 0.0
      %656 = vmatpush.msra.mxu0 0.0
      %657 = vmatpush.msra.mxu0 0.0
      %658 = vmatpush.msra.mxu0 0.0
      %659 = vmatpush.msra.mxu0 %v596
      %660 = vmatmul.f32.gmra.mxu0 %v591
      %v661 = vpop.f32.mrf.mxu0
      %v662 = vadd.f32 0.0, %v661
      %663 = vdwg.mxu0
      %664 = vmatpush.msra.mxu0 0.0
      %665 = vmatpush.msra.mxu0 0.0
      %666 = vmatpush.msra.mxu0 0.0
      %667 = vmatpush.msra.mxu0 0.0
      %668 = vmatpush.msra.mxu0 0.0
      %669 = vmatpush.msra.mxu0 0.0
      %670 = vmatpush.msra.mxu0 0.0
      %671 = vmatpush.msra.mxu0 0.0
      %672 = vmatpush.msra.mxu0 0.0
      %673 = vmatpush.msra.mxu0 0.0
      %674 = vmatpush.msra.mxu0 0.0
      %675 = vmatpush.msra.mxu0 0.0
      %676 = vmatpush.msra.mxu0 0.0
      %677 = vmatpush.msra.mxu0 0.0
      %678 = vmatpush.msra.mxu0 0.0
      %679 = vmatpush.msra.mxu0 %v598
      %680 = vmatmul.f32.gmra.mxu0 %v591
      %v681 = vpop.f32.mrf.mxu0
      %v682 = vadd.f32 0.0, %v681
      %683 = vdwg.mxu0
      %684 = vmatpush.msra.mxu0 0.0
      %685 = vmatpush.msra.mxu0 0.0
      %686 = vmatpush.msra.mxu0 0.0
      %687 = vmatpush.msra.mxu0 0.0
      %688 = vmatpush.msra.mxu0 0.0
      %689 = vmatpush.msra.mxu0 0.0
      %690 = vmatpush.msra.mxu0 0.0
      %691 = vmatpush.msra.mxu0 0.0
      %692 = vmatpush.msra.mxu0 0.0
      %693 = vmatpush.msra.mxu0 0.0
      %694 = vmatpush.msra.mxu0 0.0
      %695 = vmatpush.msra.mxu0 0.0
      %696 = vmatpush.msra.mxu0 0.0
      %697 = vmatpush.msra.mxu0 0.0
      %698 = vmatpush.msra.mxu0 0.0
      %699 = vmatpush.msra.mxu0 %v600
      %700 = vmatmul.f32.gmra.mxu0 %v591
      %v701 = vpop.f32.mrf.mxu0
      %v702 = vadd.f32 0.0, %v701
      %703 = vdwg.mxu0
      %704 = vmatpush.msra.mxu0 0.0
      %705 = vmatpush.msra.mxu0 0.0
      %706 = vmatpush.msra.mxu0 0.0
      %707 = vmatpush.msra.mxu0 0.0
      %708 = vmatpush.msra.mxu0 0.0
      %709 = vmatpush.msra.mxu0 0.0
      %710 = vmatpush.msra.mxu0 0.0
      %711 = vmatpush.msra.mxu0 0.0
      %712 = vmatpush.msra.mxu0 0.0
      %713 = vmatpush.msra.mxu0 0.0
      %714 = vmatpush.msra.mxu0 0.0
      %715 = vmatpush.msra.mxu0 0.0
      %716 = vmatpush.msra.mxu0 0.0
      %717 = vmatpush.msra.mxu0 0.0
      %718 = vmatpush.msra.mxu0 0.0
      %719 = vmatpush.msra.mxu0 %v602
      %720 = vmatmul.f32.gmra.mxu0 %v591
      %v721 = vpop.f32.mrf.mxu0
      %v722 = vadd.f32 0.0, %v721
      %723 = vdwg.mxu0
      %724 = vmatpush.msra.mxu0 0.0
      %725 = vmatpush.msra.mxu0 0.0
      %726 = vmatpush.msra.mxu0 0.0
      %727 = vmatpush.msra.mxu0 0.0
      %728 = vmatpush.msra.mxu0 0.0
      %729 = vmatpush.msra.mxu0 0.0
      %730 = vmatpush.msra.mxu0 0.0
      %731 = vmatpush.msra.mxu0 0.0
      %732 = vmatpush.msra.mxu0 0.0
      %733 = vmatpush.msra.mxu0 0.0
      %734 = vmatpush.msra.mxu0 0.0
      %735 = vmatpush.msra.mxu0 0.0
      %736 = vmatpush.msra.mxu0 0.0
      %737 = vmatpush.msra.mxu0 0.0
      %738 = vmatpush.msra.mxu0 0.0
      %739 = vmatpush.msra.mxu0 %v604
      %740 = vmatmul.f32.gmra.mxu0 %v591
      %v741 = vpop.f32.mrf.mxu0
      %v742 = vadd.f32 0.0, %v741
      %743 = vdwg.mxu0
      %744 = vmatpush.msra.mxu0 0.0
      %745 = vmatpush.msra.mxu0 0.0
      %746 = vmatpush.msra.mxu0 0.0
      %747 = vmatpush.msra.mxu0 0.0
      %748 = vmatpush.msra.mxu0 0.0
      %749 = vmatpush.msra.mxu0 0.0
      %750 = vmatpush.msra.mxu0 0.0
      %751 = vmatpush.msra.mxu0 0.0
      %752 = vmatpush.msra.mxu0 0.0
      %753 = vmatpush.msra.mxu0 0.0
      %754 = vmatpush.msra.mxu0 0.0
      %755 = vmatpush.msra.mxu0 0.0
      %756 = vmatpush.msra.mxu0 0.0
      %757 = vmatpush.msra.mxu0 0.0
      %758 = vmatpush.msra.mxu0 0.0
      %759 = vmatpush.msra.mxu0 %v606
      %760 = vmatmul.f32.gmra.mxu0 %v591
      %v761 = vpop.f32.mrf.mxu0
      %v762 = vadd.f32 0.0, %v761
      %763 = vdwg.mxu0
      %764 = vmatpush.msra.mxu0 0.0
      %765 = vmatpush.msra.mxu0 0.0
      %766 = vmatpush.msra.mxu0 0.0
      %767 = vmatpush.msra.mxu0 0.0
      %768 = vmatpush.msra.mxu0 0.0
      %769 = vmatpush.msra.mxu0 0.0
      %770 = vmatpush.msra.mxu0 0.0
      %771 = vmatpush.msra.mxu0 0.0
      %772 = vmatpush.msra.mxu0 0.0
      %773 = vmatpush.msra.mxu0 0.0
      %774 = vmatpush.msra.mxu0 0.0
      %775 = vmatpush.msra.mxu0 0.0
      %776 = vmatpush.msra.mxu0 0.0
      %777 = vmatpush.msra.mxu0 0.0
      %778 = vmatpush.msra.mxu0 0.0
      %779 = vmatpush.msra.mxu0 %v608
      %780 = vmatmul.f32.gmra.mxu0 %v591
      %v781 = vpop.f32.mrf.mxu0
      %v782 = vadd.f32 0.0, %v781
      %783 = vdwg.mxu0
      %784 = vmatpush.msra.mxu0 0.0
      %785 = vmatpush.msra.mxu0 0.0
      %786 = vmatpush.msra.mxu0 0.0
      %787 = vmatpush.msra.mxu0 0.0
      %788 = vmatpush.msra.mxu0 0.0
      %789 = vmatpush.msra.mxu0 0.0
      %790 = vmatpush.msra.mxu0 0.0
      %791 = vmatpush.msra.mxu0 0.0
      %792 = vmatpush.msra.mxu0 0.0
      %793 = vmatpush.msra.mxu0 0.0
      %794 = vmatpush.msra.mxu0 0.0
      %795 = vmatpush.msra.mxu0 0.0
      %796 = vmatpush.msra.mxu0 0.0
      %797 = vmatpush.msra.mxu0 0.0
      %798 = vmatpush.msra.mxu0 0.0
      %799 = vmatpush.msra.mxu0 %v610
      %800 = vmatmul.f32.gmra.mxu0 %v591
      %v801 = vpop.f32.mrf.mxu0
      %v802 = vadd.f32 0.0, %v801
      %803 = vdwg.mxu0
      %804 = vmatpush.msra.mxu0 0.0
      %805 = vmatpush.msra.mxu0 0.0
      %806 = vmatpush.msra.mxu0 0.0
      %807 = vmatpush.msra.mxu0 0.0
      %808 = vmatpush.msra.mxu0 0.0
      %809 = vmatpush.msra.mxu0 0.0
      %810 = vmatpush.msra.mxu0 0.0
      %811 = vmatpush.msra.mxu0 0.0
      %812 = vmatpush.msra.mxu0 0.0
      %813 = vmatpush.msra.mxu0 0.0
      %814 = vmatpush.msra.mxu0 0.0
      %815 = vmatpush.msra.mxu0 0.0
      %816 = vmatpush.msra.mxu0 0.0
      %817 = vmatpush.msra.mxu0 0.0
      %818 = vmatpush.msra.mxu0 0.0
      %819 = vmatpush.msra.mxu0 %v612
      %820 = vmatmul.f32.gmra.mxu0 %v591
      %v821 = vpop.f32.mrf.mxu0
      %v822 = vadd.f32 0.0, %v821
      %823 = vdwg.mxu0
      %824 = vmatpush.msra.mxu0 0.0
      %825 = vmatpush.msra.mxu0 0.0
      %826 = vmatpush.msra.mxu0 0.0
      %827 = vmatpush.msra.mxu0 0.0
      %828 = vmatpush.msra.mxu0 0.0
      %829 = vmatpush.msra.mxu0 0.0
      %830 = vmatpush.msra.mxu0 0.0
      %831 = vmatpush.msra.mxu0 0.0
      %832 = vmatpush.msra.mxu0 0.0
      %833 = vmatpush.msra.mxu0 0.0
      %834 = vmatpush.msra.mxu0 0.0
      %835 = vmatpush.msra.mxu0 0.0
      %836 = vmatpush.msra.mxu0 0.0
      %837 = vmatpush.msra.mxu0 0.0
      %838 = vmatpush.msra.mxu0 0.0
      %839 = vmatpush.msra.mxu0 %v614
      %840 = vmatmul.f32.gmra.mxu0 %v591
      %v841 = vpop.f32.mrf.mxu0
      %v842 = vadd.f32 0.0, %v841
      %843 = vdwg.mxu0
      %844 = vmatpush.msra.mxu0 0.0
      %845 = vmatpush.msra.mxu0 0.0
      %846 = vmatpush.msra.mxu0 0.0
      %847 = vmatpush.msra.mxu0 0.0
      %848 = vmatpush.msra.mxu0 0.0
      %849 = vmatpush.msra.mxu0 0.0
      %850 = vmatpush.msra.mxu0 0.0
      %851 = vmatpush.msra.mxu0 0.0
      %852 = vmatpush.msra.mxu0 0.0
      %853 = vmatpush.msra.mxu0 0.0
      %854 = vmatpush.msra.mxu0 0.0
      %855 = vmatpush.msra.mxu0 0.0
      %856 = vmatpush.msra.mxu0 0.0
      %857 = vmatpush.msra.mxu0 0.0
      %858 = vmatpush.msra.mxu0 0.0
      %859 = vmatpush.msra.mxu0 %v616
      %860 = vmatmul.f32.gmra.mxu0 %v591
      %v861 = vpop.f32.mrf.mxu0
      %v862 = vadd.f32 0.0, %v861
      %863 = vdwg.mxu0
      %864 = vmatpush.msra.mxu0 0.0
      %865 = vmatpush.msra.mxu0 0.0
      %866 = vmatpush.msra.mxu0 0.0
      %867 = vmatpush.msra.mxu0 0.0
      %868 = vmatpush.msra.mxu0 0.0
      %869 = vmatpush.msra.mxu0 0.0
      %870 = vmatpush.msra.mxu0 0.0
      %871 = vmatpush.msra.mxu0 0.0
      %872 = vmatpush.msra.mxu0 0.0
      %873 = vmatpush.msra.mxu0 0.0
      %874 = vmatpush.msra.mxu0 0.0
      %875 = vmatpush.msra.mxu0 0.0
      %876 = vmatpush.msra.mxu0 0.0
      %877 = vmatpush.msra.mxu0 0.0
      %878 = vmatpush.msra.mxu0 0.0
      %879 = vmatpush.msra.mxu0 %v618
      %880 = vmatmul.f32.gmra.mxu0 %v591
      %v881 = vpop.f32.mrf.mxu0
      %v882 = vadd.f32 0.0, %v881
      %883 = vdwg.mxu0
      %884 = vmatpush.msra.mxu0 0.0
      %885 = vmatpush.msra.mxu0 0.0
      %886 = vmatpush.msra.mxu0 0.0
      %887 = vmatpush.msra.mxu0 0.0
      %888 = vmatpush.msra.mxu0 0.0
      %889 = vmatpush.msra.mxu0 0.0
      %890 = vmatpush.msra.mxu0 0.0
      %891 = vmatpush.msra.mxu0 0.0
      %892 = vmatpush.msra.mxu0 0.0
      %893 = vmatpush.msra.mxu0 0.0
      %894 = vmatpush.msra.mxu0 0.0
      %895 = vmatpush.msra.mxu0 0.0
      %896 = vmatpush.msra.mxu0 0.0
      %897 = vmatpush.msra.mxu0 0.0
      %898 = vmatpush.msra.mxu0 0.0
      %899 = vmatpush.msra.mxu0 %v620
      %900 = vmatmul.f32.gmra.mxu0 %v591
      %v901 = vpop.f32.mrf.mxu0
      %v902 = vadd.f32 0.0, %v901
      %903 = vdwg.mxu0
      %904 = vmatpush.msra.mxu0 0.0
      %905 = vmatpush.msra.mxu0 0.0
      %906 = vmatpush.msra.mxu0 0.0
      %907 = vmatpush.msra.mxu0 0.0
      %908 = vmatpush.msra.mxu0 0.0
      %909 = vmatpush.msra.mxu0 0.0
      %910 = vmatpush.msra.mxu0 0.0
      %911 = vmatpush.msra.mxu0 0.0
      %912 = vmatpush.msra.mxu0 0.0
      %913 = vmatpush.msra.mxu0 0.0
      %914 = vmatpush.msra.mxu0 0.0
      %915 = vmatpush.msra.mxu0 0.0
      %916 = vmatpush.msra.mxu0 0.0
      %917 = vmatpush.msra.mxu0 0.0
      %918 = vmatpush.msra.mxu0 0.0
      %919 = vmatpush.msra.mxu0 %v622
      %920 = vmatmul.f32.gmra.mxu0 %v591
      %v921 = vpop.f32.mrf.mxu0
      %v922 = vadd.f32 0.0, %v921
      %923 = vdwg.mxu0
      %924 = vst [vmem:[#allocation1] ss:$2 sm:$0xff] %v499
      %s925 = scalar_lea.vmem [#allocation1], 16
      %926 = vst [vmem:[%s925] ss:$2 sm:$0xff] %v500
      %s927 = scalar_lea.vmem [#allocation1], 32
      %928 = vst [vmem:[%s927] ss:$2 sm:$0xff] %v501
      %s929 = scalar_lea.vmem [#allocation1], 48
      %930 = vst [vmem:[%s929] ss:$2 sm:$0xff] %v502
      %v931 = vld.sshfl [vmem:[#allocation1] sm:$0xff pattern:$0x75316420]
      %v932 = vld.sshfl [vmem:[#allocation1 + $0x8] sm:$0xff pattern:$0x75316420]
      %v933 = vld.sshfl [vmem:[#allocation1 + $0x10] sm:$0xff pattern:$0x75316420]
      %v934 = vld.sshfl [vmem:[#allocation1 + $0x18] sm:$0xff pattern:$0x75316420]
      %v935 = vld.sshfl [vmem:[#allocation1 + $0x20] sm:$0xff pattern:$0x75316420]
      %v936 = vld.sshfl [vmem:[#allocation1 + $0x28] sm:$0xff pattern:$0x75316420]
      %v937 = vld.sshfl [vmem:[#allocation1 + $0x30] sm:$0xff pattern:$0x75316420]
      %v938 = vld.sshfl [vmem:[#allocation1 + $0x38] sm:$0xff pattern:$0x75316420]
      %939 = vst [vmem:[#allocation1] ss:$2 sm:$0xff] %v503
      %940 = vst [vmem:[%s925] ss:$2 sm:$0xff] %v504
      %941 = vst [vmem:[%s927] ss:$2 sm:$0xff] %v505
      %942 = vst [vmem:[%s929] ss:$2 sm:$0xff] %v506
      %v943 = vld.sshfl [vmem:[#allocation1] sm:$0xff pattern:$0x75316420]
      %v944 = vld.sshfl [vmem:[#allocation1 + $0x8] sm:$0xff pattern:$0x75316420]
      %v945 = vld.sshfl [vmem:[#allocation1 + $0x10] sm:$0xff pattern:$0x75316420]
      %v946 = vld.sshfl [vmem:[#allocation1 + $0x18] sm:$0xff pattern:$0x75316420]
      %v947 = vld.sshfl [vmem:[#allocation1 + $0x20] sm:$0xff pattern:$0x75316420]
      %v948 = vld.sshfl [vmem:[#allocation1 + $0x28] sm:$0xff pattern:$0x75316420]
      %v949 = vld.sshfl [vmem:[#allocation1 + $0x30] sm:$0xff pattern:$0x75316420]
      %v951 = vsel %vm589, %v507, 0
      %v953 = vsel %vm593, %v931, 0
      %v955 = vsel %vm593, %v932, 0
      %v957 = vsel %vm593, %v933, 0
      %v959 = vsel %vm593, %v934, 0
      %v961 = vsel %vm593, %v935, 0
      %v963 = vsel %vm593, %v936, 0
      %v965 = vsel %vm593, %v937, 0
      %v967 = vsel %vm593, %v938, 0
      %v969 = vsel %vm593, %v943, 0
      %v971 = vsel %vm593, %v944, 0
      %v973 = vsel %vm593, %v945, 0
      %v975 = vsel %vm593, %v946, 0
      %v977 = vsel %vm593, %v947, 0
      %v979 = vsel %vm593, %v948, 0
      %v981 = vsel %vm593, %v949, 0
      %983 = vmatpush.msra.mxu0 0.0
      %984 = vmatpush.msra.mxu0 0.0
      %985 = vmatpush.msra.mxu0 0.0
      %986 = vmatpush.msra.mxu0 0.0
      %987 = vmatpush.msra.mxu0 0.0
      %988 = vmatpush.msra.mxu0 0.0
      %989 = vmatpush.msra.mxu0 0.0
      %990 = vmatpush.msra.mxu0 0.0
      %991 = vmatpush.msra.mxu0 0.0
      %992 = vmatpush.msra.mxu0 0.0
      %993 = vmatpush.msra.mxu0 0.0
      %994 = vmatpush.msra.mxu0 0.0
      %995 = vmatpush.msra.mxu0 0.0
      %996 = vmatpush.msra.mxu0 0.0
      %997 = vmatpush.msra.mxu0 0.0
      %998 = vmatpush.msra.mxu0 %v953
      %999 = vmatmul.f32.gmra.mxu0 %v951
      %v1000 = vpop.f32.mrf.mxu0
      %v1001 = vadd.f32 %v642, %v1000
      %1002 = vdwg.mxu0
      %1003 = vmatpush.msra.mxu0 0.0
      %1004 = vmatpush.msra.mxu0 0.0
      %1005 = vmatpush.msra.mxu0 0.0
      %1006 = vmatpush.msra.mxu0 0.0
      %1007 = vmatpush.msra.mxu0 0.0
      %1008 = vmatpush.msra.mxu0 0.0
      %1009 = vmatpush.msra.mxu0 0.0
      %1010 = vmatpush.msra.mxu0 0.0
      %1011 = vmatpush.msra.mxu0 0.0
      %1012 = vmatpush.msra.mxu0 0.0
      %1013 = vmatpush.msra.mxu0 0.0
      %1014 = vmatpush.msra.mxu0 0.0
      %1015 = vmatpush.msra.mxu0 0.0
      %1016 = vmatpush.msra.mxu0 0.0
      %1017 = vmatpush.msra.mxu0 0.0
      %1018 = vmatpush.msra.mxu0 %v955
      %1019 = vmatmul.f32.gmra.mxu0 %v951
      %v1020 = vpop.f32.mrf.mxu0
      %v1021 = vadd.f32 %v662, %v1020
      %1022 = vdwg.mxu0
      %1023 = vmatpush.msra.mxu0 0.0
      %1024 = vmatpush.msra.mxu0 0.0
      %1025 = vmatpush.msra.mxu0 0.0
      %1026 = vmatpush.msra.mxu0 0.0
      %1027 = vmatpush.msra.mxu0 0.0
      %1028 = vmatpush.msra.mxu0 0.0
      %1029 = vmatpush.msra.mxu0 0.0
      %1030 = vmatpush.msra.mxu0 0.0
      %1031 = vmatpush.msra.mxu0 0.0
      %1032 = vmatpush.msra.mxu0 0.0
      %1033 = vmatpush.msra.mxu0 0.0
      %1034 = vmatpush.msra.mxu0 0.0
      %1035 = vmatpush.msra.mxu0 0.0
      %1036 = vmatpush.msra.mxu0 0.0
      %1037 = vmatpush.msra.mxu0 0.0
      %1038 = vmatpush.msra.mxu0 %v957
      %1039 = vmatmul.f32.gmra.mxu0 %v951
      %v1040 = vpop.f32.mrf.mxu0
      %v1041 = vadd.f32 %v682, %v1040
      %1042 = vdwg.mxu0
      %1043 = vmatpush.msra.mxu0 0.0
      %1044 = vmatpush.msra.mxu0 0.0
      %1045 = vmatpush.msra.mxu0 0.0
      %1046 = vmatpush.msra.mxu0 0.0
      %1047 = vmatpush.msra.mxu0 0.0
      %1048 = vmatpush.msra.mxu0 0.0
      %1049 = vmatpush.msra.mxu0 0.0
      %1050 = vmatpush.msra.mxu0 0.0
      %1051 = vmatpush.msra.mxu0 0.0
      %1052 = vmatpush.msra.mxu0 0.0
      %1053 = vmatpush.msra.mxu0 0.0
      %1054 = vmatpush.msra.mxu0 0.0
      %1055 = vmatpush.msra.mxu0 0.0
      %1056 = vmatpush.msra.mxu0 0.0
      %1057 = vmatpush.msra.mxu0 0.0
      %1058 = vmatpush.msra.mxu0 %v959
      %1059 = vmatmul.f32.gmra.mxu0 %v951
      %v1060 = vpop.f32.mrf.mxu0
      %v1061 = vadd.f32 %v702, %v1060
      %1062 = vdwg.mxu0
      %1063 = vmatpush.msra.mxu0 0.0
      %1064 = vmatpush.msra.mxu0 0.0
      %1065 = vmatpush.msra.mxu0 0.0
      %1066 = vmatpush.msra.mxu0 0.0
      %1067 = vmatpush.msra.mxu0 0.0
      %1068 = vmatpush.msra.mxu0 0.0
      %1069 = vmatpush.msra.mxu0 0.0
      %1070 = vmatpush.msra.mxu0 0.0
      %1071 = vmatpush.msra.mxu0 0.0
      %1072 = vmatpush.msra.mxu0 0.0
      %1073 = vmatpush.msra.mxu0 0.0
      %1074 = vmatpush.msra.mxu0 0.0
      %1075 = vmatpush.msra.mxu0 0.0
      %1076 = vmatpush.msra.mxu0 0.0
      %1077 = vmatpush.msra.mxu0 0.0
      %1078 = vmatpush.msra.mxu0 %v961
      %1079 = vmatmul.f32.gmra.mxu0 %v951
      %v1080 = vpop.f32.mrf.mxu0
      %v1081 = vadd.f32 %v722, %v1080
      %1082 = vdwg.mxu0
      %1083 = vmatpush.msra.mxu0 0.0
      %1084 = vmatpush.msra.mxu0 0.0
      %1085 = vmatpush.msra.mxu0 0.0
      %1086 = vmatpush.msra.mxu0 0.0
      %1087 = vmatpush.msra.mxu0 0.0
      %1088 = vmatpush.msra.mxu0 0.0
      %1089 = vmatpush.msra.mxu0 0.0
      %1090 = vmatpush.msra.mxu0 0.0
      %1091 = vmatpush.msra.mxu0 0.0
      %1092 = vmatpush.msra.mxu0 0.0
      %1093 = vmatpush.msra.mxu0 0.0
      %1094 = vmatpush.msra.mxu0 0.0
      %1095 = vmatpush.msra.mxu0 0.0
      %1096 = vmatpush.msra.mxu0 0.0
      %1097 = vmatpush.msra.mxu0 0.0
      %1098 = vmatpush.msra.mxu0 %v963
      %1099 = vmatmul.f32.gmra.mxu0 %v951
      %v1100 = vpop.f32.mrf.mxu0
      %v1101 = vadd.f32 %v742, %v1100
      %1102 = vdwg.mxu0
      %1103 = vmatpush.msra.mxu0 0.0
      %1104 = vmatpush.msra.mxu0 0.0
      %1105 = vmatpush.msra.mxu0 0.0
      %1106 = vmatpush.msra.mxu0 0.0
      %1107 = vmatpush.msra.mxu0 0.0
      %1108 = vmatpush.msra.mxu0 0.0
      %1109 = vmatpush.msra.mxu0 0.0
      %1110 = vmatpush.msra.mxu0 0.0
      %1111 = vmatpush.msra.mxu0 0.0
      %1112 = vmatpush.msra.mxu0 0.0
      %1113 = vmatpush.msra.mxu0 0.0
      %1114 = vmatpush.msra.mxu0 0.0
      %1115 = vmatpush.msra.mxu0 0.0
      %1116 = vmatpush.msra.mxu0 0.0
      %1117 = vmatpush.msra.mxu0 0.0
      %1118 = vmatpush.msra.mxu0 %v965
      %1119 = vmatmul.f32.gmra.mxu0 %v951
      %v1120 = vpop.f32.mrf.mxu0
      %v1121 = vadd.f32 %v762, %v1120
      %1122 = vdwg.mxu0
      %1123 = vmatpush.msra.mxu0 0.0
      %1124 = vmatpush.msra.mxu0 0.0
      %1125 = vmatpush.msra.mxu0 0.0
      %1126 = vmatpush.msra.mxu0 0.0
      %1127 = vmatpush.msra.mxu0 0.0
      %1128 = vmatpush.msra.mxu0 0.0
      %1129 = vmatpush.msra.mxu0 0.0
      %1130 = vmatpush.msra.mxu0 0.0
      %1131 = vmatpush.msra.mxu0 0.0
      %1132 = vmatpush.msra.mxu0 0.0
      %1133 = vmatpush.msra.mxu0 0.0
      %1134 = vmatpush.msra.mxu0 0.0
      %1135 = vmatpush.msra.mxu0 0.0
      %1136 = vmatpush.msra.mxu0 0.0
      %1137 = vmatpush.msra.mxu0 0.0
      %1138 = vmatpush.msra.mxu0 %v967
      %1139 = vmatmul.f32.gmra.mxu0 %v951
      %v1140 = vpop.f32.mrf.mxu0
      %v1141 = vadd.f32 %v782, %v1140
      %1142 = vdwg.mxu0
      %1143 = vmatpush.msra.mxu0 0.0
      %1144 = vmatpush.msra.mxu0 0.0
      %1145 = vmatpush.msra.mxu0 0.0
      %1146 = vmatpush.msra.mxu0 0.0
      %1147 = vmatpush.msra.mxu0 0.0
      %1148 = vmatpush.msra.mxu0 0.0
      %1149 = vmatpush.msra.mxu0 0.0
      %1150 = vmatpush.msra.mxu0 0.0
      %1151 = vmatpush.msra.mxu0 0.0
      %1152 = vmatpush.msra.mxu0 0.0
      %1153 = vmatpush.msra.mxu0 0.0
      %1154 = vmatpush.msra.mxu0 0.0
      %1155 = vmatpush.msra.mxu0 0.0
      %1156 = vmatpush.msra.mxu0 0.0
      %1157 = vmatpush.msra.mxu0 0.0
      %1158 = vmatpush.msra.mxu0 %v969
      %1159 = vmatmul.f32.gmra.mxu0 %v951
      %v1160 = vpop.f32.mrf.mxu0
      %v1161 = vadd.f32 %v802, %v1160
      %1162 = vdwg.mxu0
      %1163 = vmatpush.msra.mxu0 0.0
      %1164 = vmatpush.msra.mxu0 0.0
      %1165 = vmatpush.msra.mxu0 0.0
      %1166 = vmatpush.msra.mxu0 0.0
      %1167 = vmatpush.msra.mxu0 0.0
      %1168 = vmatpush.msra.mxu0 0.0
      %1169 = vmatpush.msra.mxu0 0.0
      %1170 = vmatpush.msra.mxu0 0.0
      %1171 = vmatpush.msra.mxu0 0.0
      %1172 = vmatpush.msra.mxu0 0.0
      %1173 = vmatpush.msra.mxu0 0.0
      %1174 = vmatpush.msra.mxu0 0.0
      %1175 = vmatpush.msra.mxu0 0.0
      %1176 = vmatpush.msra.mxu0 0.0
      %1177 = vmatpush.msra.mxu0 0.0
      %1178 = vmatpush.msra.mxu0 %v971
      %1179 = vmatmul.f32.gmra.mxu0 %v951
      %v1180 = vpop.f32.mrf.mxu0
      %v1181 = vadd.f32 %v822, %v1180
      %1182 = vdwg.mxu0
      %1183 = vmatpush.msra.mxu0 0.0
      %1184 = vmatpush.msra.mxu0 0.0
      %1185 = vmatpush.msra.mxu0 0.0
      %1186 = vmatpush.msra.mxu0 0.0
      %1187 = vmatpush.msra.mxu0 0.0
      %1188 = vmatpush.msra.mxu0 0.0
      %1189 = vmatpush.msra.mxu0 0.0
      %1190 = vmatpush.msra.mxu0 0.0
      %1191 = vmatpush.msra.mxu0 0.0
      %1192 = vmatpush.msra.mxu0 0.0
      %1193 = vmatpush.msra.mxu0 0.0
      %1194 = vmatpush.msra.mxu0 0.0
      %1195 = vmatpush.msra.mxu0 0.0
      %1196 = vmatpush.msra.mxu0 0.0
      %1197 = vmatpush.msra.mxu0 0.0
      %1198 = vmatpush.msra.mxu0 %v973
      %1199 = vmatmul.f32.gmra.mxu0 %v951
      %v1200 = vpop.f32.mrf.mxu0
      %v1201 = vadd.f32 %v842, %v1200
      %1202 = vdwg.mxu0
      %1203 = vmatpush.msra.mxu0 0.0
      %1204 = vmatpush.msra.mxu0 0.0
      %1205 = vmatpush.msra.mxu0 0.0
      %1206 = vmatpush.msra.mxu0 0.0
      %1207 = vmatpush.msra.mxu0 0.0
      %1208 = vmatpush.msra.mxu0 0.0
      %1209 = vmatpush.msra.mxu0 0.0
      %1210 = vmatpush.msra.mxu0 0.0
      %1211 = vmatpush.msra.mxu0 0.0
      %1212 = vmatpush.msra.mxu0 0.0
      %1213 = vmatpush.msra.mxu0 0.0
      %1214 = vmatpush.msra.mxu0 0.0
      %1215 = vmatpush.msra.mxu0 0.0
      %1216 = vmatpush.msra.mxu0 0.0
      %1217 = vmatpush.msra.mxu0 0.0
      %1218 = vmatpush.msra.mxu0 %v975
      %1219 = vmatmul.f32.gmra.mxu0 %v951
      %v1220 = vpop.f32.mrf.mxu0
      %v1221 = vadd.f32 %v862, %v1220
      %1222 = vdwg.mxu0
      %1223 = vmatpush.msra.mxu0 0.0
      %1224 = vmatpush.msra.mxu0 0.0
      %1225 = vmatpush.msra.mxu0 0.0
      %1226 = vmatpush.msra.mxu0 0.0
      %1227 = vmatpush.msra.mxu0 0.0
      %1228 = vmatpush.msra.mxu0 0.0
      %1229 = vmatpush.msra.mxu0 0.0
      %1230 = vmatpush.msra.mxu0 0.0
      %1231 = vmatpush.msra.mxu0 0.0
      %1232 = vmatpush.msra.mxu0 0.0
      %1233 = vmatpush.msra.mxu0 0.0
      %1234 = vmatpush.msra.mxu0 0.0
      %1235 = vmatpush.msra.mxu0 0.0
      %1236 = vmatpush.msra.mxu0 0.0
      %1237 = vmatpush.msra.mxu0 0.0
      %1238 = vmatpush.msra.mxu0 %v977
      %1239 = vmatmul.f32.gmra.mxu0 %v951
      %v1240 = vpop.f32.mrf.mxu0
      %v1241 = vadd.f32 %v882, %v1240
      %1242 = vdwg.mxu0
      %1243 = vmatpush.msra.mxu0 0.0
      %1244 = vmatpush.msra.mxu0 0.0
      %1245 = vmatpush.msra.mxu0 0.0
      %1246 = vmatpush.msra.mxu0 0.0
      %1247 = vmatpush.msra.mxu0 0.0
      %1248 = vmatpush.msra.mxu0 0.0
      %1249 = vmatpush.msra.mxu0 0.0
      %1250 = vmatpush.msra.mxu0 0.0
      %1251 = vmatpush.msra.mxu0 0.0
      %1252 = vmatpush.msra.mxu0 0.0
      %1253 = vmatpush.msra.mxu0 0.0
      %1254 = vmatpush.msra.mxu0 0.0
      %1255 = vmatpush.msra.mxu0 0.0
      %1256 = vmatpush.msra.mxu0 0.0
      %1257 = vmatpush.msra.mxu0 0.0
      %1258 = vmatpush.msra.mxu0 %v979
      %1259 = vmatmul.f32.gmra.mxu0 %v951
      %v1260 = vpop.f32.mrf.mxu0
      %v1261 = vadd.f32 %v902, %v1260
      %1262 = vdwg.mxu0
      %1263 = vmatpush.msra.mxu0 0.0
      %1264 = vmatpush.msra.mxu0 0.0
      %1265 = vmatpush.msra.mxu0 0.0
      %1266 = vmatpush.msra.mxu0 0.0
      %1267 = vmatpush.msra.mxu0 0.0
      %1268 = vmatpush.msra.mxu0 0.0
      %1269 = vmatpush.msra.mxu0 0.0
      %1270 = vmatpush.msra.mxu0 0.0
      %1271 = vmatpush.msra.mxu0 0.0
      %1272 = vmatpush.msra.mxu0 0.0
      %1273 = vmatpush.msra.mxu0 0.0
      %1274 = vmatpush.msra.mxu0 0.0
      %1275 = vmatpush.msra.mxu0 0.0
      %1276 = vmatpush.msra.mxu0 0.0
      %1277 = vmatpush.msra.mxu0 0.0
      %1278 = vmatpush.msra.mxu0 %v981
      %1279 = vmatmul.f32.gmra.mxu0 %v951
      %v1280 = vpop.f32.mrf.mxu0
      %v1281 = vadd.f32 %v922, %v1280
      %1282 = vdwg.mxu0
      %s1283 = scalar_lea.vmem %s1, 16
      %v1284 = vld [vmem:[%s1283] sm:$0xff]
      %1285 = vst [vmem:[#allocation1] ss:$2 sm:$0xff] %v499
      %s1286 = scalar_lea.vmem [#allocation1], 16
      %1287 = vst [vmem:[%s1286] ss:$2 sm:$0xff] %v500
      %s1288 = scalar_lea.vmem [#allocation1], 32
      %1289 = vst [vmem:[%s1288] ss:$2 sm:$0xff] %v501
      %s1290 = scalar_lea.vmem [#allocation1], 48
      %1291 = vst [vmem:[%s1290] ss:$2 sm:$0xff] %v502
      %v1292 = vld.sshfl [vmem:[#allocation1] sm:$0xff pattern:$0x75316420]
      %v1293 = vld.sshfl [vmem:[#allocation1 + $0x8] sm:$0xff pattern:$0x75316420]
      %v1294 = vld.sshfl [vmem:[#allocation1 + $0x10] sm:$0xff pattern:$0x75316420]
      %v1295 = vld.sshfl [vmem:[#allocation1 + $0x18] sm:$0xff pattern:$0x75316420]
      %v1296 = vld.sshfl [vmem:[#allocation1 + $0x20] sm:$0xff pattern:$0x75316420]
      %v1297 = vld.sshfl [vmem:[#allocation1 + $0x28] sm:$0xff pattern:$0x75316420]
      %v1298 = vld.sshfl [vmem:[#allocation1 + $0x30] sm:$0xff pattern:$0x75316420]
      %v1299 = vld.sshfl [vmem:[#allocation1 + $0x38] sm:$0xff pattern:$0x75316420]
      %1300 = vst [vmem:[#allocation1] ss:$2 sm:$0xff] %v503
      %1301 = vst [vmem:[%s1286] ss:$2 sm:$0xff] %v504
      %1302 = vst [vmem:[%s1288] ss:$2 sm:$0xff] %v505
      %1303 = vst [vmem:[%s1290] ss:$2 sm:$0xff] %v506
      %v1304 = vld.sshfl [vmem:[#allocation1] sm:$0xff pattern:$0x75316420]
      %v1305 = vld.sshfl [vmem:[#allocation1 + $0x8] sm:$0xff pattern:$0x75316420]
      %v1306 = vld.sshfl [vmem:[#allocation1 + $0x10] sm:$0xff pattern:$0x75316420]
      %v1307 = vld.sshfl [vmem:[#allocation1 + $0x18] sm:$0xff pattern:$0x75316420]
      %v1308 = vld.sshfl [vmem:[#allocation1 + $0x20] sm:$0xff pattern:$0x75316420]
      %v1309 = vld.sshfl [vmem:[#allocation1 + $0x28] sm:$0xff pattern:$0x75316420]
      %v1310 = vld.sshfl [vmem:[#allocation1 + $0x30] sm:$0xff pattern:$0x75316420]
      %1311 = vrot.lane.b32.xlu0 %v1292, 126
      %v1312 = vpop.permute.xlu0 %1311
      %1313 = vrot.lane.b32.xlu0 %v1293, 126
      %v1314 = vpop.permute.xlu0 %1313
      %1315 = vrot.lane.b32.xlu0 %v1294, 126
      %v1316 = vpop.permute.xlu0 %1315
      %1317 = vrot.lane.b32.xlu0 %v1295, 126
      %v1318 = vpop.permute.xlu0 %1317
      %1319 = vrot.lane.b32.xlu0 %v1296, 126
      %v1320 = vpop.permute.xlu0 %1319
      %1321 = vrot.lane.b32.xlu0 %v1297, 126
      %v1322 = vpop.permute.xlu0 %1321
      %1323 = vrot.lane.b32.xlu0 %v1298, 126
      %v1324 = vpop.permute.xlu0 %1323
      %1325 = vrot.lane.b32.xlu0 %v1299, 126
      %v1326 = vpop.permute.xlu0 %1325
      %1327 = vrot.lane.b32.xlu0 %v1304, 126
      %v1328 = vpop.permute.xlu0 %1327
      %1329 = vrot.lane.b32.xlu0 %v1305, 126
      %v1330 = vpop.permute.xlu0 %1329
      %1331 = vrot.lane.b32.xlu0 %v1306, 126
      %v1332 = vpop.permute.xlu0 %1331
      %1333 = vrot.lane.b32.xlu0 %v1307, 126
      %v1334 = vpop.permute.xlu0 %1333
      %1335 = vrot.lane.b32.xlu0 %v1308, 126
      %v1336 = vpop.permute.xlu0 %1335
      %1337 = vrot.lane.b32.xlu0 %v1309, 126
      %v1338 = vpop.permute.xlu0 %1337
      %1339 = vrot.lane.b32.xlu0 %v1310, 126
      %v1340 = vpop.permute.xlu0 %1339
      %vm1341 = vcmask 1031168
      %v1342 = vsel %vm1341, %v1312, %v1314
      %v1343 = vsel %vm1341, %v1314, %v1316
      %v1344 = vsel %vm1341, %v1316, %v1318
      %v1345 = vsel %vm1341, %v1318, %v1320
      %v1346 = vsel %vm1341, %v1320, %v1322
      %v1347 = vsel %vm1341, %v1322, %v1324
      %v1348 = vsel %vm1341, %v1324, %v1326
      %v1349 = vsel %vm1341, %v1326, %v1328
      %v1350 = vsel %vm1341, %v1328, %v1330
      %v1351 = vsel %vm1341, %v1330, %v1332
      %v1352 = vsel %vm1341, %v1332, %v1334
      %v1353 = vsel %vm1341, %v1334, %v1336
      %v1354 = vsel %vm1341, %v1336, %v1338
      %v1355 = vsel %vm1341, %v1338, %v1340
      %v1357 = vsel %vm589, %v1284, 0
      %v1359 = vsel %vm593, %v1342, 0
      %v1361 = vsel %vm593, %v1343, 0
      %v1363 = vsel %vm593, %v1344, 0
      %v1365 = vsel %vm593, %v1345, 0
      %v1367 = vsel %vm593, %v1346, 0
      %v1369 = vsel %vm593, %v1347, 0
      %v1371 = vsel %vm593, %v1348, 0
      %v1373 = vsel %vm593, %v1349, 0
      %v1375 = vsel %vm593, %v1350, 0
      %v1377 = vsel %vm593, %v1351, 0
      %v1379 = vsel %vm593, %v1352, 0
      %v1381 = vsel %vm593, %v1353, 0
      %v1383 = vsel %vm593, %v1354, 0
      %v1385 = vsel %vm593, %v1355, 0
      %v1387 = vsel %vm593, %v1340, 0
      %1389 = vmatpush.msra.mxu0 0.0
      %1390 = vmatpush.msra.mxu0 0.0
      %1391 = vmatpush.msra.mxu0 0.0
      %1392 = vmatpush.msra.mxu0 0.0
      %1393 = vmatpush.msra.mxu0 0.0
      %1394 = vmatpush.msra.mxu0 0.0
      %1395 = vmatpush.msra.mxu0 0.0
      %1396 = vmatpush.msra.mxu0 0.0
      %1397 = vmatpush.msra.mxu0 0.0
      %1398 = vmatpush.msra.mxu0 0.0
      %1399 = vmatpush.msra.mxu0 0.0
      %1400 = vmatpush.msra.mxu0 0.0
      %1401 = vmatpush.msra.mxu0 0.0
      %1402 = vmatpush.msra.mxu0 0.0
      %1403 = vmatpush.msra.mxu0 0.0
      %1404 = vmatpush.msra.mxu0 %v1359
      %1405 = vmatmul.f32.gmra.mxu0 %v1357
      %v1406 = vpop.f32.mrf.mxu0
      %v1407 = vadd.f32 0.0, %v1406
      %1408 = vdwg.mxu0
      %1409 = vmatpush.msra.mxu0 0.0
      %1410 = vmatpush.msra.mxu0 0.0
      %1411 = vmatpush.msra.mxu0 0.0
      %1412 = vmatpush.msra.mxu0 0.0
      %1413 = vmatpush.msra.mxu0 0.0
      %1414 = vmatpush.msra.mxu0 0.0
      %1415 = vmatpush.msra.mxu0 0.0
      %1416 = vmatpush.msra.mxu0 0.0
      %1417 = vmatpush.msra.mxu0 0.0
      %1418 = vmatpush.msra.mxu0 0.0
      %1419 = vmatpush.msra.mxu0 0.0
      %1420 = vmatpush.msra.mxu0 0.0
      %1421 = vmatpush.msra.mxu0 0.0
      %1422 = vmatpush.msra.mxu0 0.0
      %1423 = vmatpush.msra.mxu0 0.0
      %1424 = vmatpush.msra.mxu0 %v1361
      %1425 = vmatmul.f32.gmra.mxu0 %v1357
      %v1426 = vpop.f32.mrf.mxu0
      %v1427 = vadd.f32 0.0, %v1426
      %1428 = vdwg.mxu0
      %1429 = vmatpush.msra.mxu0 0.0
      %1430 = vmatpush.msra.mxu0 0.0
      %1431 = vmatpush.msra.mxu0 0.0
      %1432 = vmatpush.msra.mxu0 0.0
      %1433 = vmatpush.msra.mxu0 0.0
      %1434 = vmatpush.msra.mxu0 0.0
      %1435 = vmatpush.msra.mxu0 0.0
      %1436 = vmatpush.msra.mxu0 0.0
      %1437 = vmatpush.msra.mxu0 0.0
      %1438 = vmatpush.msra.mxu0 0.0
      %1439 = vmatpush.msra.mxu0 0.0
      %1440 = vmatpush.msra.mxu0 0.0
      %1441 = vmatpush.msra.mxu0 0.0
      %1442 = vmatpush.msra.mxu0 0.0
      %1443 = vmatpush.msra.mxu0 0.0
      %1444 = vmatpush.msra.mxu0 %v1363
      %1445 = vmatmul.f32.gmra.mxu0 %v1357
      %v1446 = vpop.f32.mrf.mxu0
      %v1447 = vadd.f32 0.0, %v1446
      %1448 = vdwg.mxu0
      %1449 = vmatpush.msra.mxu0 0.0
      %1450 = vmatpush.msra.mxu0 0.0
      %1451 = vmatpush.msra.mxu0 0.0
      %1452 = vmatpush.msra.mxu0 0.0
      %1453 = vmatpush.msra.mxu0 0.0
      %1454 = vmatpush.msra.mxu0 0.0
      %1455 = vmatpush.msra.mxu0 0.0
      %1456 = vmatpush.msra.mxu0 0.0
      %1457 = vmatpush.msra.mxu0 0.0
      %1458 = vmatpush.msra.mxu0 0.0
      %1459 = vmatpush.msra.mxu0 0.0
      %1460 = vmatpush.msra.mxu0 0.0
      %1461 = vmatpush.msra.mxu0 0.0
      %1462 = vmatpush.msra.mxu0 0.0
      %1463 = vmatpush.msra.mxu0 0.0
      %1464 = vmatpush.msra.mxu0 %v1365
      %1465 = vmatmul.f32.gmra.mxu0 %v1357
      %v1466 = vpop.f32.mrf.mxu0
      %v1467 = vadd.f32 0.0, %v1466
      %1468 = vdwg.mxu0
      %1469 = vmatpush.msra.mxu0 0.0
      %1470 = vmatpush.msra.mxu0 0.0
      %1471 = vmatpush.msra.mxu0 0.0
      %1472 = vmatpush.msra.mxu0 0.0
      %1473 = vmatpush.msra.mxu0 0.0
      %1474 = vmatpush.msra.mxu0 0.0
      %1475 = vmatpush.msra.mxu0 0.0
      %1476 = vmatpush.msra.mxu0 0.0
      %1477 = vmatpush.msra.mxu0 0.0
      %1478 = vmatpush.msra.mxu0 0.0
      %1479 = vmatpush.msra.mxu0 0.0
      %1480 = vmatpush.msra.mxu0 0.0
      %1481 = vmatpush.msra.mxu0 0.0
      %1482 = vmatpush.msra.mxu0 0.0
      %1483 = vmatpush.msra.mxu0 0.0
      %1484 = vmatpush.msra.mxu0 %v1367
      %1485 = vmatmul.f32.gmra.mxu0 %v1357
      %v1486 = vpop.f32.mrf.mxu0
      %v1487 = vadd.f32 0.0, %v1486
      %1488 = vdwg.mxu0
      %1489 = vmatpush.msra.mxu0 0.0
      %1490 = vmatpush.msra.mxu0 0.0
      %1491 = vmatpush.msra.mxu0 0.0
      %1492 = vmatpush.msra.mxu0 0.0
      %1493 = vmatpush.msra.mxu0 0.0
      %1494 = vmatpush.msra.mxu0 0.0
      %1495 = vmatpush.msra.mxu0 0.0
      %1496 = vmatpush.msra.mxu0 0.0
      %1497 = vmatpush.msra.mxu0 0.0
      %1498 = vmatpush.msra.mxu0 0.0
      %1499 = vmatpush.msra.mxu0 0.0
      %1500 = vmatpush.msra.mxu0 0.0
      %1501 = vmatpush.msra.mxu0 0.0
      %1502 = vmatpush.msra.mxu0 0.0
      %1503 = vmatpush.msra.mxu0 0.0
      %1504 = vmatpush.msra.mxu0 %v1369
      %1505 = vmatmul.f32.gmra.mxu0 %v1357
      %v1506 = vpop.f32.mrf.mxu0
      %v1507 = vadd.f32 0.0, %v1506
      %1508 = vdwg.mxu0
      %1509 = vmatpush.msra.mxu0 0.0
      %1510 = vmatpush.msra.mxu0 0.0
      %1511 = vmatpush.msra.mxu0 0.0
      %1512 = vmatpush.msra.mxu0 0.0
      %1513 = vmatpush.msra.mxu0 0.0
      %1514 = vmatpush.msra.mxu0 0.0
      %1515 = vmatpush.msra.mxu0 0.0
      %1516 = vmatpush.msra.mxu0 0.0
      %1517 = vmatpush.msra.mxu0 0.0
      %1518 = vmatpush.msra.mxu0 0.0
      %1519 = vmatpush.msra.mxu0 0.0
      %1520 = vmatpush.msra.mxu0 0.0
      %1521 = vmatpush.msra.mxu0 0.0
      %1522 = vmatpush.msra.mxu0 0.0
      %1523 = vmatpush.msra.mxu0 0.0
      %1524 = vmatpush.msra.mxu0 %v1371
      %1525 = vmatmul.f32.gmra.mxu0 %v1357
      %v1526 = vpop.f32.mrf.mxu0
      %v1527 = vadd.f32 0.0, %v1526
      %1528 = vdwg.mxu0
      %1529 = vmatpush.msra.mxu0 0.0
      %1530 = vmatpush.msra.mxu0 0.0
      %1531 = vmatpush.msra.mxu0 0.0
      %1532 = vmatpush.msra.mxu0 0.0
      %1533 = vmatpush.msra.mxu0 0.0
      %1534 = vmatpush.msra.mxu0 0.0
      %1535 = vmatpush.msra.mxu0 0.0
      %1536 = vmatpush.msra.mxu0 0.0
      %1537 = vmatpush.msra.mxu0 0.0
      %1538 = vmatpush.msra.mxu0 0.0
      %1539 = vmatpush.msra.mxu0 0.0
      %1540 = vmatpush.msra.mxu0 0.0
      %1541 = vmatpush.msra.mxu0 0.0
      %1542 = vmatpush.msra.mxu0 0.0
      %1543 = vmatpush.msra.mxu0 0.0
      %1544 = vmatpush.msra.mxu0 %v1373
      %1545 = vmatmul.f32.gmra.mxu0 %v1357
      %v1546 = vpop.f32.mrf.mxu0
      %v1547 = vadd.f32 0.0, %v1546
      %1548 = vdwg.mxu0
      %1549 = vmatpush.msra.mxu0 0.0
      %1550 = vmatpush.msra.mxu0 0.0
      %1551 = vmatpush.msra.mxu0 0.0
      %1552 = vmatpush.msra.mxu0 0.0
      %1553 = vmatpush.msra.mxu0 0.0
      %1554 = vmatpush.msra.mxu0 0.0
      %1555 = vmatpush.msra.mxu0 0.0
      %1556 = vmatpush.msra.mxu0 0.0
      %1557 = vmatpush.msra.mxu0 0.0
      %1558 = vmatpush.msra.mxu0 0.0
      %1559 = vmatpush.msra.mxu0 0.0
      %1560 = vmatpush.msra.mxu0 0.0
      %1561 = vmatpush.msra.mxu0 0.0
      %1562 = vmatpush.msra.mxu0 0.0
      %1563 = vmatpush.msra.mxu0 0.0
      %1564 = vmatpush.msra.mxu0 %v1375
      %1565 = vmatmul.f32.gmra.mxu0 %v1357
      %v1566 = vpop.f32.mrf.mxu0
      %v1567 = vadd.f32 0.0, %v1566
      %1568 = vdwg.mxu0
      %1569 = vmatpush.msra.mxu0 0.0
      %1570 = vmatpush.msra.mxu0 0.0
      %1571 = vmatpush.msra.mxu0 0.0
      %1572 = vmatpush.msra.mxu0 0.0
      %1573 = vmatpush.msra.mxu0 0.0
      %1574 = vmatpush.msra.mxu0 0.0
      %1575 = vmatpush.msra.mxu0 0.0
      %1576 = vmatpush.msra.mxu0 0.0
      %1577 = vmatpush.msra.mxu0 0.0
      %1578 = vmatpush.msra.mxu0 0.0
      %1579 = vmatpush.msra.mxu0 0.0
      %1580 = vmatpush.msra.mxu0 0.0
      %1581 = vmatpush.msra.mxu0 0.0
      %1582 = vmatpush.msra.mxu0 0.0
      %1583 = vmatpush.msra.mxu0 0.0
      %1584 = vmatpush.msra.mxu0 %v1377
      %1585 = vmatmul.f32.gmra.mxu0 %v1357
      %v1586 = vpop.f32.mrf.mxu0
      %v1587 = vadd.f32 0.0, %v1586
      %1588 = vdwg.mxu0
      %1589 = vmatpush.msra.mxu0 0.0
      %1590 = vmatpush.msra.mxu0 0.0
      %1591 = vmatpush.msra.mxu0 0.0
      %1592 = vmatpush.msra.mxu0 0.0
      %1593 = vmatpush.msra.mxu0 0.0
      %1594 = vmatpush.msra.mxu0 0.0
      %1595 = vmatpush.msra.mxu0 0.0
      %1596 = vmatpush.msra.mxu0 0.0
      %1597 = vmatpush.msra.mxu0 0.0
      %1598 = vmatpush.msra.mxu0 0.0
      %1599 = vmatpush.msra.mxu0 0.0
      %1600 = vmatpush.msra.mxu0 0.0
      %1601 = vmatpush.msra.mxu0 0.0
      %1602 = vmatpush.msra.mxu0 0.0
      %1603 = vmatpush.msra.mxu0 0.0
      %1604 = vmatpush.msra.mxu0 %v1379
      %1605 = vmatmul.f32.gmra.mxu0 %v1357
      %v1606 = vpop.f32.mrf.mxu0
      %v1607 = vadd.f32 0.0, %v1606
      %1608 = vdwg.mxu0
      %1609 = vmatpush.msra.mxu0 0.0
      %1610 = vmatpush.msra.mxu0 0.0
      %1611 = vmatpush.msra.mxu0 0.0
      %1612 = vmatpush.msra.mxu0 0.0
      %1613 = vmatpush.msra.mxu0 0.0
      %1614 = vmatpush.msra.mxu0 0.0
      %1615 = vmatpush.msra.mxu0 0.0
      %1616 = vmatpush.msra.mxu0 0.0
      %1617 = vmatpush.msra.mxu0 0.0
      %1618 = vmatpush.msra.mxu0 0.0
      %1619 = vmatpush.msra.mxu0 0.0
      %1620 = vmatpush.msra.mxu0 0.0
      %1621 = vmatpush.msra.mxu0 0.0
      %1622 = vmatpush.msra.mxu0 0.0
      %1623 = vmatpush.msra.mxu0 0.0
      %1624 = vmatpush.msra.mxu0 %v1381
      %1625 = vmatmul.f32.gmra.mxu0 %v1357
      %v1626 = vpop.f32.mrf.mxu0
      %v1627 = vadd.f32 0.0, %v1626
      %1628 = vdwg.mxu0
      %1629 = vmatpush.msra.mxu0 0.0
      %1630 = vmatpush.msra.mxu0 0.0
      %1631 = vmatpush.msra.mxu0 0.0
      %1632 = vmatpush.msra.mxu0 0.0
      %1633 = vmatpush.msra.mxu0 0.0
      %1634 = vmatpush.msra.mxu0 0.0
      %1635 = vmatpush.msra.mxu0 0.0
      %1636 = vmatpush.msra.mxu0 0.0
      %1637 = vmatpush.msra.mxu0 0.0
      %1638 = vmatpush.msra.mxu0 0.0
      %1639 = vmatpush.msra.mxu0 0.0
      %1640 = vmatpush.msra.mxu0 0.0
      %1641 = vmatpush.msra.mxu0 0.0
      %1642 = vmatpush.msra.mxu0 0.0
      %1643 = vmatpush.msra.mxu0 0.0
      %1644 = vmatpush.msra.mxu0 %v1383
      %1645 = vmatmul.f32.gmra.mxu0 %v1357
      %v1646 = vpop.f32.mrf.mxu0
      %v1647 = vadd.f32 0.0, %v1646
      %1648 = vdwg.mxu0
      %1649 = vmatpush.msra.mxu0 0.0
      %1650 = vmatpush.msra.mxu0 0.0
      %1651 = vmatpush.msra.mxu0 0.0
      %1652 = vmatpush.msra.mxu0 0.0
      %1653 = vmatpush.msra.mxu0 0.0
      %1654 = vmatpush.msra.mxu0 0.0
      %1655 = vmatpush.msra.mxu0 0.0
      %1656 = vmatpush.msra.mxu0 0.0
      %1657 = vmatpush.msra.mxu0 0.0
      %1658 = vmatpush.msra.mxu0 0.0
      %1659 = vmatpush.msra.mxu0 0.0
      %1660 = vmatpush.msra.mxu0 0.0
      %1661 = vmatpush.msra.mxu0 0.0
      %1662 = vmatpush.msra.mxu0 0.0
      %1663 = vmatpush.msra.mxu0 0.0
      %1664 = vmatpush.msra.mxu0 %v1385
      %1665 = vmatmul.f32.gmra.mxu0 %v1357
      %v1666 = vpop.f32.mrf.mxu0
      %v1667 = vadd.f32 0.0, %v1666
      %1668 = vdwg.mxu0
      %1669 = vmatpush.msra.mxu0 0.0
      %1670 = vmatpush.msra.mxu0 0.0
      %1671 = vmatpush.msra.mxu0 0.0
      %1672 = vmatpush.msra.mxu0 0.0
      %1673 = vmatpush.msra.mxu0 0.0
      %1674 = vmatpush.msra.mxu0 0.0
      %1675 = vmatpush.msra.mxu0 0.0
      %1676 = vmatpush.msra.mxu0 0.0
      %1677 = vmatpush.msra.mxu0 0.0
      %1678 = vmatpush.msra.mxu0 0.0
      %1679 = vmatpush.msra.mxu0 0.0
      %1680 = vmatpush.msra.mxu0 0.0
      %1681 = vmatpush.msra.mxu0 0.0
      %1682 = vmatpush.msra.mxu0 0.0
      %1683 = vmatpush.msra.mxu0 0.0
      %1684 = vmatpush.msra.mxu0 %v1387
      %1685 = vmatmul.f32.gmra.mxu0 %v1357
      %v1686 = vpop.f32.mrf.mxu0
      %v1687 = vadd.f32 0.0, %v1686
      %1688 = vdwg.mxu0
      %v1689 = vadd.f32 %v1001, %v1407
      %v1690 = vadd.f32 %v1021, %v1427
      %v1691 = vadd.f32 %v1041, %v1447
      %v1692 = vadd.f32 %v1061, %v1467
      %v1693 = vadd.f32 %v1081, %v1487
      %v1694 = vadd.f32 %v1101, %v1507
      %v1695 = vadd.f32 %v1121, %v1527
      %v1696 = vadd.f32 %v1141, %v1547
      %v1697 = vadd.f32 %v1161, %v1567
      %v1698 = vadd.f32 %v1181, %v1587
      %v1699 = vadd.f32 %v1201, %v1607
      %v1700 = vadd.f32 %v1221, %v1627
      %v1701 = vadd.f32 %v1241, %v1647
      %v1702 = vadd.f32 %v1261, %v1667
      %v1703 = vadd.f32 %v1281, %v1687
      %s1704 = scalar_lea.vmem %s1, 24
      %v1705 = vld [vmem:[%s1704] sm:$0xff]
      %1706 = vst [vmem:[#allocation1] ss:$2 sm:$0xff] %v499
      %s1707 = scalar_lea.vmem [#allocation1], 16
      %1708 = vst [vmem:[%s1707] ss:$2 sm:$0xff] %v500
      %s1709 = scalar_lea.vmem [#allocation1], 32
      %1710 = vst [vmem:[%s1709] ss:$2 sm:$0xff] %v501
      %s1711 = scalar_lea.vmem [#allocation1], 48
      %1712 = vst [vmem:[%s1711] ss:$2 sm:$0xff] %v502
      %v1713 = vld.sshfl [vmem:[#allocation1] sm:$0xff pattern:$0x75316420]
      %v1714 = vld.sshfl [vmem:[#allocation1 + $0x8] sm:$0xff pattern:$0x75316420]
      %v1715 = vld.sshfl [vmem:[#allocation1 + $0x10] sm:$0xff pattern:$0x75316420]
      %v1716 = vld.sshfl [vmem:[#allocation1 + $0x18] sm:$0xff pattern:$0x75316420]
      %v1717 = vld.sshfl [vmem:[#allocation1 + $0x20] sm:$0xff pattern:$0x75316420]
      %v1718 = vld.sshfl [vmem:[#allocation1 + $0x28] sm:$0xff pattern:$0x75316420]
      %v1719 = vld.sshfl [vmem:[#allocation1 + $0x30] sm:$0xff pattern:$0x75316420]
      %v1720 = vld.sshfl [vmem:[#allocation1 + $0x38] sm:$0xff pattern:$0x75316420]
      %1721 = vst [vmem:[#allocation1] ss:$2 sm:$0xff] %v503
      %1722 = vst [vmem:[%s1707] ss:$2 sm:$0xff] %v504
      %1723 = vst [vmem:[%s1709] ss:$2 sm:$0xff] %v505
      %1724 = vst [vmem:[%s1711] ss:$2 sm:$0xff] %v506
      %v1725 = vld.sshfl [vmem:[#allocation1] sm:$0xff pattern:$0x75316420]
      %v1726 = vld.sshfl [vmem:[#allocation1 + $0x8] sm:$0xff pattern:$0x75316420]
      %v1727 = vld.sshfl [vmem:[#allocation1 + $0x10] sm:$0xff pattern:$0x75316420]
      %v1728 = vld.sshfl [vmem:[#allocation1 + $0x18] sm:$0xff pattern:$0x75316420]
      %v1729 = vld.sshfl [vmem:[#allocation1 + $0x20] sm:$0xff pattern:$0x75316420]
      %v1730 = vld.sshfl [vmem:[#allocation1 + $0x28] sm:$0xff pattern:$0x75316420]
      %v1731 = vld.sshfl [vmem:[#allocation1 + $0x30] sm:$0xff pattern:$0x75316420]
      %1732 = vrot.lane.b32.xlu0 %v1713, 84
      %v1733 = vpop.permute.xlu0 %1732
      %1734 = vrot.lane.b32.xlu0 %v1714, 84
      %v1735 = vpop.permute.xlu0 %1734
      %1736 = vrot.lane.b32.xlu0 %v1715, 84
      %v1737 = vpop.permute.xlu0 %1736
      %1738 = vrot.lane.b32.xlu0 %v1716, 84
      %v1739 = vpop.permute.xlu0 %1738
      %1740 = vrot.lane.b32.xlu0 %v1717, 84
      %v1741 = vpop.permute.xlu0 %1740
      %1742 = vrot.lane.b32.xlu0 %v1718, 84
      %v1743 = vpop.permute.xlu0 %1742
      %1744 = vrot.lane.b32.xlu0 %v1719, 84
      %v1745 = vpop.permute.xlu0 %1744
      %1746 = vrot.lane.b32.xlu0 %v1720, 84
      %v1747 = vpop.permute.xlu0 %1746
      %1748 = vrot.lane.b32.xlu0 %v1725, 84
      %v1749 = vpop.permute.xlu0 %1748
      %1750 = vrot.lane.b32.xlu0 %v1726, 84
      %v1751 = vpop.permute.xlu0 %1750
      %1752 = vrot.lane.b32.xlu0 %v1727, 84
      %v1753 = vpop.permute.xlu0 %1752
      %1754 = vrot.lane.b32.xlu0 %v1728, 84
      %v1755 = vpop.permute.xlu0 %1754
      %1756 = vrot.lane.b32.xlu0 %v1729, 84
      %v1757 = vpop.permute.xlu0 %1756
      %1758 = vrot.lane.b32.xlu0 %v1730, 84
      %v1759 = vpop.permute.xlu0 %1758
      %1760 = vrot.lane.b32.xlu0 %v1731, 84
      %v1761 = vpop.permute.xlu0 %1760
      %vm1762 = vcmask 687104
      %v1763 = vsel %vm1762, %v1733, %v1735
      %v1764 = vsel %vm1762, %v1735, %v1737
      %v1765 = vsel %vm1762, %v1737, %v1739
      %v1766 = vsel %vm1762, %v1739, %v1741
      %v1767 = vsel %vm1762, %v1741, %v1743
      %v1768 = vsel %vm1762, %v1743, %v1745
      %v1769 = vsel %vm1762, %v1745, %v1747
      %v1770 = vsel %vm1762, %v1747, %v1749
      %v1771 = vsel %vm1762, %v1749, %v1751
      %v1772 = vsel %vm1762, %v1751, %v1753
      %v1773 = vsel %vm1762, %v1753, %v1755
      %v1774 = vsel %vm1762, %v1755, %v1757
      %v1775 = vsel %vm1762, %v1757, %v1759
      %v1776 = vsel %vm1762, %v1759, %v1761
      %v1778 = vsel %vm589, %v1705, 0
      %v1780 = vsel %vm593, %v1763, 0
      %v1782 = vsel %vm593, %v1764, 0
      %v1784 = vsel %vm593, %v1765, 0
      %v1786 = vsel %vm593, %v1766, 0
      %v1788 = vsel %vm593, %v1767, 0
      %v1790 = vsel %vm593, %v1768, 0
      %v1792 = vsel %vm593, %v1769, 0
      %v1794 = vsel %vm593, %v1770, 0
      %v1796 = vsel %vm593, %v1771, 0
      %v1798 = vsel %vm593, %v1772, 0
      %v1800 = vsel %vm593, %v1773, 0
      %v1802 = vsel %vm593, %v1774, 0
      %v1804 = vsel %vm593, %v1775, 0
      %v1806 = vsel %vm593, %v1776, 0
      %v1808 = vsel %vm593, %v1761, 0
      %1810 = vmatpush.msra.mxu0 0.0
      %1811 = vmatpush.msra.mxu0 0.0
      %1812 = vmatpush.msra.mxu0 0.0
      %1813 = vmatpush.msra.mxu0 0.0
      %1814 = vmatpush.msra.mxu0 0.0
      %1815 = vmatpush.msra.mxu0 0.0
      %1816 = vmatpush.msra.mxu0 0.0
      %1817 = vmatpush.msra.mxu0 0.0
      %1818 = vmatpush.msra.mxu0 0.0
      %1819 = vmatpush.msra.mxu0 0.0
      %1820 = vmatpush.msra.mxu0 0.0
      %1821 = vmatpush.msra.mxu0 0.0
      %1822 = vmatpush.msra.mxu0 0.0
      %1823 = vmatpush.msra.mxu0 0.0
      %1824 = vmatpush.msra.mxu0 0.0
      %1825 = vmatpush.msra.mxu0 %v1780
      %1826 = vmatmul.f32.gmra.mxu0 %v1778
      %v1827 = vpop.f32.mrf.mxu0
      %v1828 = vadd.f32 0.0, %v1827
      %1829 = vdwg.mxu0
      %1830 = vmatpush.msra.mxu0 0.0
      %1831 = vmatpush.msra.mxu0 0.0
      %1832 = vmatpush.msra.mxu0 0.0
      %1833 = vmatpush.msra.mxu0 0.0
      %1834 = vmatpush.msra.mxu0 0.0
      %1835 = vmatpush.msra.mxu0 0.0
      %1836 = vmatpush.msra.mxu0 0.0
      %1837 = vmatpush.msra.mxu0 0.0
      %1838 = vmatpush.msra.mxu0 0.0
      %1839 = vmatpush.msra.mxu0 0.0
      %1840 = vmatpush.msra.mxu0 0.0
      %1841 = vmatpush.msra.mxu0 0.0
      %1842 = vmatpush.msra.mxu0 0.0
      %1843 = vmatpush.msra.mxu0 0.0
      %1844 = vmatpush.msra.mxu0 0.0
      %1845 = vmatpush.msra.mxu0 %v1782
      %1846 = vmatmul.f32.gmra.mxu0 %v1778
      %v1847 = vpop.f32.mrf.mxu0
      %v1848 = vadd.f32 0.0, %v1847
      %1849 = vdwg.mxu0
      %1850 = vmatpush.msra.mxu0 0.0
      %1851 = vmatpush.msra.mxu0 0.0
      %1852 = vmatpush.msra.mxu0 0.0
      %1853 = vmatpush.msra.mxu0 0.0
      %1854 = vmatpush.msra.mxu0 0.0
      %1855 = vmatpush.msra.mxu0 0.0
      %1856 = vmatpush.msra.mxu0 0.0
      %1857 = vmatpush.msra.mxu0 0.0
      %1858 = vmatpush.msra.mxu0 0.0
      %1859 = vmatpush.msra.mxu0 0.0
      %1860 = vmatpush.msra.mxu0 0.0
      %1861 = vmatpush.msra.mxu0 0.0
      %1862 = vmatpush.msra.mxu0 0.0
      %1863 = vmatpush.msra.mxu0 0.0
      %1864 = vmatpush.msra.mxu0 0.0
      %1865 = vmatpush.msra.mxu0 %v1784
      %1866 = vmatmul.f32.gmra.mxu0 %v1778
      %v1867 = vpop.f32.mrf.mxu0
      %v1868 = vadd.f32 0.0, %v1867
      %1869 = vdwg.mxu0
      %1870 = vmatpush.msra.mxu0 0.0
      %1871 = vmatpush.msra.mxu0 0.0
      %1872 = vmatpush.msra.mxu0 0.0
      %1873 = vmatpush.msra.mxu0 0.0
      %1874 = vmatpush.msra.mxu0 0.0
      %1875 = vmatpush.msra.mxu0 0.0
      %1876 = vmatpush.msra.mxu0 0.0
      %1877 = vmatpush.msra.mxu0 0.0
      %1878 = vmatpush.msra.mxu0 0.0
      %1879 = vmatpush.msra.mxu0 0.0
      %1880 = vmatpush.msra.mxu0 0.0
      %1881 = vmatpush.msra.mxu0 0.0
      %1882 = vmatpush.msra.mxu0 0.0
      %1883 = vmatpush.msra.mxu0 0.0
      %1884 = vmatpush.msra.mxu0 0.0
      %1885 = vmatpush.msra.mxu0 %v1786
      %1886 = vmatmul.f32.gmra.mxu0 %v1778
      %v1887 = vpop.f32.mrf.mxu0
      %v1888 = vadd.f32 0.0, %v1887
      %1889 = vdwg.mxu0
      %1890 = vmatpush.msra.mxu0 0.0
      %1891 = vmatpush.msra.mxu0 0.0
      %1892 = vmatpush.msra.mxu0 0.0
      %1893 = vmatpush.msra.mxu0 0.0
      %1894 = vmatpush.msra.mxu0 0.0
      %1895 = vmatpush.msra.mxu0 0.0
      %1896 = vmatpush.msra.mxu0 0.0
      %1897 = vmatpush.msra.mxu0 0.0
      %1898 = vmatpush.msra.mxu0 0.0
      %1899 = vmatpush.msra.mxu0 0.0
      %1900 = vmatpush.msra.mxu0 0.0
      %1901 = vmatpush.msra.mxu0 0.0
      %1902 = vmatpush.msra.mxu0 0.0
      %1903 = vmatpush.msra.mxu0 0.0
      %1904 = vmatpush.msra.mxu0 0.0
      %1905 = vmatpush.msra.mxu0 %v1788
      %1906 = vmatmul.f32.gmra.mxu0 %v1778
      %v1907 = vpop.f32.mrf.mxu0
      %v1908 = vadd.f32 0.0, %v1907
      %1909 = vdwg.mxu0
      %1910 = vmatpush.msra.mxu0 0.0
      %1911 = vmatpush.msra.mxu0 0.0
      %1912 = vmatpush.msra.mxu0 0.0
      %1913 = vmatpush.msra.mxu0 0.0
      %1914 = vmatpush.msra.mxu0 0.0
      %1915 = vmatpush.msra.mxu0 0.0
      %1916 = vmatpush.msra.mxu0 0.0
      %1917 = vmatpush.msra.mxu0 0.0
      %1918 = vmatpush.msra.mxu0 0.0
      %1919 = vmatpush.msra.mxu0 0.0
      %1920 = vmatpush.msra.mxu0 0.0
      %1921 = vmatpush.msra.mxu0 0.0
      %1922 = vmatpush.msra.mxu0 0.0
      %1923 = vmatpush.msra.mxu0 0.0
      %1924 = vmatpush.msra.mxu0 0.0
      %1925 = vmatpush.msra.mxu0 %v1790
      %1926 = vmatmul.f32.gmra.mxu0 %v1778
      %v1927 = vpop.f32.mrf.mxu0
      %v1928 = vadd.f32 0.0, %v1927
      %1929 = vdwg.mxu0
      %1930 = vmatpush.msra.mxu0 0.0
      %1931 = vmatpush.msra.mxu0 0.0
      %1932 = vmatpush.msra.mxu0 0.0
      %1933 = vmatpush.msra.mxu0 0.0
      %1934 = vmatpush.msra.mxu0 0.0
      %1935 = vmatpush.msra.mxu0 0.0
      %1936 = vmatpush.msra.mxu0 0.0
      %1937 = vmatpush.msra.mxu0 0.0
      %1938 = vmatpush.msra.mxu0 0.0
      %1939 = vmatpush.msra.mxu0 0.0
      %1940 = vmatpush.msra.mxu0 0.0
      %1941 = vmatpush.msra.mxu0 0.0
      %1942 = vmatpush.msra.mxu0 0.0
      %1943 = vmatpush.msra.mxu0 0.0
      %1944 = vmatpush.msra.mxu0 0.0
      %1945 = vmatpush.msra.mxu0 %v1792
      %1946 = vmatmul.f32.gmra.mxu0 %v1778
      %v1947 = vpop.f32.mrf.mxu0
      %v1948 = vadd.f32 0.0, %v1947
      %1949 = vdwg.mxu0
      %1950 = vmatpush.msra.mxu0 0.0
      %1951 = vmatpush.msra.mxu0 0.0
      %1952 = vmatpush.msra.mxu0 0.0
      %1953 = vmatpush.msra.mxu0 0.0
      %1954 = vmatpush.msra.mxu0 0.0
      %1955 = vmatpush.msra.mxu0 0.0
      %1956 = vmatpush.msra.mxu0 0.0
      %1957 = vmatpush.msra.mxu0 0.0
      %1958 = vmatpush.msra.mxu0 0.0
      %1959 = vmatpush.msra.mxu0 0.0
      %1960 = vmatpush.msra.mxu0 0.0
      %1961 = vmatpush.msra.mxu0 0.0
      %1962 = vmatpush.msra.mxu0 0.0
      %1963 = vmatpush.msra.mxu0 0.0
      %1964 = vmatpush.msra.mxu0 0.0
      %1965 = vmatpush.msra.mxu0 %v1794
      %1966 = vmatmul.f32.gmra.mxu0 %v1778
      %v1967 = vpop.f32.mrf.mxu0
      %v1968 = vadd.f32 0.0, %v1967
      %1969 = vdwg.mxu0
      %1970 = vmatpush.msra.mxu0 0.0
      %1971 = vmatpush.msra.mxu0 0.0
      %1972 = vmatpush.msra.mxu0 0.0
      %1973 = vmatpush.msra.mxu0 0.0
      %1974 = vmatpush.msra.mxu0 0.0
      %1975 = vmatpush.msra.mxu0 0.0
      %1976 = vmatpush.msra.mxu0 0.0
      %1977 = vmatpush.msra.mxu0 0.0
      %1978 = vmatpush.msra.mxu0 0.0
      %1979 = vmatpush.msra.mxu0 0.0
      %1980 = vmatpush.msra.mxu0 0.0
      %1981 = vmatpush.msra.mxu0 0.0
      %1982 = vmatpush.msra.mxu0 0.0
      %1983 = vmatpush.msra.mxu0 0.0
      %1984 = vmatpush.msra.mxu0 0.0
      %1985 = vmatpush.msra.mxu0 %v1796
      %1986 = vmatmul.f32.gmra.mxu0 %v1778
      %v1987 = vpop.f32.mrf.mxu0
      %v1988 = vadd.f32 0.0, %v1987
      %1989 = vdwg.mxu0
      %1990 = vmatpush.msra.mxu0 0.0
      %1991 = vmatpush.msra.mxu0 0.0
      %1992 = vmatpush.msra.mxu0 0.0
      %1993 = vmatpush.msra.mxu0 0.0
      %1994 = vmatpush.msra.mxu0 0.0
      %1995 = vmatpush.msra.mxu0 0.0
      %1996 = vmatpush.msra.mxu0 0.0
      %1997 = vmatpush.msra.mxu0 0.0
      %1998 = vmatpush.msra.mxu0 0.0
      %1999 = vmatpush.msra.mxu0 0.0
      %2000 = vmatpush.msra.mxu0 0.0
      %2001 = vmatpush.msra.mxu0 0.0
      %2002 = vmatpush.msra.mxu0 0.0
      %2003 = vmatpush.msra.mxu0 0.0
      %2004 = vmatpush.msra.mxu0 0.0
      %2005 = vmatpush.msra.mxu0 %v1798
      %2006 = vmatmul.f32.gmra.mxu0 %v1778
      %v2007 = vpop.f32.mrf.mxu0
      %v2008 = vadd.f32 0.0, %v2007
      %2009 = vdwg.mxu0
      %2010 = vmatpush.msra.mxu0 0.0
      %2011 = vmatpush.msra.mxu0 0.0
      %2012 = vmatpush.msra.mxu0 0.0
      %2013 = vmatpush.msra.mxu0 0.0
      %2014 = vmatpush.msra.mxu0 0.0
      %2015 = vmatpush.msra.mxu0 0.0
      %2016 = vmatpush.msra.mxu0 0.0
      %2017 = vmatpush.msra.mxu0 0.0
      %2018 = vmatpush.msra.mxu0 0.0
      %2019 = vmatpush.msra.mxu0 0.0
      %2020 = vmatpush.msra.mxu0 0.0
      %2021 = vmatpush.msra.mxu0 0.0
      %2022 = vmatpush.msra.mxu0 0.0
      %2023 = vmatpush.msra.mxu0 0.0
      %2024 = vmatpush.msra.mxu0 0.0
      %2025 = vmatpush.msra.mxu0 %v1800
      %2026 = vmatmul.f32.gmra.mxu0 %v1778
      %v2027 = vpop.f32.mrf.mxu0
      %v2028 = vadd.f32 0.0, %v2027
      %2029 = vdwg.mxu0
      %2030 = vmatpush.msra.mxu0 0.0
      %2031 = vmatpush.msra.mxu0 0.0
      %2032 = vmatpush.msra.mxu0 0.0
      %2033 = vmatpush.msra.mxu0 0.0
      %2034 = vmatpush.msra.mxu0 0.0
      %2035 = vmatpush.msra.mxu0 0.0
      %2036 = vmatpush.msra.mxu0 0.0
      %2037 = vmatpush.msra.mxu0 0.0
      %2038 = vmatpush.msra.mxu0 0.0
      %2039 = vmatpush.msra.mxu0 0.0
      %2040 = vmatpush.msra.mxu0 0.0
      %2041 = vmatpush.msra.mxu0 0.0
      %2042 = vmatpush.msra.mxu0 0.0
      %2043 = vmatpush.msra.mxu0 0.0
      %2044 = vmatpush.msra.mxu0 0.0
      %2045 = vmatpush.msra.mxu0 %v1802
      %2046 = vmatmul.f32.gmra.mxu0 %v1778
      %v2047 = vpop.f32.mrf.mxu0
      %v2048 = vadd.f32 0.0, %v2047
      %2049 = vdwg.mxu0
      %2050 = vmatpush.msra.mxu0 0.0
      %2051 = vmatpush.msra.mxu0 0.0
      %2052 = vmatpush.msra.mxu0 0.0
      %2053 = vmatpush.msra.mxu0 0.0
      %2054 = vmatpush.msra.mxu0 0.0
      %2055 = vmatpush.msra.mxu0 0.0
      %2056 = vmatpush.msra.mxu0 0.0
      %2057 = vmatpush.msra.mxu0 0.0
      %2058 = vmatpush.msra.mxu0 0.0
      %2059 = vmatpush.msra.mxu0 0.0
      %2060 = vmatpush.msra.mxu0 0.0
      %2061 = vmatpush.msra.mxu0 0.0
      %2062 = vmatpush.msra.mxu0 0.0
      %2063 = vmatpush.msra.mxu0 0.0
      %2064 = vmatpush.msra.mxu0 0.0
      %2065 = vmatpush.msra.mxu0 %v1804
      %2066 = vmatmul.f32.gmra.mxu0 %v1778
      %v2067 = vpop.f32.mrf.mxu0
      %v2068 = vadd.f32 0.0, %v2067
      %2069 = vdwg.mxu0
      %2070 = vmatpush.msra.mxu0 0.0
      %2071 = vmatpush.msra.mxu0 0.0
      %2072 = vmatpush.msra.mxu0 0.0
      %2073 = vmatpush.msra.mxu0 0.0
      %2074 = vmatpush.msra.mxu0 0.0
      %2075 = vmatpush.msra.mxu0 0.0
      %2076 = vmatpush.msra.mxu0 0.0
      %2077 = vmatpush.msra.mxu0 0.0
      %2078 = vmatpush.msra.mxu0 0.0
      %2079 = vmatpush.msra.mxu0 0.0
      %2080 = vmatpush.msra.mxu0 0.0
      %2081 = vmatpush.msra.mxu0 0.0
      %2082 = vmatpush.msra.mxu0 0.0
      %2083 = vmatpush.msra.mxu0 0.0
      %2084 = vmatpush.msra.mxu0 0.0
      %2085 = vmatpush.msra.mxu0 %v1806
      %2086 = vmatmul.f32.gmra.mxu0 %v1778
      %v2087 = vpop.f32.mrf.mxu0
      %v2088 = vadd.f32 0.0, %v2087
      %2089 = vdwg.mxu0
      %2090 = vmatpush.msra.mxu0 0.0
      %2091 = vmatpush.msra.mxu0 0.0
      %2092 = vmatpush.msra.mxu0 0.0
      %2093 = vmatpush.msra.mxu0 0.0
      %2094 = vmatpush.msra.mxu0 0.0
      %2095 = vmatpush.msra.mxu0 0.0
      %2096 = vmatpush.msra.mxu0 0.0
      %2097 = vmatpush.msra.mxu0 0.0
      %2098 = vmatpush.msra.mxu0 0.0
      %2099 = vmatpush.msra.mxu0 0.0
      %2100 = vmatpush.msra.mxu0 0.0
      %2101 = vmatpush.msra.mxu0 0.0
      %2102 = vmatpush.msra.mxu0 0.0
      %2103 = vmatpush.msra.mxu0 0.0
      %2104 = vmatpush.msra.mxu0 0.0
      %2105 = vmatpush.msra.mxu0 %v1808
      %2106 = vmatmul.f32.gmra.mxu0 %v1778
      %v2107 = vpop.f32.mrf.mxu0
      %v2108 = vadd.f32 0.0, %v2107
      %2109 = vdwg.mxu0
      %v2110 = vadd.f32 %v1689, %v1828
      %v2111 = vadd.f32 %v1690, %v1848
      %v2112 = vadd.f32 %v1691, %v1868
      %v2113 = vadd.f32 %v1692, %v1888
      %v2114 = vadd.f32 %v1693, %v1908
      %v2115 = vadd.f32 %v1694, %v1928
      %v2116 = vadd.f32 %v1695, %v1948
      %v2117 = vadd.f32 %v1696, %v1968
      %v2118 = vadd.f32 %v1697, %v1988
      %v2119 = vadd.f32 %v1698, %v2008
      %v2120 = vadd.f32 %v1699, %v2028
      %v2121 = vadd.f32 %v1700, %v2048
      %v2122 = vadd.f32 %v1701, %v2068
      %v2123 = vadd.f32 %v1702, %v2088
      %v2124 = vadd.f32 %v1703, %v2108
      %s2125 = scalar_lea.vmem %s1, 32
      %v2126 = vld [vmem:[%s2125] sm:$0xff]
      %2127 = vst [vmem:[#allocation1] ss:$2 sm:$0xff] %v499
      %s2128 = scalar_lea.vmem [#allocation1], 16
      %2129 = vst [vmem:[%s2128] ss:$2 sm:$0xff] %v500
      %s2130 = scalar_lea.vmem [#allocation1], 32
      %2131 = vst [vmem:[%s2130] ss:$2 sm:$0xff] %v501
      %s2132 = scalar_lea.vmem [#allocation1], 48
      %2133 = vst [vmem:[%s2132] ss:$2 sm:$0xff] %v502
      %v2134 = vld.sshfl [vmem:[#allocation1] sm:$0xff pattern:$0x75316420]
      %v2135 = vld.sshfl [vmem:[#allocation1 + $0x8] sm:$0xff pattern:$0x75316420]
      %v2136 = vld.sshfl [vmem:[#allocation1 + $0x10] sm:$0xff pattern:$0x75316420]
      %v2137 = vld.sshfl [vmem:[#allocation1 + $0x18] sm:$0xff pattern:$0x75316420]
      %v2138 = vld.sshfl [vmem:[#allocation1 + $0x20] sm:$0xff pattern:$0x75316420]
      %v2139 = vld.sshfl [vmem:[#allocation1 + $0x28] sm:$0xff pattern:$0x75316420]
      %v2140 = vld.sshfl [vmem:[#allocation1 + $0x30] sm:$0xff pattern:$0x75316420]
      %v2141 = vld.sshfl [vmem:[#allocation1 + $0x38] sm:$0xff pattern:$0x75316420]
      %2142 = vst [vmem:[#allocation1] ss:$2 sm:$0xff] %v503
      %2143 = vst [vmem:[%s2128] ss:$2 sm:$0xff] %v504
      %2144 = vst [vmem:[%s2130] ss:$2 sm:$0xff] %v505
      %2145 = vst [vmem:[%s2132] ss:$2 sm:$0xff] %v506
      %v2146 = vld.sshfl [vmem:[#allocation1] sm:$0xff pattern:$0x75316420]
      %v2147 = vld.sshfl [vmem:[#allocation1 + $0x8] sm:$0xff pattern:$0x75316420]
      %v2148 = vld.sshfl [vmem:[#allocation1 + $0x10] sm:$0xff pattern:$0x75316420]
      %v2149 = vld.sshfl [vmem:[#allocation1 + $0x18] sm:$0xff pattern:$0x75316420]
      %v2150 = vld.sshfl [vmem:[#allocation1 + $0x20] sm:$0xff pattern:$0x75316420]
      %v2151 = vld.sshfl [vmem:[#allocation1 + $0x28] sm:$0xff pattern:$0x75316420]
      %v2152 = vld.sshfl [vmem:[#allocation1 + $0x30] sm:$0xff pattern:$0x75316420]
      %2153 = vrot.lane.b32.xlu0 %v2134, 83
      %v2154 = vpop.permute.xlu0 %2153
      %2155 = vrot.lane.b32.xlu0 %v2135, 83
      %v2156 = vpop.permute.xlu0 %2155
      %2157 = vrot.lane.b32.xlu0 %v2136, 83
      %v2158 = vpop.permute.xlu0 %2157
      %2159 = vrot.lane.b32.xlu0 %v2137, 83
      %v2160 = vpop.permute.xlu0 %2159
      %2161 = vrot.lane.b32.xlu0 %v2138, 83
      %v2162 = vpop.permute.xlu0 %2161
      %2163 = vrot.lane.b32.xlu0 %v2139, 83
      %v2164 = vpop.permute.xlu0 %2163
      %2165 = vrot.lane.b32.xlu0 %v2140, 83
      %v2166 = vpop.permute.xlu0 %2165
      %2167 = vrot.lane.b32.xlu0 %v2141, 83
      %v2168 = vpop.permute.xlu0 %2167
      %2169 = vrot.lane.b32.xlu0 %v2146, 83
      %v2170 = vpop.permute.xlu0 %2169
      %2171 = vrot.lane.b32.xlu0 %v2147, 83
      %v2172 = vpop.permute.xlu0 %2171
      %2173 = vrot.lane.b32.xlu0 %v2148, 83
      %v2174 = vpop.permute.xlu0 %2173
      %2175 = vrot.lane.b32.xlu0 %v2149, 83
      %v2176 = vpop.permute.xlu0 %2175
      %2177 = vrot.lane.b32.xlu0 %v2150, 83
      %v2178 = vpop.permute.xlu0 %2177
      %2179 = vrot.lane.b32.xlu0 %v2151, 83
      %v2180 = vpop.permute.xlu0 %2179
      %2181 = vrot.lane.b32.xlu0 %v2152, 83
      %v2182 = vpop.permute.xlu0 %2181
      %vm2183 = vcmask 678912
      %v2184 = vsel %vm2183, %v2154, %v2156
      %v2185 = vsel %vm2183, %v2156, %v2158
      %v2186 = vsel %vm2183, %v2158, %v2160
      %v2187 = vsel %vm2183, %v2160, %v2162
      %v2188 = vsel %vm2183, %v2162, %v2164
      %v2189 = vsel %vm2183, %v2164, %v2166
      %v2190 = vsel %vm2183, %v2166, %v2168
      %v2191 = vsel %vm2183, %v2168, %v2170
      %v2192 = vsel %vm2183, %v2170, %v2172
      %v2193 = vsel %vm2183, %v2172, %v2174
      %v2194 = vsel %vm2183, %v2174, %v2176
      %v2195 = vsel %vm2183, %v2176, %v2178
      %v2196 = vsel %vm2183, %v2178, %v2180
      %v2197 = vsel %vm2183, %v2180, %v2182
      %v2199 = vsel %vm589, %v2126, 0
      %v2201 = vsel %vm593, %v2184, 0
      %v2203 = vsel %vm593, %v2185, 0
      %v2205 = vsel %vm593, %v2186, 0
      %v2207 = vsel %vm593, %v2187, 0
      %v2209 = vsel %vm593, %v2188, 0
      %v2211 = vsel %vm593, %v2189, 0
      %v2213 = vsel %vm593, %v2190, 0
      %v2215 = vsel %vm593, %v2191, 0
      %v2217 = vsel %vm593, %v2192, 0
      %v2219 = vsel %vm593, %v2193, 0
      %v2221 = vsel %vm593, %v2194, 0
      %v2223 = vsel %vm593, %v2195, 0
      %v2225 = vsel %vm593, %v2196, 0
      %v2227 = vsel %vm593, %v2197, 0
      %v2229 = vsel %vm593, %v2182, 0
      %2231 = vmatpush.msra.mxu0 0.0
      %2232 = vmatpush.msra.mxu0 0.0
      %2233 = vmatpush.msra.mxu0 0.0
      %2234 = vmatpush.msra.mxu0 0.0
      %2235 = vmatpush.msra.mxu0 0.0
      %2236 = vmatpush.msra.mxu0 0.0
      %2237 = vmatpush.msra.mxu0 0.0
      %2238 = vmatpush.msra.mxu0 0.0
      %2239 = vmatpush.msra.mxu0 0.0
      %2240 = vmatpush.msra.mxu0 0.0
      %2241 = vmatpush.msra.mxu0 0.0
      %2242 = vmatpush.msra.mxu0 0.0
      %2243 = vmatpush.msra.mxu0 0.0
      %2244 = vmatpush.msra.mxu0 0.0
      %2245 = vmatpush.msra.mxu0 0.0
      %2246 = vmatpush.msra.mxu0 %v2201
      %2247 = vmatmul.f32.gmra.mxu0 %v2199
      %v2248 = vpop.f32.mrf.mxu0
      %v2249 = vadd.f32 0.0, %v2248
      %2250 = vdwg.mxu0
      %2251 = vmatpush.msra.mxu0 0.0
      %2252 = vmatpush.msra.mxu0 0.0
      %2253 = vmatpush.msra.mxu0 0.0
      %2254 = vmatpush.msra.mxu0 0.0
      %2255 = vmatpush.msra.mxu0 0.0
      %2256 = vmatpush.msra.mxu0 0.0
      %2257 = vmatpush.msra.mxu0 0.0
      %2258 = vmatpush.msra.mxu0 0.0
      %2259 = vmatpush.msra.mxu0 0.0
      %2260 = vmatpush.msra.mxu0 0.0
      %2261 = vmatpush.msra.mxu0 0.0
      %2262 = vmatpush.msra.mxu0 0.0
      %2263 = vmatpush.msra.mxu0 0.0
      %2264 = vmatpush.msra.mxu0 0.0
      %2265 = vmatpush.msra.mxu0 0.0
      %2266 = vmatpush.msra.mxu0 %v2203
      %2267 = vmatmul.f32.gmra.mxu0 %v2199
      %v2268 = vpop.f32.mrf.mxu0
      %v2269 = vadd.f32 0.0, %v2268
      %2270 = vdwg.mxu0
      %2271 = vmatpush.msra.mxu0 0.0
      %2272 = vmatpush.msra.mxu0 0.0
      %2273 = vmatpush.msra.mxu0 0.0
      %2274 = vmatpush.msra.mxu0 0.0
      %2275 = vmatpush.msra.mxu0 0.0
      %2276 = vmatpush.msra.mxu0 0.0
      %2277 = vmatpush.msra.mxu0 0.0
      %2278 = vmatpush.msra.mxu0 0.0
      %2279 = vmatpush.msra.mxu0 0.0
      %2280 = vmatpush.msra.mxu0 0.0
      %2281 = vmatpush.msra.mxu0 0.0
      %2282 = vmatpush.msra.mxu0 0.0
      %2283 = vmatpush.msra.mxu0 0.0
      %2284 = vmatpush.msra.mxu0 0.0
      %2285 = vmatpush.msra.mxu0 0.0
      %2286 = vmatpush.msra.mxu0 %v2205
      %2287 = vmatmul.f32.gmra.mxu0 %v2199
      %v2288 = vpop.f32.mrf.mxu0
      %v2289 = vadd.f32 0.0, %v2288
      %2290 = vdwg.mxu0
      %2291 = vmatpush.msra.mxu0 0.0
      %2292 = vmatpush.msra.mxu0 0.0
      %2293 = vmatpush.msra.mxu0 0.0
      %2294 = vmatpush.msra.mxu0 0.0
      %2295 = vmatpush.msra.mxu0 0.0
      %2296 = vmatpush.msra.mxu0 0.0
      %2297 = vmatpush.msra.mxu0 0.0
      %2298 = vmatpush.msra.mxu0 0.0
      %2299 = vmatpush.msra.mxu0 0.0
      %2300 = vmatpush.msra.mxu0 0.0
      %2301 = vmatpush.msra.mxu0 0.0
      %2302 = vmatpush.msra.mxu0 0.0
      %2303 = vmatpush.msra.mxu0 0.0
      %2304 = vmatpush.msra.mxu0 0.0
      %2305 = vmatpush.msra.mxu0 0.0
      %2306 = vmatpush.msra.mxu0 %v2207
      %2307 = vmatmul.f32.gmra.mxu0 %v2199
      %v2308 = vpop.f32.mrf.mxu0
      %v2309 = vadd.f32 0.0, %v2308
      %2310 = vdwg.mxu0
      %2311 = vmatpush.msra.mxu0 0.0
      %2312 = vmatpush.msra.mxu0 0.0
      %2313 = vmatpush.msra.mxu0 0.0
      %2314 = vmatpush.msra.mxu0 0.0
      %2315 = vmatpush.msra.mxu0 0.0
      %2316 = vmatpush.msra.mxu0 0.0
      %2317 = vmatpush.msra.mxu0 0.0
      %2318 = vmatpush.msra.mxu0 0.0
      %2319 = vmatpush.msra.mxu0 0.0
      %2320 = vmatpush.msra.mxu0 0.0
      %2321 = vmatpush.msra.mxu0 0.0
      %2322 = vmatpush.msra.mxu0 0.0
      %2323 = vmatpush.msra.mxu0 0.0
      %2324 = vmatpush.msra.mxu0 0.0
      %2325 = vmatpush.msra.mxu0 0.0
      %2326 = vmatpush.msra.mxu0 %v2209
      %2327 = vmatmul.f32.gmra.mxu0 %v2199
      %v2328 = vpop.f32.mrf.mxu0
      %v2329 = vadd.f32 0.0, %v2328
      %2330 = vdwg.mxu0
      %2331 = vmatpush.msra.mxu0 0.0
      %2332 = vmatpush.msra.mxu0 0.0
      %2333 = vmatpush.msra.mxu0 0.0
      %2334 = vmatpush.msra.mxu0 0.0
      %2335 = vmatpush.msra.mxu0 0.0
      %2336 = vmatpush.msra.mxu0 0.0
      %2337 = vmatpush.msra.mxu0 0.0
      %2338 = vmatpush.msra.mxu0 0.0
      %2339 = vmatpush.msra.mxu0 0.0
      %2340 = vmatpush.msra.mxu0 0.0
      %2341 = vmatpush.msra.mxu0 0.0
      %2342 = vmatpush.msra.mxu0 0.0
      %2343 = vmatpush.msra.mxu0 0.0
      %2344 = vmatpush.msra.mxu0 0.0
      %2345 = vmatpush.msra.mxu0 0.0
      %2346 = vmatpush.msra.mxu0 %v2211
      %2347 = vmatmul.f32.gmra.mxu0 %v2199
      %v2348 = vpop.f32.mrf.mxu0
      %v2349 = vadd.f32 0.0, %v2348
      %2350 = vdwg.mxu0
      %2351 = vmatpush.msra.mxu0 0.0
      %2352 = vmatpush.msra.mxu0 0.0
      %2353 = vmatpush.msra.mxu0 0.0
      %2354 = vmatpush.msra.mxu0 0.0
      %2355 = vmatpush.msra.mxu0 0.0
      %2356 = vmatpush.msra.mxu0 0.0
      %2357 = vmatpush.msra.mxu0 0.0
      %2358 = vmatpush.msra.mxu0 0.0
      %2359 = vmatpush.msra.mxu0 0.0
      %2360 = vmatpush.msra.mxu0 0.0
      %2361 = vmatpush.msra.mxu0 0.0
      %2362 = vmatpush.msra.mxu0 0.0
      %2363 = vmatpush.msra.mxu0 0.0
      %2364 = vmatpush.msra.mxu0 0.0
      %2365 = vmatpush.msra.mxu0 0.0
      %2366 = vmatpush.msra.mxu0 %v2213
      %2367 = vmatmul.f32.gmra.mxu0 %v2199
      %v2368 = vpop.f32.mrf.mxu0
      %v2369 = vadd.f32 0.0, %v2368
      %2370 = vdwg.mxu0
      %2371 = vmatpush.msra.mxu0 0.0
      %2372 = vmatpush.msra.mxu0 0.0
      %2373 = vmatpush.msra.mxu0 0.0
      %2374 = vmatpush.msra.mxu0 0.0
      %2375 = vmatpush.msra.mxu0 0.0
      %2376 = vmatpush.msra.mxu0 0.0
      %2377 = vmatpush.msra.mxu0 0.0
      %2378 = vmatpush.msra.mxu0 0.0
      %2379 = vmatpush.msra.mxu0 0.0
      %2380 = vmatpush.msra.mxu0 0.0
      %2381 = vmatpush.msra.mxu0 0.0
      %2382 = vmatpush.msra.mxu0 0.0
      %2383 = vmatpush.msra.mxu0 0.0
      %2384 = vmatpush.msra.mxu0 0.0
      %2385 = vmatpush.msra.mxu0 0.0
      %2386 = vmatpush.msra.mxu0 %v2215
      %2387 = vmatmul.f32.gmra.mxu0 %v2199
      %v2388 = vpop.f32.mrf.mxu0
      %v2389 = vadd.f32 0.0, %v2388
      %2390 = vdwg.mxu0
      %2391 = vmatpush.msra.mxu0 0.0
      %2392 = vmatpush.msra.mxu0 0.0
      %2393 = vmatpush.msra.mxu0 0.0
      %2394 = vmatpush.msra.mxu0 0.0
      %2395 = vmatpush.msra.mxu0 0.0
      %2396 = vmatpush.msra.mxu0 0.0
      %2397 = vmatpush.msra.mxu0 0.0
      %2398 = vmatpush.msra.mxu0 0.0
      %2399 = vmatpush.msra.mxu0 0.0
      %2400 = vmatpush.msra.mxu0 0.0
      %2401 = vmatpush.msra.mxu0 0.0
      %2402 = vmatpush.msra.mxu0 0.0
      %2403 = vmatpush.msra.mxu0 0.0
      %2404 = vmatpush.msra.mxu0 0.0
      %2405 = vmatpush.msra.mxu0 0.0
      %2406 = vmatpush.msra.mxu0 %v2217
      %2407 = vmatmul.f32.gmra.mxu0 %v2199
      %v2408 = vpop.f32.mrf.mxu0
      %v2409 = vadd.f32 0.0, %v2408
      %2410 = vdwg.mxu0
      %2411 = vmatpush.msra.mxu0 0.0
      %2412 = vmatpush.msra.mxu0 0.0
      %2413 = vmatpush.msra.mxu0 0.0
      %2414 = vmatpush.msra.mxu0 0.0
      %2415 = vmatpush.msra.mxu0 0.0
      %2416 = vmatpush.msra.mxu0 0.0
      %2417 = vmatpush.msra.mxu0 0.0
      %2418 = vmatpush.msra.mxu0 0.0
      %2419 = vmatpush.msra.mxu0 0.0
      %2420 = vmatpush.msra.mxu0 0.0
      %2421 = vmatpush.msra.mxu0 0.0
      %2422 = vmatpush.msra.mxu0 0.0
      %2423 = vmatpush.msra.mxu0 0.0
      %2424 = vmatpush.msra.mxu0 0.0
      %2425 = vmatpush.msra.mxu0 0.0
      %2426 = vmatpush.msra.mxu0 %v2219
      %2427 = vmatmul.f32.gmra.mxu0 %v2199
      %v2428 = vpop.f32.mrf.mxu0
      %v2429 = vadd.f32 0.0, %v2428
      %2430 = vdwg.mxu0
      %2431 = vmatpush.msra.mxu0 0.0
      %2432 = vmatpush.msra.mxu0 0.0
      %2433 = vmatpush.msra.mxu0 0.0
      %2434 = vmatpush.msra.mxu0 0.0
      %2435 = vmatpush.msra.mxu0 0.0
      %2436 = vmatpush.msra.mxu0 0.0
      %2437 = vmatpush.msra.mxu0 0.0
      %2438 = vmatpush.msra.mxu0 0.0
      %2439 = vmatpush.msra.mxu0 0.0
      %2440 = vmatpush.msra.mxu0 0.0
      %2441 = vmatpush.msra.mxu0 0.0
      %2442 = vmatpush.msra.mxu0 0.0
      %2443 = vmatpush.msra.mxu0 0.0
      %2444 = vmatpush.msra.mxu0 0.0
      %2445 = vmatpush.msra.mxu0 0.0
      %2446 = vmatpush.msra.mxu0 %v2221
      %2447 = vmatmul.f32.gmra.mxu0 %v2199
      %v2448 = vpop.f32.mrf.mxu0
      %v2449 = vadd.f32 0.0, %v2448
      %2450 = vdwg.mxu0
      %2451 = vmatpush.msra.mxu0 0.0
      %2452 = vmatpush.msra.mxu0 0.0
      %2453 = vmatpush.msra.mxu0 0.0
      %2454 = vmatpush.msra.mxu0 0.0
      %2455 = vmatpush.msra.mxu0 0.0
      %2456 = vmatpush.msra.mxu0 0.0
      %2457 = vmatpush.msra.mxu0 0.0
      %2458 = vmatpush.msra.mxu0 0.0
      %2459 = vmatpush.msra.mxu0 0.0
      %2460 = vmatpush.msra.mxu0 0.0
      %2461 = vmatpush.msra.mxu0 0.0
      %2462 = vmatpush.msra.mxu0 0.0
      %2463 = vmatpush.msra.mxu0 0.0
      %2464 = vmatpush.msra.mxu0 0.0
      %2465 = vmatpush.msra.mxu0 0.0
      %2466 = vmatpush.msra.mxu0 %v2223
      %2467 = vmatmul.f32.gmra.mxu0 %v2199
      %v2468 = vpop.f32.mrf.mxu0
      %v2469 = vadd.f32 0.0, %v2468
      %2470 = vdwg.mxu0
      %2471 = vmatpush.msra.mxu0 0.0
      %2472 = vmatpush.msra.mxu0 0.0
      %2473 = vmatpush.msra.mxu0 0.0
      %2474 = vmatpush.msra.mxu0 0.0
      %2475 = vmatpush.msra.mxu0 0.0
      %2476 = vmatpush.msra.mxu0 0.0
      %2477 = vmatpush.msra.mxu0 0.0
      %2478 = vmatpush.msra.mxu0 0.0
      %2479 = vmatpush.msra.mxu0 0.0
      %2480 = vmatpush.msra.mxu0 0.0
      %2481 = vmatpush.msra.mxu0 0.0
      %2482 = vmatpush.msra.mxu0 0.0
      %2483 = vmatpush.msra.mxu0 0.0
      %2484 = vmatpush.msra.mxu0 0.0
      %2485 = vmatpush.msra.mxu0 0.0
      %2486 = vmatpush.msra.mxu0 %v2225
      %2487 = vmatmul.f32.gmra.mxu0 %v2199
      %v2488 = vpop.f32.mrf.mxu0
      %v2489 = vadd.f32 0.0, %v2488
      %2490 = vdwg.mxu0
      %2491 = vmatpush.msra.mxu0 0.0
      %2492 = vmatpush.msra.mxu0 0.0
      %2493 = vmatpush.msra.mxu0 0.0
      %2494 = vmatpush.msra.mxu0 0.0
      %2495 = vmatpush.msra.mxu0 0.0
      %2496 = vmatpush.msra.mxu0 0.0
      %2497 = vmatpush.msra.mxu0 0.0
      %2498 = vmatpush.msra.mxu0 0.0
      %2499 = vmatpush.msra.mxu0 0.0
      %2500 = vmatpush.msra.mxu0 0.0
      %2501 = vmatpush.msra.mxu0 0.0
      %2502 = vmatpush.msra.mxu0 0.0
      %2503 = vmatpush.msra.mxu0 0.0
      %2504 = vmatpush.msra.mxu0 0.0
      %2505 = vmatpush.msra.mxu0 0.0
      %2506 = vmatpush.msra.mxu0 %v2227
      %2507 = vmatmul.f32.gmra.mxu0 %v2199
      %v2508 = vpop.f32.mrf.mxu0
      %v2509 = vadd.f32 0.0, %v2508
      %2510 = vdwg.mxu0
      %2511 = vmatpush.msra.mxu0 0.0
      %2512 = vmatpush.msra.mxu0 0.0
      %2513 = vmatpush.msra.mxu0 0.0
      %2514 = vmatpush.msra.mxu0 0.0
      %2515 = vmatpush.msra.mxu0 0.0
      %2516 = vmatpush.msra.mxu0 0.0
      %2517 = vmatpush.msra.mxu0 0.0
      %2518 = vmatpush.msra.mxu0 0.0
      %2519 = vmatpush.msra.mxu0 0.0
      %2520 = vmatpush.msra.mxu0 0.0
      %2521 = vmatpush.msra.mxu0 0.0
      %2522 = vmatpush.msra.mxu0 0.0
      %2523 = vmatpush.msra.mxu0 0.0
      %2524 = vmatpush.msra.mxu0 0.0
      %2525 = vmatpush.msra.mxu0 0.0
      %2526 = vmatpush.msra.mxu0 %v2229
      %2527 = vmatmul.f32.gmra.mxu0 %v2199
      %v2528 = vpop.f32.mrf.mxu0
      %v2529 = vadd.f32 0.0, %v2528
      %2530 = vdwg.mxu0
      %v2531 = vadd.f32 %v2110, %v2249
      %v2532 = vadd.f32 %v2111, %v2269
      %v2533 = vadd.f32 %v2112, %v2289
      %v2534 = vadd.f32 %v2113, %v2309
      %v2535 = vadd.f32 %v2114, %v2329
      %v2536 = vadd.f32 %v2115, %v2349
      %v2537 = vadd.f32 %v2116, %v2369
      %v2538 = vadd.f32 %v2117, %v2389
      %v2539 = vadd.f32 %v2118, %v2409
      %v2540 = vadd.f32 %v2119, %v2429
      %v2541 = vadd.f32 %v2120, %v2449
      %v2542 = vadd.f32 %v2121, %v2469
      %v2543 = vadd.f32 %v2122, %v2489
      %v2544 = vadd.f32 %v2123, %v2509
      %v2545 = vadd.f32 %v2124, %v2529
      %s2546 = scalar_lea.vmem %s1, 40
      %v2547 = vld [vmem:[%s2546] sm:$0xff]
      %2548 = vst [vmem:[#allocation1] ss:$2 sm:$0xff] %v499
      %s2549 = scalar_lea.vmem [#allocation1], 16
      %2550 = vst [vmem:[%s2549] ss:$2 sm:$0xff] %v500
      %s2551 = scalar_lea.vmem [#allocation1], 32
      %2552 = vst [vmem:[%s2551] ss:$2 sm:$0xff] %v501
      %s2553 = scalar_lea.vmem [#allocation1], 48
      %2554 = vst [vmem:[%s2553] ss:$2 sm:$0xff] %v502
      %v2555 = vld.sshfl [vmem:[#allocation1] sm:$0xff pattern:$0x75316420]
      %v2556 = vld.sshfl [vmem:[#allocation1 + $0x8] sm:$0xff pattern:$0x75316420]
      %v2557 = vld.sshfl [vmem:[#allocation1 + $0x10] sm:$0xff pattern:$0x75316420]
      %v2558 = vld.sshfl [vmem:[#allocation1 + $0x18] sm:$0xff pattern:$0x75316420]
      %v2559 = vld.sshfl [vmem:[#allocation1 + $0x20] sm:$0xff pattern:$0x75316420]
      %v2560 = vld.sshfl [vmem:[#allocation1 + $0x28] sm:$0xff pattern:$0x75316420]
      %v2561 = vld.sshfl [vmem:[#allocation1 + $0x30] sm:$0xff pattern:$0x75316420]
      %v2562 = vld.sshfl [vmem:[#allocation1 + $0x38] sm:$0xff pattern:$0x75316420]
      %2563 = vst [vmem:[#allocation1] ss:$2 sm:$0xff] %v503
      %2564 = vst [vmem:[%s2549] ss:$2 sm:$0xff] %v504
      %2565 = vst [vmem:[%s2551] ss:$2 sm:$0xff] %v505
      %2566 = vst [vmem:[%s2553] ss:$2 sm:$0xff] %v506
      %v2567 = vld.sshfl [vmem:[#allocation1] sm:$0xff pattern:$0x75316420]
      %v2568 = vld.sshfl [vmem:[#allocation1 + $0x8] sm:$0xff pattern:$0x75316420]
      %v2569 = vld.sshfl [vmem:[#allocation1 + $0x10] sm:$0xff pattern:$0x75316420]
      %v2570 = vld.sshfl [vmem:[#allocation1 + $0x18] sm:$0xff pattern:$0x75316420]
      %v2571 = vld.sshfl [vmem:[#allocation1 + $0x20] sm:$0xff pattern:$0x75316420]
      %v2572 = vld.sshfl [vmem:[#allocation1 + $0x28] sm:$0xff pattern:$0x75316420]
      %v2573 = vld.sshfl [vmem:[#allocation1 + $0x30] sm:$0xff pattern:$0x75316420]
      %2574 = vrot.lane.b32.xlu0 %v2555, 82
      %v2575 = vpop.permute.xlu0 %2574
      %2576 = vrot.lane.b32.xlu0 %v2556, 82
      %v2577 = vpop.permute.xlu0 %2576
      %2578 = vrot.lane.b32.xlu0 %v2557, 82
      %v2579 = vpop.permute.xlu0 %2578
      %2580 = vrot.lane.b32.xlu0 %v2558, 82
      %v2581 = vpop.permute.xlu0 %2580
      %2582 = vrot.lane.b32.xlu0 %v2559, 82
      %v2583 = vpop.permute.xlu0 %2582
      %2584 = vrot.lane.b32.xlu0 %v2560, 82
      %v2585 = vpop.permute.xlu0 %2584
      %2586 = vrot.lane.b32.xlu0 %v2561, 82
      %v2587 = vpop.permute.xlu0 %2586
      %2588 = vrot.lane.b32.xlu0 %v2562, 82
      %v2589 = vpop.permute.xlu0 %2588
      %2590 = vrot.lane.b32.xlu0 %v2567, 82
      %v2591 = vpop.permute.xlu0 %2590
      %2592 = vrot.lane.b32.xlu0 %v2568, 82
      %v2593 = vpop.permute.xlu0 %2592
      %2594 = vrot.lane.b32.xlu0 %v2569, 82
      %v2595 = vpop.permute.xlu0 %2594
      %2596 = vrot.lane.b32.xlu0 %v2570, 82
      %v2597 = vpop.permute.xlu0 %2596
      %2598 = vrot.lane.b32.xlu0 %v2571, 82
      %v2599 = vpop.permute.xlu0 %2598
      %2600 = vrot.lane.b32.xlu0 %v2572, 82
      %v2601 = vpop.permute.xlu0 %2600
      %2602 = vrot.lane.b32.xlu0 %v2573, 82
      %v2603 = vpop.permute.xlu0 %2602
      %vm2604 = vcmask 670720
      %v2605 = vsel %vm2604, %v2575, %v2577
      %v2606 = vsel %vm2604, %v2577, %v2579
      %v2607 = vsel %vm2604, %v2579, %v2581
      %v2608 = vsel %vm2604, %v2581, %v2583
      %v2609 = vsel %vm2604, %v2583, %v2585
      %v2610 = vsel %vm2604, %v2585, %v2587
      %v2611 = vsel %vm2604, %v2587, %v2589
      %v2612 = vsel %vm2604, %v2589, %v2591
      %v2613 = vsel %vm2604, %v2591, %v2593
      %v2614 = vsel %vm2604, %v2593, %v2595
      %v2615 = vsel %vm2604, %v2595, %v2597
      %v2616 = vsel %vm2604, %v2597, %v2599
      %v2617 = vsel %vm2604, %v2599, %v2601
      %v2618 = vsel %vm2604, %v2601, %v2603
      %v2620 = vsel %vm589, %v2547, 0
      %v2622 = vsel %vm593, %v2605, 0
      %v2624 = vsel %vm593, %v2606, 0
      %v2626 = vsel %vm593, %v2607, 0
      %v2628 = vsel %vm593, %v2608, 0
      %v2630 = vsel %vm593, %v2609, 0
      %v2632 = vsel %vm593, %v2610, 0
      %v2634 = vsel %vm593, %v2611, 0
      %v2636 = vsel %vm593, %v2612, 0
      %v2638 = vsel %vm593, %v2613, 0
      %v2640 = vsel %vm593, %v2614, 0
      %v2642 = vsel %vm593, %v2615, 0
      %v2644 = vsel %vm593, %v2616, 0
      %v2646 = vsel %vm593, %v2617, 0
      %v2648 = vsel %vm593, %v2618, 0
      %v2650 = vsel %vm593, %v2603, 0
      %2652 = vmatpush.msra.mxu0 0.0
      %2653 = vmatpush.msra.mxu0 0.0
      %2654 = vmatpush.msra.mxu0 0.0
      %2655 = vmatpush.msra.mxu0 0.0
      %2656 = vmatpush.msra.mxu0 0.0
      %2657 = vmatpush.msra.mxu0 0.0
      %2658 = vmatpush.msra.mxu0 0.0
      %2659 = vmatpush.msra.mxu0 0.0
      %2660 = vmatpush.msra.mxu0 0.0
      %2661 = vmatpush.msra.mxu0 0.0
      %2662 = vmatpush.msra.mxu0 0.0
      %2663 = vmatpush.msra.mxu0 0.0
      %2664 = vmatpush.msra.mxu0 0.0
      %2665 = vmatpush.msra.mxu0 0.0
      %2666 = vmatpush.msra.mxu0 0.0
      %2667 = vmatpush.msra.mxu0 %v2622
      %2668 = vmatmul.f32.gmra.mxu0 %v2620
      %v2669 = vpop.f32.mrf.mxu0
      %v2670 = vadd.f32 0.0, %v2669
      %2671 = vdwg.mxu0
      %2672 = vmatpush.msra.mxu0 0.0
      %2673 = vmatpush.msra.mxu0 0.0
      %2674 = vmatpush.msra.mxu0 0.0
      %2675 = vmatpush.msra.mxu0 0.0
      %2676 = vmatpush.msra.mxu0 0.0
      %2677 = vmatpush.msra.mxu0 0.0
      %2678 = vmatpush.msra.mxu0 0.0
      %2679 = vmatpush.msra.mxu0 0.0
      %2680 = vmatpush.msra.mxu0 0.0
      %2681 = vmatpush.msra.mxu0 0.0
      %2682 = vmatpush.msra.mxu0 0.0
      %2683 = vmatpush.msra.mxu0 0.0
      %2684 = vmatpush.msra.mxu0 0.0
      %2685 = vmatpush.msra.mxu0 0.0
      %2686 = vmatpush.msra.mxu0 0.0
      %2687 = vmatpush.msra.mxu0 %v2624
      %2688 = vmatmul.f32.gmra.mxu0 %v2620
      %v2689 = vpop.f32.mrf.mxu0
      %v2690 = vadd.f32 0.0, %v2689
      %2691 = vdwg.mxu0
      %2692 = vmatpush.msra.mxu0 0.0
      %2693 = vmatpush.msra.mxu0 0.0
      %2694 = vmatpush.msra.mxu0 0.0
      %2695 = vmatpush.msra.mxu0 0.0
      %2696 = vmatpush.msra.mxu0 0.0
      %2697 = vmatpush.msra.mxu0 0.0
      %2698 = vmatpush.msra.mxu0 0.0
      %2699 = vmatpush.msra.mxu0 0.0
      %2700 = vmatpush.msra.mxu0 0.0
      %2701 = vmatpush.msra.mxu0 0.0
      %2702 = vmatpush.msra.mxu0 0.0
      %2703 = vmatpush.msra.mxu0 0.0
      %2704 = vmatpush.msra.mxu0 0.0
      %2705 = vmatpush.msra.mxu0 0.0
      %2706 = vmatpush.msra.mxu0 0.0
      %2707 = vmatpush.msra.mxu0 %v2626
      %2708 = vmatmul.f32.gmra.mxu0 %v2620
      %v2709 = vpop.f32.mrf.mxu0
      %v2710 = vadd.f32 0.0, %v2709
      %2711 = vdwg.mxu0
      %2712 = vmatpush.msra.mxu0 0.0
      %2713 = vmatpush.msra.mxu0 0.0
      %2714 = vmatpush.msra.mxu0 0.0
      %2715 = vmatpush.msra.mxu0 0.0
      %2716 = vmatpush.msra.mxu0 0.0
      %2717 = vmatpush.msra.mxu0 0.0
      %2718 = vmatpush.msra.mxu0 0.0
      %2719 = vmatpush.msra.mxu0 0.0
      %2720 = vmatpush.msra.mxu0 0.0
      %2721 = vmatpush.msra.mxu0 0.0
      %2722 = vmatpush.msra.mxu0 0.0
      %2723 = vmatpush.msra.mxu0 0.0
      %2724 = vmatpush.msra.mxu0 0.0
      %2725 = vmatpush.msra.mxu0 0.0
      %2726 = vmatpush.msra.mxu0 0.0
      %2727 = vmatpush.msra.mxu0 %v2628
      %2728 = vmatmul.f32.gmra.mxu0 %v2620
      %v2729 = vpop.f32.mrf.mxu0
      %v2730 = vadd.f32 0.0, %v2729
      %2731 = vdwg.mxu0
      %2732 = vmatpush.msra.mxu0 0.0
      %2733 = vmatpush.msra.mxu0 0.0
      %2734 = vmatpush.msra.mxu0 0.0
      %2735 = vmatpush.msra.mxu0 0.0
      %2736 = vmatpush.msra.mxu0 0.0
      %2737 = vmatpush.msra.mxu0 0.0
      %2738 = vmatpush.msra.mxu0 0.0
      %2739 = vmatpush.msra.mxu0 0.0
      %2740 = vmatpush.msra.mxu0 0.0
      %2741 = vmatpush.msra.mxu0 0.0
      %2742 = vmatpush.msra.mxu0 0.0
      %2743 = vmatpush.msra.mxu0 0.0
      %2744 = vmatpush.msra.mxu0 0.0
      %2745 = vmatpush.msra.mxu0 0.0
      %2746 = vmatpush.msra.mxu0 0.0
      %2747 = vmatpush.msra.mxu0 %v2630
      %2748 = vmatmul.f32.gmra.mxu0 %v2620
      %v2749 = vpop.f32.mrf.mxu0
      %v2750 = vadd.f32 0.0, %v2749
      %2751 = vdwg.mxu0
      %2752 = vmatpush.msra.mxu0 0.0
      %2753 = vmatpush.msra.mxu0 0.0
      %2754 = vmatpush.msra.mxu0 0.0
      %2755 = vmatpush.msra.mxu0 0.0
      %2756 = vmatpush.msra.mxu0 0.0
      %2757 = vmatpush.msra.mxu0 0.0
      %2758 = vmatpush.msra.mxu0 0.0
      %2759 = vmatpush.msra.mxu0 0.0
      %2760 = vmatpush.msra.mxu0 0.0
      %2761 = vmatpush.msra.mxu0 0.0
      %2762 = vmatpush.msra.mxu0 0.0
      %2763 = vmatpush.msra.mxu0 0.0
      %2764 = vmatpush.msra.mxu0 0.0
      %2765 = vmatpush.msra.mxu0 0.0
      %2766 = vmatpush.msra.mxu0 0.0
      %2767 = vmatpush.msra.mxu0 %v2632
      %2768 = vmatmul.f32.gmra.mxu0 %v2620
      %v2769 = vpop.f32.mrf.mxu0
      %v2770 = vadd.f32 0.0, %v2769
      %2771 = vdwg.mxu0
      %2772 = vmatpush.msra.mxu0 0.0
      %2773 = vmatpush.msra.mxu0 0.0
      %2774 = vmatpush.msra.mxu0 0.0
      %2775 = vmatpush.msra.mxu0 0.0
      %2776 = vmatpush.msra.mxu0 0.0
      %2777 = vmatpush.msra.mxu0 0.0
      %2778 = vmatpush.msra.mxu0 0.0
      %2779 = vmatpush.msra.mxu0 0.0
      %2780 = vmatpush.msra.mxu0 0.0
      %2781 = vmatpush.msra.mxu0 0.0
      %2782 = vmatpush.msra.mxu0 0.0
      %2783 = vmatpush.msra.mxu0 0.0
      %2784 = vmatpush.msra.mxu0 0.0
      %2785 = vmatpush.msra.mxu0 0.0
      %2786 = vmatpush.msra.mxu0 0.0
      %2787 = vmatpush.msra.mxu0 %v2634
      %2788 = vmatmul.f32.gmra.mxu0 %v2620
      %v2789 = vpop.f32.mrf.mxu0
      %v2790 = vadd.f32 0.0, %v2789
      %2791 = vdwg.mxu0
      %2792 = vmatpush.msra.mxu0 0.0
      %2793 = vmatpush.msra.mxu0 0.0
      %2794 = vmatpush.msra.mxu0 0.0
      %2795 = vmatpush.msra.mxu0 0.0
      %2796 = vmatpush.msra.mxu0 0.0
      %2797 = vmatpush.msra.mxu0 0.0
      %2798 = vmatpush.msra.mxu0 0.0
      %2799 = vmatpush.msra.mxu0 0.0
      %2800 = vmatpush.msra.mxu0 0.0
      %2801 = vmatpush.msra.mxu0 0.0
      %2802 = vmatpush.msra.mxu0 0.0
      %2803 = vmatpush.msra.mxu0 0.0
      %2804 = vmatpush.msra.mxu0 0.0
      %2805 = vmatpush.msra.mxu0 0.0
      %2806 = vmatpush.msra.mxu0 0.0
      %2807 = vmatpush.msra.mxu0 %v2636
      %2808 = vmatmul.f32.gmra.mxu0 %v2620
      %v2809 = vpop.f32.mrf.mxu0
      %v2810 = vadd.f32 0.0, %v2809
      %2811 = vdwg.mxu0
      %2812 = vmatpush.msra.mxu0 0.0
      %2813 = vmatpush.msra.mxu0 0.0
      %2814 = vmatpush.msra.mxu0 0.0
      %2815 = vmatpush.msra.mxu0 0.0
      %2816 = vmatpush.msra.mxu0 0.0
      %2817 = vmatpush.msra.mxu0 0.0
      %2818 = vmatpush.msra.mxu0 0.0
      %2819 = vmatpush.msra.mxu0 0.0
      %2820 = vmatpush.msra.mxu0 0.0
      %2821 = vmatpush.msra.mxu0 0.0
      %2822 = vmatpush.msra.mxu0 0.0
      %2823 = vmatpush.msra.mxu0 0.0
      %2824 = vmatpush.msra.mxu0 0.0
      %2825 = vmatpush.msra.mxu0 0.0
      %2826 = vmatpush.msra.mxu0 0.0
      %2827 = vmatpush.msra.mxu0 %v2638
      %2828 = vmatmul.f32.gmra.mxu0 %v2620
      %v2829 = vpop.f32.mrf.mxu0
      %v2830 = vadd.f32 0.0, %v2829
      %2831 = vdwg.mxu0
      %2832 = vmatpush.msra.mxu0 0.0
      %2833 = vmatpush.msra.mxu0 0.0
      %2834 = vmatpush.msra.mxu0 0.0
      %2835 = vmatpush.msra.mxu0 0.0
      %2836 = vmatpush.msra.mxu0 0.0
      %2837 = vmatpush.msra.mxu0 0.0
      %2838 = vmatpush.msra.mxu0 0.0
      %2839 = vmatpush.msra.mxu0 0.0
      %2840 = vmatpush.msra.mxu0 0.0
      %2841 = vmatpush.msra.mxu0 0.0
      %2842 = vmatpush.msra.mxu0 0.0
      %2843 = vmatpush.msra.mxu0 0.0
      %2844 = vmatpush.msra.mxu0 0.0
      %2845 = vmatpush.msra.mxu0 0.0
      %2846 = vmatpush.msra.mxu0 0.0
      %2847 = vmatpush.msra.mxu0 %v2640
      %2848 = vmatmul.f32.gmra.mxu0 %v2620
      %v2849 = vpop.f32.mrf.mxu0
      %v2850 = vadd.f32 0.0, %v2849
      %2851 = vdwg.mxu0
      %2852 = vmatpush.msra.mxu0 0.0
      %2853 = vmatpush.msra.mxu0 0.0
      %2854 = vmatpush.msra.mxu0 0.0
      %2855 = vmatpush.msra.mxu0 0.0
      %2856 = vmatpush.msra.mxu0 0.0
      %2857 = vmatpush.msra.mxu0 0.0
      %2858 = vmatpush.msra.mxu0 0.0
      %2859 = vmatpush.msra.mxu0 0.0
      %2860 = vmatpush.msra.mxu0 0.0
      %2861 = vmatpush.msra.mxu0 0.0
      %2862 = vmatpush.msra.mxu0 0.0
      %2863 = vmatpush.msra.mxu0 0.0
      %2864 = vmatpush.msra.mxu0 0.0
      %2865 = vmatpush.msra.mxu0 0.0
      %2866 = vmatpush.msra.mxu0 0.0
      %2867 = vmatpush.msra.mxu0 %v2642
      %2868 = vmatmul.f32.gmra.mxu0 %v2620
      %v2869 = vpop.f32.mrf.mxu0
      %v2870 = vadd.f32 0.0, %v2869
      %2871 = vdwg.mxu0
      %2872 = vmatpush.msra.mxu0 0.0
      %2873 = vmatpush.msra.mxu0 0.0
      %2874 = vmatpush.msra.mxu0 0.0
      %2875 = vmatpush.msra.mxu0 0.0
      %2876 = vmatpush.msra.mxu0 0.0
      %2877 = vmatpush.msra.mxu0 0.0
      %2878 = vmatpush.msra.mxu0 0.0
      %2879 = vmatpush.msra.mxu0 0.0
      %2880 = vmatpush.msra.mxu0 0.0
      %2881 = vmatpush.msra.mxu0 0.0
      %2882 = vmatpush.msra.mxu0 0.0
      %2883 = vmatpush.msra.mxu0 0.0
      %2884 = vmatpush.msra.mxu0 0.0
      %2885 = vmatpush.msra.mxu0 0.0
      %2886 = vmatpush.msra.mxu0 0.0
      %2887 = vmatpush.msra.mxu0 %v2644
      %2888 = vmatmul.f32.gmra.mxu0 %v2620
      %v2889 = vpop.f32.mrf.mxu0
      %v2890 = vadd.f32 0.0, %v2889
      %2891 = vdwg.mxu0
      %2892 = vmatpush.msra.mxu0 0.0
      %2893 = vmatpush.msra.mxu0 0.0
      %2894 = vmatpush.msra.mxu0 0.0
      %2895 = vmatpush.msra.mxu0 0.0
      %2896 = vmatpush.msra.mxu0 0.0
      %2897 = vmatpush.msra.mxu0 0.0
      %2898 = vmatpush.msra.mxu0 0.0
      %2899 = vmatpush.msra.mxu0 0.0
      %2900 = vmatpush.msra.mxu0 0.0
      %2901 = vmatpush.msra.mxu0 0.0
      %2902 = vmatpush.msra.mxu0 0.0
      %2903 = vmatpush.msra.mxu0 0.0
      %2904 = vmatpush.msra.mxu0 0.0
      %2905 = vmatpush.msra.mxu0 0.0
      %2906 = vmatpush.msra.mxu0 0.0
      %2907 = vmatpush.msra.mxu0 %v2646
      %2908 = vmatmul.f32.gmra.mxu0 %v2620
      %v2909 = vpop.f32.mrf.mxu0
      %v2910 = vadd.f32 0.0, %v2909
      %2911 = vdwg.mxu0
      %2912 = vmatpush.msra.mxu0 0.0
      %2913 = vmatpush.msra.mxu0 0.0
      %2914 = vmatpush.msra.mxu0 0.0
      %2915 = vmatpush.msra.mxu0 0.0
      %2916 = vmatpush.msra.mxu0 0.0
      %2917 = vmatpush.msra.mxu0 0.0
      %2918 = vmatpush.msra.mxu0 0.0
      %2919 = vmatpush.msra.mxu0 0.0
      %2920 = vmatpush.msra.mxu0 0.0
      %2921 = vmatpush.msra.mxu0 0.0
      %2922 = vmatpush.msra.mxu0 0.0
      %2923 = vmatpush.msra.mxu0 0.0
      %2924 = vmatpush.msra.mxu0 0.0
      %2925 = vmatpush.msra.mxu0 0.0
      %2926 = vmatpush.msra.mxu0 0.0
      %2927 = vmatpush.msra.mxu0 %v2648
      %2928 = vmatmul.f32.gmra.mxu0 %v2620
      %v2929 = vpop.f32.mrf.mxu0
      %v2930 = vadd.f32 0.0, %v2929
      %2931 = vdwg.mxu0
      %2932 = vmatpush.msra.mxu0 0.0
      %2933 = vmatpush.msra.mxu0 0.0
      %2934 = vmatpush.msra.mxu0 0.0
      %2935 = vmatpush.msra.mxu0 0.0
      %2936 = vmatpush.msra.mxu0 0.0
      %2937 = vmatpush.msra.mxu0 0.0
      %2938 = vmatpush.msra.mxu0 0.0
      %2939 = vmatpush.msra.mxu0 0.0
      %2940 = vmatpush.msra.mxu0 0.0
      %2941 = vmatpush.msra.mxu0 0.0
      %2942 = vmatpush.msra.mxu0 0.0
      %2943 = vmatpush.msra.mxu0 0.0
      %2944 = vmatpush.msra.mxu0 0.0
      %2945 = vmatpush.msra.mxu0 0.0
      %2946 = vmatpush.msra.mxu0 0.0
      %2947 = vmatpush.msra.mxu0 %v2650
      %2948 = vmatmul.f32.gmra.mxu0 %v2620
      %v2949 = vpop.f32.mrf.mxu0
      %v2950 = vadd.f32 0.0, %v2949
      %2951 = vdwg.mxu0
      %v2952 = vadd.f32 %v2531, %v2670
      %v2953 = vadd.f32 %v2532, %v2690
      %v2954 = vadd.f32 %v2533, %v2710
      %v2955 = vadd.f32 %v2534, %v2730
      %v2956 = vadd.f32 %v2535, %v2750
      %v2957 = vadd.f32 %v2536, %v2770
      %v2958 = vadd.f32 %v2537, %v2790
      %v2959 = vadd.f32 %v2538, %v2810
      %v2960 = vadd.f32 %v2539, %v2830
      %v2961 = vadd.f32 %v2540, %v2850
      %v2962 = vadd.f32 %v2541, %v2870
      %v2963 = vadd.f32 %v2542, %v2890
      %v2964 = vadd.f32 %v2543, %v2910
      %v2965 = vadd.f32 %v2544, %v2930
      %v2966 = vadd.f32 %v2545, %v2950
      %s2967 = scalar_lea.vmem %s1, 48
      %v2968 = vld [vmem:[%s2967] sm:$0xff]
      %2969 = vst [vmem:[#allocation1] ss:$2 sm:$0xff] %v499
      %s2970 = scalar_lea.vmem [#allocation1], 16
      %2971 = vst [vmem:[%s2970] ss:$2 sm:$0xff] %v500
      %s2972 = scalar_lea.vmem [#allocation1], 32
      %2973 = vst [vmem:[%s2972] ss:$2 sm:$0xff] %v501
      %s2974 = scalar_lea.vmem [#allocation1], 48
      %2975 = vst [vmem:[%s2974] ss:$2 sm:$0xff] %v502
      %v2976 = vld.sshfl [vmem:[#allocation1] sm:$0xff pattern:$0x75316420]
      %v2977 = vld.sshfl [vmem:[#allocation1 + $0x8] sm:$0xff pattern:$0x75316420]
      %v2978 = vld.sshfl [vmem:[#allocation1 + $0x10] sm:$0xff pattern:$0x75316420]
      %v2979 = vld.sshfl [vmem:[#allocation1 + $0x18] sm:$0xff pattern:$0x75316420]
      %v2980 = vld.sshfl [vmem:[#allocation1 + $0x20] sm:$0xff pattern:$0x75316420]
      %v2981 = vld.sshfl [vmem:[#allocation1 + $0x28] sm:$0xff pattern:$0x75316420]
      %v2982 = vld.sshfl [vmem:[#allocation1 + $0x30] sm:$0xff pattern:$0x75316420]
      %v2983 = vld.sshfl [vmem:[#allocation1 + $0x38] sm:$0xff pattern:$0x75316420]
      %2984 = vst [vmem:[#allocation1] ss:$2 sm:$0xff] %v503
      %2985 = vst [vmem:[%s2970] ss:$2 sm:$0xff] %v504
      %2986 = vst [vmem:[%s2972] ss:$2 sm:$0xff] %v505
      %2987 = vst [vmem:[%s2974] ss:$2 sm:$0xff] %v506
      %v2988 = vld.sshfl [vmem:[#allocation1] sm:$0xff pattern:$0x75316420]
      %v2989 = vld.sshfl [vmem:[#allocation1 + $0x8] sm:$0xff pattern:$0x75316420]
      %v2990 = vld.sshfl [vmem:[#allocation1 + $0x10] sm:$0xff pattern:$0x75316420]
      %v2991 = vld.sshfl [vmem:[#allocation1 + $0x18] sm:$0xff pattern:$0x75316420]
      %v2992 = vld.sshfl [vmem:[#allocation1 + $0x20] sm:$0xff pattern:$0x75316420]
      %v2993 = vld.sshfl [vmem:[#allocation1 + $0x28] sm:$0xff pattern:$0x75316420]
      %v2994 = vld.sshfl [vmem:[#allocation1 + $0x30] sm:$0xff pattern:$0x75316420]
      %v2995 = vld.sshfl [vmem:[#allocation1 + $0x38] sm:$0xff pattern:$0x75316420]
      %2996 = vrot.lane.b32.xlu0 %v2976, 40
      %v2997 = vpop.permute.xlu0 %2996
      %2998 = vrot.lane.b32.xlu0 %v2977, 40
      %v2999 = vpop.permute.xlu0 %2998
      %3000 = vrot.lane.b32.xlu0 %v2978, 40
      %v3001 = vpop.permute.xlu0 %3000
      %3002 = vrot.lane.b32.xlu0 %v2979, 40
      %v3003 = vpop.permute.xlu0 %3002
      %3004 = vrot.lane.b32.xlu0 %v2980, 40
      %v3005 = vpop.permute.xlu0 %3004
      %3006 = vrot.lane.b32.xlu0 %v2981, 40
      %v3007 = vpop.permute.xlu0 %3006
      %3008 = vrot.lane.b32.xlu0 %v2982, 40
      %v3009 = vpop.permute.xlu0 %3008
      %3010 = vrot.lane.b32.xlu0 %v2983, 40
      %v3011 = vpop.permute.xlu0 %3010
      %3012 = vrot.lane.b32.xlu0 %v2988, 40
      %v3013 = vpop.permute.xlu0 %3012
      %3014 = vrot.lane.b32.xlu0 %v2989, 40
      %v3015 = vpop.permute.xlu0 %3014
      %3016 = vrot.lane.b32.xlu0 %v2990, 40
      %v3017 = vpop.permute.xlu0 %3016
      %3018 = vrot.lane.b32.xlu0 %v2991, 40
      %v3019 = vpop.permute.xlu0 %3018
      %3020 = vrot.lane.b32.xlu0 %v2992, 40
      %v3021 = vpop.permute.xlu0 %3020
      %3022 = vrot.lane.b32.xlu0 %v2993, 40
      %v3023 = vpop.permute.xlu0 %3022
      %3024 = vrot.lane.b32.xlu0 %v2994, 40
      %v3025 = vpop.permute.xlu0 %3024
      %3026 = vrot.lane.b32.xlu0 %v2995, 40
      %v3027 = vpop.permute.xlu0 %3026
      %vm3028 = vcmask 326656
      %v3029 = vsel %vm3028, %v2997, %v2999
      %v3030 = vsel %vm3028, %v2999, %v3001
      %v3031 = vsel %vm3028, %v3001, %v3003
      %v3032 = vsel %vm3028, %v3003, %v3005
      %v3033 = vsel %vm3028, %v3005, %v3007
      %v3034 = vsel %vm3028, %v3007, %v3009
      %v3035 = vsel %vm3028, %v3009, %v3011
      %v3036 = vsel %vm3028, %v3011, %v3013
      %v3037 = vsel %vm3028, %v3013, %v3015
      %v3038 = vsel %vm3028, %v3015, %v3017
      %v3039 = vsel %vm3028, %v3017, %v3019
      %v3040 = vsel %vm3028, %v3019, %v3021
      %v3041 = vsel %vm3028, %v3021, %v3023
      %v3042 = vsel %vm3028, %v3023, %v3025
      %v3043 = vsel %vm3028, %v3025, %v3027
      %v3045 = vsel %vm589, %v2968, 0
      %v3047 = vsel %vm593, %v3029, 0
      %v3049 = vsel %vm593, %v3030, 0
      %v3051 = vsel %vm593, %v3031, 0
      %v3053 = vsel %vm593, %v3032, 0
      %v3055 = vsel %vm593, %v3033, 0
      %v3057 = vsel %vm593, %v3034, 0
      %v3059 = vsel %vm593, %v3035, 0
      %v3061 = vsel %vm593, %v3036, 0
      %v3063 = vsel %vm593, %v3037, 0
      %v3065 = vsel %vm593, %v3038, 0
      %v3067 = vsel %vm593, %v3039, 0
      %v3069 = vsel %vm593, %v3040, 0
      %v3071 = vsel %vm593, %v3041, 0
      %v3073 = vsel %vm593, %v3042, 0
      %v3075 = vsel %vm593, %v3043, 0
      %3077 = vmatpush.msra.mxu0 0.0
      %3078 = vmatpush.msra.mxu0 0.0
      %3079 = vmatpush.msra.mxu0 0.0
      %3080 = vmatpush.msra.mxu0 0.0
      %3081 = vmatpush.msra.mxu0 0.0
      %3082 = vmatpush.msra.mxu0 0.0
      %3083 = vmatpush.msra.mxu0 0.0
      %3084 = vmatpush.msra.mxu0 0.0
      %3085 = vmatpush.msra.mxu0 0.0
      %3086 = vmatpush.msra.mxu0 0.0
      %3087 = vmatpush.msra.mxu0 0.0
      %3088 = vmatpush.msra.mxu0 0.0
      %3089 = vmatpush.msra.mxu0 0.0
      %3090 = vmatpush.msra.mxu0 0.0
      %3091 = vmatpush.msra.mxu0 0.0
      %3092 = vmatpush.msra.mxu0 %v3047
      %3093 = vmatmul.f32.gmra.mxu0 %v3045
      %v3094 = vpop.f32.mrf.mxu0
      %v3095 = vadd.f32 0.0, %v3094
      %3096 = vdwg.mxu0
      %3097 = vmatpush.msra.mxu0 0.0
      %3098 = vmatpush.msra.mxu0 0.0
      %3099 = vmatpush.msra.mxu0 0.0
      %3100 = vmatpush.msra.mxu0 0.0
      %3101 = vmatpush.msra.mxu0 0.0
      %3102 = vmatpush.msra.mxu0 0.0
      %3103 = vmatpush.msra.mxu0 0.0
      %3104 = vmatpush.msra.mxu0 0.0
      %3105 = vmatpush.msra.mxu0 0.0
      %3106 = vmatpush.msra.mxu0 0.0
      %3107 = vmatpush.msra.mxu0 0.0
      %3108 = vmatpush.msra.mxu0 0.0
      %3109 = vmatpush.msra.mxu0 0.0
      %3110 = vmatpush.msra.mxu0 0.0
      %3111 = vmatpush.msra.mxu0 0.0
      %3112 = vmatpush.msra.mxu0 %v3049
      %3113 = vmatmul.f32.gmra.mxu0 %v3045
      %v3114 = vpop.f32.mrf.mxu0
      %v3115 = vadd.f32 0.0, %v3114
      %3116 = vdwg.mxu0
      %3117 = vmatpush.msra.mxu0 0.0
      %3118 = vmatpush.msra.mxu0 0.0
      %3119 = vmatpush.msra.mxu0 0.0
      %3120 = vmatpush.msra.mxu0 0.0
      %3121 = vmatpush.msra.mxu0 0.0
      %3122 = vmatpush.msra.mxu0 0.0
      %3123 = vmatpush.msra.mxu0 0.0
      %3124 = vmatpush.msra.mxu0 0.0
      %3125 = vmatpush.msra.mxu0 0.0
      %3126 = vmatpush.msra.mxu0 0.0
      %3127 = vmatpush.msra.mxu0 0.0
      %3128 = vmatpush.msra.mxu0 0.0
      %3129 = vmatpush.msra.mxu0 0.0
      %3130 = vmatpush.msra.mxu0 0.0
      %3131 = vmatpush.msra.mxu0 0.0
      %3132 = vmatpush.msra.mxu0 %v3051
      %3133 = vmatmul.f32.gmra.mxu0 %v3045
      %v3134 = vpop.f32.mrf.mxu0
      %v3135 = vadd.f32 0.0, %v3134
      %3136 = vdwg.mxu0
      %3137 = vmatpush.msra.mxu0 0.0
      %3138 = vmatpush.msra.mxu0 0.0
      %3139 = vmatpush.msra.mxu0 0.0
      %3140 = vmatpush.msra.mxu0 0.0
      %3141 = vmatpush.msra.mxu0 0.0
      %3142 = vmatpush.msra.mxu0 0.0
      %3143 = vmatpush.msra.mxu0 0.0
      %3144 = vmatpush.msra.mxu0 0.0
      %3145 = vmatpush.msra.mxu0 0.0
      %3146 = vmatpush.msra.mxu0 0.0
      %3147 = vmatpush.msra.mxu0 0.0
      %3148 = vmatpush.msra.mxu0 0.0
      %3149 = vmatpush.msra.mxu0 0.0
      %3150 = vmatpush.msra.mxu0 0.0
      %3151 = vmatpush.msra.mxu0 0.0
      %3152 = vmatpush.msra.mxu0 %v3053
      %3153 = vmatmul.f32.gmra.mxu0 %v3045
      %v3154 = vpop.f32.mrf.mxu0
      %v3155 = vadd.f32 0.0, %v3154
      %3156 = vdwg.mxu0
      %3157 = vmatpush.msra.mxu0 0.0
      %3158 = vmatpush.msra.mxu0 0.0
      %3159 = vmatpush.msra.mxu0 0.0
      %3160 = vmatpush.msra.mxu0 0.0
      %3161 = vmatpush.msra.mxu0 0.0
      %3162 = vmatpush.msra.mxu0 0.0
      %3163 = vmatpush.msra.mxu0 0.0
      %3164 = vmatpush.msra.mxu0 0.0
      %3165 = vmatpush.msra.mxu0 0.0
      %3166 = vmatpush.msra.mxu0 0.0
      %3167 = vmatpush.msra.mxu0 0.0
      %3168 = vmatpush.msra.mxu0 0.0
      %3169 = vmatpush.msra.mxu0 0.0
      %3170 = vmatpush.msra.mxu0 0.0
      %3171 = vmatpush.msra.mxu0 0.0
      %3172 = vmatpush.msra.mxu0 %v3055
      %3173 = vmatmul.f32.gmra.mxu0 %v3045
      %v3174 = vpop.f32.mrf.mxu0
      %v3175 = vadd.f32 0.0, %v3174
      %3176 = vdwg.mxu0
      %3177 = vmatpush.msra.mxu0 0.0
      %3178 = vmatpush.msra.mxu0 0.0
      %3179 = vmatpush.msra.mxu0 0.0
      %3180 = vmatpush.msra.mxu0 0.0
      %3181 = vmatpush.msra.mxu0 0.0
      %3182 = vmatpush.msra.mxu0 0.0
      %3183 = vmatpush.msra.mxu0 0.0
      %3184 = vmatpush.msra.mxu0 0.0
      %3185 = vmatpush.msra.mxu0 0.0
      %3186 = vmatpush.msra.mxu0 0.0
      %3187 = vmatpush.msra.mxu0 0.0
      %3188 = vmatpush.msra.mxu0 0.0
      %3189 = vmatpush.msra.mxu0 0.0
      %3190 = vmatpush.msra.mxu0 0.0
      %3191 = vmatpush.msra.mxu0 0.0
      %3192 = vmatpush.msra.mxu0 %v3057
      %3193 = vmatmul.f32.gmra.mxu0 %v3045
      %v3194 = vpop.f32.mrf.mxu0
      %v3195 = vadd.f32 0.0, %v3194
      %3196 = vdwg.mxu0
      %3197 = vmatpush.msra.mxu0 0.0
      %3198 = vmatpush.msra.mxu0 0.0
      %3199 = vmatpush.msra.mxu0 0.0
      %3200 = vmatpush.msra.mxu0 0.0
      %3201 = vmatpush.msra.mxu0 0.0
      %3202 = vmatpush.msra.mxu0 0.0
      %3203 = vmatpush.msra.mxu0 0.0
      %3204 = vmatpush.msra.mxu0 0.0
      %3205 = vmatpush.msra.mxu0 0.0
      %3206 = vmatpush.msra.mxu0 0.0
      %3207 = vmatpush.msra.mxu0 0.0
      %3208 = vmatpush.msra.mxu0 0.0
      %3209 = vmatpush.msra.mxu0 0.0
      %3210 = vmatpush.msra.mxu0 0.0
      %3211 = vmatpush.msra.mxu0 0.0
      %3212 = vmatpush.msra.mxu0 %v3059
      %3213 = vmatmul.f32.gmra.mxu0 %v3045
      %v3214 = vpop.f32.mrf.mxu0
      %v3215 = vadd.f32 0.0, %v3214
      %3216 = vdwg.mxu0
      %3217 = vmatpush.msra.mxu0 0.0
      %3218 = vmatpush.msra.mxu0 0.0
      %3219 = vmatpush.msra.mxu0 0.0
      %3220 = vmatpush.msra.mxu0 0.0
      %3221 = vmatpush.msra.mxu0 0.0
      %3222 = vmatpush.msra.mxu0 0.0
      %3223 = vmatpush.msra.mxu0 0.0
      %3224 = vmatpush.msra.mxu0 0.0
      %3225 = vmatpush.msra.mxu0 0.0
      %3226 = vmatpush.msra.mxu0 0.0
      %3227 = vmatpush.msra.mxu0 0.0
      %3228 = vmatpush.msra.mxu0 0.0
      %3229 = vmatpush.msra.mxu0 0.0
      %3230 = vmatpush.msra.mxu0 0.0
      %3231 = vmatpush.msra.mxu0 0.0
      %3232 = vmatpush.msra.mxu0 %v3061
      %3233 = vmatmul.f32.gmra.mxu0 %v3045
      %v3234 = vpop.f32.mrf.mxu0
      %v3235 = vadd.f32 0.0, %v3234
      %3236 = vdwg.mxu0
      %3237 = vmatpush.msra.mxu0 0.0
      %3238 = vmatpush.msra.mxu0 0.0
      %3239 = vmatpush.msra.mxu0 0.0
      %3240 = vmatpush.msra.mxu0 0.0
      %3241 = vmatpush.msra.mxu0 0.0
      %3242 = vmatpush.msra.mxu0 0.0
      %3243 = vmatpush.msra.mxu0 0.0
      %3244 = vmatpush.msra.mxu0 0.0
      %3245 = vmatpush.msra.mxu0 0.0
      %3246 = vmatpush.msra.mxu0 0.0
      %3247 = vmatpush.msra.mxu0 0.0
      %3248 = vmatpush.msra.mxu0 0.0
      %3249 = vmatpush.msra.mxu0 0.0
      %3250 = vmatpush.msra.mxu0 0.0
      %3251 = vmatpush.msra.mxu0 0.0
      %3252 = vmatpush.msra.mxu0 %v3063
      %3253 = vmatmul.f32.gmra.mxu0 %v3045
      %v3254 = vpop.f32.mrf.mxu0
      %v3255 = vadd.f32 0.0, %v3254
      %3256 = vdwg.mxu0
      %3257 = vmatpush.msra.mxu0 0.0
      %3258 = vmatpush.msra.mxu0 0.0
      %3259 = vmatpush.msra.mxu0 0.0
      %3260 = vmatpush.msra.mxu0 0.0
      %3261 = vmatpush.msra.mxu0 0.0
      %3262 = vmatpush.msra.mxu0 0.0
      %3263 = vmatpush.msra.mxu0 0.0
      %3264 = vmatpush.msra.mxu0 0.0
      %3265 = vmatpush.msra.mxu0 0.0
      %3266 = vmatpush.msra.mxu0 0.0
      %3267 = vmatpush.msra.mxu0 0.0
      %3268 = vmatpush.msra.mxu0 0.0
      %3269 = vmatpush.msra.mxu0 0.0
      %3270 = vmatpush.msra.mxu0 0.0
      %3271 = vmatpush.msra.mxu0 0.0
      %3272 = vmatpush.msra.mxu0 %v3065
      %3273 = vmatmul.f32.gmra.mxu0 %v3045
      %v3274 = vpop.f32.mrf.mxu0
      %v3275 = vadd.f32 0.0, %v3274
      %3276 = vdwg.mxu0
      %3277 = vmatpush.msra.mxu0 0.0
      %3278 = vmatpush.msra.mxu0 0.0
      %3279 = vmatpush.msra.mxu0 0.0
      %3280 = vmatpush.msra.mxu0 0.0
      %3281 = vmatpush.msra.mxu0 0.0
      %3282 = vmatpush.msra.mxu0 0.0
      %3283 = vmatpush.msra.mxu0 0.0
      %3284 = vmatpush.msra.mxu0 0.0
      %3285 = vmatpush.msra.mxu0 0.0
      %3286 = vmatpush.msra.mxu0 0.0
      %3287 = vmatpush.msra.mxu0 0.0
      %3288 = vmatpush.msra.mxu0 0.0
      %3289 = vmatpush.msra.mxu0 0.0
      %3290 = vmatpush.msra.mxu0 0.0
      %3291 = vmatpush.msra.mxu0 0.0
      %3292 = vmatpush.msra.mxu0 %v3067
      %3293 = vmatmul.f32.gmra.mxu0 %v3045
      %v3294 = vpop.f32.mrf.mxu0
      %v3295 = vadd.f32 0.0, %v3294
      %3296 = vdwg.mxu0
      %3297 = vmatpush.msra.mxu0 0.0
      %3298 = vmatpush.msra.mxu0 0.0
      %3299 = vmatpush.msra.mxu0 0.0
      %3300 = vmatpush.msra.mxu0 0.0
      %3301 = vmatpush.msra.mxu0 0.0
      %3302 = vmatpush.msra.mxu0 0.0
      %3303 = vmatpush.msra.mxu0 0.0
      %3304 = vmatpush.msra.mxu0 0.0
      %3305 = vmatpush.msra.mxu0 0.0
      %3306 = vmatpush.msra.mxu0 0.0
      %3307 = vmatpush.msra.mxu0 0.0
      %3308 = vmatpush.msra.mxu0 0.0
      %3309 = vmatpush.msra.mxu0 0.0
      %3310 = vmatpush.msra.mxu0 0.0
      %3311 = vmatpush.msra.mxu0 0.0
      %3312 = vmatpush.msra.mxu0 %v3069
      %3313 = vmatmul.f32.gmra.mxu0 %v3045
      %v3314 = vpop.f32.mrf.mxu0
      %v3315 = vadd.f32 0.0, %v3314
      %3316 = vdwg.mxu0
      %3317 = vmatpush.msra.mxu0 0.0
      %3318 = vmatpush.msra.mxu0 0.0
      %3319 = vmatpush.msra.mxu0 0.0
      %3320 = vmatpush.msra.mxu0 0.0
      %3321 = vmatpush.msra.mxu0 0.0
      %3322 = vmatpush.msra.mxu0 0.0
      %3323 = vmatpush.msra.mxu0 0.0
      %3324 = vmatpush.msra.mxu0 0.0
      %3325 = vmatpush.msra.mxu0 0.0
      %3326 = vmatpush.msra.mxu0 0.0
      %3327 = vmatpush.msra.mxu0 0.0
      %3328 = vmatpush.msra.mxu0 0.0
      %3329 = vmatpush.msra.mxu0 0.0
      %3330 = vmatpush.msra.mxu0 0.0
      %3331 = vmatpush.msra.mxu0 0.0
      %3332 = vmatpush.msra.mxu0 %v3071
      %3333 = vmatmul.f32.gmra.mxu0 %v3045
      %v3334 = vpop.f32.mrf.mxu0
      %v3335 = vadd.f32 0.0, %v3334
      %3336 = vdwg.mxu0
      %3337 = vmatpush.msra.mxu0 0.0
      %3338 = vmatpush.msra.mxu0 0.0
      %3339 = vmatpush.msra.mxu0 0.0
      %3340 = vmatpush.msra.mxu0 0.0
      %3341 = vmatpush.msra.mxu0 0.0
      %3342 = vmatpush.msra.mxu0 0.0
      %3343 = vmatpush.msra.mxu0 0.0
      %3344 = vmatpush.msra.mxu0 0.0
      %3345 = vmatpush.msra.mxu0 0.0
      %3346 = vmatpush.msra.mxu0 0.0
      %3347 = vmatpush.msra.mxu0 0.0
      %3348 = vmatpush.msra.mxu0 0.0
      %3349 = vmatpush.msra.mxu0 0.0
      %3350 = vmatpush.msra.mxu0 0.0
      %3351 = vmatpush.msra.mxu0 0.0
      %3352 = vmatpush.msra.mxu0 %v3073
      %3353 = vmatmul.f32.gmra.mxu0 %v3045
      %v3354 = vpop.f32.mrf.mxu0
      %v3355 = vadd.f32 0.0, %v3354
      %3356 = vdwg.mxu0
      %3357 = vmatpush.msra.mxu0 0.0
      %3358 = vmatpush.msra.mxu0 0.0
      %3359 = vmatpush.msra.mxu0 0.0
      %3360 = vmatpush.msra.mxu0 0.0
      %3361 = vmatpush.msra.mxu0 0.0
      %3362 = vmatpush.msra.mxu0 0.0
      %3363 = vmatpush.msra.mxu0 0.0
      %3364 = vmatpush.msra.mxu0 0.0
      %3365 = vmatpush.msra.mxu0 0.0
      %3366 = vmatpush.msra.mxu0 0.0
      %3367 = vmatpush.msra.mxu0 0.0
      %3368 = vmatpush.msra.mxu0 0.0
      %3369 = vmatpush.msra.mxu0 0.0
      %3370 = vmatpush.msra.mxu0 0.0
      %3371 = vmatpush.msra.mxu0 0.0
      %3372 = vmatpush.msra.mxu0 %v3075
      %3373 = vmatmul.f32.gmra.mxu0 %v3045
      %v3374 = vpop.f32.mrf.mxu0
      %v3375 = vadd.f32 0.0, %v3374
      %3376 = vdwg.mxu0
      %v3377 = vadd.f32 %v2952, %v3095
      %v3378 = vadd.f32 %v2953, %v3115
      %v3379 = vadd.f32 %v2954, %v3135
      %v3380 = vadd.f32 %v2955, %v3155
      %v3381 = vadd.f32 %v2956, %v3175
      %v3382 = vadd.f32 %v2957, %v3195
      %v3383 = vadd.f32 %v2958, %v3215
      %v3384 = vadd.f32 %v2959, %v3235
      %v3385 = vadd.f32 %v2960, %v3255
      %v3386 = vadd.f32 %v2961, %v3275
      %v3387 = vadd.f32 %v2962, %v3295
      %v3388 = vadd.f32 %v2963, %v3315
      %v3389 = vadd.f32 %v2964, %v3335
      %v3390 = vadd.f32 %v2965, %v3355
      %v3391 = vadd.f32 %v2966, %v3375
      %s3392 = scalar_lea.vmem %s1, 56
      %v3393 = vld [vmem:[%s3392] sm:$0xff]
      %3394 = vst [vmem:[#allocation1] ss:$2 sm:$0xff] %v499
      %s3395 = scalar_lea.vmem [#allocation1], 16
      %3396 = vst [vmem:[%s3395] ss:$2 sm:$0xff] %v500
      %s3397 = scalar_lea.vmem [#allocation1], 32
      %3398 = vst [vmem:[%s3397] ss:$2 sm:$0xff] %v501
      %s3399 = scalar_lea.vmem [#allocation1], 48
      %3400 = vst [vmem:[%s3399] ss:$2 sm:$0xff] %v502
      %v3401 = vld.sshfl [vmem:[#allocation1] sm:$0xff pattern:$0x75316420]
      %v3402 = vld.sshfl [vmem:[#allocation1 + $0x8] sm:$0xff pattern:$0x75316420]
      %v3403 = vld.sshfl [vmem:[#allocation1 + $0x10] sm:$0xff pattern:$0x75316420]
      %v3404 = vld.sshfl [vmem:[#allocation1 + $0x18] sm:$0xff pattern:$0x75316420]
      %v3405 = vld.sshfl [vmem:[#allocation1 + $0x20] sm:$0xff pattern:$0x75316420]
      %v3406 = vld.sshfl [vmem:[#allocation1 + $0x28] sm:$0xff pattern:$0x75316420]
      %v3407 = vld.sshfl [vmem:[#allocation1 + $0x30] sm:$0xff pattern:$0x75316420]
      %v3408 = vld.sshfl [vmem:[#allocation1 + $0x38] sm:$0xff pattern:$0x75316420]
      %3409 = vst [vmem:[#allocation1] ss:$2 sm:$0xff] %v503
      %3410 = vst [vmem:[%s3395] ss:$2 sm:$0xff] %v504
      %3411 = vst [vmem:[%s3397] ss:$2 sm:$0xff] %v505
      %3412 = vst [vmem:[%s3399] ss:$2 sm:$0xff] %v506
      %v3413 = vld.sshfl [vmem:[#allocation1] sm:$0xff pattern:$0x75316420]
      %v3414 = vld.sshfl [vmem:[#allocation1 + $0x8] sm:$0xff pattern:$0x75316420]
      %v3415 = vld.sshfl [vmem:[#allocation1 + $0x10] sm:$0xff pattern:$0x75316420]
      %v3416 = vld.sshfl [vmem:[#allocation1 + $0x18] sm:$0xff pattern:$0x75316420]
      %v3417 = vld.sshfl [vmem:[#allocation1 + $0x20] sm:$0xff pattern:$0x75316420]
      %v3418 = vld.sshfl [vmem:[#allocation1 + $0x28] sm:$0xff pattern:$0x75316420]
      %v3419 = vld.sshfl [vmem:[#allocation1 + $0x30] sm:$0xff pattern:$0x75316420]
      %v3420 = vld.sshfl [vmem:[#allocation1 + $0x38] sm:$0xff pattern:$0x75316420]
      %3421 = vrot.lane.b32.xlu0 %v3401, 39
      %v3422 = vpop.permute.xlu0 %3421
      %3423 = vrot.lane.b32.xlu0 %v3402, 39
      %v3424 = vpop.permute.xlu0 %3423
      %3425 = vrot.lane.b32.xlu0 %v3403, 39
      %v3426 = vpop.permute.xlu0 %3425
      %3427 = vrot.lane.b32.xlu0 %v3404, 39
      %v3428 = vpop.permute.xlu0 %3427
      %3429 = vrot.lane.b32.xlu0 %v3405, 39
      %v3430 = vpop.permute.xlu0 %3429
      %3431 = vrot.lane.b32.xlu0 %v3406, 39
      %v3432 = vpop.permute.xlu0 %3431
      %3433 = vrot.lane.b32.xlu0 %v3407, 39
      %v3434 = vpop.permute.xlu0 %3433
      %3435 = vrot.lane.b32.xlu0 %v3408, 39
      %v3436 = vpop.permute.xlu0 %3435
      %3437 = vrot.lane.b32.xlu0 %v3413, 39
      %v3438 = vpop.permute.xlu0 %3437
      %3439 = vrot.lane.b32.xlu0 %v3414, 39
      %v3440 = vpop.permute.xlu0 %3439
      %3441 = vrot.lane.b32.xlu0 %v3415, 39
      %v3442 = vpop.permute.xlu0 %3441
      %3443 = vrot.lane.b32.xlu0 %v3416, 39
      %v3444 = vpop.permute.xlu0 %3443
      %3445 = vrot.lane.b32.xlu0 %v3417, 39
      %v3446 = vpop.permute.xlu0 %3445
      %3447 = vrot.lane.b32.xlu0 %v3418, 39
      %v3448 = vpop.permute.xlu0 %3447
      %3449 = vrot.lane.b32.xlu0 %v3419, 39
      %v3450 = vpop.permute.xlu0 %3449
      %3451 = vrot.lane.b32.xlu0 %v3420, 39
      %v3452 = vpop.permute.xlu0 %3451
      %vm3453 = vcmask 318464
      %v3454 = vsel %vm3453, %v3422, %v3424
      %v3455 = vsel %vm3453, %v3424, %v3426
      %v3456 = vsel %vm3453, %v3426, %v3428
      %v3457 = vsel %vm3453, %v3428, %v3430
      %v3458 = vsel %vm3453, %v3430, %v3432
      %v3459 = vsel %vm3453, %v3432, %v3434
      %v3460 = vsel %vm3453, %v3434, %v3436
      %v3461 = vsel %vm3453, %v3436, %v3438
      %v3462 = vsel %vm3453, %v3438, %v3440
      %v3463 = vsel %vm3453, %v3440, %v3442
      %v3464 = vsel %vm3453, %v3442, %v3444
      %v3465 = vsel %vm3453, %v3444, %v3446
      %v3466 = vsel %vm3453, %v3446, %v3448
      %v3467 = vsel %vm3453, %v3448, %v3450
      %v3468 = vsel %vm3453, %v3450, %v3452
      %v3470 = vsel %vm589, %v3393, 0
      %v3472 = vsel %vm593, %v3454, 0
      %v3474 = vsel %vm593, %v3455, 0
      %v3476 = vsel %vm593, %v3456, 0
      %v3478 = vsel %vm593, %v3457, 0
      %v3480 = vsel %vm593, %v3458, 0
      %v3482 = vsel %vm593, %v3459, 0
      %v3484 = vsel %vm593, %v3460, 0
      %v3486 = vsel %vm593, %v3461, 0
      %v3488 = vsel %vm593, %v3462, 0
      %v3490 = vsel %vm593, %v3463, 0
      %v3492 = vsel %vm593, %v3464, 0
      %v3494 = vsel %vm593, %v3465, 0
      %v3496 = vsel %vm593, %v3466, 0
      %v3498 = vsel %vm593, %v3467, 0
      %v3500 = vsel %vm593, %v3468, 0
      %3502 = vmatpush.msra.mxu0 0.0
      %3503 = vmatpush.msra.mxu0 0.0
      %3504 = vmatpush.msra.mxu0 0.0
      %3505 = vmatpush.msra.mxu0 0.0
      %3506 = vmatpush.msra.mxu0 0.0
      %3507 = vmatpush.msra.mxu0 0.0
      %3508 = vmatpush.msra.mxu0 0.0
      %3509 = vmatpush.msra.mxu0 0.0
      %3510 = vmatpush.msra.mxu0 0.0
      %3511 = vmatpush.msra.mxu0 0.0
      %3512 = vmatpush.msra.mxu0 0.0
      %3513 = vmatpush.msra.mxu0 0.0
      %3514 = vmatpush.msra.mxu0 0.0
      %3515 = vmatpush.msra.mxu0 0.0
      %3516 = vmatpush.msra.mxu0 0.0
      %3517 = vmatpush.msra.mxu0 %v3472
      %3518 = vmatmul.f32.gmra.mxu0 %v3470
      %v3519 = vpop.f32.mrf.mxu0
      %v3520 = vadd.f32 0.0, %v3519
      %3521 = vdwg.mxu0
      %3522 = vmatpush.msra.mxu0 0.0
      %3523 = vmatpush.msra.mxu0 0.0
      %3524 = vmatpush.msra.mxu0 0.0
      %3525 = vmatpush.msra.mxu0 0.0
      %3526 = vmatpush.msra.mxu0 0.0
      %3527 = vmatpush.msra.mxu0 0.0
      %3528 = vmatpush.msra.mxu0 0.0
      %3529 = vmatpush.msra.mxu0 0.0
      %3530 = vmatpush.msra.mxu0 0.0
      %3531 = vmatpush.msra.mxu0 0.0
      %3532 = vmatpush.msra.mxu0 0.0
      %3533 = vmatpush.msra.mxu0 0.0
      %3534 = vmatpush.msra.mxu0 0.0
      %3535 = vmatpush.msra.mxu0 0.0
      %3536 = vmatpush.msra.mxu0 0.0
      %3537 = vmatpush.msra.mxu0 %v3474
      %3538 = vmatmul.f32.gmra.mxu0 %v3470
      %v3539 = vpop.f32.mrf.mxu0
      %v3540 = vadd.f32 0.0, %v3539
      %3541 = vdwg.mxu0
      %3542 = vmatpush.msra.mxu0 0.0
      %3543 = vmatpush.msra.mxu0 0.0
      %3544 = vmatpush.msra.mxu0 0.0
      %3545 = vmatpush.msra.mxu0 0.0
      %3546 = vmatpush.msra.mxu0 0.0
      %3547 = vmatpush.msra.mxu0 0.0
      %3548 = vmatpush.msra.mxu0 0.0
      %3549 = vmatpush.msra.mxu0 0.0
      %3550 = vmatpush.msra.mxu0 0.0
      %3551 = vmatpush.msra.mxu0 0.0
      %3552 = vmatpush.msra.mxu0 0.0
      %3553 = vmatpush.msra.mxu0 0.0
      %3554 = vmatpush.msra.mxu0 0.0
      %3555 = vmatpush.msra.mxu0 0.0
      %3556 = vmatpush.msra.mxu0 0.0
      %3557 = vmatpush.msra.mxu0 %v3476
      %3558 = vmatmul.f32.gmra.mxu0 %v3470
      %v3559 = vpop.f32.mrf.mxu0
      %v3560 = vadd.f32 0.0, %v3559
      %3561 = vdwg.mxu0
      %3562 = vmatpush.msra.mxu0 0.0
      %3563 = vmatpush.msra.mxu0 0.0
      %3564 = vmatpush.msra.mxu0 0.0
      %3565 = vmatpush.msra.mxu0 0.0
      %3566 = vmatpush.msra.mxu0 0.0
      %3567 = vmatpush.msra.mxu0 0.0
      %3568 = vmatpush.msra.mxu0 0.0
      %3569 = vmatpush.msra.mxu0 0.0
      %3570 = vmatpush.msra.mxu0 0.0
      %3571 = vmatpush.msra.mxu0 0.0
      %3572 = vmatpush.msra.mxu0 0.0
      %3573 = vmatpush.msra.mxu0 0.0
      %3574 = vmatpush.msra.mxu0 0.0
      %3575 = vmatpush.msra.mxu0 0.0
      %3576 = vmatpush.msra.mxu0 0.0
      %3577 = vmatpush.msra.mxu0 %v3478
      %3578 = vmatmul.f32.gmra.mxu0 %v3470
      %v3579 = vpop.f32.mrf.mxu0
      %v3580 = vadd.f32 0.0, %v3579
      %3581 = vdwg.mxu0
      %3582 = vmatpush.msra.mxu0 0.0
      %3583 = vmatpush.msra.mxu0 0.0
      %3584 = vmatpush.msra.mxu0 0.0
      %3585 = vmatpush.msra.mxu0 0.0
      %3586 = vmatpush.msra.mxu0 0.0
      %3587 = vmatpush.msra.mxu0 0.0
      %3588 = vmatpush.msra.mxu0 0.0
      %3589 = vmatpush.msra.mxu0 0.0
      %3590 = vmatpush.msra.mxu0 0.0
      %3591 = vmatpush.msra.mxu0 0.0
      %3592 = vmatpush.msra.mxu0 0.0
      %3593 = vmatpush.msra.mxu0 0.0
      %3594 = vmatpush.msra.mxu0 0.0
      %3595 = vmatpush.msra.mxu0 0.0
      %3596 = vmatpush.msra.mxu0 0.0
      %3597 = vmatpush.msra.mxu0 %v3480
      %3598 = vmatmul.f32.gmra.mxu0 %v3470
      %v3599 = vpop.f32.mrf.mxu0
      %v3600 = vadd.f32 0.0, %v3599
      %3601 = vdwg.mxu0
      %3602 = vmatpush.msra.mxu0 0.0
      %3603 = vmatpush.msra.mxu0 0.0
      %3604 = vmatpush.msra.mxu0 0.0
      %3605 = vmatpush.msra.mxu0 0.0
      %3606 = vmatpush.msra.mxu0 0.0
      %3607 = vmatpush.msra.mxu0 0.0
      %3608 = vmatpush.msra.mxu0 0.0
      %3609 = vmatpush.msra.mxu0 0.0
      %3610 = vmatpush.msra.mxu0 0.0
      %3611 = vmatpush.msra.mxu0 0.0
      %3612 = vmatpush.msra.mxu0 0.0
      %3613 = vmatpush.msra.mxu0 0.0
      %3614 = vmatpush.msra.mxu0 0.0
      %3615 = vmatpush.msra.mxu0 0.0
      %3616 = vmatpush.msra.mxu0 0.0
      %3617 = vmatpush.msra.mxu0 %v3482
      %3618 = vmatmul.f32.gmra.mxu0 %v3470
      %v3619 = vpop.f32.mrf.mxu0
      %v3620 = vadd.f32 0.0, %v3619
      %3621 = vdwg.mxu0
      %3622 = vmatpush.msra.mxu0 0.0
      %3623 = vmatpush.msra.mxu0 0.0
      %3624 = vmatpush.msra.mxu0 0.0
      %3625 = vmatpush.msra.mxu0 0.0
      %3626 = vmatpush.msra.mxu0 0.0
      %3627 = vmatpush.msra.mxu0 0.0
      %3628 = vmatpush.msra.mxu0 0.0
      %3629 = vmatpush.msra.mxu0 0.0
      %3630 = vmatpush.msra.mxu0 0.0
      %3631 = vmatpush.msra.mxu0 0.0
      %3632 = vmatpush.msra.mxu0 0.0
      %3633 = vmatpush.msra.mxu0 0.0
      %3634 = vmatpush.msra.mxu0 0.0
      %3635 = vmatpush.msra.mxu0 0.0
      %3636 = vmatpush.msra.mxu0 0.0
      %3637 = vmatpush.msra.mxu0 %v3484
      %3638 = vmatmul.f32.gmra.mxu0 %v3470
      %v3639 = vpop.f32.mrf.mxu0
      %v3640 = vadd.f32 0.0, %v3639
      %3641 = vdwg.mxu0
      %3642 = vmatpush.msra.mxu0 0.0
      %3643 = vmatpush.msra.mxu0 0.0
      %3644 = vmatpush.msra.mxu0 0.0
      %3645 = vmatpush.msra.mxu0 0.0
      %3646 = vmatpush.msra.mxu0 0.0
      %3647 = vmatpush.msra.mxu0 0.0
      %3648 = vmatpush.msra.mxu0 0.0
      %3649 = vmatpush.msra.mxu0 0.0
      %3650 = vmatpush.msra.mxu0 0.0
      %3651 = vmatpush.msra.mxu0 0.0
      %3652 = vmatpush.msra.mxu0 0.0
      %3653 = vmatpush.msra.mxu0 0.0
      %3654 = vmatpush.msra.mxu0 0.0
      %3655 = vmatpush.msra.mxu0 0.0
      %3656 = vmatpush.msra.mxu0 0.0
      %3657 = vmatpush.msra.mxu0 %v3486
      %3658 = vmatmul.f32.gmra.mxu0 %v3470
      %v3659 = vpop.f32.mrf.mxu0
      %v3660 = vadd.f32 0.0, %v3659
      %3661 = vdwg.mxu0
      %3662 = vmatpush.msra.mxu0 0.0
      %3663 = vmatpush.msra.mxu0 0.0
      %3664 = vmatpush.msra.mxu0 0.0
      %3665 = vmatpush.msra.mxu0 0.0
      %3666 = vmatpush.msra.mxu0 0.0
      %3667 = vmatpush.msra.mxu0 0.0
      %3668 = vmatpush.msra.mxu0 0.0
      %3669 = vmatpush.msra.mxu0 0.0
      %3670 = vmatpush.msra.mxu0 0.0
      %3671 = vmatpush.msra.mxu0 0.0
      %3672 = vmatpush.msra.mxu0 0.0
      %3673 = vmatpush.msra.mxu0 0.0
      %3674 = vmatpush.msra.mxu0 0.0
      %3675 = vmatpush.msra.mxu0 0.0
      %3676 = vmatpush.msra.mxu0 0.0
      %3677 = vmatpush.msra.mxu0 %v3488
      %3678 = vmatmul.f32.gmra.mxu0 %v3470
      %v3679 = vpop.f32.mrf.mxu0
      %v3680 = vadd.f32 0.0, %v3679
      %3681 = vdwg.mxu0
      %3682 = vmatpush.msra.mxu0 0.0
      %3683 = vmatpush.msra.mxu0 0.0
      %3684 = vmatpush.msra.mxu0 0.0
      %3685 = vmatpush.msra.mxu0 0.0
      %3686 = vmatpush.msra.mxu0 0.0
      %3687 = vmatpush.msra.mxu0 0.0
      %3688 = vmatpush.msra.mxu0 0.0
      %3689 = vmatpush.msra.mxu0 0.0
      %3690 = vmatpush.msra.mxu0 0.0
      %3691 = vmatpush.msra.mxu0 0.0
      %3692 = vmatpush.msra.mxu0 0.0
      %3693 = vmatpush.msra.mxu0 0.0
      %3694 = vmatpush.msra.mxu0 0.0
      %3695 = vmatpush.msra.mxu0 0.0
      %3696 = vmatpush.msra.mxu0 0.0
      %3697 = vmatpush.msra.mxu0 %v3490
      %3698 = vmatmul.f32.gmra.mxu0 %v3470
      %v3699 = vpop.f32.mrf.mxu0
      %v3700 = vadd.f32 0.0, %v3699
      %3701 = vdwg.mxu0
      %3702 = vmatpush.msra.mxu0 0.0
      %3703 = vmatpush.msra.mxu0 0.0
      %3704 = vmatpush.msra.mxu0 0.0
      %3705 = vmatpush.msra.mxu0 0.0
      %3706 = vmatpush.msra.mxu0 0.0
      %3707 = vmatpush.msra.mxu0 0.0
      %3708 = vmatpush.msra.mxu0 0.0
      %3709 = vmatpush.msra.mxu0 0.0
      %3710 = vmatpush.msra.mxu0 0.0
      %3711 = vmatpush.msra.mxu0 0.0
      %3712 = vmatpush.msra.mxu0 0.0
      %3713 = vmatpush.msra.mxu0 0.0
      %3714 = vmatpush.msra.mxu0 0.0
      %3715 = vmatpush.msra.mxu0 0.0
      %3716 = vmatpush.msra.mxu0 0.0
      %3717 = vmatpush.msra.mxu0 %v3492
      %3718 = vmatmul.f32.gmra.mxu0 %v3470
      %v3719 = vpop.f32.mrf.mxu0
      %v3720 = vadd.f32 0.0, %v3719
      %3721 = vdwg.mxu0
      %3722 = vmatpush.msra.mxu0 0.0
      %3723 = vmatpush.msra.mxu0 0.0
      %3724 = vmatpush.msra.mxu0 0.0
      %3725 = vmatpush.msra.mxu0 0.0
      %3726 = vmatpush.msra.mxu0 0.0
      %3727 = vmatpush.msra.mxu0 0.0
      %3728 = vmatpush.msra.mxu0 0.0
      %3729 = vmatpush.msra.mxu0 0.0
      %3730 = vmatpush.msra.mxu0 0.0
      %3731 = vmatpush.msra.mxu0 0.0
      %3732 = vmatpush.msra.mxu0 0.0
      %3733 = vmatpush.msra.mxu0 0.0
      %3734 = vmatpush.msra.mxu0 0.0
      %3735 = vmatpush.msra.mxu0 0.0
      %3736 = vmatpush.msra.mxu0 0.0
      %3737 = vmatpush.msra.mxu0 %v3494
      %3738 = vmatmul.f32.gmra.mxu0 %v3470
      %v3739 = vpop.f32.mrf.mxu0
      %v3740 = vadd.f32 0.0, %v3739
      %3741 = vdwg.mxu0
      %3742 = vmatpush.msra.mxu0 0.0
      %3743 = vmatpush.msra.mxu0 0.0
      %3744 = vmatpush.msra.mxu0 0.0
      %3745 = vmatpush.msra.mxu0 0.0
      %3746 = vmatpush.msra.mxu0 0.0
      %3747 = vmatpush.msra.mxu0 0.0
      %3748 = vmatpush.msra.mxu0 0.0
      %3749 = vmatpush.msra.mxu0 0.0
      %3750 = vmatpush.msra.mxu0 0.0
      %3751 = vmatpush.msra.mxu0 0.0
      %3752 = vmatpush.msra.mxu0 0.0
      %3753 = vmatpush.msra.mxu0 0.0
      %3754 = vmatpush.msra.mxu0 0.0
      %3755 = vmatpush.msra.mxu0 0.0
      %3756 = vmatpush.msra.mxu0 0.0
      %3757 = vmatpush.msra.mxu0 %v3496
      %3758 = vmatmul.f32.gmra.mxu0 %v3470
      %v3759 = vpop.f32.mrf.mxu0
      %v3760 = vadd.f32 0.0, %v3759
      %3761 = vdwg.mxu0
      %3762 = vmatpush.msra.mxu0 0.0
      %3763 = vmatpush.msra.mxu0 0.0
      %3764 = vmatpush.msra.mxu0 0.0
      %3765 = vmatpush.msra.mxu0 0.0
      %3766 = vmatpush.msra.mxu0 0.0
      %3767 = vmatpush.msra.mxu0 0.0
      %3768 = vmatpush.msra.mxu0 0.0
      %3769 = vmatpush.msra.mxu0 0.0
      %3770 = vmatpush.msra.mxu0 0.0
      %3771 = vmatpush.msra.mxu0 0.0
      %3772 = vmatpush.msra.mxu0 0.0
      %3773 = vmatpush.msra.mxu0 0.0
      %3774 = vmatpush.msra.mxu0 0.0
      %3775 = vmatpush.msra.mxu0 0.0
      %3776 = vmatpush.msra.mxu0 0.0
      %3777 = vmatpush.msra.mxu0 %v3498
      %3778 = vmatmul.f32.gmra.mxu0 %v3470
      %v3779 = vpop.f32.mrf.mxu0
      %v3780 = vadd.f32 0.0, %v3779
      %3781 = vdwg.mxu0
      %3782 = vmatpush.msra.mxu0 0.0
      %3783 = vmatpush.msra.mxu0 0.0
      %3784 = vmatpush.msra.mxu0 0.0
      %3785 = vmatpush.msra.mxu0 0.0
      %3786 = vmatpush.msra.mxu0 0.0
      %3787 = vmatpush.msra.mxu0 0.0
      %3788 = vmatpush.msra.mxu0 0.0
      %3789 = vmatpush.msra.mxu0 0.0
      %3790 = vmatpush.msra.mxu0 0.0
      %3791 = vmatpush.msra.mxu0 0.0
      %3792 = vmatpush.msra.mxu0 0.0
      %3793 = vmatpush.msra.mxu0 0.0
      %3794 = vmatpush.msra.mxu0 0.0
      %3795 = vmatpush.msra.mxu0 0.0
      %3796 = vmatpush.msra.mxu0 0.0
      %3797 = vmatpush.msra.mxu0 %v3500
      %3798 = vmatmul.f32.gmra.mxu0 %v3470
      %v3799 = vpop.f32.mrf.mxu0
      %v3800 = vadd.f32 0.0, %v3799
      %3801 = vdwg.mxu0
      %v3802 = vadd.f32 %v3377, %v3520
      %v3803 = vadd.f32 %v3378, %v3540
      %v3804 = vadd.f32 %v3379, %v3560
      %v3805 = vadd.f32 %v3380, %v3580
      %v3806 = vadd.f32 %v3381, %v3600
      %v3807 = vadd.f32 %v3382, %v3620
      %v3808 = vadd.f32 %v3383, %v3640
      %v3809 = vadd.f32 %v3384, %v3660
      %v3810 = vadd.f32 %v3385, %v3680
      %v3811 = vadd.f32 %v3386, %v3700
      %v3812 = vadd.f32 %v3387, %v3720
      %v3813 = vadd.f32 %v3388, %v3740
      %v3814 = vadd.f32 %v3389, %v3760
      %v3815 = vadd.f32 %v3390, %v3780
      %v3816 = vadd.f32 %v3391, %v3800
      %s3817 = scalar_lea.vmem %s1, 64
      %v3818 = vld [vmem:[%s3817] sm:$0xff]
      %3819 = vst [vmem:[#allocation1] ss:$2 sm:$0xff] %v499
      %s3820 = scalar_lea.vmem [#allocation1], 16
      %3821 = vst [vmem:[%s3820] ss:$2 sm:$0xff] %v500
      %s3822 = scalar_lea.vmem [#allocation1], 32
      %3823 = vst [vmem:[%s3822] ss:$2 sm:$0xff] %v501
      %s3824 = scalar_lea.vmem [#allocation1], 48
      %3825 = vst [vmem:[%s3824] ss:$2 sm:$0xff] %v502
      %v3826 = vld.sshfl [vmem:[#allocation1] sm:$0xff pattern:$0x75316420]
      %v3827 = vld.sshfl [vmem:[#allocation1 + $0x8] sm:$0xff pattern:$0x75316420]
      %v3828 = vld.sshfl [vmem:[#allocation1 + $0x10] sm:$0xff pattern:$0x75316420]
      %v3829 = vld.sshfl [vmem:[#allocation1 + $0x18] sm:$0xff pattern:$0x75316420]
      %v3830 = vld.sshfl [vmem:[#allocation1 + $0x20] sm:$0xff pattern:$0x75316420]
      %v3831 = vld.sshfl [vmem:[#allocation1 + $0x28] sm:$0xff pattern:$0x75316420]
      %v3832 = vld.sshfl [vmem:[#allocation1 + $0x30] sm:$0xff pattern:$0x75316420]
      %v3833 = vld.sshfl [vmem:[#allocation1 + $0x38] sm:$0xff pattern:$0x75316420]
      %3834 = vst [vmem:[#allocation1] ss:$2 sm:$0xff] %v503
      %3835 = vst [vmem:[%s3820] ss:$2 sm:$0xff] %v504
      %3836 = vst [vmem:[%s3822] ss:$2 sm:$0xff] %v505
      %3837 = vst [vmem:[%s3824] ss:$2 sm:$0xff] %v506
      %v3838 = vld.sshfl [vmem:[#allocation1] sm:$0xff pattern:$0x75316420]
      %v3839 = vld.sshfl [vmem:[#allocation1 + $0x8] sm:$0xff pattern:$0x75316420]
      %v3840 = vld.sshfl [vmem:[#allocation1 + $0x10] sm:$0xff pattern:$0x75316420]
      %v3841 = vld.sshfl [vmem:[#allocation1 + $0x18] sm:$0xff pattern:$0x75316420]
      %v3842 = vld.sshfl [vmem:[#allocation1 + $0x20] sm:$0xff pattern:$0x75316420]
      %v3843 = vld.sshfl [vmem:[#allocation1 + $0x28] sm:$0xff pattern:$0x75316420]
      %v3844 = vld.sshfl [vmem:[#allocation1 + $0x30] sm:$0xff pattern:$0x75316420]
      %v3845 = vld.sshfl [vmem:[#allocation1 + $0x38] sm:$0xff pattern:$0x75316420]
      %3846 = vrot.lane.b32.xlu0 %v3826, 38
      %v3847 = vpop.permute.xlu0 %3846
      %3848 = vrot.lane.b32.xlu0 %v3827, 38
      %v3849 = vpop.permute.xlu0 %3848
      %3850 = vrot.lane.b32.xlu0 %v3828, 38
      %v3851 = vpop.permute.xlu0 %3850
      %3852 = vrot.lane.b32.xlu0 %v3829, 38
      %v3853 = vpop.permute.xlu0 %3852
      %3854 = vrot.lane.b32.xlu0 %v3830, 38
      %v3855 = vpop.permute.xlu0 %3854
      %3856 = vrot.lane.b32.xlu0 %v3831, 38
      %v3857 = vpop.permute.xlu0 %3856
      %3858 = vrot.lane.b32.xlu0 %v3832, 38
      %v3859 = vpop.permute.xlu0 %3858
      %3860 = vrot.lane.b32.xlu0 %v3833, 38
      %v3861 = vpop.permute.xlu0 %3860
      %3862 = vrot.lane.b32.xlu0 %v3838, 38
      %v3863 = vpop.permute.xlu0 %3862
      %3864 = vrot.lane.b32.xlu0 %v3839, 38
      %v3865 = vpop.permute.xlu0 %3864
      %3866 = vrot.lane.b32.xlu0 %v3840, 38
      %v3867 = vpop.permute.xlu0 %3866
      %3868 = vrot.lane.b32.xlu0 %v3841, 38
      %v3869 = vpop.permute.xlu0 %3868
      %3870 = vrot.lane.b32.xlu0 %v3842, 38
      %v3871 = vpop.permute.xlu0 %3870
      %3872 = vrot.lane.b32.xlu0 %v3843, 38
      %v3873 = vpop.permute.xlu0 %3872
      %3874 = vrot.lane.b32.xlu0 %v3844, 38
      %v3875 = vpop.permute.xlu0 %3874
      %3876 = vrot.lane.b32.xlu0 %v3845, 38
      %v3877 = vpop.permute.xlu0 %3876
      %vm3878 = vcmask 310272
      %v3879 = vsel %vm3878, %v3847, %v3849
      %v3880 = vsel %vm3878, %v3849, %v3851
      %v3881 = vsel %vm3878, %v3851, %v3853
      %v3882 = vsel %vm3878, %v3853, %v3855
      %v3883 = vsel %vm3878, %v3855, %v3857
      %v3884 = vsel %vm3878, %v3857, %v3859
      %v3885 = vsel %vm3878, %v3859, %v3861
      %v3886 = vsel %vm3878, %v3861, %v3863
      %v3887 = vsel %vm3878, %v3863, %v3865
      %v3888 = vsel %vm3878, %v3865, %v3867
      %v3889 = vsel %vm3878, %v3867, %v3869
      %v3890 = vsel %vm3878, %v3869, %v3871
      %v3891 = vsel %vm3878, %v3871, %v3873
      %v3892 = vsel %vm3878, %v3873, %v3875
      %v3893 = vsel %vm3878, %v3875, %v3877
      %v3895 = vsel %vm589, %v3818, 0
      %v3897 = vsel %vm593, %v3879, 0
      %v3899 = vsel %vm593, %v3880, 0
      %v3901 = vsel %vm593, %v3881, 0
      %v3903 = vsel %vm593, %v3882, 0
      %v3905 = vsel %vm593, %v3883, 0
      %v3907 = vsel %vm593, %v3884, 0
      %v3909 = vsel %vm593, %v3885, 0
      %v3911 = vsel %vm593, %v3886, 0
      %v3913 = vsel %vm593, %v3887, 0
      %v3915 = vsel %vm593, %v3888, 0
      %v3917 = vsel %vm593, %v3889, 0
      %v3919 = vsel %vm593, %v3890, 0
      %v3921 = vsel %vm593, %v3891, 0
      %v3923 = vsel %vm593, %v3892, 0
      %v3925 = vsel %vm593, %v3893, 0
      %3927 = vmatpush.msra.mxu0 0.0
      %3928 = vmatpush.msra.mxu0 0.0
      %3929 = vmatpush.msra.mxu0 0.0
      %3930 = vmatpush.msra.mxu0 0.0
      %3931 = vmatpush.msra.mxu0 0.0
      %3932 = vmatpush.msra.mxu0 0.0
      %3933 = vmatpush.msra.mxu0 0.0
      %3934 = vmatpush.msra.mxu0 0.0
      %3935 = vmatpush.msra.mxu0 0.0
      %3936 = vmatpush.msra.mxu0 0.0
      %3937 = vmatpush.msra.mxu0 0.0
      %3938 = vmatpush.msra.mxu0 0.0
      %3939 = vmatpush.msra.mxu0 0.0
      %3940 = vmatpush.msra.mxu0 0.0
      %3941 = vmatpush.msra.mxu0 0.0
      %3942 = vmatpush.msra.mxu0 %v3897
      %3943 = vmatmul.f32.gmra.mxu0 %v3895
      %v3944 = vpop.f32.mrf.mxu0
      %v3945 = vadd.f32 0.0, %v3944
      %3946 = vdwg.mxu0
      %3947 = vmatpush.msra.mxu0 0.0
      %3948 = vmatpush.msra.mxu0 0.0
      %3949 = vmatpush.msra.mxu0 0.0
      %3950 = vmatpush.msra.mxu0 0.0
      %3951 = vmatpush.msra.mxu0 0.0
      %3952 = vmatpush.msra.mxu0 0.0
      %3953 = vmatpush.msra.mxu0 0.0
      %3954 = vmatpush.msra.mxu0 0.0
      %3955 = vmatpush.msra.mxu0 0.0
      %3956 = vmatpush.msra.mxu0 0.0
      %3957 = vmatpush.msra.mxu0 0.0
      %3958 = vmatpush.msra.mxu0 0.0
      %3959 = vmatpush.msra.mxu0 0.0
      %3960 = vmatpush.msra.mxu0 0.0
      %3961 = vmatpush.msra.mxu0 0.0
      %3962 = vmatpush.msra.mxu0 %v3899
      %3963 = vmatmul.f32.gmra.mxu0 %v3895
      %v3964 = vpop.f32.mrf.mxu0
      %v3965 = vadd.f32 0.0, %v3964
      %3966 = vdwg.mxu0
      %3967 = vmatpush.msra.mxu0 0.0
      %3968 = vmatpush.msra.mxu0 0.0
      %3969 = vmatpush.msra.mxu0 0.0
      %3970 = vmatpush.msra.mxu0 0.0
      %3971 = vmatpush.msra.mxu0 0.0
      %3972 = vmatpush.msra.mxu0 0.0
      %3973 = vmatpush.msra.mxu0 0.0
      %3974 = vmatpush.msra.mxu0 0.0
      %3975 = vmatpush.msra.mxu0 0.0
      %3976 = vmatpush.msra.mxu0 0.0
      %3977 = vmatpush.msra.mxu0 0.0
      %3978 = vmatpush.msra.mxu0 0.0
      %3979 = vmatpush.msra.mxu0 0.0
      %3980 = vmatpush.msra.mxu0 0.0
      %3981 = vmatpush.msra.mxu0 0.0
      %3982 = vmatpush.msra.mxu0 %v3901
      %3983 = vmatmul.f32.gmra.mxu0 %v3895
      %v3984 = vpop.f32.mrf.mxu0
      %v3985 = vadd.f32 0.0, %v3984
      %3986 = vdwg.mxu0
      %3987 = vmatpush.msra.mxu0 0.0
      %3988 = vmatpush.msra.mxu0 0.0
      %3989 = vmatpush.msra.mxu0 0.0
      %3990 = vmatpush.msra.mxu0 0.0
      %3991 = vmatpush.msra.mxu0 0.0
      %3992 = vmatpush.msra.mxu0 0.0
      %3993 = vmatpush.msra.mxu0 0.0
      %3994 = vmatpush.msra.mxu0 0.0
      %3995 = vmatpush.msra.mxu0 0.0
      %3996 = vmatpush.msra.mxu0 0.0
      %3997 = vmatpush.msra.mxu0 0.0
      %3998 = vmatpush.msra.mxu0 0.0
      %3999 = vmatpush.msra.mxu0 0.0
      %4000 = vmatpush.msra.mxu0 0.0
      %4001 = vmatpush.msra.mxu0 0.0
      %4002 = vmatpush.msra.mxu0 %v3903
      %4003 = vmatmul.f32.gmra.mxu0 %v3895
      %v4004 = vpop.f32.mrf.mxu0
      %v4005 = vadd.f32 0.0, %v4004
      %4006 = vdwg.mxu0
      %4007 = vmatpush.msra.mxu0 0.0
      %4008 = vmatpush.msra.mxu0 0.0
      %4009 = vmatpush.msra.mxu0 0.0
      %4010 = vmatpush.msra.mxu0 0.0
      %4011 = vmatpush.msra.mxu0 0.0
      %4012 = vmatpush.msra.mxu0 0.0
      %4013 = vmatpush.msra.mxu0 0.0
      %4014 = vmatpush.msra.mxu0 0.0
      %4015 = vmatpush.msra.mxu0 0.0
      %4016 = vmatpush.msra.mxu0 0.0
      %4017 = vmatpush.msra.mxu0 0.0
      %4018 = vmatpush.msra.mxu0 0.0
      %4019 = vmatpush.msra.mxu0 0.0
      %4020 = vmatpush.msra.mxu0 0.0
      %4021 = vmatpush.msra.mxu0 0.0
      %4022 = vmatpush.msra.mxu0 %v3905
      %4023 = vmatmul.f32.gmra.mxu0 %v3895
      %v4024 = vpop.f32.mrf.mxu0
      %v4025 = vadd.f32 0.0, %v4024
      %4026 = vdwg.mxu0
      %4027 = vmatpush.msra.mxu0 0.0
      %4028 = vmatpush.msra.mxu0 0.0
      %4029 = vmatpush.msra.mxu0 0.0
      %4030 = vmatpush.msra.mxu0 0.0
      %4031 = vmatpush.msra.mxu0 0.0
      %4032 = vmatpush.msra.mxu0 0.0
      %4033 = vmatpush.msra.mxu0 0.0
      %4034 = vmatpush.msra.mxu0 0.0
      %4035 = vmatpush.msra.mxu0 0.0
      %4036 = vmatpush.msra.mxu0 0.0
      %4037 = vmatpush.msra.mxu0 0.0
      %4038 = vmatpush.msra.mxu0 0.0
      %4039 = vmatpush.msra.mxu0 0.0
      %4040 = vmatpush.msra.mxu0 0.0
      %4041 = vmatpush.msra.mxu0 0.0
      %4042 = vmatpush.msra.mxu0 %v3907
      %4043 = vmatmul.f32.gmra.mxu0 %v3895
      %v4044 = vpop.f32.mrf.mxu0
      %v4045 = vadd.f32 0.0, %v4044
      %4046 = vdwg.mxu0
      %4047 = vmatpush.msra.mxu0 0.0
      %4048 = vmatpush.msra.mxu0 0.0
      %4049 = vmatpush.msra.mxu0 0.0
      %4050 = vmatpush.msra.mxu0 0.0
      %4051 = vmatpush.msra.mxu0 0.0
      %4052 = vmatpush.msra.mxu0 0.0
      %4053 = vmatpush.msra.mxu0 0.0
      %4054 = vmatpush.msra.mxu0 0.0
      %4055 = vmatpush.msra.mxu0 0.0
      %4056 = vmatpush.msra.mxu0 0.0
      %4057 = vmatpush.msra.mxu0 0.0
      %4058 = vmatpush.msra.mxu0 0.0
      %4059 = vmatpush.msra.mxu0 0.0
      %4060 = vmatpush.msra.mxu0 0.0
      %4061 = vmatpush.msra.mxu0 0.0
      %4062 = vmatpush.msra.mxu0 %v3909
      %4063 = vmatmul.f32.gmra.mxu0 %v3895
      %v4064 = vpop.f32.mrf.mxu0
      %v4065 = vadd.f32 0.0, %v4064
      %4066 = vdwg.mxu0
      %4067 = vmatpush.msra.mxu0 0.0
      %4068 = vmatpush.msra.mxu0 0.0
      %4069 = vmatpush.msra.mxu0 0.0
      %4070 = vmatpush.msra.mxu0 0.0
      %4071 = vmatpush.msra.mxu0 0.0
      %4072 = vmatpush.msra.mxu0 0.0
      %4073 = vmatpush.msra.mxu0 0.0
      %4074 = vmatpush.msra.mxu0 0.0
      %4075 = vmatpush.msra.mxu0 0.0
      %4076 = vmatpush.msra.mxu0 0.0
      %4077 = vmatpush.msra.mxu0 0.0
      %4078 = vmatpush.msra.mxu0 0.0
      %4079 = vmatpush.msra.mxu0 0.0
      %4080 = vmatpush.msra.mxu0 0.0
      %4081 = vmatpush.msra.mxu0 0.0
      %4082 = vmatpush.msra.mxu0 %v3911
      %4083 = vmatmul.f32.gmra.mxu0 %v3895
      %v4084 = vpop.f32.mrf.mxu0
      %v4085 = vadd.f32 0.0, %v4084
      %4086 = vdwg.mxu0
      %4087 = vmatpush.msra.mxu0 0.0
      %4088 = vmatpush.msra.mxu0 0.0
      %4089 = vmatpush.msra.mxu0 0.0
      %4090 = vmatpush.msra.mxu0 0.0
      %4091 = vmatpush.msra.mxu0 0.0
      %4092 = vmatpush.msra.mxu0 0.0
      %4093 = vmatpush.msra.mxu0 0.0
      %4094 = vmatpush.msra.mxu0 0.0
      %4095 = vmatpush.msra.mxu0 0.0
      %4096 = vmatpush.msra.mxu0 0.0
      %4097 = vmatpush.msra.mxu0 0.0
      %4098 = vmatpush.msra.mxu0 0.0
      %4099 = vmatpush.msra.mxu0 0.0
      %4100 = vmatpush.msra.mxu0 0.0
      %4101 = vmatpush.msra.mxu0 0.0
      %4102 = vmatpush.msra.mxu0 %v3913
      %4103 = vmatmul.f32.gmra.mxu0 %v3895
      %v4104 = vpop.f32.mrf.mxu0
      %v4105 = vadd.f32 0.0, %v4104
      %4106 = vdwg.mxu0
      %4107 = vmatpush.msra.mxu0 0.0
      %4108 = vmatpush.msra.mxu0 0.0
      %4109 = vmatpush.msra.mxu0 0.0
      %4110 = vmatpush.msra.mxu0 0.0
      %4111 = vmatpush.msra.mxu0 0.0
      %4112 = vmatpush.msra.mxu0 0.0
      %4113 = vmatpush.msra.mxu0 0.0
      %4114 = vmatpush.msra.mxu0 0.0
      %4115 = vmatpush.msra.mxu0 0.0
      %4116 = vmatpush.msra.mxu0 0.0
      %4117 = vmatpush.msra.mxu0 0.0
      %4118 = vmatpush.msra.mxu0 0.0
      %4119 = vmatpush.msra.mxu0 0.0
      %4120 = vmatpush.msra.mxu0 0.0
      %4121 = vmatpush.msra.mxu0 0.0
      %4122 = vmatpush.msra.mxu0 %v3915
      %4123 = vmatmul.f32.gmra.mxu0 %v3895
      %v4124 = vpop.f32.mrf.mxu0
      %v4125 = vadd.f32 0.0, %v4124
      %4126 = vdwg.mxu0
      %4127 = vmatpush.msra.mxu0 0.0
      %4128 = vmatpush.msra.mxu0 0.0
      %4129 = vmatpush.msra.mxu0 0.0
      %4130 = vmatpush.msra.mxu0 0.0
      %4131 = vmatpush.msra.mxu0 0.0
      %4132 = vmatpush.msra.mxu0 0.0
      %4133 = vmatpush.msra.mxu0 0.0
      %4134 = vmatpush.msra.mxu0 0.0
      %4135 = vmatpush.msra.mxu0 0.0
      %4136 = vmatpush.msra.mxu0 0.0
      %4137 = vmatpush.msra.mxu0 0.0
      %4138 = vmatpush.msra.mxu0 0.0
      %4139 = vmatpush.msra.mxu0 0.0
      %4140 = vmatpush.msra.mxu0 0.0
      %4141 = vmatpush.msra.mxu0 0.0
      %4142 = vmatpush.msra.mxu0 %v3917
      %4143 = vmatmul.f32.gmra.mxu0 %v3895
      %v4144 = vpop.f32.mrf.mxu0
      %v4145 = vadd.f32 0.0, %v4144
      %4146 = vdwg.mxu0
      %4147 = vmatpush.msra.mxu0 0.0
      %4148 = vmatpush.msra.mxu0 0.0
      %4149 = vmatpush.msra.mxu0 0.0
      %4150 = vmatpush.msra.mxu0 0.0
      %4151 = vmatpush.msra.mxu0 0.0
      %4152 = vmatpush.msra.mxu0 0.0
      %4153 = vmatpush.msra.mxu0 0.0
      %4154 = vmatpush.msra.mxu0 0.0
      %4155 = vmatpush.msra.mxu0 0.0
      %4156 = vmatpush.msra.mxu0 0.0
      %4157 = vmatpush.msra.mxu0 0.0
      %4158 = vmatpush.msra.mxu0 0.0
      %4159 = vmatpush.msra.mxu0 0.0
      %4160 = vmatpush.msra.mxu0 0.0
      %4161 = vmatpush.msra.mxu0 0.0
      %4162 = vmatpush.msra.mxu0 %v3919
      %4163 = vmatmul.f32.gmra.mxu0 %v3895
      %v4164 = vpop.f32.mrf.mxu0
      %v4165 = vadd.f32 0.0, %v4164
      %4166 = vdwg.mxu0
      %4167 = vmatpush.msra.mxu0 0.0
      %4168 = vmatpush.msra.mxu0 0.0
      %4169 = vmatpush.msra.mxu0 0.0
      %4170 = vmatpush.msra.mxu0 0.0
      %4171 = vmatpush.msra.mxu0 0.0
      %4172 = vmatpush.msra.mxu0 0.0
      %4173 = vmatpush.msra.mxu0 0.0
      %4174 = vmatpush.msra.mxu0 0.0
      %4175 = vmatpush.msra.mxu0 0.0
      %4176 = vmatpush.msra.mxu0 0.0
      %4177 = vmatpush.msra.mxu0 0.0
      %4178 = vmatpush.msra.mxu0 0.0
      %4179 = vmatpush.msra.mxu0 0.0
      %4180 = vmatpush.msra.mxu0 0.0
      %4181 = vmatpush.msra.mxu0 0.0
      %4182 = vmatpush.msra.mxu0 %v3921
      %4183 = vmatmul.f32.gmra.mxu0 %v3895
      %v4184 = vpop.f32.mrf.mxu0
      %v4185 = vadd.f32 0.0, %v4184
      %4186 = vdwg.mxu0
      %4187 = vmatpush.msra.mxu0 0.0
      %4188 = vmatpush.msra.mxu0 0.0
      %4189 = vmatpush.msra.mxu0 0.0
      %4190 = vmatpush.msra.mxu0 0.0
      %4191 = vmatpush.msra.mxu0 0.0
      %4192 = vmatpush.msra.mxu0 0.0
      %4193 = vmatpush.msra.mxu0 0.0
      %4194 = vmatpush.msra.mxu0 0.0
      %4195 = vmatpush.msra.mxu0 0.0
      %4196 = vmatpush.msra.mxu0 0.0
      %4197 = vmatpush.msra.mxu0 0.0
      %4198 = vmatpush.msra.mxu0 0.0
      %4199 = vmatpush.msra.mxu0 0.0
      %4200 = vmatpush.msra.mxu0 0.0
      %4201 = vmatpush.msra.mxu0 0.0
      %4202 = vmatpush.msra.mxu0 %v3923
      %4203 = vmatmul.f32.gmra.mxu0 %v3895
      %v4204 = vpop.f32.mrf.mxu0
      %v4205 = vadd.f32 0.0, %v4204
      %4206 = vdwg.mxu0
      %4207 = vmatpush.msra.mxu0 0.0
      %4208 = vmatpush.msra.mxu0 0.0
      %4209 = vmatpush.msra.mxu0 0.0
      %4210 = vmatpush.msra.mxu0 0.0
      %4211 = vmatpush.msra.mxu0 0.0
      %4212 = vmatpush.msra.mxu0 0.0
      %4213 = vmatpush.msra.mxu0 0.0
      %4214 = vmatpush.msra.mxu0 0.0
      %4215 = vmatpush.msra.mxu0 0.0
      %4216 = vmatpush.msra.mxu0 0.0
      %4217 = vmatpush.msra.mxu0 0.0
      %4218 = vmatpush.msra.mxu0 0.0
      %4219 = vmatpush.msra.mxu0 0.0
      %4220 = vmatpush.msra.mxu0 0.0
      %4221 = vmatpush.msra.mxu0 0.0
      %4222 = vmatpush.msra.mxu0 %v3925
      %4223 = vmatmul.f32.gmra.mxu0 %v3895
      %v4224 = vpop.f32.mrf.mxu0
      %v4225 = vadd.f32 0.0, %v4224
      %4226 = vdwg.mxu0
      %v4227 = vadd.f32 %v3802, %v3945
      %v4228 = vadd.f32 %v3803, %v3965
      %v4229 = vadd.f32 %v3804, %v3985
      %v4230 = vadd.f32 %v3805, %v4005
      %v4231 = vadd.f32 %v3806, %v4025
      %v4232 = vadd.f32 %v3807, %v4045
      %v4233 = vadd.f32 %v3808, %v4065
      %v4234 = vadd.f32 %v3809, %v4085
      %v4235 = vadd.f32 %v3810, %v4105
      %v4236 = vadd.f32 %v3811, %v4125
      %v4237 = vadd.f32 %v3812, %v4145
      %v4238 = vadd.f32 %v3813, %v4165
      %v4239 = vadd.f32 %v3814, %v4185
      %v4240 = vadd.f32 %v3815, %v4205
      %v4241 = vadd.f32 %v3816, %v4225
      %v4242 = vld [vmem:[%s2] sm:$0xff]
      %4244 = vset.pattern.permute.xlu0 0
      %4245 = vperm.xlu0 %4244, %v4242
      %v4246 = vpop.permute.xlu0 %4245
      %v4248 = vadd.f32 %v4227, %v4246
      %v4249 = vadd.f32 %v4228, %v4246
      %v4250 = vadd.f32 %v4229, %v4246
      %v4251 = vadd.f32 %v4230, %v4246
      %v4252 = vadd.f32 %v4231, %v4246
      %v4253 = vadd.f32 %v4232, %v4246
      %v4254 = vadd.f32 %v4233, %v4246
      %v4255 = vadd.f32 %v4234, %v4246
      %v4256 = vadd.f32 %v4235, %v4246
      %v4257 = vadd.f32 %v4236, %v4246
      %v4258 = vadd.f32 %v4237, %v4246
      %v4259 = vadd.f32 %v4238, %v4246
      %v4260 = vadd.f32 %v4239, %v4246
      %v4261 = vadd.f32 %v4240, %v4246
      %v4262 = vadd.f32 %v4241, %v4246
      %v4263 = vmax.f32 %v4248, 0.0
      %v4264 = vmax.f32 %v4249, 0.0
      %v4265 = vmax.f32 %v4250, 0.0
      %v4266 = vmax.f32 %v4251, 0.0
      %v4267 = vmax.f32 %v4252, 0.0
      %v4268 = vmax.f32 %v4253, 0.0
      %v4269 = vmax.f32 %v4254, 0.0
      %v4270 = vmax.f32 %v4255, 0.0
      %v4271 = vmax.f32 %v4256, 0.0
      %v4272 = vmax.f32 %v4257, 0.0
      %v4273 = vmax.f32 %v4258, 0.0
      %v4274 = vmax.f32 %v4259, 0.0
      %v4275 = vmax.f32 %v4260, 0.0
      %v4276 = vmax.f32 %v4261, 0.0
      %v4277 = vmax.f32 %v4262, 0.0
      %v4278 = vld [vmem:[%s3] sm:$0xff]
      %s4279 = scalar_lea.vmem %s3, 8
      %v4280 = vld [vmem:[%s4279] sm:$0xff]
      %4295 = vrot.lane.b32.xlu0 %v4263, 127
      %v4296 = vpop.permute.xlu0 %4295
      %4297 = vrot.lane.b32.xlu0 %v4264, 127
      %v4298 = vpop.permute.xlu0 %4297
      %4299 = vrot.lane.b32.xlu0 %v4265, 127
      %v4300 = vpop.permute.xlu0 %4299
      %4301 = vrot.lane.b32.xlu0 %v4266, 127
      %v4302 = vpop.permute.xlu0 %4301
      %4303 = vrot.lane.b32.xlu0 %v4267, 127
      %v4304 = vpop.permute.xlu0 %4303
      %4305 = vrot.lane.b32.xlu0 %v4268, 127
      %v4306 = vpop.permute.xlu0 %4305
      %4307 = vrot.lane.b32.xlu0 %v4269, 127
      %v4308 = vpop.permute.xlu0 %4307
      %4309 = vrot.lane.b32.xlu0 %v4270, 127
      %v4310 = vpop.permute.xlu0 %4309
      %4311 = vrot.lane.b32.xlu0 %v4271, 127
      %v4312 = vpop.permute.xlu0 %4311
      %4313 = vrot.lane.b32.xlu0 %v4272, 127
      %v4314 = vpop.permute.xlu0 %4313
      %4315 = vrot.lane.b32.xlu0 %v4273, 127
      %v4316 = vpop.permute.xlu0 %4315
      %4317 = vrot.lane.b32.xlu0 %v4274, 127
      %v4318 = vpop.permute.xlu0 %4317
      %4319 = vrot.lane.b32.xlu0 %v4275, 127
      %v4320 = vpop.permute.xlu0 %4319
      %4321 = vrot.lane.b32.xlu0 %v4276, 127
      %v4322 = vpop.permute.xlu0 %4321
      %v4323 = vsel %vm574, %v4296, %v4298
      %v4324 = vsel %vm574, %v4298, %v4300
      %v4325 = vsel %vm574, %v4300, %v4302
      %v4326 = vsel %vm574, %v4302, %v4304
      %v4327 = vsel %vm574, %v4304, %v4306
      %v4328 = vsel %vm574, %v4306, %v4308
      %v4329 = vsel %vm574, %v4308, %v4310
      %v4330 = vsel %vm574, %v4310, %v4312
      %v4331 = vsel %vm574, %v4312, %v4314
      %v4332 = vsel %vm574, %v4314, %v4316
      %v4333 = vsel %vm574, %v4316, %v4318
      %v4334 = vsel %vm574, %v4318, %v4320
      %v4335 = vsel %vm574, %v4320, %v4322
      %vm4350 = vcmask 64512
      %v4352 = vsel %vm4350, %v4280, 0
      %4354 = vmatpush.msra.mxu0 0.0
      %4355 = vmatpush.msra.mxu0 0.0
      %4356 = vmatpush.msra.mxu0 0.0
      %4357 = vmatpush.msra.mxu0 0.0
      %4358 = vmatpush.msra.mxu0 0.0
      %4359 = vmatpush.msra.mxu0 0.0
      %4360 = vmatpush.msra.mxu0 0.0
      %4361 = vmatpush.msra.mxu0 0.0
      %4362 = vmatpush.msra.mxu0 0.0
      %4363 = vmatpush.msra.mxu0 0.0
      %4364 = vmatpush.msra.mxu0 0.0
      %4365 = vmatpush.msra.mxu0 0.0
      %4366 = vmatpush.msra.mxu0 0.0
      %4367 = vmatpush.msra.mxu0 0.0
      %4368 = vmatpush.msra.mxu0 0.0
      %4369 = vmatpush.msra.mxu0 %v4323
      %4370 = vmatmul.f32.gmra.mxu0 %v4352
      %v4371 = vpop.f32.mrf.mxu0
      %v4372 = vadd.f32 0.0, %v4371
      %4373 = vdwg.mxu0
      %4374 = vmatpush.msra.mxu0 0.0
      %4375 = vmatpush.msra.mxu0 0.0
      %4376 = vmatpush.msra.mxu0 0.0
      %4377 = vmatpush.msra.mxu0 0.0
      %4378 = vmatpush.msra.mxu0 0.0
      %4379 = vmatpush.msra.mxu0 0.0
      %4380 = vmatpush.msra.mxu0 0.0
      %4381 = vmatpush.msra.mxu0 0.0
      %4382 = vmatpush.msra.mxu0 0.0
      %4383 = vmatpush.msra.mxu0 0.0
      %4384 = vmatpush.msra.mxu0 0.0
      %4385 = vmatpush.msra.mxu0 0.0
      %4386 = vmatpush.msra.mxu0 0.0
      %4387 = vmatpush.msra.mxu0 0.0
      %4388 = vmatpush.msra.mxu0 0.0
      %4389 = vmatpush.msra.mxu0 %v4324
      %4390 = vmatmul.f32.gmra.mxu0 %v4352
      %v4391 = vpop.f32.mrf.mxu0
      %v4392 = vadd.f32 0.0, %v4391
      %4393 = vdwg.mxu0
      %4394 = vmatpush.msra.mxu0 0.0
      %4395 = vmatpush.msra.mxu0 0.0
      %4396 = vmatpush.msra.mxu0 0.0
      %4397 = vmatpush.msra.mxu0 0.0
      %4398 = vmatpush.msra.mxu0 0.0
      %4399 = vmatpush.msra.mxu0 0.0
      %4400 = vmatpush.msra.mxu0 0.0
      %4401 = vmatpush.msra.mxu0 0.0
      %4402 = vmatpush.msra.mxu0 0.0
      %4403 = vmatpush.msra.mxu0 0.0
      %4404 = vmatpush.msra.mxu0 0.0
      %4405 = vmatpush.msra.mxu0 0.0
      %4406 = vmatpush.msra.mxu0 0.0
      %4407 = vmatpush.msra.mxu0 0.0
      %4408 = vmatpush.msra.mxu0 0.0
      %4409 = vmatpush.msra.mxu0 %v4325
      %4410 = vmatmul.f32.gmra.mxu0 %v4352
      %v4411 = vpop.f32.mrf.mxu0
      %v4412 = vadd.f32 0.0, %v4411
      %4413 = vdwg.mxu0
      %4414 = vmatpush.msra.mxu0 0.0
      %4415 = vmatpush.msra.mxu0 0.0
      %4416 = vmatpush.msra.mxu0 0.0
      %4417 = vmatpush.msra.mxu0 0.0
      %4418 = vmatpush.msra.mxu0 0.0
      %4419 = vmatpush.msra.mxu0 0.0
      %4420 = vmatpush.msra.mxu0 0.0
      %4421 = vmatpush.msra.mxu0 0.0
      %4422 = vmatpush.msra.mxu0 0.0
      %4423 = vmatpush.msra.mxu0 0.0
      %4424 = vmatpush.msra.mxu0 0.0
      %4425 = vmatpush.msra.mxu0 0.0
      %4426 = vmatpush.msra.mxu0 0.0
      %4427 = vmatpush.msra.mxu0 0.0
      %4428 = vmatpush.msra.mxu0 0.0
      %4429 = vmatpush.msra.mxu0 %v4326
      %4430 = vmatmul.f32.gmra.mxu0 %v4352
      %v4431 = vpop.f32.mrf.mxu0
      %v4432 = vadd.f32 0.0, %v4431
      %4433 = vdwg.mxu0
      %4434 = vmatpush.msra.mxu0 0.0
      %4435 = vmatpush.msra.mxu0 0.0
      %4436 = vmatpush.msra.mxu0 0.0
      %4437 = vmatpush.msra.mxu0 0.0
      %4438 = vmatpush.msra.mxu0 0.0
      %4439 = vmatpush.msra.mxu0 0.0
      %4440 = vmatpush.msra.mxu0 0.0
      %4441 = vmatpush.msra.mxu0 0.0
      %4442 = vmatpush.msra.mxu0 0.0
      %4443 = vmatpush.msra.mxu0 0.0
      %4444 = vmatpush.msra.mxu0 0.0
      %4445 = vmatpush.msra.mxu0 0.0
      %4446 = vmatpush.msra.mxu0 0.0
      %4447 = vmatpush.msra.mxu0 0.0
      %4448 = vmatpush.msra.mxu0 0.0
      %4449 = vmatpush.msra.mxu0 %v4327
      %4450 = vmatmul.f32.gmra.mxu0 %v4352
      %v4451 = vpop.f32.mrf.mxu0
      %v4452 = vadd.f32 0.0, %v4451
      %4453 = vdwg.mxu0
      %4454 = vmatpush.msra.mxu0 0.0
      %4455 = vmatpush.msra.mxu0 0.0
      %4456 = vmatpush.msra.mxu0 0.0
      %4457 = vmatpush.msra.mxu0 0.0
      %4458 = vmatpush.msra.mxu0 0.0
      %4459 = vmatpush.msra.mxu0 0.0
      %4460 = vmatpush.msra.mxu0 0.0
      %4461 = vmatpush.msra.mxu0 0.0
      %4462 = vmatpush.msra.mxu0 0.0
      %4463 = vmatpush.msra.mxu0 0.0
      %4464 = vmatpush.msra.mxu0 0.0
      %4465 = vmatpush.msra.mxu0 0.0
      %4466 = vmatpush.msra.mxu0 0.0
      %4467 = vmatpush.msra.mxu0 0.0
      %4468 = vmatpush.msra.mxu0 0.0
      %4469 = vmatpush.msra.mxu0 %v4328
      %4470 = vmatmul.f32.gmra.mxu0 %v4352
      %v4471 = vpop.f32.mrf.mxu0
      %v4472 = vadd.f32 0.0, %v4471
      %4473 = vdwg.mxu0
      %4474 = vmatpush.msra.mxu0 0.0
      %4475 = vmatpush.msra.mxu0 0.0
      %4476 = vmatpush.msra.mxu0 0.0
      %4477 = vmatpush.msra.mxu0 0.0
      %4478 = vmatpush.msra.mxu0 0.0
      %4479 = vmatpush.msra.mxu0 0.0
      %4480 = vmatpush.msra.mxu0 0.0
      %4481 = vmatpush.msra.mxu0 0.0
      %4482 = vmatpush.msra.mxu0 0.0
      %4483 = vmatpush.msra.mxu0 0.0
      %4484 = vmatpush.msra.mxu0 0.0
      %4485 = vmatpush.msra.mxu0 0.0
      %4486 = vmatpush.msra.mxu0 0.0
      %4487 = vmatpush.msra.mxu0 0.0
      %4488 = vmatpush.msra.mxu0 0.0
      %4489 = vmatpush.msra.mxu0 %v4329
      %4490 = vmatmul.f32.gmra.mxu0 %v4352
      %v4491 = vpop.f32.mrf.mxu0
      %v4492 = vadd.f32 0.0, %v4491
      %4493 = vdwg.mxu0
      %4494 = vmatpush.msra.mxu0 0.0
      %4495 = vmatpush.msra.mxu0 0.0
      %4496 = vmatpush.msra.mxu0 0.0
      %4497 = vmatpush.msra.mxu0 0.0
      %4498 = vmatpush.msra.mxu0 0.0
      %4499 = vmatpush.msra.mxu0 0.0
      %4500 = vmatpush.msra.mxu0 0.0
      %4501 = vmatpush.msra.mxu0 0.0
      %4502 = vmatpush.msra.mxu0 0.0
      %4503 = vmatpush.msra.mxu0 0.0
      %4504 = vmatpush.msra.mxu0 0.0
      %4505 = vmatpush.msra.mxu0 0.0
      %4506 = vmatpush.msra.mxu0 0.0
      %4507 = vmatpush.msra.mxu0 0.0
      %4508 = vmatpush.msra.mxu0 0.0
      %4509 = vmatpush.msra.mxu0 %v4330
      %4510 = vmatmul.f32.gmra.mxu0 %v4352
      %v4511 = vpop.f32.mrf.mxu0
      %v4512 = vadd.f32 0.0, %v4511
      %4513 = vdwg.mxu0
      %4514 = vmatpush.msra.mxu0 0.0
      %4515 = vmatpush.msra.mxu0 0.0
      %4516 = vmatpush.msra.mxu0 0.0
      %4517 = vmatpush.msra.mxu0 0.0
      %4518 = vmatpush.msra.mxu0 0.0
      %4519 = vmatpush.msra.mxu0 0.0
      %4520 = vmatpush.msra.mxu0 0.0
      %4521 = vmatpush.msra.mxu0 0.0
      %4522 = vmatpush.msra.mxu0 0.0
      %4523 = vmatpush.msra.mxu0 0.0
      %4524 = vmatpush.msra.mxu0 0.0
      %4525 = vmatpush.msra.mxu0 0.0
      %4526 = vmatpush.msra.mxu0 0.0
      %4527 = vmatpush.msra.mxu0 0.0
      %4528 = vmatpush.msra.mxu0 0.0
      %4529 = vmatpush.msra.mxu0 %v4331
      %4530 = vmatmul.f32.gmra.mxu0 %v4352
      %v4531 = vpop.f32.mrf.mxu0
      %v4532 = vadd.f32 0.0, %v4531
      %4533 = vdwg.mxu0
      %4534 = vmatpush.msra.mxu0 0.0
      %4535 = vmatpush.msra.mxu0 0.0
      %4536 = vmatpush.msra.mxu0 0.0
      %4537 = vmatpush.msra.mxu0 0.0
      %4538 = vmatpush.msra.mxu0 0.0
      %4539 = vmatpush.msra.mxu0 0.0
      %4540 = vmatpush.msra.mxu0 0.0
      %4541 = vmatpush.msra.mxu0 0.0
      %4542 = vmatpush.msra.mxu0 0.0
      %4543 = vmatpush.msra.mxu0 0.0
      %4544 = vmatpush.msra.mxu0 0.0
      %4545 = vmatpush.msra.mxu0 0.0
      %4546 = vmatpush.msra.mxu0 0.0
      %4547 = vmatpush.msra.mxu0 0.0
      %4548 = vmatpush.msra.mxu0 0.0
      %4549 = vmatpush.msra.mxu0 %v4332
      %4550 = vmatmul.f32.gmra.mxu0 %v4352
      %v4551 = vpop.f32.mrf.mxu0
      %v4552 = vadd.f32 0.0, %v4551
      %4553 = vdwg.mxu0
      %4554 = vmatpush.msra.mxu0 0.0
      %4555 = vmatpush.msra.mxu0 0.0
      %4556 = vmatpush.msra.mxu0 0.0
      %4557 = vmatpush.msra.mxu0 0.0
      %4558 = vmatpush.msra.mxu0 0.0
      %4559 = vmatpush.msra.mxu0 0.0
      %4560 = vmatpush.msra.mxu0 0.0
      %4561 = vmatpush.msra.mxu0 0.0
      %4562 = vmatpush.msra.mxu0 0.0
      %4563 = vmatpush.msra.mxu0 0.0
      %4564 = vmatpush.msra.mxu0 0.0
      %4565 = vmatpush.msra.mxu0 0.0
      %4566 = vmatpush.msra.mxu0 0.0
      %4567 = vmatpush.msra.mxu0 0.0
      %4568 = vmatpush.msra.mxu0 0.0
      %4569 = vmatpush.msra.mxu0 %v4333
      %4570 = vmatmul.f32.gmra.mxu0 %v4352
      %v4571 = vpop.f32.mrf.mxu0
      %v4572 = vadd.f32 0.0, %v4571
      %4573 = vdwg.mxu0
      %4574 = vmatpush.msra.mxu0 0.0
      %4575 = vmatpush.msra.mxu0 0.0
      %4576 = vmatpush.msra.mxu0 0.0
      %4577 = vmatpush.msra.mxu0 0.0
      %4578 = vmatpush.msra.mxu0 0.0
      %4579 = vmatpush.msra.mxu0 0.0
      %4580 = vmatpush.msra.mxu0 0.0
      %4581 = vmatpush.msra.mxu0 0.0
      %4582 = vmatpush.msra.mxu0 0.0
      %4583 = vmatpush.msra.mxu0 0.0
      %4584 = vmatpush.msra.mxu0 0.0
      %4585 = vmatpush.msra.mxu0 0.0
      %4586 = vmatpush.msra.mxu0 0.0
      %4587 = vmatpush.msra.mxu0 0.0
      %4588 = vmatpush.msra.mxu0 0.0
      %4589 = vmatpush.msra.mxu0 %v4334
      %4590 = vmatmul.f32.gmra.mxu0 %v4352
      %v4591 = vpop.f32.mrf.mxu0
      %v4592 = vadd.f32 0.0, %v4591
      %4593 = vdwg.mxu0
      %4594 = vmatpush.msra.mxu0 0.0
      %4595 = vmatpush.msra.mxu0 0.0
      %4596 = vmatpush.msra.mxu0 0.0
      %4597 = vmatpush.msra.mxu0 0.0
      %4598 = vmatpush.msra.mxu0 0.0
      %4599 = vmatpush.msra.mxu0 0.0
      %4600 = vmatpush.msra.mxu0 0.0
      %4601 = vmatpush.msra.mxu0 0.0
      %4602 = vmatpush.msra.mxu0 0.0
      %4603 = vmatpush.msra.mxu0 0.0
      %4604 = vmatpush.msra.mxu0 0.0
      %4605 = vmatpush.msra.mxu0 0.0
      %4606 = vmatpush.msra.mxu0 0.0
      %4607 = vmatpush.msra.mxu0 0.0
      %4608 = vmatpush.msra.mxu0 0.0
      %4609 = vmatpush.msra.mxu0 %v4335
      %4610 = vmatmul.f32.gmra.mxu0 %v4352
      %v4611 = vpop.f32.mrf.mxu0
      %v4612 = vadd.f32 0.0, %v4611
      %4613 = vdwg.mxu0
      %4614 = vmatpush.msra.mxu0 0.0
      %4615 = vmatpush.msra.mxu0 0.0
      %4616 = vmatpush.msra.mxu0 0.0
      %4617 = vmatpush.msra.mxu0 0.0
      %4618 = vmatpush.msra.mxu0 0.0
      %4619 = vmatpush.msra.mxu0 0.0
      %4620 = vmatpush.msra.mxu0 0.0
      %4621 = vmatpush.msra.mxu0 0.0
      %4622 = vmatpush.msra.mxu0 0.0
      %4623 = vmatpush.msra.mxu0 0.0
      %4624 = vmatpush.msra.mxu0 0.0
      %4625 = vmatpush.msra.mxu0 0.0
      %4626 = vmatpush.msra.mxu0 0.0
      %4627 = vmatpush.msra.mxu0 0.0
      %4628 = vmatpush.msra.mxu0 0.0
      %4629 = vmatpush.msra.mxu0 %v4322
      %4630 = vmatmul.f32.gmra.mxu0 %v4352
      %v4631 = vpop.f32.mrf.mxu0
      %v4632 = vadd.f32 0.0, %v4631
      %4633 = vdwg.mxu0
      %v4635 = vsel %vm4350, %v4278, 0
      %4637 = vmatpush.msra.mxu0 0.0
      %4638 = vmatpush.msra.mxu0 0.0
      %4639 = vmatpush.msra.mxu0 0.0
      %4640 = vmatpush.msra.mxu0 0.0
      %4641 = vmatpush.msra.mxu0 0.0
      %4642 = vmatpush.msra.mxu0 0.0
      %4643 = vmatpush.msra.mxu0 0.0
      %4644 = vmatpush.msra.mxu0 0.0
      %4645 = vmatpush.msra.mxu0 0.0
      %4646 = vmatpush.msra.mxu0 0.0
      %4647 = vmatpush.msra.mxu0 0.0
      %4648 = vmatpush.msra.mxu0 0.0
      %4649 = vmatpush.msra.mxu0 0.0
      %4650 = vmatpush.msra.mxu0 0.0
      %4651 = vmatpush.msra.mxu0 0.0
      %4652 = vmatpush.msra.mxu0 %v4263
      %4653 = vmatmul.f32.gmra.mxu0 %v4635
      %v4654 = vpop.f32.mrf.mxu0
      %v4655 = vadd.f32 %v4372, %v4654
      %4656 = vdwg.mxu0
      %4657 = vmatpush.msra.mxu0 0.0
      %4658 = vmatpush.msra.mxu0 0.0
      %4659 = vmatpush.msra.mxu0 0.0
      %4660 = vmatpush.msra.mxu0 0.0
      %4661 = vmatpush.msra.mxu0 0.0
      %4662 = vmatpush.msra.mxu0 0.0
      %4663 = vmatpush.msra.mxu0 0.0
      %4664 = vmatpush.msra.mxu0 0.0
      %4665 = vmatpush.msra.mxu0 0.0
      %4666 = vmatpush.msra.mxu0 0.0
      %4667 = vmatpush.msra.mxu0 0.0
      %4668 = vmatpush.msra.mxu0 0.0
      %4669 = vmatpush.msra.mxu0 0.0
      %4670 = vmatpush.msra.mxu0 0.0
      %4671 = vmatpush.msra.mxu0 0.0
      %4672 = vmatpush.msra.mxu0 %v4264
      %4673 = vmatmul.f32.gmra.mxu0 %v4635
      %v4674 = vpop.f32.mrf.mxu0
      %v4675 = vadd.f32 %v4392, %v4674
      %4676 = vdwg.mxu0
      %4677 = vmatpush.msra.mxu0 0.0
      %4678 = vmatpush.msra.mxu0 0.0
      %4679 = vmatpush.msra.mxu0 0.0
      %4680 = vmatpush.msra.mxu0 0.0
      %4681 = vmatpush.msra.mxu0 0.0
      %4682 = vmatpush.msra.mxu0 0.0
      %4683 = vmatpush.msra.mxu0 0.0
      %4684 = vmatpush.msra.mxu0 0.0
      %4685 = vmatpush.msra.mxu0 0.0
      %4686 = vmatpush.msra.mxu0 0.0
      %4687 = vmatpush.msra.mxu0 0.0
      %4688 = vmatpush.msra.mxu0 0.0
      %4689 = vmatpush.msra.mxu0 0.0
      %4690 = vmatpush.msra.mxu0 0.0
      %4691 = vmatpush.msra.mxu0 0.0
      %4692 = vmatpush.msra.mxu0 %v4265
      %4693 = vmatmul.f32.gmra.mxu0 %v4635
      %v4694 = vpop.f32.mrf.mxu0
      %v4695 = vadd.f32 %v4412, %v4694
      %4696 = vdwg.mxu0
      %4697 = vmatpush.msra.mxu0 0.0
      %4698 = vmatpush.msra.mxu0 0.0
      %4699 = vmatpush.msra.mxu0 0.0
      %4700 = vmatpush.msra.mxu0 0.0
      %4701 = vmatpush.msra.mxu0 0.0
      %4702 = vmatpush.msra.mxu0 0.0
      %4703 = vmatpush.msra.mxu0 0.0
      %4704 = vmatpush.msra.mxu0 0.0
      %4705 = vmatpush.msra.mxu0 0.0
      %4706 = vmatpush.msra.mxu0 0.0
      %4707 = vmatpush.msra.mxu0 0.0
      %4708 = vmatpush.msra.mxu0 0.0
      %4709 = vmatpush.msra.mxu0 0.0
      %4710 = vmatpush.msra.mxu0 0.0
      %4711 = vmatpush.msra.mxu0 0.0
      %4712 = vmatpush.msra.mxu0 %v4266
      %4713 = vmatmul.f32.gmra.mxu0 %v4635
      %v4714 = vpop.f32.mrf.mxu0
      %v4715 = vadd.f32 %v4432, %v4714
      %4716 = vdwg.mxu0
      %4717 = vmatpush.msra.mxu0 0.0
      %4718 = vmatpush.msra.mxu0 0.0
      %4719 = vmatpush.msra.mxu0 0.0
      %4720 = vmatpush.msra.mxu0 0.0
      %4721 = vmatpush.msra.mxu0 0.0
      %4722 = vmatpush.msra.mxu0 0.0
      %4723 = vmatpush.msra.mxu0 0.0
      %4724 = vmatpush.msra.mxu0 0.0
      %4725 = vmatpush.msra.mxu0 0.0
      %4726 = vmatpush.msra.mxu0 0.0
      %4727 = vmatpush.msra.mxu0 0.0
      %4728 = vmatpush.msra.mxu0 0.0
      %4729 = vmatpush.msra.mxu0 0.0
      %4730 = vmatpush.msra.mxu0 0.0
      %4731 = vmatpush.msra.mxu0 0.0
      %4732 = vmatpush.msra.mxu0 %v4267
      %4733 = vmatmul.f32.gmra.mxu0 %v4635
      %v4734 = vpop.f32.mrf.mxu0
      %v4735 = vadd.f32 %v4452, %v4734
      %4736 = vdwg.mxu0
      %4737 = vmatpush.msra.mxu0 0.0
      %4738 = vmatpush.msra.mxu0 0.0
      %4739 = vmatpush.msra.mxu0 0.0
      %4740 = vmatpush.msra.mxu0 0.0
      %4741 = vmatpush.msra.mxu0 0.0
      %4742 = vmatpush.msra.mxu0 0.0
      %4743 = vmatpush.msra.mxu0 0.0
      %4744 = vmatpush.msra.mxu0 0.0
      %4745 = vmatpush.msra.mxu0 0.0
      %4746 = vmatpush.msra.mxu0 0.0
      %4747 = vmatpush.msra.mxu0 0.0
      %4748 = vmatpush.msra.mxu0 0.0
      %4749 = vmatpush.msra.mxu0 0.0
      %4750 = vmatpush.msra.mxu0 0.0
      %4751 = vmatpush.msra.mxu0 0.0
      %4752 = vmatpush.msra.mxu0 %v4268
      %4753 = vmatmul.f32.gmra.mxu0 %v4635
      %v4754 = vpop.f32.mrf.mxu0
      %v4755 = vadd.f32 %v4472, %v4754
      %4756 = vdwg.mxu0
      %4757 = vmatpush.msra.mxu0 0.0
      %4758 = vmatpush.msra.mxu0 0.0
      %4759 = vmatpush.msra.mxu0 0.0
      %4760 = vmatpush.msra.mxu0 0.0
      %4761 = vmatpush.msra.mxu0 0.0
      %4762 = vmatpush.msra.mxu0 0.0
      %4763 = vmatpush.msra.mxu0 0.0
      %4764 = vmatpush.msra.mxu0 0.0
      %4765 = vmatpush.msra.mxu0 0.0
      %4766 = vmatpush.msra.mxu0 0.0
      %4767 = vmatpush.msra.mxu0 0.0
      %4768 = vmatpush.msra.mxu0 0.0
      %4769 = vmatpush.msra.mxu0 0.0
      %4770 = vmatpush.msra.mxu0 0.0
      %4771 = vmatpush.msra.mxu0 0.0
      %4772 = vmatpush.msra.mxu0 %v4269
      %4773 = vmatmul.f32.gmra.mxu0 %v4635
      %v4774 = vpop.f32.mrf.mxu0
      %v4775 = vadd.f32 %v4492, %v4774
      %4776 = vdwg.mxu0
      %4777 = vmatpush.msra.mxu0 0.0
      %4778 = vmatpush.msra.mxu0 0.0
      %4779 = vmatpush.msra.mxu0 0.0
      %4780 = vmatpush.msra.mxu0 0.0
      %4781 = vmatpush.msra.mxu0 0.0
      %4782 = vmatpush.msra.mxu0 0.0
      %4783 = vmatpush.msra.mxu0 0.0
      %4784 = vmatpush.msra.mxu0 0.0
      %4785 = vmatpush.msra.mxu0 0.0
      %4786 = vmatpush.msra.mxu0 0.0
      %4787 = vmatpush.msra.mxu0 0.0
      %4788 = vmatpush.msra.mxu0 0.0
      %4789 = vmatpush.msra.mxu0 0.0
      %4790 = vmatpush.msra.mxu0 0.0
      %4791 = vmatpush.msra.mxu0 0.0
      %4792 = vmatpush.msra.mxu0 %v4270
      %4793 = vmatmul.f32.gmra.mxu0 %v4635
      %v4794 = vpop.f32.mrf.mxu0
      %v4795 = vadd.f32 %v4512, %v4794
      %4796 = vdwg.mxu0
      %4797 = vmatpush.msra.mxu0 0.0
      %4798 = vmatpush.msra.mxu0 0.0
      %4799 = vmatpush.msra.mxu0 0.0
      %4800 = vmatpush.msra.mxu0 0.0
      %4801 = vmatpush.msra.mxu0 0.0
      %4802 = vmatpush.msra.mxu0 0.0
      %4803 = vmatpush.msra.mxu0 0.0
      %4804 = vmatpush.msra.mxu0 0.0
      %4805 = vmatpush.msra.mxu0 0.0
      %4806 = vmatpush.msra.mxu0 0.0
      %4807 = vmatpush.msra.mxu0 0.0
      %4808 = vmatpush.msra.mxu0 0.0
      %4809 = vmatpush.msra.mxu0 0.0
      %4810 = vmatpush.msra.mxu0 0.0
      %4811 = vmatpush.msra.mxu0 0.0
      %4812 = vmatpush.msra.mxu0 %v4271
      %4813 = vmatmul.f32.gmra.mxu0 %v4635
      %v4814 = vpop.f32.mrf.mxu0
      %v4815 = vadd.f32 %v4532, %v4814
      %4816 = vdwg.mxu0
      %4817 = vmatpush.msra.mxu0 0.0
      %4818 = vmatpush.msra.mxu0 0.0
      %4819 = vmatpush.msra.mxu0 0.0
      %4820 = vmatpush.msra.mxu0 0.0
      %4821 = vmatpush.msra.mxu0 0.0
      %4822 = vmatpush.msra.mxu0 0.0
      %4823 = vmatpush.msra.mxu0 0.0
      %4824 = vmatpush.msra.mxu0 0.0
      %4825 = vmatpush.msra.mxu0 0.0
      %4826 = vmatpush.msra.mxu0 0.0
      %4827 = vmatpush.msra.mxu0 0.0
      %4828 = vmatpush.msra.mxu0 0.0
      %4829 = vmatpush.msra.mxu0 0.0
      %4830 = vmatpush.msra.mxu0 0.0
      %4831 = vmatpush.msra.mxu0 0.0
      %4832 = vmatpush.msra.mxu0 %v4272
      %4833 = vmatmul.f32.gmra.mxu0 %v4635
      %v4834 = vpop.f32.mrf.mxu0
      %v4835 = vadd.f32 %v4552, %v4834
      %4836 = vdwg.mxu0
      %4837 = vmatpush.msra.mxu0 0.0
      %4838 = vmatpush.msra.mxu0 0.0
      %4839 = vmatpush.msra.mxu0 0.0
      %4840 = vmatpush.msra.mxu0 0.0
      %4841 = vmatpush.msra.mxu0 0.0
      %4842 = vmatpush.msra.mxu0 0.0
      %4843 = vmatpush.msra.mxu0 0.0
      %4844 = vmatpush.msra.mxu0 0.0
      %4845 = vmatpush.msra.mxu0 0.0
      %4846 = vmatpush.msra.mxu0 0.0
      %4847 = vmatpush.msra.mxu0 0.0
      %4848 = vmatpush.msra.mxu0 0.0
      %4849 = vmatpush.msra.mxu0 0.0
      %4850 = vmatpush.msra.mxu0 0.0
      %4851 = vmatpush.msra.mxu0 0.0
      %4852 = vmatpush.msra.mxu0 %v4273
      %4853 = vmatmul.f32.gmra.mxu0 %v4635
      %v4854 = vpop.f32.mrf.mxu0
      %v4855 = vadd.f32 %v4572, %v4854
      %4856 = vdwg.mxu0
      %4857 = vmatpush.msra.mxu0 0.0
      %4858 = vmatpush.msra.mxu0 0.0
      %4859 = vmatpush.msra.mxu0 0.0
      %4860 = vmatpush.msra.mxu0 0.0
      %4861 = vmatpush.msra.mxu0 0.0
      %4862 = vmatpush.msra.mxu0 0.0
      %4863 = vmatpush.msra.mxu0 0.0
      %4864 = vmatpush.msra.mxu0 0.0
      %4865 = vmatpush.msra.mxu0 0.0
      %4866 = vmatpush.msra.mxu0 0.0
      %4867 = vmatpush.msra.mxu0 0.0
      %4868 = vmatpush.msra.mxu0 0.0
      %4869 = vmatpush.msra.mxu0 0.0
      %4870 = vmatpush.msra.mxu0 0.0
      %4871 = vmatpush.msra.mxu0 0.0
      %4872 = vmatpush.msra.mxu0 %v4274
      %4873 = vmatmul.f32.gmra.mxu0 %v4635
      %v4874 = vpop.f32.mrf.mxu0
      %v4875 = vadd.f32 %v4592, %v4874
      %4876 = vdwg.mxu0
      %4877 = vmatpush.msra.mxu0 0.0
      %4878 = vmatpush.msra.mxu0 0.0
      %4879 = vmatpush.msra.mxu0 0.0
      %4880 = vmatpush.msra.mxu0 0.0
      %4881 = vmatpush.msra.mxu0 0.0
      %4882 = vmatpush.msra.mxu0 0.0
      %4883 = vmatpush.msra.mxu0 0.0
      %4884 = vmatpush.msra.mxu0 0.0
      %4885 = vmatpush.msra.mxu0 0.0
      %4886 = vmatpush.msra.mxu0 0.0
      %4887 = vmatpush.msra.mxu0 0.0
      %4888 = vmatpush.msra.mxu0 0.0
      %4889 = vmatpush.msra.mxu0 0.0
      %4890 = vmatpush.msra.mxu0 0.0
      %4891 = vmatpush.msra.mxu0 0.0
      %4892 = vmatpush.msra.mxu0 %v4275
      %4893 = vmatmul.f32.gmra.mxu0 %v4635
      %v4894 = vpop.f32.mrf.mxu0
      %v4895 = vadd.f32 %v4612, %v4894
      %4896 = vdwg.mxu0
      %4897 = vmatpush.msra.mxu0 0.0
      %4898 = vmatpush.msra.mxu0 0.0
      %4899 = vmatpush.msra.mxu0 0.0
      %4900 = vmatpush.msra.mxu0 0.0
      %4901 = vmatpush.msra.mxu0 0.0
      %4902 = vmatpush.msra.mxu0 0.0
      %4903 = vmatpush.msra.mxu0 0.0
      %4904 = vmatpush.msra.mxu0 0.0
      %4905 = vmatpush.msra.mxu0 0.0
      %4906 = vmatpush.msra.mxu0 0.0
      %4907 = vmatpush.msra.mxu0 0.0
      %4908 = vmatpush.msra.mxu0 0.0
      %4909 = vmatpush.msra.mxu0 0.0
      %4910 = vmatpush.msra.mxu0 0.0
      %4911 = vmatpush.msra.mxu0 0.0
      %4912 = vmatpush.msra.mxu0 %v4276
      %4913 = vmatmul.f32.gmra.mxu0 %v4635
      %v4914 = vpop.f32.mrf.mxu0
      %v4915 = vadd.f32 %v4632, %v4914
      %4916 = vdwg.mxu0
      %s4917 = scalar_lea.vmem %s3, 16
      %v4918 = vld [vmem:[%s4917] sm:$0xff]
      %4919 = vrot.lane.b32.xlu0 %v4263, 126
      %v4920 = vpop.permute.xlu0 %4919
      %4921 = vrot.lane.b32.xlu0 %v4264, 126
      %v4922 = vpop.permute.xlu0 %4921
      %4923 = vrot.lane.b32.xlu0 %v4265, 126
      %v4924 = vpop.permute.xlu0 %4923
      %4925 = vrot.lane.b32.xlu0 %v4266, 126
      %v4926 = vpop.permute.xlu0 %4925
      %4927 = vrot.lane.b32.xlu0 %v4267, 126
      %v4928 = vpop.permute.xlu0 %4927
      %4929 = vrot.lane.b32.xlu0 %v4268, 126
      %v4930 = vpop.permute.xlu0 %4929
      %4931 = vrot.lane.b32.xlu0 %v4269, 126
      %v4932 = vpop.permute.xlu0 %4931
      %4933 = vrot.lane.b32.xlu0 %v4270, 126
      %v4934 = vpop.permute.xlu0 %4933
      %4935 = vrot.lane.b32.xlu0 %v4271, 126
      %v4936 = vpop.permute.xlu0 %4935
      %4937 = vrot.lane.b32.xlu0 %v4272, 126
      %v4938 = vpop.permute.xlu0 %4937
      %4939 = vrot.lane.b32.xlu0 %v4273, 126
      %v4940 = vpop.permute.xlu0 %4939
      %4941 = vrot.lane.b32.xlu0 %v4274, 126
      %v4942 = vpop.permute.xlu0 %4941
      %4943 = vrot.lane.b32.xlu0 %v4275, 126
      %v4944 = vpop.permute.xlu0 %4943
      %4945 = vrot.lane.b32.xlu0 %v4276, 126
      %v4946 = vpop.permute.xlu0 %4945
      %v4947 = vsel %vm1341, %v4920, %v4922
      %v4948 = vsel %vm1341, %v4922, %v4924
      %v4949 = vsel %vm1341, %v4924, %v4926
      %v4950 = vsel %vm1341, %v4926, %v4928
      %v4951 = vsel %vm1341, %v4928, %v4930
      %v4952 = vsel %vm1341, %v4930, %v4932
      %v4953 = vsel %vm1341, %v4932, %v4934
      %v4954 = vsel %vm1341, %v4934, %v4936
      %v4955 = vsel %vm1341, %v4936, %v4938
      %v4956 = vsel %vm1341, %v4938, %v4940
      %v4957 = vsel %vm1341, %v4940, %v4942
      %v4958 = vsel %vm1341, %v4942, %v4944
      %v4959 = vsel %vm1341, %v4944, %v4946
      %v4975 = vsel %vm4350, %v4918, 0
      %4977 = vmatpush.msra.mxu0 0.0
      %4978 = vmatpush.msra.mxu0 0.0
      %4979 = vmatpush.msra.mxu0 0.0
      %4980 = vmatpush.msra.mxu0 0.0
      %4981 = vmatpush.msra.mxu0 0.0
      %4982 = vmatpush.msra.mxu0 0.0
      %4983 = vmatpush.msra.mxu0 0.0
      %4984 = vmatpush.msra.mxu0 0.0
      %4985 = vmatpush.msra.mxu0 0.0
      %4986 = vmatpush.msra.mxu0 0.0
      %4987 = vmatpush.msra.mxu0 0.0
      %4988 = vmatpush.msra.mxu0 0.0
      %4989 = vmatpush.msra.mxu0 0.0
      %4990 = vmatpush.msra.mxu0 0.0
      %4991 = vmatpush.msra.mxu0 0.0
      %4992 = vmatpush.msra.mxu0 %v4947
      %4993 = vmatmul.f32.gmra.mxu0 %v4975
      %v4994 = vpop.f32.mrf.mxu0
      %v4995 = vadd.f32 0.0, %v4994
      %4996 = vdwg.mxu0
      %4997 = vmatpush.msra.mxu0 0.0
      %4998 = vmatpush.msra.mxu0 0.0
      %4999 = vmatpush.msra.mxu0 0.0
      %5000 = vmatpush.msra.mxu0 0.0
      %5001 = vmatpush.msra.mxu0 0.0
      %5002 = vmatpush.msra.mxu0 0.0
      %5003 = vmatpush.msra.mxu0 0.0
      %5004 = vmatpush.msra.mxu0 0.0
      %5005 = vmatpush.msra.mxu0 0.0
      %5006 = vmatpush.msra.mxu0 0.0
      %5007 = vmatpush.msra.mxu0 0.0
      %5008 = vmatpush.msra.mxu0 0.0
      %5009 = vmatpush.msra.mxu0 0.0
      %5010 = vmatpush.msra.mxu0 0.0
      %5011 = vmatpush.msra.mxu0 0.0
      %5012 = vmatpush.msra.mxu0 %v4948
      %5013 = vmatmul.f32.gmra.mxu0 %v4975
      %v5014 = vpop.f32.mrf.mxu0
      %v5015 = vadd.f32 0.0, %v5014
      %5016 = vdwg.mxu0
      %5017 = vmatpush.msra.mxu0 0.0
      %5018 = vmatpush.msra.mxu0 0.0
      %5019 = vmatpush.msra.mxu0 0.0
      %5020 = vmatpush.msra.mxu0 0.0
      %5021 = vmatpush.msra.mxu0 0.0
      %5022 = vmatpush.msra.mxu0 0.0
      %5023 = vmatpush.msra.mxu0 0.0
      %5024 = vmatpush.msra.mxu0 0.0
      %5025 = vmatpush.msra.mxu0 0.0
      %5026 = vmatpush.msra.mxu0 0.0
      %5027 = vmatpush.msra.mxu0 0.0
      %5028 = vmatpush.msra.mxu0 0.0
      %5029 = vmatpush.msra.mxu0 0.0
      %5030 = vmatpush.msra.mxu0 0.0
      %5031 = vmatpush.msra.mxu0 0.0
      %5032 = vmatpush.msra.mxu0 %v4949
      %5033 = vmatmul.f32.gmra.mxu0 %v4975
      %v5034 = vpop.f32.mrf.mxu0
      %v5035 = vadd.f32 0.0, %v5034
      %5036 = vdwg.mxu0
      %5037 = vmatpush.msra.mxu0 0.0
      %5038 = vmatpush.msra.mxu0 0.0
      %5039 = vmatpush.msra.mxu0 0.0
      %5040 = vmatpush.msra.mxu0 0.0
      %5041 = vmatpush.msra.mxu0 0.0
      %5042 = vmatpush.msra.mxu0 0.0
      %5043 = vmatpush.msra.mxu0 0.0
      %5044 = vmatpush.msra.mxu0 0.0
      %5045 = vmatpush.msra.mxu0 0.0
      %5046 = vmatpush.msra.mxu0 0.0
      %5047 = vmatpush.msra.mxu0 0.0
      %5048 = vmatpush.msra.mxu0 0.0
      %5049 = vmatpush.msra.mxu0 0.0
      %5050 = vmatpush.msra.mxu0 0.0
      %5051 = vmatpush.msra.mxu0 0.0
      %5052 = vmatpush.msra.mxu0 %v4950
      %5053 = vmatmul.f32.gmra.mxu0 %v4975
      %v5054 = vpop.f32.mrf.mxu0
      %v5055 = vadd.f32 0.0, %v5054
      %5056 = vdwg.mxu0
      %5057 = vmatpush.msra.mxu0 0.0
      %5058 = vmatpush.msra.mxu0 0.0
      %5059 = vmatpush.msra.mxu0 0.0
      %5060 = vmatpush.msra.mxu0 0.0
      %5061 = vmatpush.msra.mxu0 0.0
      %5062 = vmatpush.msra.mxu0 0.0
      %5063 = vmatpush.msra.mxu0 0.0
      %5064 = vmatpush.msra.mxu0 0.0
      %5065 = vmatpush.msra.mxu0 0.0
      %5066 = vmatpush.msra.mxu0 0.0
      %5067 = vmatpush.msra.mxu0 0.0
      %5068 = vmatpush.msra.mxu0 0.0
      %5069 = vmatpush.msra.mxu0 0.0
      %5070 = vmatpush.msra.mxu0 0.0
      %5071 = vmatpush.msra.mxu0 0.0
      %5072 = vmatpush.msra.mxu0 %v4951
      %5073 = vmatmul.f32.gmra.mxu0 %v4975
      %v5074 = vpop.f32.mrf.mxu0
      %v5075 = vadd.f32 0.0, %v5074
      %5076 = vdwg.mxu0
      %5077 = vmatpush.msra.mxu0 0.0
      %5078 = vmatpush.msra.mxu0 0.0
      %5079 = vmatpush.msra.mxu0 0.0
      %5080 = vmatpush.msra.mxu0 0.0
      %5081 = vmatpush.msra.mxu0 0.0
      %5082 = vmatpush.msra.mxu0 0.0
      %5083 = vmatpush.msra.mxu0 0.0
      %5084 = vmatpush.msra.mxu0 0.0
      %5085 = vmatpush.msra.mxu0 0.0
      %5086 = vmatpush.msra.mxu0 0.0
      %5087 = vmatpush.msra.mxu0 0.0
      %5088 = vmatpush.msra.mxu0 0.0
      %5089 = vmatpush.msra.mxu0 0.0
      %5090 = vmatpush.msra.mxu0 0.0
      %5091 = vmatpush.msra.mxu0 0.0
      %5092 = vmatpush.msra.mxu0 %v4952
      %5093 = vmatmul.f32.gmra.mxu0 %v4975
      %v5094 = vpop.f32.mrf.mxu0
      %v5095 = vadd.f32 0.0, %v5094
      %5096 = vdwg.mxu0
      %5097 = vmatpush.msra.mxu0 0.0
      %5098 = vmatpush.msra.mxu0 0.0
      %5099 = vmatpush.msra.mxu0 0.0
      %5100 = vmatpush.msra.mxu0 0.0
      %5101 = vmatpush.msra.mxu0 0.0
      %5102 = vmatpush.msra.mxu0 0.0
      %5103 = vmatpush.msra.mxu0 0.0
      %5104 = vmatpush.msra.mxu0 0.0
      %5105 = vmatpush.msra.mxu0 0.0
      %5106 = vmatpush.msra.mxu0 0.0
      %5107 = vmatpush.msra.mxu0 0.0
      %5108 = vmatpush.msra.mxu0 0.0
      %5109 = vmatpush.msra.mxu0 0.0
      %5110 = vmatpush.msra.mxu0 0.0
      %5111 = vmatpush.msra.mxu0 0.0
      %5112 = vmatpush.msra.mxu0 %v4953
      %5113 = vmatmul.f32.gmra.mxu0 %v4975
      %v5114 = vpop.f32.mrf.mxu0
      %v5115 = vadd.f32 0.0, %v5114
      %5116 = vdwg.mxu0
      %5117 = vmatpush.msra.mxu0 0.0
      %5118 = vmatpush.msra.mxu0 0.0
      %5119 = vmatpush.msra.mxu0 0.0
      %5120 = vmatpush.msra.mxu0 0.0
      %5121 = vmatpush.msra.mxu0 0.0
      %5122 = vmatpush.msra.mxu0 0.0
      %5123 = vmatpush.msra.mxu0 0.0
      %5124 = vmatpush.msra.mxu0 0.0
      %5125 = vmatpush.msra.mxu0 0.0
      %5126 = vmatpush.msra.mxu0 0.0
      %5127 = vmatpush.msra.mxu0 0.0
      %5128 = vmatpush.msra.mxu0 0.0
      %5129 = vmatpush.msra.mxu0 0.0
      %5130 = vmatpush.msra.mxu0 0.0
      %5131 = vmatpush.msra.mxu0 0.0
      %5132 = vmatpush.msra.mxu0 %v4954
      %5133 = vmatmul.f32.gmra.mxu0 %v4975
      %v5134 = vpop.f32.mrf.mxu0
      %v5135 = vadd.f32 0.0, %v5134
      %5136 = vdwg.mxu0
      %5137 = vmatpush.msra.mxu0 0.0
      %5138 = vmatpush.msra.mxu0 0.0
      %5139 = vmatpush.msra.mxu0 0.0
      %5140 = vmatpush.msra.mxu0 0.0
      %5141 = vmatpush.msra.mxu0 0.0
      %5142 = vmatpush.msra.mxu0 0.0
      %5143 = vmatpush.msra.mxu0 0.0
      %5144 = vmatpush.msra.mxu0 0.0
      %5145 = vmatpush.msra.mxu0 0.0
      %5146 = vmatpush.msra.mxu0 0.0
      %5147 = vmatpush.msra.mxu0 0.0
      %5148 = vmatpush.msra.mxu0 0.0
      %5149 = vmatpush.msra.mxu0 0.0
      %5150 = vmatpush.msra.mxu0 0.0
      %5151 = vmatpush.msra.mxu0 0.0
      %5152 = vmatpush.msra.mxu0 %v4955
      %5153 = vmatmul.f32.gmra.mxu0 %v4975
      %v5154 = vpop.f32.mrf.mxu0
      %v5155 = vadd.f32 0.0, %v5154
      %5156 = vdwg.mxu0
      %5157 = vmatpush.msra.mxu0 0.0
      %5158 = vmatpush.msra.mxu0 0.0
      %5159 = vmatpush.msra.mxu0 0.0
      %5160 = vmatpush.msra.mxu0 0.0
      %5161 = vmatpush.msra.mxu0 0.0
      %5162 = vmatpush.msra.mxu0 0.0
      %5163 = vmatpush.msra.mxu0 0.0
      %5164 = vmatpush.msra.mxu0 0.0
      %5165 = vmatpush.msra.mxu0 0.0
      %5166 = vmatpush.msra.mxu0 0.0
      %5167 = vmatpush.msra.mxu0 0.0
      %5168 = vmatpush.msra.mxu0 0.0
      %5169 = vmatpush.msra.mxu0 0.0
      %5170 = vmatpush.msra.mxu0 0.0
      %5171 = vmatpush.msra.mxu0 0.0
      %5172 = vmatpush.msra.mxu0 %v4956
      %5173 = vmatmul.f32.gmra.mxu0 %v4975
      %v5174 = vpop.f32.mrf.mxu0
      %v5175 = vadd.f32 0.0, %v5174
      %5176 = vdwg.mxu0
      %5177 = vmatpush.msra.mxu0 0.0
      %5178 = vmatpush.msra.mxu0 0.0
      %5179 = vmatpush.msra.mxu0 0.0
      %5180 = vmatpush.msra.mxu0 0.0
      %5181 = vmatpush.msra.mxu0 0.0
      %5182 = vmatpush.msra.mxu0 0.0
      %5183 = vmatpush.msra.mxu0 0.0
      %5184 = vmatpush.msra.mxu0 0.0
      %5185 = vmatpush.msra.mxu0 0.0
      %5186 = vmatpush.msra.mxu0 0.0
      %5187 = vmatpush.msra.mxu0 0.0
      %5188 = vmatpush.msra.mxu0 0.0
      %5189 = vmatpush.msra.mxu0 0.0
      %5190 = vmatpush.msra.mxu0 0.0
      %5191 = vmatpush.msra.mxu0 0.0
      %5192 = vmatpush.msra.mxu0 %v4957
      %5193 = vmatmul.f32.gmra.mxu0 %v4975
      %v5194 = vpop.f32.mrf.mxu0
      %v5195 = vadd.f32 0.0, %v5194
      %5196 = vdwg.mxu0
      %5197 = vmatpush.msra.mxu0 0.0
      %5198 = vmatpush.msra.mxu0 0.0
      %5199 = vmatpush.msra.mxu0 0.0
      %5200 = vmatpush.msra.mxu0 0.0
      %5201 = vmatpush.msra.mxu0 0.0
      %5202 = vmatpush.msra.mxu0 0.0
      %5203 = vmatpush.msra.mxu0 0.0
      %5204 = vmatpush.msra.mxu0 0.0
      %5205 = vmatpush.msra.mxu0 0.0
      %5206 = vmatpush.msra.mxu0 0.0
      %5207 = vmatpush.msra.mxu0 0.0
      %5208 = vmatpush.msra.mxu0 0.0
      %5209 = vmatpush.msra.mxu0 0.0
      %5210 = vmatpush.msra.mxu0 0.0
      %5211 = vmatpush.msra.mxu0 0.0
      %5212 = vmatpush.msra.mxu0 %v4958
      %5213 = vmatmul.f32.gmra.mxu0 %v4975
      %v5214 = vpop.f32.mrf.mxu0
      %v5215 = vadd.f32 0.0, %v5214
      %5216 = vdwg.mxu0
      %5217 = vmatpush.msra.mxu0 0.0
      %5218 = vmatpush.msra.mxu0 0.0
      %5219 = vmatpush.msra.mxu0 0.0
      %5220 = vmatpush.msra.mxu0 0.0
      %5221 = vmatpush.msra.mxu0 0.0
      %5222 = vmatpush.msra.mxu0 0.0
      %5223 = vmatpush.msra.mxu0 0.0
      %5224 = vmatpush.msra.mxu0 0.0
      %5225 = vmatpush.msra.mxu0 0.0
      %5226 = vmatpush.msra.mxu0 0.0
      %5227 = vmatpush.msra.mxu0 0.0
      %5228 = vmatpush.msra.mxu0 0.0
      %5229 = vmatpush.msra.mxu0 0.0
      %5230 = vmatpush.msra.mxu0 0.0
      %5231 = vmatpush.msra.mxu0 0.0
      %5232 = vmatpush.msra.mxu0 %v4959
      %5233 = vmatmul.f32.gmra.mxu0 %v4975
      %v5234 = vpop.f32.mrf.mxu0
      %v5235 = vadd.f32 0.0, %v5234
      %5236 = vdwg.mxu0
      %5237 = vmatpush.msra.mxu0 0.0
      %5238 = vmatpush.msra.mxu0 0.0
      %5239 = vmatpush.msra.mxu0 0.0
      %5240 = vmatpush.msra.mxu0 0.0
      %5241 = vmatpush.msra.mxu0 0.0
      %5242 = vmatpush.msra.mxu0 0.0
      %5243 = vmatpush.msra.mxu0 0.0
      %5244 = vmatpush.msra.mxu0 0.0
      %5245 = vmatpush.msra.mxu0 0.0
      %5246 = vmatpush.msra.mxu0 0.0
      %5247 = vmatpush.msra.mxu0 0.0
      %5248 = vmatpush.msra.mxu0 0.0
      %5249 = vmatpush.msra.mxu0 0.0
      %5250 = vmatpush.msra.mxu0 0.0
      %5251 = vmatpush.msra.mxu0 0.0
      %5252 = vmatpush.msra.mxu0 %v4946
      %5253 = vmatmul.f32.gmra.mxu0 %v4975
      %v5254 = vpop.f32.mrf.mxu0
      %v5255 = vadd.f32 0.0, %v5254
      %5256 = vdwg.mxu0
      %v5257 = vadd.f32 %v4655, %v4995
      %v5258 = vadd.f32 %v4675, %v5015
      %v5259 = vadd.f32 %v4695, %v5035
      %v5260 = vadd.f32 %v4715, %v5055
      %v5261 = vadd.f32 %v4735, %v5075
      %v5262 = vadd.f32 %v4755, %v5095
      %v5263 = vadd.f32 %v4775, %v5115
      %v5264 = vadd.f32 %v4795, %v5135
      %v5265 = vadd.f32 %v4815, %v5155
      %v5266 = vadd.f32 %v4835, %v5175
      %v5267 = vadd.f32 %v4855, %v5195
      %v5268 = vadd.f32 %v4875, %v5215
      %v5269 = vadd.f32 %v4895, %v5235
      %v5270 = vadd.f32 %v4915, %v5255
      %s5271 = scalar_lea.vmem %s3, 24
      %v5272 = vld [vmem:[%s5271] sm:$0xff]
      %5274 = vrot.lane.b32.xlu0 %v4263, 84
      %v5275 = vpop.permute.xlu0 %5274
      %5276 = vrot.lane.b32.xlu0 %v4264, 84
      %v5277 = vpop.permute.xlu0 %5276
      %5278 = vrot.lane.b32.xlu0 %v4265, 84
      %v5279 = vpop.permute.xlu0 %5278
      %5280 = vrot.lane.b32.xlu0 %v4266, 84
      %v5281 = vpop.permute.xlu0 %5280
      %5282 = vrot.lane.b32.xlu0 %v4267, 84
      %v5283 = vpop.permute.xlu0 %5282
      %5284 = vrot.lane.b32.xlu0 %v4268, 84
      %v5285 = vpop.permute.xlu0 %5284
      %5286 = vrot.lane.b32.xlu0 %v4269, 84
      %v5287 = vpop.permute.xlu0 %5286
      %5288 = vrot.lane.b32.xlu0 %v4270, 84
      %v5289 = vpop.permute.xlu0 %5288
      %5290 = vrot.lane.b32.xlu0 %v4271, 84
      %v5291 = vpop.permute.xlu0 %5290
      %5292 = vrot.lane.b32.xlu0 %v4272, 84
      %v5293 = vpop.permute.xlu0 %5292
      %5294 = vrot.lane.b32.xlu0 %v4273, 84
      %v5295 = vpop.permute.xlu0 %5294
      %5296 = vrot.lane.b32.xlu0 %v4274, 84
      %v5297 = vpop.permute.xlu0 %5296
      %5298 = vrot.lane.b32.xlu0 %v4275, 84
      %v5299 = vpop.permute.xlu0 %5298
      %5300 = vrot.lane.b32.xlu0 %v4276, 84
      %v5301 = vpop.permute.xlu0 %5300
      %5302 = vrot.lane.b32.xlu0 %v4277, 84
      %v5303 = vpop.permute.xlu0 %5302
      %v5304 = vsel %vm1762, %v5275, %v5277
      %v5305 = vsel %vm1762, %v5277, %v5279
      %v5306 = vsel %vm1762, %v5279, %v5281
      %v5307 = vsel %vm1762, %v5281, %v5283
      %v5308 = vsel %vm1762, %v5283, %v5285
      %v5309 = vsel %vm1762, %v5285, %v5287
      %v5310 = vsel %vm1762, %v5287, %v5289
      %v5311 = vsel %vm1762, %v5289, %v5291
      %v5312 = vsel %vm1762, %v5291, %v5293
      %v5313 = vsel %vm1762, %v5293, %v5295
      %v5314 = vsel %vm1762, %v5295, %v5297
      %v5315 = vsel %vm1762, %v5297, %v5299
      %v5316 = vsel %vm1762, %v5299, %v5301
      %v5317 = vsel %vm1762, %v5301, %v5303
      %v5333 = vsel %vm4350, %v5272, 0
      %5335 = vmatpush.msra.mxu0 0.0
      %5336 = vmatpush.msra.mxu0 0.0
      %5337 = vmatpush.msra.mxu0 0.0
      %5338 = vmatpush.msra.mxu0 0.0
      %5339 = vmatpush.msra.mxu0 0.0
      %5340 = vmatpush.msra.mxu0 0.0
      %5341 = vmatpush.msra.mxu0 0.0
      %5342 = vmatpush.msra.mxu0 0.0
      %5343 = vmatpush.msra.mxu0 0.0
      %5344 = vmatpush.msra.mxu0 0.0
      %5345 = vmatpush.msra.mxu0 0.0
      %5346 = vmatpush.msra.mxu0 0.0
      %5347 = vmatpush.msra.mxu0 0.0
      %5348 = vmatpush.msra.mxu0 0.0
      %5349 = vmatpush.msra.mxu0 0.0
      %5350 = vmatpush.msra.mxu0 %v5304
      %5351 = vmatmul.f32.gmra.mxu0 %v5333
      %v5352 = vpop.f32.mrf.mxu0
      %v5353 = vadd.f32 0.0, %v5352
      %5354 = vdwg.mxu0
      %5355 = vmatpush.msra.mxu0 0.0
      %5356 = vmatpush.msra.mxu0 0.0
      %5357 = vmatpush.msra.mxu0 0.0
      %5358 = vmatpush.msra.mxu0 0.0
      %5359 = vmatpush.msra.mxu0 0.0
      %5360 = vmatpush.msra.mxu0 0.0
      %5361 = vmatpush.msra.mxu0 0.0
      %5362 = vmatpush.msra.mxu0 0.0
      %5363 = vmatpush.msra.mxu0 0.0
      %5364 = vmatpush.msra.mxu0 0.0
      %5365 = vmatpush.msra.mxu0 0.0
      %5366 = vmatpush.msra.mxu0 0.0
      %5367 = vmatpush.msra.mxu0 0.0
      %5368 = vmatpush.msra.mxu0 0.0
      %5369 = vmatpush.msra.mxu0 0.0
      %5370 = vmatpush.msra.mxu0 %v5305
      %5371 = vmatmul.f32.gmra.mxu0 %v5333
      %v5372 = vpop.f32.mrf.mxu0
      %v5373 = vadd.f32 0.0, %v5372
      %5374 = vdwg.mxu0
      %5375 = vmatpush.msra.mxu0 0.0
      %5376 = vmatpush.msra.mxu0 0.0
      %5377 = vmatpush.msra.mxu0 0.0
      %5378 = vmatpush.msra.mxu0 0.0
      %5379 = vmatpush.msra.mxu0 0.0
      %5380 = vmatpush.msra.mxu0 0.0
      %5381 = vmatpush.msra.mxu0 0.0
      %5382 = vmatpush.msra.mxu0 0.0
      %5383 = vmatpush.msra.mxu0 0.0
      %5384 = vmatpush.msra.mxu0 0.0
      %5385 = vmatpush.msra.mxu0 0.0
      %5386 = vmatpush.msra.mxu0 0.0
      %5387 = vmatpush.msra.mxu0 0.0
      %5388 = vmatpush.msra.mxu0 0.0
      %5389 = vmatpush.msra.mxu0 0.0
      %5390 = vmatpush.msra.mxu0 %v5306
      %5391 = vmatmul.f32.gmra.mxu0 %v5333
      %v5392 = vpop.f32.mrf.mxu0
      %v5393 = vadd.f32 0.0, %v5392
      %5394 = vdwg.mxu0
      %5395 = vmatpush.msra.mxu0 0.0
      %5396 = vmatpush.msra.mxu0 0.0
      %5397 = vmatpush.msra.mxu0 0.0
      %5398 = vmatpush.msra.mxu0 0.0
      %5399 = vmatpush.msra.mxu0 0.0
      %5400 = vmatpush.msra.mxu0 0.0
      %5401 = vmatpush.msra.mxu0 0.0
      %5402 = vmatpush.msra.mxu0 0.0
      %5403 = vmatpush.msra.mxu0 0.0
      %5404 = vmatpush.msra.mxu0 0.0
      %5405 = vmatpush.msra.mxu0 0.0
      %5406 = vmatpush.msra.mxu0 0.0
      %5407 = vmatpush.msra.mxu0 0.0
      %5408 = vmatpush.msra.mxu0 0.0
      %5409 = vmatpush.msra.mxu0 0.0
      %5410 = vmatpush.msra.mxu0 %v5307
      %5411 = vmatmul.f32.gmra.mxu0 %v5333
      %v5412 = vpop.f32.mrf.mxu0
      %v5413 = vadd.f32 0.0, %v5412
      %5414 = vdwg.mxu0
      %5415 = vmatpush.msra.mxu0 0.0
      %5416 = vmatpush.msra.mxu0 0.0
      %5417 = vmatpush.msra.mxu0 0.0
      %5418 = vmatpush.msra.mxu0 0.0
      %5419 = vmatpush.msra.mxu0 0.0
      %5420 = vmatpush.msra.mxu0 0.0
      %5421 = vmatpush.msra.mxu0 0.0
      %5422 = vmatpush.msra.mxu0 0.0
      %5423 = vmatpush.msra.mxu0 0.0
      %5424 = vmatpush.msra.mxu0 0.0
      %5425 = vmatpush.msra.mxu0 0.0
      %5426 = vmatpush.msra.mxu0 0.0
      %5427 = vmatpush.msra.mxu0 0.0
      %5428 = vmatpush.msra.mxu0 0.0
      %5429 = vmatpush.msra.mxu0 0.0
      %5430 = vmatpush.msra.mxu0 %v5308
      %5431 = vmatmul.f32.gmra.mxu0 %v5333
      %v5432 = vpop.f32.mrf.mxu0
      %v5433 = vadd.f32 0.0, %v5432
      %5434 = vdwg.mxu0
      %5435 = vmatpush.msra.mxu0 0.0
      %5436 = vmatpush.msra.mxu0 0.0
      %5437 = vmatpush.msra.mxu0 0.0
      %5438 = vmatpush.msra.mxu0 0.0
      %5439 = vmatpush.msra.mxu0 0.0
      %5440 = vmatpush.msra.mxu0 0.0
      %5441 = vmatpush.msra.mxu0 0.0
      %5442 = vmatpush.msra.mxu0 0.0
      %5443 = vmatpush.msra.mxu0 0.0
      %5444 = vmatpush.msra.mxu0 0.0
      %5445 = vmatpush.msra.mxu0 0.0
      %5446 = vmatpush.msra.mxu0 0.0
      %5447 = vmatpush.msra.mxu0 0.0
      %5448 = vmatpush.msra.mxu0 0.0
      %5449 = vmatpush.msra.mxu0 0.0
      %5450 = vmatpush.msra.mxu0 %v5309
      %5451 = vmatmul.f32.gmra.mxu0 %v5333
      %v5452 = vpop.f32.mrf.mxu0
      %v5453 = vadd.f32 0.0, %v5452
      %5454 = vdwg.mxu0
      %5455 = vmatpush.msra.mxu0 0.0
      %5456 = vmatpush.msra.mxu0 0.0
      %5457 = vmatpush.msra.mxu0 0.0
      %5458 = vmatpush.msra.mxu0 0.0
      %5459 = vmatpush.msra.mxu0 0.0
      %5460 = vmatpush.msra.mxu0 0.0
      %5461 = vmatpush.msra.mxu0 0.0
      %5462 = vmatpush.msra.mxu0 0.0
      %5463 = vmatpush.msra.mxu0 0.0
      %5464 = vmatpush.msra.mxu0 0.0
      %5465 = vmatpush.msra.mxu0 0.0
      %5466 = vmatpush.msra.mxu0 0.0
      %5467 = vmatpush.msra.mxu0 0.0
      %5468 = vmatpush.msra.mxu0 0.0
      %5469 = vmatpush.msra.mxu0 0.0
      %5470 = vmatpush.msra.mxu0 %v5310
      %5471 = vmatmul.f32.gmra.mxu0 %v5333
      %v5472 = vpop.f32.mrf.mxu0
      %v5473 = vadd.f32 0.0, %v5472
      %5474 = vdwg.mxu0
      %5475 = vmatpush.msra.mxu0 0.0
      %5476 = vmatpush.msra.mxu0 0.0
      %5477 = vmatpush.msra.mxu0 0.0
      %5478 = vmatpush.msra.mxu0 0.0
      %5479 = vmatpush.msra.mxu0 0.0
      %5480 = vmatpush.msra.mxu0 0.0
      %5481 = vmatpush.msra.mxu0 0.0
      %5482 = vmatpush.msra.mxu0 0.0
      %5483 = vmatpush.msra.mxu0 0.0
      %5484 = vmatpush.msra.mxu0 0.0
      %5485 = vmatpush.msra.mxu0 0.0
      %5486 = vmatpush.msra.mxu0 0.0
      %5487 = vmatpush.msra.mxu0 0.0
      %5488 = vmatpush.msra.mxu0 0.0
      %5489 = vmatpush.msra.mxu0 0.0
      %5490 = vmatpush.msra.mxu0 %v5311
      %5491 = vmatmul.f32.gmra.mxu0 %v5333
      %v5492 = vpop.f32.mrf.mxu0
      %v5493 = vadd.f32 0.0, %v5492
      %5494 = vdwg.mxu0
      %5495 = vmatpush.msra.mxu0 0.0
      %5496 = vmatpush.msra.mxu0 0.0
      %5497 = vmatpush.msra.mxu0 0.0
      %5498 = vmatpush.msra.mxu0 0.0
      %5499 = vmatpush.msra.mxu0 0.0
      %5500 = vmatpush.msra.mxu0 0.0
      %5501 = vmatpush.msra.mxu0 0.0
      %5502 = vmatpush.msra.mxu0 0.0
      %5503 = vmatpush.msra.mxu0 0.0
      %5504 = vmatpush.msra.mxu0 0.0
      %5505 = vmatpush.msra.mxu0 0.0
      %5506 = vmatpush.msra.mxu0 0.0
      %5507 = vmatpush.msra.mxu0 0.0
      %5508 = vmatpush.msra.mxu0 0.0
      %5509 = vmatpush.msra.mxu0 0.0
      %5510 = vmatpush.msra.mxu0 %v5312
      %5511 = vmatmul.f32.gmra.mxu0 %v5333
      %v5512 = vpop.f32.mrf.mxu0
      %v5513 = vadd.f32 0.0, %v5512
      %5514 = vdwg.mxu0
      %5515 = vmatpush.msra.mxu0 0.0
      %5516 = vmatpush.msra.mxu0 0.0
      %5517 = vmatpush.msra.mxu0 0.0
      %5518 = vmatpush.msra.mxu0 0.0
      %5519 = vmatpush.msra.mxu0 0.0
      %5520 = vmatpush.msra.mxu0 0.0
      %5521 = vmatpush.msra.mxu0 0.0
      %5522 = vmatpush.msra.mxu0 0.0
      %5523 = vmatpush.msra.mxu0 0.0
      %5524 = vmatpush.msra.mxu0 0.0
      %5525 = vmatpush.msra.mxu0 0.0
      %5526 = vmatpush.msra.mxu0 0.0
      %5527 = vmatpush.msra.mxu0 0.0
      %5528 = vmatpush.msra.mxu0 0.0
      %5529 = vmatpush.msra.mxu0 0.0
      %5530 = vmatpush.msra.mxu0 %v5313
      %5531 = vmatmul.f32.gmra.mxu0 %v5333
      %v5532 = vpop.f32.mrf.mxu0
      %v5533 = vadd.f32 0.0, %v5532
      %5534 = vdwg.mxu0
      %5535 = vmatpush.msra.mxu0 0.0
      %5536 = vmatpush.msra.mxu0 0.0
      %5537 = vmatpush.msra.mxu0 0.0
      %5538 = vmatpush.msra.mxu0 0.0
      %5539 = vmatpush.msra.mxu0 0.0
      %5540 = vmatpush.msra.mxu0 0.0
      %5541 = vmatpush.msra.mxu0 0.0
      %5542 = vmatpush.msra.mxu0 0.0
      %5543 = vmatpush.msra.mxu0 0.0
      %5544 = vmatpush.msra.mxu0 0.0
      %5545 = vmatpush.msra.mxu0 0.0
      %5546 = vmatpush.msra.mxu0 0.0
      %5547 = vmatpush.msra.mxu0 0.0
      %5548 = vmatpush.msra.mxu0 0.0
      %5549 = vmatpush.msra.mxu0 0.0
      %5550 = vmatpush.msra.mxu0 %v5314
      %5551 = vmatmul.f32.gmra.mxu0 %v5333
      %v5552 = vpop.f32.mrf.mxu0
      %v5553 = vadd.f32 0.0, %v5552
      %5554 = vdwg.mxu0
      %5555 = vmatpush.msra.mxu0 0.0
      %5556 = vmatpush.msra.mxu0 0.0
      %5557 = vmatpush.msra.mxu0 0.0
      %5558 = vmatpush.msra.mxu0 0.0
      %5559 = vmatpush.msra.mxu0 0.0
      %5560 = vmatpush.msra.mxu0 0.0
      %5561 = vmatpush.msra.mxu0 0.0
      %5562 = vmatpush.msra.mxu0 0.0
      %5563 = vmatpush.msra.mxu0 0.0
      %5564 = vmatpush.msra.mxu0 0.0
      %5565 = vmatpush.msra.mxu0 0.0
      %5566 = vmatpush.msra.mxu0 0.0
      %5567 = vmatpush.msra.mxu0 0.0
      %5568 = vmatpush.msra.mxu0 0.0
      %5569 = vmatpush.msra.mxu0 0.0
      %5570 = vmatpush.msra.mxu0 %v5315
      %5571 = vmatmul.f32.gmra.mxu0 %v5333
      %v5572 = vpop.f32.mrf.mxu0
      %v5573 = vadd.f32 0.0, %v5572
      %5574 = vdwg.mxu0
      %5575 = vmatpush.msra.mxu0 0.0
      %5576 = vmatpush.msra.mxu0 0.0
      %5577 = vmatpush.msra.mxu0 0.0
      %5578 = vmatpush.msra.mxu0 0.0
      %5579 = vmatpush.msra.mxu0 0.0
      %5580 = vmatpush.msra.mxu0 0.0
      %5581 = vmatpush.msra.mxu0 0.0
      %5582 = vmatpush.msra.mxu0 0.0
      %5583 = vmatpush.msra.mxu0 0.0
      %5584 = vmatpush.msra.mxu0 0.0
      %5585 = vmatpush.msra.mxu0 0.0
      %5586 = vmatpush.msra.mxu0 0.0
      %5587 = vmatpush.msra.mxu0 0.0
      %5588 = vmatpush.msra.mxu0 0.0
      %5589 = vmatpush.msra.mxu0 0.0
      %5590 = vmatpush.msra.mxu0 %v5316
      %5591 = vmatmul.f32.gmra.mxu0 %v5333
      %v5592 = vpop.f32.mrf.mxu0
      %v5593 = vadd.f32 0.0, %v5592
      %5594 = vdwg.mxu0
      %5595 = vmatpush.msra.mxu0 0.0
      %5596 = vmatpush.msra.mxu0 0.0
      %5597 = vmatpush.msra.mxu0 0.0
      %5598 = vmatpush.msra.mxu0 0.0
      %5599 = vmatpush.msra.mxu0 0.0
      %5600 = vmatpush.msra.mxu0 0.0
      %5601 = vmatpush.msra.mxu0 0.0
      %5602 = vmatpush.msra.mxu0 0.0
      %5603 = vmatpush.msra.mxu0 0.0
      %5604 = vmatpush.msra.mxu0 0.0
      %5605 = vmatpush.msra.mxu0 0.0
      %5606 = vmatpush.msra.mxu0 0.0
      %5607 = vmatpush.msra.mxu0 0.0
      %5608 = vmatpush.msra.mxu0 0.0
      %5609 = vmatpush.msra.mxu0 0.0
      %5610 = vmatpush.msra.mxu0 %v5317
      %5611 = vmatmul.f32.gmra.mxu0 %v5333
      %v5612 = vpop.f32.mrf.mxu0
      %v5613 = vadd.f32 0.0, %v5612
      %5614 = vdwg.mxu0
      %v5615 = vadd.f32 %v5257, %v5353
      %v5616 = vadd.f32 %v5258, %v5373
      %v5617 = vadd.f32 %v5259, %v5393
      %v5618 = vadd.f32 %v5260, %v5413
      %v5619 = vadd.f32 %v5261, %v5433
      %v5620 = vadd.f32 %v5262, %v5453
      %v5621 = vadd.f32 %v5263, %v5473
      %v5622 = vadd.f32 %v5264, %v5493
      %v5623 = vadd.f32 %v5265, %v5513
      %v5624 = vadd.f32 %v5266, %v5533
      %v5625 = vadd.f32 %v5267, %v5553
      %v5626 = vadd.f32 %v5268, %v5573
      %v5627 = vadd.f32 %v5269, %v5593
      %v5628 = vadd.f32 %v5270, %v5613
      %s5629 = scalar_lea.vmem %s3, 32
      %v5630 = vld [vmem:[%s5629] sm:$0xff]
      %5631 = vrot.lane.b32.xlu0 %v4263, 83
      %v5632 = vpop.permute.xlu0 %5631
      %5633 = vrot.lane.b32.xlu0 %v4264, 83
      %v5634 = vpop.permute.xlu0 %5633
      %5635 = vrot.lane.b32.xlu0 %v4265, 83
      %v5636 = vpop.permute.xlu0 %5635
      %5637 = vrot.lane.b32.xlu0 %v4266, 83
      %v5638 = vpop.permute.xlu0 %5637
      %5639 = vrot.lane.b32.xlu0 %v4267, 83
      %v5640 = vpop.permute.xlu0 %5639
      %5641 = vrot.lane.b32.xlu0 %v4268, 83
      %v5642 = vpop.permute.xlu0 %5641
      %5643 = vrot.lane.b32.xlu0 %v4269, 83
      %v5644 = vpop.permute.xlu0 %5643
      %5645 = vrot.lane.b32.xlu0 %v4270, 83
      %v5646 = vpop.permute.xlu0 %5645
      %5647 = vrot.lane.b32.xlu0 %v4271, 83
      %v5648 = vpop.permute.xlu0 %5647
      %5649 = vrot.lane.b32.xlu0 %v4272, 83
      %v5650 = vpop.permute.xlu0 %5649
      %5651 = vrot.lane.b32.xlu0 %v4273, 83
      %v5652 = vpop.permute.xlu0 %5651
      %5653 = vrot.lane.b32.xlu0 %v4274, 83
      %v5654 = vpop.permute.xlu0 %5653
      %5655 = vrot.lane.b32.xlu0 %v4275, 83
      %v5656 = vpop.permute.xlu0 %5655
      %5657 = vrot.lane.b32.xlu0 %v4276, 83
      %v5658 = vpop.permute.xlu0 %5657
      %5659 = vrot.lane.b32.xlu0 %v4277, 83
      %v5660 = vpop.permute.xlu0 %5659
      %v5661 = vsel %vm2183, %v5632, %v5634
      %v5662 = vsel %vm2183, %v5634, %v5636
      %v5663 = vsel %vm2183, %v5636, %v5638
      %v5664 = vsel %vm2183, %v5638, %v5640
      %v5665 = vsel %vm2183, %v5640, %v5642
      %v5666 = vsel %vm2183, %v5642, %v5644
      %v5667 = vsel %vm2183, %v5644, %v5646
      %v5668 = vsel %vm2183, %v5646, %v5648
      %v5669 = vsel %vm2183, %v5648, %v5650
      %v5670 = vsel %vm2183, %v5650, %v5652
      %v5671 = vsel %vm2183, %v5652, %v5654
      %v5672 = vsel %vm2183, %v5654, %v5656
      %v5673 = vsel %vm2183, %v5656, %v5658
      %v5674 = vsel %vm2183, %v5658, %v5660
      %v5690 = vsel %vm4350, %v5630, 0
      %5692 = vmatpush.msra.mxu0 0.0
      %5693 = vmatpush.msra.mxu0 0.0
      %5694 = vmatpush.msra.mxu0 0.0
      %5695 = vmatpush.msra.mxu0 0.0
      %5696 = vmatpush.msra.mxu0 0.0
      %5697 = vmatpush.msra.mxu0 0.0
      %5698 = vmatpush.msra.mxu0 0.0
      %5699 = vmatpush.msra.mxu0 0.0
      %5700 = vmatpush.msra.mxu0 0.0
      %5701 = vmatpush.msra.mxu0 0.0
      %5702 = vmatpush.msra.mxu0 0.0
      %5703 = vmatpush.msra.mxu0 0.0
      %5704 = vmatpush.msra.mxu0 0.0
      %5705 = vmatpush.msra.mxu0 0.0
      %5706 = vmatpush.msra.mxu0 0.0
      %5707 = vmatpush.msra.mxu0 %v5661
      %5708 = vmatmul.f32.gmra.mxu0 %v5690
      %v5709 = vpop.f32.mrf.mxu0
      %v5710 = vadd.f32 0.0, %v5709
      %5711 = vdwg.mxu0
      %5712 = vmatpush.msra.mxu0 0.0
      %5713 = vmatpush.msra.mxu0 0.0
      %5714 = vmatpush.msra.mxu0 0.0
      %5715 = vmatpush.msra.mxu0 0.0
      %5716 = vmatpush.msra.mxu0 0.0
      %5717 = vmatpush.msra.mxu0 0.0
      %5718 = vmatpush.msra.mxu0 0.0
      %5719 = vmatpush.msra.mxu0 0.0
      %5720 = vmatpush.msra.mxu0 0.0
      %5721 = vmatpush.msra.mxu0 0.0
      %5722 = vmatpush.msra.mxu0 0.0
      %5723 = vmatpush.msra.mxu0 0.0
      %5724 = vmatpush.msra.mxu0 0.0
      %5725 = vmatpush.msra.mxu0 0.0
      %5726 = vmatpush.msra.mxu0 0.0
      %5727 = vmatpush.msra.mxu0 %v5662
      %5728 = vmatmul.f32.gmra.mxu0 %v5690
      %v5729 = vpop.f32.mrf.mxu0
      %v5730 = vadd.f32 0.0, %v5729
      %5731 = vdwg.mxu0
      %5732 = vmatpush.msra.mxu0 0.0
      %5733 = vmatpush.msra.mxu0 0.0
      %5734 = vmatpush.msra.mxu0 0.0
      %5735 = vmatpush.msra.mxu0 0.0
      %5736 = vmatpush.msra.mxu0 0.0
      %5737 = vmatpush.msra.mxu0 0.0
      %5738 = vmatpush.msra.mxu0 0.0
      %5739 = vmatpush.msra.mxu0 0.0
      %5740 = vmatpush.msra.mxu0 0.0
      %5741 = vmatpush.msra.mxu0 0.0
      %5742 = vmatpush.msra.mxu0 0.0
      %5743 = vmatpush.msra.mxu0 0.0
      %5744 = vmatpush.msra.mxu0 0.0
      %5745 = vmatpush.msra.mxu0 0.0
      %5746 = vmatpush.msra.mxu0 0.0
      %5747 = vmatpush.msra.mxu0 %v5663
      %5748 = vmatmul.f32.gmra.mxu0 %v5690
      %v5749 = vpop.f32.mrf.mxu0
      %v5750 = vadd.f32 0.0, %v5749
      %5751 = vdwg.mxu0
      %5752 = vmatpush.msra.mxu0 0.0
      %5753 = vmatpush.msra.mxu0 0.0
      %5754 = vmatpush.msra.mxu0 0.0
      %5755 = vmatpush.msra.mxu0 0.0
      %5756 = vmatpush.msra.mxu0 0.0
      %5757 = vmatpush.msra.mxu0 0.0
      %5758 = vmatpush.msra.mxu0 0.0
      %5759 = vmatpush.msra.mxu0 0.0
      %5760 = vmatpush.msra.mxu0 0.0
      %5761 = vmatpush.msra.mxu0 0.0
      %5762 = vmatpush.msra.mxu0 0.0
      %5763 = vmatpush.msra.mxu0 0.0
      %5764 = vmatpush.msra.mxu0 0.0
      %5765 = vmatpush.msra.mxu0 0.0
      %5766 = vmatpush.msra.mxu0 0.0
      %5767 = vmatpush.msra.mxu0 %v5664
      %5768 = vmatmul.f32.gmra.mxu0 %v5690
      %v5769 = vpop.f32.mrf.mxu0
      %v5770 = vadd.f32 0.0, %v5769
      %5771 = vdwg.mxu0
      %5772 = vmatpush.msra.mxu0 0.0
      %5773 = vmatpush.msra.mxu0 0.0
      %5774 = vmatpush.msra.mxu0 0.0
      %5775 = vmatpush.msra.mxu0 0.0
      %5776 = vmatpush.msra.mxu0 0.0
      %5777 = vmatpush.msra.mxu0 0.0
      %5778 = vmatpush.msra.mxu0 0.0
      %5779 = vmatpush.msra.mxu0 0.0
      %5780 = vmatpush.msra.mxu0 0.0
      %5781 = vmatpush.msra.mxu0 0.0
      %5782 = vmatpush.msra.mxu0 0.0
      %5783 = vmatpush.msra.mxu0 0.0
      %5784 = vmatpush.msra.mxu0 0.0
      %5785 = vmatpush.msra.mxu0 0.0
      %5786 = vmatpush.msra.mxu0 0.0
      %5787 = vmatpush.msra.mxu0 %v5665
      %5788 = vmatmul.f32.gmra.mxu0 %v5690
      %v5789 = vpop.f32.mrf.mxu0
      %v5790 = vadd.f32 0.0, %v5789
      %5791 = vdwg.mxu0
      %5792 = vmatpush.msra.mxu0 0.0
      %5793 = vmatpush.msra.mxu0 0.0
      %5794 = vmatpush.msra.mxu0 0.0
      %5795 = vmatpush.msra.mxu0 0.0
      %5796 = vmatpush.msra.mxu0 0.0
      %5797 = vmatpush.msra.mxu0 0.0
      %5798 = vmatpush.msra.mxu0 0.0
      %5799 = vmatpush.msra.mxu0 0.0
      %5800 = vmatpush.msra.mxu0 0.0
      %5801 = vmatpush.msra.mxu0 0.0
      %5802 = vmatpush.msra.mxu0 0.0
      %5803 = vmatpush.msra.mxu0 0.0
      %5804 = vmatpush.msra.mxu0 0.0
      %5805 = vmatpush.msra.mxu0 0.0
      %5806 = vmatpush.msra.mxu0 0.0
      %5807 = vmatpush.msra.mxu0 %v5666
      %5808 = vmatmul.f32.gmra.mxu0 %v5690
      %v5809 = vpop.f32.mrf.mxu0
      %v5810 = vadd.f32 0.0, %v5809
      %5811 = vdwg.mxu0
      %5812 = vmatpush.msra.mxu0 0.0
      %5813 = vmatpush.msra.mxu0 0.0
      %5814 = vmatpush.msra.mxu0 0.0
      %5815 = vmatpush.msra.mxu0 0.0
      %5816 = vmatpush.msra.mxu0 0.0
      %5817 = vmatpush.msra.mxu0 0.0
      %5818 = vmatpush.msra.mxu0 0.0
      %5819 = vmatpush.msra.mxu0 0.0
      %5820 = vmatpush.msra.mxu0 0.0
      %5821 = vmatpush.msra.mxu0 0.0
      %5822 = vmatpush.msra.mxu0 0.0
      %5823 = vmatpush.msra.mxu0 0.0
      %5824 = vmatpush.msra.mxu0 0.0
      %5825 = vmatpush.msra.mxu0 0.0
      %5826 = vmatpush.msra.mxu0 0.0
      %5827 = vmatpush.msra.mxu0 %v5667
      %5828 = vmatmul.f32.gmra.mxu0 %v5690
      %v5829 = vpop.f32.mrf.mxu0
      %v5830 = vadd.f32 0.0, %v5829
      %5831 = vdwg.mxu0
      %5832 = vmatpush.msra.mxu0 0.0
      %5833 = vmatpush.msra.mxu0 0.0
      %5834 = vmatpush.msra.mxu0 0.0
      %5835 = vmatpush.msra.mxu0 0.0
      %5836 = vmatpush.msra.mxu0 0.0
      %5837 = vmatpush.msra.mxu0 0.0
      %5838 = vmatpush.msra.mxu0 0.0
      %5839 = vmatpush.msra.mxu0 0.0
      %5840 = vmatpush.msra.mxu0 0.0
      %5841 = vmatpush.msra.mxu0 0.0
      %5842 = vmatpush.msra.mxu0 0.0
      %5843 = vmatpush.msra.mxu0 0.0
      %5844 = vmatpush.msra.mxu0 0.0
      %5845 = vmatpush.msra.mxu0 0.0
      %5846 = vmatpush.msra.mxu0 0.0
      %5847 = vmatpush.msra.mxu0 %v5668
      %5848 = vmatmul.f32.gmra.mxu0 %v5690
      %v5849 = vpop.f32.mrf.mxu0
      %v5850 = vadd.f32 0.0, %v5849
      %5851 = vdwg.mxu0
      %5852 = vmatpush.msra.mxu0 0.0
      %5853 = vmatpush.msra.mxu0 0.0
      %5854 = vmatpush.msra.mxu0 0.0
      %5855 = vmatpush.msra.mxu0 0.0
      %5856 = vmatpush.msra.mxu0 0.0
      %5857 = vmatpush.msra.mxu0 0.0
      %5858 = vmatpush.msra.mxu0 0.0
      %5859 = vmatpush.msra.mxu0 0.0
      %5860 = vmatpush.msra.mxu0 0.0
      %5861 = vmatpush.msra.mxu0 0.0
      %5862 = vmatpush.msra.mxu0 0.0
      %5863 = vmatpush.msra.mxu0 0.0
      %5864 = vmatpush.msra.mxu0 0.0
      %5865 = vmatpush.msra.mxu0 0.0
      %5866 = vmatpush.msra.mxu0 0.0
      %5867 = vmatpush.msra.mxu0 %v5669
      %5868 = vmatmul.f32.gmra.mxu0 %v5690
      %v5869 = vpop.f32.mrf.mxu0
      %v5870 = vadd.f32 0.0, %v5869
      %5871 = vdwg.mxu0
      %5872 = vmatpush.msra.mxu0 0.0
      %5873 = vmatpush.msra.mxu0 0.0
      %5874 = vmatpush.msra.mxu0 0.0
      %5875 = vmatpush.msra.mxu0 0.0
      %5876 = vmatpush.msra.mxu0 0.0
      %5877 = vmatpush.msra.mxu0 0.0
      %5878 = vmatpush.msra.mxu0 0.0
      %5879 = vmatpush.msra.mxu0 0.0
      %5880 = vmatpush.msra.mxu0 0.0
      %5881 = vmatpush.msra.mxu0 0.0
      %5882 = vmatpush.msra.mxu0 0.0
      %5883 = vmatpush.msra.mxu0 0.0
      %5884 = vmatpush.msra.mxu0 0.0
      %5885 = vmatpush.msra.mxu0 0.0
      %5886 = vmatpush.msra.mxu0 0.0
      %5887 = vmatpush.msra.mxu0 %v5670
      %5888 = vmatmul.f32.gmra.mxu0 %v5690
      %v5889 = vpop.f32.mrf.mxu0
      %v5890 = vadd.f32 0.0, %v5889
      %5891 = vdwg.mxu0
      %5892 = vmatpush.msra.mxu0 0.0
      %5893 = vmatpush.msra.mxu0 0.0
      %5894 = vmatpush.msra.mxu0 0.0
      %5895 = vmatpush.msra.mxu0 0.0
      %5896 = vmatpush.msra.mxu0 0.0
      %5897 = vmatpush.msra.mxu0 0.0
      %5898 = vmatpush.msra.mxu0 0.0
      %5899 = vmatpush.msra.mxu0 0.0
      %5900 = vmatpush.msra.mxu0 0.0
      %5901 = vmatpush.msra.mxu0 0.0
      %5902 = vmatpush.msra.mxu0 0.0
      %5903 = vmatpush.msra.mxu0 0.0
      %5904 = vmatpush.msra.mxu0 0.0
      %5905 = vmatpush.msra.mxu0 0.0
      %5906 = vmatpush.msra.mxu0 0.0
      %5907 = vmatpush.msra.mxu0 %v5671
      %5908 = vmatmul.f32.gmra.mxu0 %v5690
      %v5909 = vpop.f32.mrf.mxu0
      %v5910 = vadd.f32 0.0, %v5909
      %5911 = vdwg.mxu0
      %5912 = vmatpush.msra.mxu0 0.0
      %5913 = vmatpush.msra.mxu0 0.0
      %5914 = vmatpush.msra.mxu0 0.0
      %5915 = vmatpush.msra.mxu0 0.0
      %5916 = vmatpush.msra.mxu0 0.0
      %5917 = vmatpush.msra.mxu0 0.0
      %5918 = vmatpush.msra.mxu0 0.0
      %5919 = vmatpush.msra.mxu0 0.0
      %5920 = vmatpush.msra.mxu0 0.0
      %5921 = vmatpush.msra.mxu0 0.0
      %5922 = vmatpush.msra.mxu0 0.0
      %5923 = vmatpush.msra.mxu0 0.0
      %5924 = vmatpush.msra.mxu0 0.0
      %5925 = vmatpush.msra.mxu0 0.0
      %5926 = vmatpush.msra.mxu0 0.0
      %5927 = vmatpush.msra.mxu0 %v5672
      %5928 = vmatmul.f32.gmra.mxu0 %v5690
      %v5929 = vpop.f32.mrf.mxu0
      %v5930 = vadd.f32 0.0, %v5929
      %5931 = vdwg.mxu0
      %5932 = vmatpush.msra.mxu0 0.0
      %5933 = vmatpush.msra.mxu0 0.0
      %5934 = vmatpush.msra.mxu0 0.0
      %5935 = vmatpush.msra.mxu0 0.0
      %5936 = vmatpush.msra.mxu0 0.0
      %5937 = vmatpush.msra.mxu0 0.0
      %5938 = vmatpush.msra.mxu0 0.0
      %5939 = vmatpush.msra.mxu0 0.0
      %5940 = vmatpush.msra.mxu0 0.0
      %5941 = vmatpush.msra.mxu0 0.0
      %5942 = vmatpush.msra.mxu0 0.0
      %5943 = vmatpush.msra.mxu0 0.0
      %5944 = vmatpush.msra.mxu0 0.0
      %5945 = vmatpush.msra.mxu0 0.0
      %5946 = vmatpush.msra.mxu0 0.0
      %5947 = vmatpush.msra.mxu0 %v5673
      %5948 = vmatmul.f32.gmra.mxu0 %v5690
      %v5949 = vpop.f32.mrf.mxu0
      %v5950 = vadd.f32 0.0, %v5949
      %5951 = vdwg.mxu0
      %5952 = vmatpush.msra.mxu0 0.0
      %5953 = vmatpush.msra.mxu0 0.0
      %5954 = vmatpush.msra.mxu0 0.0
      %5955 = vmatpush.msra.mxu0 0.0
      %5956 = vmatpush.msra.mxu0 0.0
      %5957 = vmatpush.msra.mxu0 0.0
      %5958 = vmatpush.msra.mxu0 0.0
      %5959 = vmatpush.msra.mxu0 0.0
      %5960 = vmatpush.msra.mxu0 0.0
      %5961 = vmatpush.msra.mxu0 0.0
      %5962 = vmatpush.msra.mxu0 0.0
      %5963 = vmatpush.msra.mxu0 0.0
      %5964 = vmatpush.msra.mxu0 0.0
      %5965 = vmatpush.msra.mxu0 0.0
      %5966 = vmatpush.msra.mxu0 0.0
      %5967 = vmatpush.msra.mxu0 %v5674
      %5968 = vmatmul.f32.gmra.mxu0 %v5690
      %v5969 = vpop.f32.mrf.mxu0
      %v5970 = vadd.f32 0.0, %v5969
      %5971 = vdwg.mxu0
      %v5972 = vadd.f32 %v5615, %v5710
      %v5973 = vadd.f32 %v5616, %v5730
      %v5974 = vadd.f32 %v5617, %v5750
      %v5975 = vadd.f32 %v5618, %v5770
      %v5976 = vadd.f32 %v5619, %v5790
      %v5977 = vadd.f32 %v5620, %v5810
      %v5978 = vadd.f32 %v5621, %v5830
      %v5979 = vadd.f32 %v5622, %v5850
      %v5980 = vadd.f32 %v5623, %v5870
      %v5981 = vadd.f32 %v5624, %v5890
      %v5982 = vadd.f32 %v5625, %v5910
      %v5983 = vadd.f32 %v5626, %v5930
      %v5984 = vadd.f32 %v5627, %v5950
      %v5985 = vadd.f32 %v5628, %v5970
      %s5986 = scalar_lea.vmem %s3, 40
      %v5987 = vld [vmem:[%s5986] sm:$0xff]
      %5988 = vrot.lane.b32.xlu0 %v4263, 82
      %v5989 = vpop.permute.xlu0 %5988
      %5990 = vrot.lane.b32.xlu0 %v4264, 82
      %v5991 = vpop.permute.xlu0 %5990
      %5992 = vrot.lane.b32.xlu0 %v4265, 82
      %v5993 = vpop.permute.xlu0 %5992
      %5994 = vrot.lane.b32.xlu0 %v4266, 82
      %v5995 = vpop.permute.xlu0 %5994
      %5996 = vrot.lane.b32.xlu0 %v4267, 82
      %v5997 = vpop.permute.xlu0 %5996
      %5998 = vrot.lane.b32.xlu0 %v4268, 82
      %v5999 = vpop.permute.xlu0 %5998
      %6000 = vrot.lane.b32.xlu0 %v4269, 82
      %v6001 = vpop.permute.xlu0 %6000
      %6002 = vrot.lane.b32.xlu0 %v4270, 82
      %v6003 = vpop.permute.xlu0 %6002
      %6004 = vrot.lane.b32.xlu0 %v4271, 82
      %v6005 = vpop.permute.xlu0 %6004
      %6006 = vrot.lane.b32.xlu0 %v4272, 82
      %v6007 = vpop.permute.xlu0 %6006
      %6008 = vrot.lane.b32.xlu0 %v4273, 82
      %v6009 = vpop.permute.xlu0 %6008
      %6010 = vrot.lane.b32.xlu0 %v4274, 82
      %v6011 = vpop.permute.xlu0 %6010
      %6012 = vrot.lane.b32.xlu0 %v4275, 82
      %v6013 = vpop.permute.xlu0 %6012
      %6014 = vrot.lane.b32.xlu0 %v4276, 82
      %v6015 = vpop.permute.xlu0 %6014
      %6016 = vrot.lane.b32.xlu0 %v4277, 82
      %v6017 = vpop.permute.xlu0 %6016
      %v6018 = vsel %vm2604, %v5989, %v5991
      %v6019 = vsel %vm2604, %v5991, %v5993
      %v6020 = vsel %vm2604, %v5993, %v5995
      %v6021 = vsel %vm2604, %v5995, %v5997
      %v6022 = vsel %vm2604, %v5997, %v5999
      %v6023 = vsel %vm2604, %v5999, %v6001
      %v6024 = vsel %vm2604, %v6001, %v6003
      %v6025 = vsel %vm2604, %v6003, %v6005
      %v6026 = vsel %vm2604, %v6005, %v6007
      %v6027 = vsel %vm2604, %v6007, %v6009
      %v6028 = vsel %vm2604, %v6009, %v6011
      %v6029 = vsel %vm2604, %v6011, %v6013
      %v6030 = vsel %vm2604, %v6013, %v6015
      %v6031 = vsel %vm2604, %v6015, %v6017
      %v6047 = vsel %vm4350, %v5987, 0
      %6049 = vmatpush.msra.mxu0 0.0
      %6050 = vmatpush.msra.mxu0 0.0
      %6051 = vmatpush.msra.mxu0 0.0
      %6052 = vmatpush.msra.mxu0 0.0
      %6053 = vmatpush.msra.mxu0 0.0
      %6054 = vmatpush.msra.mxu0 0.0
      %6055 = vmatpush.msra.mxu0 0.0
      %6056 = vmatpush.msra.mxu0 0.0
      %6057 = vmatpush.msra.mxu0 0.0
      %6058 = vmatpush.msra.mxu0 0.0
      %6059 = vmatpush.msra.mxu0 0.0
      %6060 = vmatpush.msra.mxu0 0.0
      %6061 = vmatpush.msra.mxu0 0.0
      %6062 = vmatpush.msra.mxu0 0.0
      %6063 = vmatpush.msra.mxu0 0.0
      %6064 = vmatpush.msra.mxu0 %v6018
      %6065 = vmatmul.f32.gmra.mxu0 %v6047
      %v6066 = vpop.f32.mrf.mxu0
      %v6067 = vadd.f32 0.0, %v6066
      %6068 = vdwg.mxu0
      %6069 = vmatpush.msra.mxu0 0.0
      %6070 = vmatpush.msra.mxu0 0.0
      %6071 = vmatpush.msra.mxu0 0.0
      %6072 = vmatpush.msra.mxu0 0.0
      %6073 = vmatpush.msra.mxu0 0.0
      %6074 = vmatpush.msra.mxu0 0.0
      %6075 = vmatpush.msra.mxu0 0.0
      %6076 = vmatpush.msra.mxu0 0.0
      %6077 = vmatpush.msra.mxu0 0.0
      %6078 = vmatpush.msra.mxu0 0.0
      %6079 = vmatpush.msra.mxu0 0.0
      %6080 = vmatpush.msra.mxu0 0.0
      %6081 = vmatpush.msra.mxu0 0.0
      %6082 = vmatpush.msra.mxu0 0.0
      %6083 = vmatpush.msra.mxu0 0.0
      %6084 = vmatpush.msra.mxu0 %v6019
      %6085 = vmatmul.f32.gmra.mxu0 %v6047
      %v6086 = vpop.f32.mrf.mxu0
      %v6087 = vadd.f32 0.0, %v6086
      %6088 = vdwg.mxu0
      %6089 = vmatpush.msra.mxu0 0.0
      %6090 = vmatpush.msra.mxu0 0.0
      %6091 = vmatpush.msra.mxu0 0.0
      %6092 = vmatpush.msra.mxu0 0.0
      %6093 = vmatpush.msra.mxu0 0.0
      %6094 = vmatpush.msra.mxu0 0.0
      %6095 = vmatpush.msra.mxu0 0.0
      %6096 = vmatpush.msra.mxu0 0.0
      %6097 = vmatpush.msra.mxu0 0.0
      %6098 = vmatpush.msra.mxu0 0.0
      %6099 = vmatpush.msra.mxu0 0.0
      %6100 = vmatpush.msra.mxu0 0.0
      %6101 = vmatpush.msra.mxu0 0.0
      %6102 = vmatpush.msra.mxu0 0.0
      %6103 = vmatpush.msra.mxu0 0.0
      %6104 = vmatpush.msra.mxu0 %v6020
      %6105 = vmatmul.f32.gmra.mxu0 %v6047
      %v6106 = vpop.f32.mrf.mxu0
      %v6107 = vadd.f32 0.0, %v6106
      %6108 = vdwg.mxu0
      %6109 = vmatpush.msra.mxu0 0.0
      %6110 = vmatpush.msra.mxu0 0.0
      %6111 = vmatpush.msra.mxu0 0.0
      %6112 = vmatpush.msra.mxu0 0.0
      %6113 = vmatpush.msra.mxu0 0.0
      %6114 = vmatpush.msra.mxu0 0.0
      %6115 = vmatpush.msra.mxu0 0.0
      %6116 = vmatpush.msra.mxu0 0.0
      %6117 = vmatpush.msra.mxu0 0.0
      %6118 = vmatpush.msra.mxu0 0.0
      %6119 = vmatpush.msra.mxu0 0.0
      %6120 = vmatpush.msra.mxu0 0.0
      %6121 = vmatpush.msra.mxu0 0.0
      %6122 = vmatpush.msra.mxu0 0.0
      %6123 = vmatpush.msra.mxu0 0.0
      %6124 = vmatpush.msra.mxu0 %v6021
      %6125 = vmatmul.f32.gmra.mxu0 %v6047
      %v6126 = vpop.f32.mrf.mxu0
      %v6127 = vadd.f32 0.0, %v6126
      %6128 = vdwg.mxu0
      %6129 = vmatpush.msra.mxu0 0.0
      %6130 = vmatpush.msra.mxu0 0.0
      %6131 = vmatpush.msra.mxu0 0.0
      %6132 = vmatpush.msra.mxu0 0.0
      %6133 = vmatpush.msra.mxu0 0.0
      %6134 = vmatpush.msra.mxu0 0.0
      %6135 = vmatpush.msra.mxu0 0.0
      %6136 = vmatpush.msra.mxu0 0.0
      %6137 = vmatpush.msra.mxu0 0.0
      %6138 = vmatpush.msra.mxu0 0.0
      %6139 = vmatpush.msra.mxu0 0.0
      %6140 = vmatpush.msra.mxu0 0.0
      %6141 = vmatpush.msra.mxu0 0.0
      %6142 = vmatpush.msra.mxu0 0.0
      %6143 = vmatpush.msra.mxu0 0.0
      %6144 = vmatpush.msra.mxu0 %v6022
      %6145 = vmatmul.f32.gmra.mxu0 %v6047
      %v6146 = vpop.f32.mrf.mxu0
      %v6147 = vadd.f32 0.0, %v6146
      %6148 = vdwg.mxu0
      %6149 = vmatpush.msra.mxu0 0.0
      %6150 = vmatpush.msra.mxu0 0.0
      %6151 = vmatpush.msra.mxu0 0.0
      %6152 = vmatpush.msra.mxu0 0.0
      %6153 = vmatpush.msra.mxu0 0.0
      %6154 = vmatpush.msra.mxu0 0.0
      %6155 = vmatpush.msra.mxu0 0.0
      %6156 = vmatpush.msra.mxu0 0.0
      %6157 = vmatpush.msra.mxu0 0.0
      %6158 = vmatpush.msra.mxu0 0.0
      %6159 = vmatpush.msra.mxu0 0.0
      %6160 = vmatpush.msra.mxu0 0.0
      %6161 = vmatpush.msra.mxu0 0.0
      %6162 = vmatpush.msra.mxu0 0.0
      %6163 = vmatpush.msra.mxu0 0.0
      %6164 = vmatpush.msra.mxu0 %v6023
      %6165 = vmatmul.f32.gmra.mxu0 %v6047
      %v6166 = vpop.f32.mrf.mxu0
      %v6167 = vadd.f32 0.0, %v6166
      %6168 = vdwg.mxu0
      %6169 = vmatpush.msra.mxu0 0.0
      %6170 = vmatpush.msra.mxu0 0.0
      %6171 = vmatpush.msra.mxu0 0.0
      %6172 = vmatpush.msra.mxu0 0.0
      %6173 = vmatpush.msra.mxu0 0.0
      %6174 = vmatpush.msra.mxu0 0.0
      %6175 = vmatpush.msra.mxu0 0.0
      %6176 = vmatpush.msra.mxu0 0.0
      %6177 = vmatpush.msra.mxu0 0.0
      %6178 = vmatpush.msra.mxu0 0.0
      %6179 = vmatpush.msra.mxu0 0.0
      %6180 = vmatpush.msra.mxu0 0.0
      %6181 = vmatpush.msra.mxu0 0.0
      %6182 = vmatpush.msra.mxu0 0.0
      %6183 = vmatpush.msra.mxu0 0.0
      %6184 = vmatpush.msra.mxu0 %v6024
      %6185 = vmatmul.f32.gmra.mxu0 %v6047
      %v6186 = vpop.f32.mrf.mxu0
      %v6187 = vadd.f32 0.0, %v6186
      %6188 = vdwg.mxu0
      %6189 = vmatpush.msra.mxu0 0.0
      %6190 = vmatpush.msra.mxu0 0.0
      %6191 = vmatpush.msra.mxu0 0.0
      %6192 = vmatpush.msra.mxu0 0.0
      %6193 = vmatpush.msra.mxu0 0.0
      %6194 = vmatpush.msra.mxu0 0.0
      %6195 = vmatpush.msra.mxu0 0.0
      %6196 = vmatpush.msra.mxu0 0.0
      %6197 = vmatpush.msra.mxu0 0.0
      %6198 = vmatpush.msra.mxu0 0.0
      %6199 = vmatpush.msra.mxu0 0.0
      %6200 = vmatpush.msra.mxu0 0.0
      %6201 = vmatpush.msra.mxu0 0.0
      %6202 = vmatpush.msra.mxu0 0.0
      %6203 = vmatpush.msra.mxu0 0.0
      %6204 = vmatpush.msra.mxu0 %v6025
      %6205 = vmatmul.f32.gmra.mxu0 %v6047
      %v6206 = vpop.f32.mrf.mxu0
      %v6207 = vadd.f32 0.0, %v6206
      %6208 = vdwg.mxu0
      %6209 = vmatpush.msra.mxu0 0.0
      %6210 = vmatpush.msra.mxu0 0.0
      %6211 = vmatpush.msra.mxu0 0.0
      %6212 = vmatpush.msra.mxu0 0.0
      %6213 = vmatpush.msra.mxu0 0.0
      %6214 = vmatpush.msra.mxu0 0.0
      %6215 = vmatpush.msra.mxu0 0.0
      %6216 = vmatpush.msra.mxu0 0.0
      %6217 = vmatpush.msra.mxu0 0.0
      %6218 = vmatpush.msra.mxu0 0.0
      %6219 = vmatpush.msra.mxu0 0.0
      %6220 = vmatpush.msra.mxu0 0.0
      %6221 = vmatpush.msra.mxu0 0.0
      %6222 = vmatpush.msra.mxu0 0.0
      %6223 = vmatpush.msra.mxu0 0.0
      %6224 = vmatpush.msra.mxu0 %v6026
      %6225 = vmatmul.f32.gmra.mxu0 %v6047
      %v6226 = vpop.f32.mrf.mxu0
      %v6227 = vadd.f32 0.0, %v6226
      %6228 = vdwg.mxu0
      %6229 = vmatpush.msra.mxu0 0.0
      %6230 = vmatpush.msra.mxu0 0.0
      %6231 = vmatpush.msra.mxu0 0.0
      %6232 = vmatpush.msra.mxu0 0.0
      %6233 = vmatpush.msra.mxu0 0.0
      %6234 = vmatpush.msra.mxu0 0.0
      %6235 = vmatpush.msra.mxu0 0.0
      %6236 = vmatpush.msra.mxu0 0.0
      %6237 = vmatpush.msra.mxu0 0.0
      %6238 = vmatpush.msra.mxu0 0.0
      %6239 = vmatpush.msra.mxu0 0.0
      %6240 = vmatpush.msra.mxu0 0.0
      %6241 = vmatpush.msra.mxu0 0.0
      %6242 = vmatpush.msra.mxu0 0.0
      %6243 = vmatpush.msra.mxu0 0.0
      %6244 = vmatpush.msra.mxu0 %v6027
      %6245 = vmatmul.f32.gmra.mxu0 %v6047
      %v6246 = vpop.f32.mrf.mxu0
      %v6247 = vadd.f32 0.0, %v6246
      %6248 = vdwg.mxu0
      %6249 = vmatpush.msra.mxu0 0.0
      %6250 = vmatpush.msra.mxu0 0.0
      %6251 = vmatpush.msra.mxu0 0.0
      %6252 = vmatpush.msra.mxu0 0.0
      %6253 = vmatpush.msra.mxu0 0.0
      %6254 = vmatpush.msra.mxu0 0.0
      %6255 = vmatpush.msra.mxu0 0.0
      %6256 = vmatpush.msra.mxu0 0.0
      %6257 = vmatpush.msra.mxu0 0.0
      %6258 = vmatpush.msra.mxu0 0.0
      %6259 = vmatpush.msra.mxu0 0.0
      %6260 = vmatpush.msra.mxu0 0.0
      %6261 = vmatpush.msra.mxu0 0.0
      %6262 = vmatpush.msra.mxu0 0.0
      %6263 = vmatpush.msra.mxu0 0.0
      %6264 = vmatpush.msra.mxu0 %v6028
      %6265 = vmatmul.f32.gmra.mxu0 %v6047
      %v6266 = vpop.f32.mrf.mxu0
      %v6267 = vadd.f32 0.0, %v6266
      %6268 = vdwg.mxu0
      %6269 = vmatpush.msra.mxu0 0.0
      %6270 = vmatpush.msra.mxu0 0.0
      %6271 = vmatpush.msra.mxu0 0.0
      %6272 = vmatpush.msra.mxu0 0.0
      %6273 = vmatpush.msra.mxu0 0.0
      %6274 = vmatpush.msra.mxu0 0.0
      %6275 = vmatpush.msra.mxu0 0.0
      %6276 = vmatpush.msra.mxu0 0.0
      %6277 = vmatpush.msra.mxu0 0.0
      %6278 = vmatpush.msra.mxu0 0.0
      %6279 = vmatpush.msra.mxu0 0.0
      %6280 = vmatpush.msra.mxu0 0.0
      %6281 = vmatpush.msra.mxu0 0.0
      %6282 = vmatpush.msra.mxu0 0.0
      %6283 = vmatpush.msra.mxu0 0.0
      %6284 = vmatpush.msra.mxu0 %v6029
      %6285 = vmatmul.f32.gmra.mxu0 %v6047
      %v6286 = vpop.f32.mrf.mxu0
      %v6287 = vadd.f32 0.0, %v6286
      %6288 = vdwg.mxu0
      %6289 = vmatpush.msra.mxu0 0.0
      %6290 = vmatpush.msra.mxu0 0.0
      %6291 = vmatpush.msra.mxu0 0.0
      %6292 = vmatpush.msra.mxu0 0.0
      %6293 = vmatpush.msra.mxu0 0.0
      %6294 = vmatpush.msra.mxu0 0.0
      %6295 = vmatpush.msra.mxu0 0.0
      %6296 = vmatpush.msra.mxu0 0.0
      %6297 = vmatpush.msra.mxu0 0.0
      %6298 = vmatpush.msra.mxu0 0.0
      %6299 = vmatpush.msra.mxu0 0.0
      %6300 = vmatpush.msra.mxu0 0.0
      %6301 = vmatpush.msra.mxu0 0.0
      %6302 = vmatpush.msra.mxu0 0.0
      %6303 = vmatpush.msra.mxu0 0.0
      %6304 = vmatpush.msra.mxu0 %v6030
      %6305 = vmatmul.f32.gmra.mxu0 %v6047
      %v6306 = vpop.f32.mrf.mxu0
      %v6307 = vadd.f32 0.0, %v6306
      %6308 = vdwg.mxu0
      %6309 = vmatpush.msra.mxu0 0.0
      %6310 = vmatpush.msra.mxu0 0.0
      %6311 = vmatpush.msra.mxu0 0.0
      %6312 = vmatpush.msra.mxu0 0.0
      %6313 = vmatpush.msra.mxu0 0.0
      %6314 = vmatpush.msra.mxu0 0.0
      %6315 = vmatpush.msra.mxu0 0.0
      %6316 = vmatpush.msra.mxu0 0.0
      %6317 = vmatpush.msra.mxu0 0.0
      %6318 = vmatpush.msra.mxu0 0.0
      %6319 = vmatpush.msra.mxu0 0.0
      %6320 = vmatpush.msra.mxu0 0.0
      %6321 = vmatpush.msra.mxu0 0.0
      %6322 = vmatpush.msra.mxu0 0.0
      %6323 = vmatpush.msra.mxu0 0.0
      %6324 = vmatpush.msra.mxu0 %v6031
      %6325 = vmatmul.f32.gmra.mxu0 %v6047
      %v6326 = vpop.f32.mrf.mxu0
      %v6327 = vadd.f32 0.0, %v6326
      %6328 = vdwg.mxu0
      %v6329 = vadd.f32 %v5972, %v6067
      %v6330 = vadd.f32 %v5973, %v6087
      %v6331 = vadd.f32 %v5974, %v6107
      %v6332 = vadd.f32 %v5975, %v6127
      %v6333 = vadd.f32 %v5976, %v6147
      %v6334 = vadd.f32 %v5977, %v6167
      %v6335 = vadd.f32 %v5978, %v6187
      %v6336 = vadd.f32 %v5979, %v6207
      %v6337 = vadd.f32 %v5980, %v6227
      %v6338 = vadd.f32 %v5981, %v6247
      %v6339 = vadd.f32 %v5982, %v6267
      %v6340 = vadd.f32 %v5983, %v6287
      %v6341 = vadd.f32 %v5984, %v6307
      %v6342 = vadd.f32 %v5985, %v6327
      %s6343 = scalar_lea.vmem %s3, 48
      %v6344 = vld [vmem:[%s6343] sm:$0xff]
      %6345 = vrot.lane.b32.xlu0 %v4263, 40
      %v6346 = vpop.permute.xlu0 %6345
      %6347 = vrot.lane.b32.xlu0 %v4264, 40
      %v6348 = vpop.permute.xlu0 %6347
      %6349 = vrot.lane.b32.xlu0 %v4265, 40
      %v6350 = vpop.permute.xlu0 %6349
      %6351 = vrot.lane.b32.xlu0 %v4266, 40
      %v6352 = vpop.permute.xlu0 %6351
      %6353 = vrot.lane.b32.xlu0 %v4267, 40
      %v6354 = vpop.permute.xlu0 %6353
      %6355 = vrot.lane.b32.xlu0 %v4268, 40
      %v6356 = vpop.permute.xlu0 %6355
      %6357 = vrot.lane.b32.xlu0 %v4269, 40
      %v6358 = vpop.permute.xlu0 %6357
      %6359 = vrot.lane.b32.xlu0 %v4270, 40
      %v6360 = vpop.permute.xlu0 %6359
      %6361 = vrot.lane.b32.xlu0 %v4271, 40
      %v6362 = vpop.permute.xlu0 %6361
      %6363 = vrot.lane.b32.xlu0 %v4272, 40
      %v6364 = vpop.permute.xlu0 %6363
      %6365 = vrot.lane.b32.xlu0 %v4273, 40
      %v6366 = vpop.permute.xlu0 %6365
      %6367 = vrot.lane.b32.xlu0 %v4274, 40
      %v6368 = vpop.permute.xlu0 %6367
      %6369 = vrot.lane.b32.xlu0 %v4275, 40
      %v6370 = vpop.permute.xlu0 %6369
      %6371 = vrot.lane.b32.xlu0 %v4276, 40
      %v6372 = vpop.permute.xlu0 %6371
      %6373 = vrot.lane.b32.xlu0 %v4277, 40
      %v6374 = vpop.permute.xlu0 %6373
      %v6375 = vsel %vm3028, %v6346, %v6348
      %v6376 = vsel %vm3028, %v6348, %v6350
      %v6377 = vsel %vm3028, %v6350, %v6352
      %v6378 = vsel %vm3028, %v6352, %v6354
      %v6379 = vsel %vm3028, %v6354, %v6356
      %v6380 = vsel %vm3028, %v6356, %v6358
      %v6381 = vsel %vm3028, %v6358, %v6360
      %v6382 = vsel %vm3028, %v6360, %v6362
      %v6383 = vsel %vm3028, %v6362, %v6364
      %v6384 = vsel %vm3028, %v6364, %v6366
      %v6385 = vsel %vm3028, %v6366, %v6368
      %v6386 = vsel %vm3028, %v6368, %v6370
      %v6387 = vsel %vm3028, %v6370, %v6372
      %v6388 = vsel %vm3028, %v6372, %v6374
      %v6404 = vsel %vm4350, %v6344, 0
      %6406 = vmatpush.msra.mxu0 0.0
      %6407 = vmatpush.msra.mxu0 0.0
      %6408 = vmatpush.msra.mxu0 0.0
      %6409 = vmatpush.msra.mxu0 0.0
      %6410 = vmatpush.msra.mxu0 0.0
      %6411 = vmatpush.msra.mxu0 0.0
      %6412 = vmatpush.msra.mxu0 0.0
      %6413 = vmatpush.msra.mxu0 0.0
      %6414 = vmatpush.msra.mxu0 0.0
      %6415 = vmatpush.msra.mxu0 0.0
      %6416 = vmatpush.msra.mxu0 0.0
      %6417 = vmatpush.msra.mxu0 0.0
      %6418 = vmatpush.msra.mxu0 0.0
      %6419 = vmatpush.msra.mxu0 0.0
      %6420 = vmatpush.msra.mxu0 0.0
      %6421 = vmatpush.msra.mxu0 %v6375
      %6422 = vmatmul.f32.gmra.mxu0 %v6404
      %v6423 = vpop.f32.mrf.mxu0
      %v6424 = vadd.f32 0.0, %v6423
      %6425 = vdwg.mxu0
      %6426 = vmatpush.msra.mxu0 0.0
      %6427 = vmatpush.msra.mxu0 0.0
      %6428 = vmatpush.msra.mxu0 0.0
      %6429 = vmatpush.msra.mxu0 0.0
      %6430 = vmatpush.msra.mxu0 0.0
      %6431 = vmatpush.msra.mxu0 0.0
      %6432 = vmatpush.msra.mxu0 0.0
      %6433 = vmatpush.msra.mxu0 0.0
      %6434 = vmatpush.msra.mxu0 0.0
      %6435 = vmatpush.msra.mxu0 0.0
      %6436 = vmatpush.msra.mxu0 0.0
      %6437 = vmatpush.msra.mxu0 0.0
      %6438 = vmatpush.msra.mxu0 0.0
      %6439 = vmatpush.msra.mxu0 0.0
      %6440 = vmatpush.msra.mxu0 0.0
      %6441 = vmatpush.msra.mxu0 %v6376
      %6442 = vmatmul.f32.gmra.mxu0 %v6404
      %v6443 = vpop.f32.mrf.mxu0
      %v6444 = vadd.f32 0.0, %v6443
      %6445 = vdwg.mxu0
      %6446 = vmatpush.msra.mxu0 0.0
      %6447 = vmatpush.msra.mxu0 0.0
      %6448 = vmatpush.msra.mxu0 0.0
      %6449 = vmatpush.msra.mxu0 0.0
      %6450 = vmatpush.msra.mxu0 0.0
      %6451 = vmatpush.msra.mxu0 0.0
      %6452 = vmatpush.msra.mxu0 0.0
      %6453 = vmatpush.msra.mxu0 0.0
      %6454 = vmatpush.msra.mxu0 0.0
      %6455 = vmatpush.msra.mxu0 0.0
      %6456 = vmatpush.msra.mxu0 0.0
      %6457 = vmatpush.msra.mxu0 0.0
      %6458 = vmatpush.msra.mxu0 0.0
      %6459 = vmatpush.msra.mxu0 0.0
      %6460 = vmatpush.msra.mxu0 0.0
      %6461 = vmatpush.msra.mxu0 %v6377
      %6462 = vmatmul.f32.gmra.mxu0 %v6404
      %v6463 = vpop.f32.mrf.mxu0
      %v6464 = vadd.f32 0.0, %v6463
      %6465 = vdwg.mxu0
      %6466 = vmatpush.msra.mxu0 0.0
      %6467 = vmatpush.msra.mxu0 0.0
      %6468 = vmatpush.msra.mxu0 0.0
      %6469 = vmatpush.msra.mxu0 0.0
      %6470 = vmatpush.msra.mxu0 0.0
      %6471 = vmatpush.msra.mxu0 0.0
      %6472 = vmatpush.msra.mxu0 0.0
      %6473 = vmatpush.msra.mxu0 0.0
      %6474 = vmatpush.msra.mxu0 0.0
      %6475 = vmatpush.msra.mxu0 0.0
      %6476 = vmatpush.msra.mxu0 0.0
      %6477 = vmatpush.msra.mxu0 0.0
      %6478 = vmatpush.msra.mxu0 0.0
      %6479 = vmatpush.msra.mxu0 0.0
      %6480 = vmatpush.msra.mxu0 0.0
      %6481 = vmatpush.msra.mxu0 %v6378
      %6482 = vmatmul.f32.gmra.mxu0 %v6404
      %v6483 = vpop.f32.mrf.mxu0
      %v6484 = vadd.f32 0.0, %v6483
      %6485 = vdwg.mxu0
      %6486 = vmatpush.msra.mxu0 0.0
      %6487 = vmatpush.msra.mxu0 0.0
      %6488 = vmatpush.msra.mxu0 0.0
      %6489 = vmatpush.msra.mxu0 0.0
      %6490 = vmatpush.msra.mxu0 0.0
      %6491 = vmatpush.msra.mxu0 0.0
      %6492 = vmatpush.msra.mxu0 0.0
      %6493 = vmatpush.msra.mxu0 0.0
      %6494 = vmatpush.msra.mxu0 0.0
      %6495 = vmatpush.msra.mxu0 0.0
      %6496 = vmatpush.msra.mxu0 0.0
      %6497 = vmatpush.msra.mxu0 0.0
      %6498 = vmatpush.msra.mxu0 0.0
      %6499 = vmatpush.msra.mxu0 0.0
      %6500 = vmatpush.msra.mxu0 0.0
      %6501 = vmatpush.msra.mxu0 %v6379
      %6502 = vmatmul.f32.gmra.mxu0 %v6404
      %v6503 = vpop.f32.mrf.mxu0
      %v6504 = vadd.f32 0.0, %v6503
      %6505 = vdwg.mxu0
      %6506 = vmatpush.msra.mxu0 0.0
      %6507 = vmatpush.msra.mxu0 0.0
      %6508 = vmatpush.msra.mxu0 0.0
      %6509 = vmatpush.msra.mxu0 0.0
      %6510 = vmatpush.msra.mxu0 0.0
      %6511 = vmatpush.msra.mxu0 0.0
      %6512 = vmatpush.msra.mxu0 0.0
      %6513 = vmatpush.msra.mxu0 0.0
      %6514 = vmatpush.msra.mxu0 0.0
      %6515 = vmatpush.msra.mxu0 0.0
      %6516 = vmatpush.msra.mxu0 0.0
      %6517 = vmatpush.msra.mxu0 0.0
      %6518 = vmatpush.msra.mxu0 0.0
      %6519 = vmatpush.msra.mxu0 0.0
      %6520 = vmatpush.msra.mxu0 0.0
      %6521 = vmatpush.msra.mxu0 %v6380
      %6522 = vmatmul.f32.gmra.mxu0 %v6404
      %v6523 = vpop.f32.mrf.mxu0
      %v6524 = vadd.f32 0.0, %v6523
      %6525 = vdwg.mxu0
      %6526 = vmatpush.msra.mxu0 0.0
      %6527 = vmatpush.msra.mxu0 0.0
      %6528 = vmatpush.msra.mxu0 0.0
      %6529 = vmatpush.msra.mxu0 0.0
      %6530 = vmatpush.msra.mxu0 0.0
      %6531 = vmatpush.msra.mxu0 0.0
      %6532 = vmatpush.msra.mxu0 0.0
      %6533 = vmatpush.msra.mxu0 0.0
      %6534 = vmatpush.msra.mxu0 0.0
      %6535 = vmatpush.msra.mxu0 0.0
      %6536 = vmatpush.msra.mxu0 0.0
      %6537 = vmatpush.msra.mxu0 0.0
      %6538 = vmatpush.msra.mxu0 0.0
      %6539 = vmatpush.msra.mxu0 0.0
      %6540 = vmatpush.msra.mxu0 0.0
      %6541 = vmatpush.msra.mxu0 %v6381
      %6542 = vmatmul.f32.gmra.mxu0 %v6404
      %v6543 = vpop.f32.mrf.mxu0
      %v6544 = vadd.f32 0.0, %v6543
      %6545 = vdwg.mxu0
      %6546 = vmatpush.msra.mxu0 0.0
      %6547 = vmatpush.msra.mxu0 0.0
      %6548 = vmatpush.msra.mxu0 0.0
      %6549 = vmatpush.msra.mxu0 0.0
      %6550 = vmatpush.msra.mxu0 0.0
      %6551 = vmatpush.msra.mxu0 0.0
      %6552 = vmatpush.msra.mxu0 0.0
      %6553 = vmatpush.msra.mxu0 0.0
      %6554 = vmatpush.msra.mxu0 0.0
      %6555 = vmatpush.msra.mxu0 0.0
      %6556 = vmatpush.msra.mxu0 0.0
      %6557 = vmatpush.msra.mxu0 0.0
      %6558 = vmatpush.msra.mxu0 0.0
      %6559 = vmatpush.msra.mxu0 0.0
      %6560 = vmatpush.msra.mxu0 0.0
      %6561 = vmatpush.msra.mxu0 %v6382
      %6562 = vmatmul.f32.gmra.mxu0 %v6404
      %v6563 = vpop.f32.mrf.mxu0
      %v6564 = vadd.f32 0.0, %v6563
      %6565 = vdwg.mxu0
      %6566 = vmatpush.msra.mxu0 0.0
      %6567 = vmatpush.msra.mxu0 0.0
      %6568 = vmatpush.msra.mxu0 0.0
      %6569 = vmatpush.msra.mxu0 0.0
      %6570 = vmatpush.msra.mxu0 0.0
      %6571 = vmatpush.msra.mxu0 0.0
      %6572 = vmatpush.msra.mxu0 0.0
      %6573 = vmatpush.msra.mxu0 0.0
      %6574 = vmatpush.msra.mxu0 0.0
      %6575 = vmatpush.msra.mxu0 0.0
      %6576 = vmatpush.msra.mxu0 0.0
      %6577 = vmatpush.msra.mxu0 0.0
      %6578 = vmatpush.msra.mxu0 0.0
      %6579 = vmatpush.msra.mxu0 0.0
      %6580 = vmatpush.msra.mxu0 0.0
      %6581 = vmatpush.msra.mxu0 %v6383
      %6582 = vmatmul.f32.gmra.mxu0 %v6404
      %v6583 = vpop.f32.mrf.mxu0
      %v6584 = vadd.f32 0.0, %v6583
      %6585 = vdwg.mxu0
      %6586 = vmatpush.msra.mxu0 0.0
      %6587 = vmatpush.msra.mxu0 0.0
      %6588 = vmatpush.msra.mxu0 0.0
      %6589 = vmatpush.msra.mxu0 0.0
      %6590 = vmatpush.msra.mxu0 0.0
      %6591 = vmatpush.msra.mxu0 0.0
      %6592 = vmatpush.msra.mxu0 0.0
      %6593 = vmatpush.msra.mxu0 0.0
      %6594 = vmatpush.msra.mxu0 0.0
      %6595 = vmatpush.msra.mxu0 0.0
      %6596 = vmatpush.msra.mxu0 0.0
      %6597 = vmatpush.msra.mxu0 0.0
      %6598 = vmatpush.msra.mxu0 0.0
      %6599 = vmatpush.msra.mxu0 0.0
      %6600 = vmatpush.msra.mxu0 0.0
      %6601 = vmatpush.msra.mxu0 %v6384
      %6602 = vmatmul.f32.gmra.mxu0 %v6404
      %v6603 = vpop.f32.mrf.mxu0
      %v6604 = vadd.f32 0.0, %v6603
      %6605 = vdwg.mxu0
      %6606 = vmatpush.msra.mxu0 0.0
      %6607 = vmatpush.msra.mxu0 0.0
      %6608 = vmatpush.msra.mxu0 0.0
      %6609 = vmatpush.msra.mxu0 0.0
      %6610 = vmatpush.msra.mxu0 0.0
      %6611 = vmatpush.msra.mxu0 0.0
      %6612 = vmatpush.msra.mxu0 0.0
      %6613 = vmatpush.msra.mxu0 0.0
      %6614 = vmatpush.msra.mxu0 0.0
      %6615 = vmatpush.msra.mxu0 0.0
      %6616 = vmatpush.msra.mxu0 0.0
      %6617 = vmatpush.msra.mxu0 0.0
      %6618 = vmatpush.msra.mxu0 0.0
      %6619 = vmatpush.msra.mxu0 0.0
      %6620 = vmatpush.msra.mxu0 0.0
      %6621 = vmatpush.msra.mxu0 %v6385
      %6622 = vmatmul.f32.gmra.mxu0 %v6404
      %v6623 = vpop.f32.mrf.mxu0
      %v6624 = vadd.f32 0.0, %v6623
      %6625 = vdwg.mxu0
      %6626 = vmatpush.msra.mxu0 0.0
      %6627 = vmatpush.msra.mxu0 0.0
      %6628 = vmatpush.msra.mxu0 0.0
      %6629 = vmatpush.msra.mxu0 0.0
      %6630 = vmatpush.msra.mxu0 0.0
      %6631 = vmatpush.msra.mxu0 0.0
      %6632 = vmatpush.msra.mxu0 0.0
      %6633 = vmatpush.msra.mxu0 0.0
      %6634 = vmatpush.msra.mxu0 0.0
      %6635 = vmatpush.msra.mxu0 0.0
      %6636 = vmatpush.msra.mxu0 0.0
      %6637 = vmatpush.msra.mxu0 0.0
      %6638 = vmatpush.msra.mxu0 0.0
      %6639 = vmatpush.msra.mxu0 0.0
      %6640 = vmatpush.msra.mxu0 0.0
      %6641 = vmatpush.msra.mxu0 %v6386
      %6642 = vmatmul.f32.gmra.mxu0 %v6404
      %v6643 = vpop.f32.mrf.mxu0
      %v6644 = vadd.f32 0.0, %v6643
      %6645 = vdwg.mxu0
      %6646 = vmatpush.msra.mxu0 0.0
      %6647 = vmatpush.msra.mxu0 0.0
      %6648 = vmatpush.msra.mxu0 0.0
      %6649 = vmatpush.msra.mxu0 0.0
      %6650 = vmatpush.msra.mxu0 0.0
      %6651 = vmatpush.msra.mxu0 0.0
      %6652 = vmatpush.msra.mxu0 0.0
      %6653 = vmatpush.msra.mxu0 0.0
      %6654 = vmatpush.msra.mxu0 0.0
      %6655 = vmatpush.msra.mxu0 0.0
      %6656 = vmatpush.msra.mxu0 0.0
      %6657 = vmatpush.msra.mxu0 0.0
      %6658 = vmatpush.msra.mxu0 0.0
      %6659 = vmatpush.msra.mxu0 0.0
      %6660 = vmatpush.msra.mxu0 0.0
      %6661 = vmatpush.msra.mxu0 %v6387
      %6662 = vmatmul.f32.gmra.mxu0 %v6404
      %v6663 = vpop.f32.mrf.mxu0
      %v6664 = vadd.f32 0.0, %v6663
      %6665 = vdwg.mxu0
      %6666 = vmatpush.msra.mxu0 0.0
      %6667 = vmatpush.msra.mxu0 0.0
      %6668 = vmatpush.msra.mxu0 0.0
      %6669 = vmatpush.msra.mxu0 0.0
      %6670 = vmatpush.msra.mxu0 0.0
      %6671 = vmatpush.msra.mxu0 0.0
      %6672 = vmatpush.msra.mxu0 0.0
      %6673 = vmatpush.msra.mxu0 0.0
      %6674 = vmatpush.msra.mxu0 0.0
      %6675 = vmatpush.msra.mxu0 0.0
      %6676 = vmatpush.msra.mxu0 0.0
      %6677 = vmatpush.msra.mxu0 0.0
      %6678 = vmatpush.msra.mxu0 0.0
      %6679 = vmatpush.msra.mxu0 0.0
      %6680 = vmatpush.msra.mxu0 0.0
      %6681 = vmatpush.msra.mxu0 %v6388
      %6682 = vmatmul.f32.gmra.mxu0 %v6404
      %v6683 = vpop.f32.mrf.mxu0
      %v6684 = vadd.f32 0.0, %v6683
      %6685 = vdwg.mxu0
      %v6686 = vadd.f32 %v6329, %v6424
      %v6687 = vadd.f32 %v6330, %v6444
      %v6688 = vadd.f32 %v6331, %v6464
      %v6689 = vadd.f32 %v6332, %v6484
      %v6690 = vadd.f32 %v6333, %v6504
      %v6691 = vadd.f32 %v6334, %v6524
      %v6692 = vadd.f32 %v6335, %v6544
      %v6693 = vadd.f32 %v6336, %v6564
      %v6694 = vadd.f32 %v6337, %v6584
      %v6695 = vadd.f32 %v6338, %v6604
      %v6696 = vadd.f32 %v6339, %v6624
      %v6697 = vadd.f32 %v6340, %v6644
      %v6698 = vadd.f32 %v6341, %v6664
      %v6699 = vadd.f32 %v6342, %v6684
      %s6700 = scalar_lea.vmem %s3, 56
      %v6701 = vld [vmem:[%s6700] sm:$0xff]
      %6702 = vrot.lane.b32.xlu0 %v4263, 39
      %v6703 = vpop.permute.xlu0 %6702
      %6704 = vrot.lane.b32.xlu0 %v4264, 39
      %v6705 = vpop.permute.xlu0 %6704
      %6706 = vrot.lane.b32.xlu0 %v4265, 39
      %v6707 = vpop.permute.xlu0 %6706
      %6708 = vrot.lane.b32.xlu0 %v4266, 39
      %v6709 = vpop.permute.xlu0 %6708
      %6710 = vrot.lane.b32.xlu0 %v4267, 39
      %v6711 = vpop.permute.xlu0 %6710
      %6712 = vrot.lane.b32.xlu0 %v4268, 39
      %v6713 = vpop.permute.xlu0 %6712
      %6714 = vrot.lane.b32.xlu0 %v4269, 39
      %v6715 = vpop.permute.xlu0 %6714
      %6716 = vrot.lane.b32.xlu0 %v4270, 39
      %v6717 = vpop.permute.xlu0 %6716
      %6718 = vrot.lane.b32.xlu0 %v4271, 39
      %v6719 = vpop.permute.xlu0 %6718
      %6720 = vrot.lane.b32.xlu0 %v4272, 39
      %v6721 = vpop.permute.xlu0 %6720
      %6722 = vrot.lane.b32.xlu0 %v4273, 39
      %v6723 = vpop.permute.xlu0 %6722
      %6724 = vrot.lane.b32.xlu0 %v4274, 39
      %v6725 = vpop.permute.xlu0 %6724
      %6726 = vrot.lane.b32.xlu0 %v4275, 39
      %v6727 = vpop.permute.xlu0 %6726
      %6728 = vrot.lane.b32.xlu0 %v4276, 39
      %v6729 = vpop.permute.xlu0 %6728
      %6730 = vrot.lane.b32.xlu0 %v4277, 39
      %v6731 = vpop.permute.xlu0 %6730
      %v6732 = vsel %vm3453, %v6703, %v6705
      %v6733 = vsel %vm3453, %v6705, %v6707
      %v6734 = vsel %vm3453, %v6707, %v6709
      %v6735 = vsel %vm3453, %v6709, %v6711
      %v6736 = vsel %vm3453, %v6711, %v6713
      %v6737 = vsel %vm3453, %v6713, %v6715
      %v6738 = vsel %vm3453, %v6715, %v6717
      %v6739 = vsel %vm3453, %v6717, %v6719
      %v6740 = vsel %vm3453, %v6719, %v6721
      %v6741 = vsel %vm3453, %v6721, %v6723
      %v6742 = vsel %vm3453, %v6723, %v6725
      %v6743 = vsel %vm3453, %v6725, %v6727
      %v6744 = vsel %vm3453, %v6727, %v6729
      %v6745 = vsel %vm3453, %v6729, %v6731
      %v6761 = vsel %vm4350, %v6701, 0
      %6763 = vmatpush.msra.mxu0 0.0
      %6764 = vmatpush.msra.mxu0 0.0
      %6765 = vmatpush.msra.mxu0 0.0
      %6766 = vmatpush.msra.mxu0 0.0
      %6767 = vmatpush.msra.mxu0 0.0
      %6768 = vmatpush.msra.mxu0 0.0
      %6769 = vmatpush.msra.mxu0 0.0
      %6770 = vmatpush.msra.mxu0 0.0
      %6771 = vmatpush.msra.mxu0 0.0
      %6772 = vmatpush.msra.mxu0 0.0
      %6773 = vmatpush.msra.mxu0 0.0
      %6774 = vmatpush.msra.mxu0 0.0
      %6775 = vmatpush.msra.mxu0 0.0
      %6776 = vmatpush.msra.mxu0 0.0
      %6777 = vmatpush.msra.mxu0 0.0
      %6778 = vmatpush.msra.mxu0 %v6732
      %6779 = vmatmul.f32.gmra.mxu0 %v6761
      %v6780 = vpop.f32.mrf.mxu0
      %v6781 = vadd.f32 0.0, %v6780
      %6782 = vdwg.mxu0
      %6783 = vmatpush.msra.mxu0 0.0
      %6784 = vmatpush.msra.mxu0 0.0
      %6785 = vmatpush.msra.mxu0 0.0
      %6786 = vmatpush.msra.mxu0 0.0
      %6787 = vmatpush.msra.mxu0 0.0
      %6788 = vmatpush.msra.mxu0 0.0
      %6789 = vmatpush.msra.mxu0 0.0
      %6790 = vmatpush.msra.mxu0 0.0
      %6791 = vmatpush.msra.mxu0 0.0
      %6792 = vmatpush.msra.mxu0 0.0
      %6793 = vmatpush.msra.mxu0 0.0
      %6794 = vmatpush.msra.mxu0 0.0
      %6795 = vmatpush.msra.mxu0 0.0
      %6796 = vmatpush.msra.mxu0 0.0
      %6797 = vmatpush.msra.mxu0 0.0
      %6798 = vmatpush.msra.mxu0 %v6733
      %6799 = vmatmul.f32.gmra.mxu0 %v6761
      %v6800 = vpop.f32.mrf.mxu0
      %v6801 = vadd.f32 0.0, %v6800
      %6802 = vdwg.mxu0
      %6803 = vmatpush.msra.mxu0 0.0
      %6804 = vmatpush.msra.mxu0 0.0
      %6805 = vmatpush.msra.mxu0 0.0
      %6806 = vmatpush.msra.mxu0 0.0
      %6807 = vmatpush.msra.mxu0 0.0
      %6808 = vmatpush.msra.mxu0 0.0
      %6809 = vmatpush.msra.mxu0 0.0
      %6810 = vmatpush.msra.mxu0 0.0
      %6811 = vmatpush.msra.mxu0 0.0
      %6812 = vmatpush.msra.mxu0 0.0
      %6813 = vmatpush.msra.mxu0 0.0
      %6814 = vmatpush.msra.mxu0 0.0
      %6815 = vmatpush.msra.mxu0 0.0
      %6816 = vmatpush.msra.mxu0 0.0
      %6817 = vmatpush.msra.mxu0 0.0
      %6818 = vmatpush.msra.mxu0 %v6734
      %6819 = vmatmul.f32.gmra.mxu0 %v6761
      %v6820 = vpop.f32.mrf.mxu0
      %v6821 = vadd.f32 0.0, %v6820
      %6822 = vdwg.mxu0
      %6823 = vmatpush.msra.mxu0 0.0
      %6824 = vmatpush.msra.mxu0 0.0
      %6825 = vmatpush.msra.mxu0 0.0
      %6826 = vmatpush.msra.mxu0 0.0
      %6827 = vmatpush.msra.mxu0 0.0
      %6828 = vmatpush.msra.mxu0 0.0
      %6829 = vmatpush.msra.mxu0 0.0
      %6830 = vmatpush.msra.mxu0 0.0
      %6831 = vmatpush.msra.mxu0 0.0
      %6832 = vmatpush.msra.mxu0 0.0
      %6833 = vmatpush.msra.mxu0 0.0
      %6834 = vmatpush.msra.mxu0 0.0
      %6835 = vmatpush.msra.mxu0 0.0
      %6836 = vmatpush.msra.mxu0 0.0
      %6837 = vmatpush.msra.mxu0 0.0
      %6838 = vmatpush.msra.mxu0 %v6735
      %6839 = vmatmul.f32.gmra.mxu0 %v6761
      %v6840 = vpop.f32.mrf.mxu0
      %v6841 = vadd.f32 0.0, %v6840
      %6842 = vdwg.mxu0
      %6843 = vmatpush.msra.mxu0 0.0
      %6844 = vmatpush.msra.mxu0 0.0
      %6845 = vmatpush.msra.mxu0 0.0
      %6846 = vmatpush.msra.mxu0 0.0
      %6847 = vmatpush.msra.mxu0 0.0
      %6848 = vmatpush.msra.mxu0 0.0
      %6849 = vmatpush.msra.mxu0 0.0
      %6850 = vmatpush.msra.mxu0 0.0
      %6851 = vmatpush.msra.mxu0 0.0
      %6852 = vmatpush.msra.mxu0 0.0
      %6853 = vmatpush.msra.mxu0 0.0
      %6854 = vmatpush.msra.mxu0 0.0
      %6855 = vmatpush.msra.mxu0 0.0
      %6856 = vmatpush.msra.mxu0 0.0
      %6857 = vmatpush.msra.mxu0 0.0
      %6858 = vmatpush.msra.mxu0 %v6736
      %6859 = vmatmul.f32.gmra.mxu0 %v6761
      %v6860 = vpop.f32.mrf.mxu0
      %v6861 = vadd.f32 0.0, %v6860
      %6862 = vdwg.mxu0
      %6863 = vmatpush.msra.mxu0 0.0
      %6864 = vmatpush.msra.mxu0 0.0
      %6865 = vmatpush.msra.mxu0 0.0
      %6866 = vmatpush.msra.mxu0 0.0
      %6867 = vmatpush.msra.mxu0 0.0
      %6868 = vmatpush.msra.mxu0 0.0
      %6869 = vmatpush.msra.mxu0 0.0
      %6870 = vmatpush.msra.mxu0 0.0
      %6871 = vmatpush.msra.mxu0 0.0
      %6872 = vmatpush.msra.mxu0 0.0
      %6873 = vmatpush.msra.mxu0 0.0
      %6874 = vmatpush.msra.mxu0 0.0
      %6875 = vmatpush.msra.mxu0 0.0
      %6876 = vmatpush.msra.mxu0 0.0
      %6877 = vmatpush.msra.mxu0 0.0
      %6878 = vmatpush.msra.mxu0 %v6737
      %6879 = vmatmul.f32.gmra.mxu0 %v6761
      %v6880 = vpop.f32.mrf.mxu0
      %v6881 = vadd.f32 0.0, %v6880
      %6882 = vdwg.mxu0
      %6883 = vmatpush.msra.mxu0 0.0
      %6884 = vmatpush.msra.mxu0 0.0
      %6885 = vmatpush.msra.mxu0 0.0
      %6886 = vmatpush.msra.mxu0 0.0
      %6887 = vmatpush.msra.mxu0 0.0
      %6888 = vmatpush.msra.mxu0 0.0
      %6889 = vmatpush.msra.mxu0 0.0
      %6890 = vmatpush.msra.mxu0 0.0
      %6891 = vmatpush.msra.mxu0 0.0
      %6892 = vmatpush.msra.mxu0 0.0
      %6893 = vmatpush.msra.mxu0 0.0
      %6894 = vmatpush.msra.mxu0 0.0
      %6895 = vmatpush.msra.mxu0 0.0
      %6896 = vmatpush.msra.mxu0 0.0
      %6897 = vmatpush.msra.mxu0 0.0
      %6898 = vmatpush.msra.mxu0 %v6738
      %6899 = vmatmul.f32.gmra.mxu0 %v6761
      %v6900 = vpop.f32.mrf.mxu0
      %v6901 = vadd.f32 0.0, %v6900
      %6902 = vdwg.mxu0
      %6903 = vmatpush.msra.mxu0 0.0
      %6904 = vmatpush.msra.mxu0 0.0
      %6905 = vmatpush.msra.mxu0 0.0
      %6906 = vmatpush.msra.mxu0 0.0
      %6907 = vmatpush.msra.mxu0 0.0
      %6908 = vmatpush.msra.mxu0 0.0
      %6909 = vmatpush.msra.mxu0 0.0
      %6910 = vmatpush.msra.mxu0 0.0
      %6911 = vmatpush.msra.mxu0 0.0
      %6912 = vmatpush.msra.mxu0 0.0
      %6913 = vmatpush.msra.mxu0 0.0
      %6914 = vmatpush.msra.mxu0 0.0
      %6915 = vmatpush.msra.mxu0 0.0
      %6916 = vmatpush.msra.mxu0 0.0
      %6917 = vmatpush.msra.mxu0 0.0
      %6918 = vmatpush.msra.mxu0 %v6739
      %6919 = vmatmul.f32.gmra.mxu0 %v6761
      %v6920 = vpop.f32.mrf.mxu0
      %v6921 = vadd.f32 0.0, %v6920
      %6922 = vdwg.mxu0
      %6923 = vmatpush.msra.mxu0 0.0
      %6924 = vmatpush.msra.mxu0 0.0
      %6925 = vmatpush.msra.mxu0 0.0
      %6926 = vmatpush.msra.mxu0 0.0
      %6927 = vmatpush.msra.mxu0 0.0
      %6928 = vmatpush.msra.mxu0 0.0
      %6929 = vmatpush.msra.mxu0 0.0
      %6930 = vmatpush.msra.mxu0 0.0
      %6931 = vmatpush.msra.mxu0 0.0
      %6932 = vmatpush.msra.mxu0 0.0
      %6933 = vmatpush.msra.mxu0 0.0
      %6934 = vmatpush.msra.mxu0 0.0
      %6935 = vmatpush.msra.mxu0 0.0
      %6936 = vmatpush.msra.mxu0 0.0
      %6937 = vmatpush.msra.mxu0 0.0
      %6938 = vmatpush.msra.mxu0 %v6740
      %6939 = vmatmul.f32.gmra.mxu0 %v6761
      %v6940 = vpop.f32.mrf.mxu0
      %v6941 = vadd.f32 0.0, %v6940
      %6942 = vdwg.mxu0
      %6943 = vmatpush.msra.mxu0 0.0
      %6944 = vmatpush.msra.mxu0 0.0
      %6945 = vmatpush.msra.mxu0 0.0
      %6946 = vmatpush.msra.mxu0 0.0
      %6947 = vmatpush.msra.mxu0 0.0
      %6948 = vmatpush.msra.mxu0 0.0
      %6949 = vmatpush.msra.mxu0 0.0
      %6950 = vmatpush.msra.mxu0 0.0
      %6951 = vmatpush.msra.mxu0 0.0
      %6952 = vmatpush.msra.mxu0 0.0
      %6953 = vmatpush.msra.mxu0 0.0
      %6954 = vmatpush.msra.mxu0 0.0
      %6955 = vmatpush.msra.mxu0 0.0
      %6956 = vmatpush.msra.mxu0 0.0
      %6957 = vmatpush.msra.mxu0 0.0
      %6958 = vmatpush.msra.mxu0 %v6741
      %6959 = vmatmul.f32.gmra.mxu0 %v6761
      %v6960 = vpop.f32.mrf.mxu0
      %v6961 = vadd.f32 0.0, %v6960
      %6962 = vdwg.mxu0
      %6963 = vmatpush.msra.mxu0 0.0
      %6964 = vmatpush.msra.mxu0 0.0
      %6965 = vmatpush.msra.mxu0 0.0
      %6966 = vmatpush.msra.mxu0 0.0
      %6967 = vmatpush.msra.mxu0 0.0
      %6968 = vmatpush.msra.mxu0 0.0
      %6969 = vmatpush.msra.mxu0 0.0
      %6970 = vmatpush.msra.mxu0 0.0
      %6971 = vmatpush.msra.mxu0 0.0
      %6972 = vmatpush.msra.mxu0 0.0
      %6973 = vmatpush.msra.mxu0 0.0
      %6974 = vmatpush.msra.mxu0 0.0
      %6975 = vmatpush.msra.mxu0 0.0
      %6976 = vmatpush.msra.mxu0 0.0
      %6977 = vmatpush.msra.mxu0 0.0
      %6978 = vmatpush.msra.mxu0 %v6742
      %6979 = vmatmul.f32.gmra.mxu0 %v6761
      %v6980 = vpop.f32.mrf.mxu0
      %v6981 = vadd.f32 0.0, %v6980
      %6982 = vdwg.mxu0
      %6983 = vmatpush.msra.mxu0 0.0
      %6984 = vmatpush.msra.mxu0 0.0
      %6985 = vmatpush.msra.mxu0 0.0
      %6986 = vmatpush.msra.mxu0 0.0
      %6987 = vmatpush.msra.mxu0 0.0
      %6988 = vmatpush.msra.mxu0 0.0
      %6989 = vmatpush.msra.mxu0 0.0
      %6990 = vmatpush.msra.mxu0 0.0
      %6991 = vmatpush.msra.mxu0 0.0
      %6992 = vmatpush.msra.mxu0 0.0
      %6993 = vmatpush.msra.mxu0 0.0
      %6994 = vmatpush.msra.mxu0 0.0
      %6995 = vmatpush.msra.mxu0 0.0
      %6996 = vmatpush.msra.mxu0 0.0
      %6997 = vmatpush.msra.mxu0 0.0
      %6998 = vmatpush.msra.mxu0 %v6743
      %6999 = vmatmul.f32.gmra.mxu0 %v6761
      %v7000 = vpop.f32.mrf.mxu0
      %v7001 = vadd.f32 0.0, %v7000
      %7002 = vdwg.mxu0
      %7003 = vmatpush.msra.mxu0 0.0
      %7004 = vmatpush.msra.mxu0 0.0
      %7005 = vmatpush.msra.mxu0 0.0
      %7006 = vmatpush.msra.mxu0 0.0
      %7007 = vmatpush.msra.mxu0 0.0
      %7008 = vmatpush.msra.mxu0 0.0
      %7009 = vmatpush.msra.mxu0 0.0
      %7010 = vmatpush.msra.mxu0 0.0
      %7011 = vmatpush.msra.mxu0 0.0
      %7012 = vmatpush.msra.mxu0 0.0
      %7013 = vmatpush.msra.mxu0 0.0
      %7014 = vmatpush.msra.mxu0 0.0
      %7015 = vmatpush.msra.mxu0 0.0
      %7016 = vmatpush.msra.mxu0 0.0
      %7017 = vmatpush.msra.mxu0 0.0
      %7018 = vmatpush.msra.mxu0 %v6744
      %7019 = vmatmul.f32.gmra.mxu0 %v6761
      %v7020 = vpop.f32.mrf.mxu0
      %v7021 = vadd.f32 0.0, %v7020
      %7022 = vdwg.mxu0
      %7023 = vmatpush.msra.mxu0 0.0
      %7024 = vmatpush.msra.mxu0 0.0
      %7025 = vmatpush.msra.mxu0 0.0
      %7026 = vmatpush.msra.mxu0 0.0
      %7027 = vmatpush.msra.mxu0 0.0
      %7028 = vmatpush.msra.mxu0 0.0
      %7029 = vmatpush.msra.mxu0 0.0
      %7030 = vmatpush.msra.mxu0 0.0
      %7031 = vmatpush.msra.mxu0 0.0
      %7032 = vmatpush.msra.mxu0 0.0
      %7033 = vmatpush.msra.mxu0 0.0
      %7034 = vmatpush.msra.mxu0 0.0
      %7035 = vmatpush.msra.mxu0 0.0
      %7036 = vmatpush.msra.mxu0 0.0
      %7037 = vmatpush.msra.mxu0 0.0
      %7038 = vmatpush.msra.mxu0 %v6745
      %7039 = vmatmul.f32.gmra.mxu0 %v6761
      %v7040 = vpop.f32.mrf.mxu0
      %v7041 = vadd.f32 0.0, %v7040
      %7042 = vdwg.mxu0
      %v7043 = vadd.f32 %v6686, %v6781
      %v7044 = vadd.f32 %v6687, %v6801
      %v7045 = vadd.f32 %v6688, %v6821
      %v7046 = vadd.f32 %v6689, %v6841
      %v7047 = vadd.f32 %v6690, %v6861
      %v7048 = vadd.f32 %v6691, %v6881
      %v7049 = vadd.f32 %v6692, %v6901
      %v7050 = vadd.f32 %v6693, %v6921
      %v7051 = vadd.f32 %v6694, %v6941
      %v7052 = vadd.f32 %v6695, %v6961
      %v7053 = vadd.f32 %v6696, %v6981
      %v7054 = vadd.f32 %v6697, %v7001
      %v7055 = vadd.f32 %v6698, %v7021
      %v7056 = vadd.f32 %v6699, %v7041
      %s7057 = scalar_lea.vmem %s3, 64
      %v7058 = vld [vmem:[%s7057] sm:$0xff]
      %7059 = vrot.lane.b32.xlu0 %v4263, 38
      %v7060 = vpop.permute.xlu0 %7059
      %7061 = vrot.lane.b32.xlu0 %v4264, 38
      %v7062 = vpop.permute.xlu0 %7061
      %7063 = vrot.lane.b32.xlu0 %v4265, 38
      %v7064 = vpop.permute.xlu0 %7063
      %7065 = vrot.lane.b32.xlu0 %v4266, 38
      %v7066 = vpop.permute.xlu0 %7065
      %7067 = vrot.lane.b32.xlu0 %v4267, 38
      %v7068 = vpop.permute.xlu0 %7067
      %7069 = vrot.lane.b32.xlu0 %v4268, 38
      %v7070 = vpop.permute.xlu0 %7069
      %7071 = vrot.lane.b32.xlu0 %v4269, 38
      %v7072 = vpop.permute.xlu0 %7071
      %7073 = vrot.lane.b32.xlu0 %v4270, 38
      %v7074 = vpop.permute.xlu0 %7073
      %7075 = vrot.lane.b32.xlu0 %v4271, 38
      %v7076 = vpop.permute.xlu0 %7075
      %7077 = vrot.lane.b32.xlu0 %v4272, 38
      %v7078 = vpop.permute.xlu0 %7077
      %7079 = vrot.lane.b32.xlu0 %v4273, 38
      %v7080 = vpop.permute.xlu0 %7079
      %7081 = vrot.lane.b32.xlu0 %v4274, 38
      %v7082 = vpop.permute.xlu0 %7081
      %7083 = vrot.lane.b32.xlu0 %v4275, 38
      %v7084 = vpop.permute.xlu0 %7083
      %7085 = vrot.lane.b32.xlu0 %v4276, 38
      %v7086 = vpop.permute.xlu0 %7085
      %7087 = vrot.lane.b32.xlu0 %v4277, 38
      %v7088 = vpop.permute.xlu0 %7087
      %v7089 = vsel %vm3878, %v7060, %v7062
      %v7090 = vsel %vm3878, %v7062, %v7064
      %v7091 = vsel %vm3878, %v7064, %v7066
      %v7092 = vsel %vm3878, %v7066, %v7068
      %v7093 = vsel %vm3878, %v7068, %v7070
      %v7094 = vsel %vm3878, %v7070, %v7072
      %v7095 = vsel %vm3878, %v7072, %v7074
      %v7096 = vsel %vm3878, %v7074, %v7076
      %v7097 = vsel %vm3878, %v7076, %v7078
      %v7098 = vsel %vm3878, %v7078, %v7080
      %v7099 = vsel %vm3878, %v7080, %v7082
      %v7100 = vsel %vm3878, %v7082, %v7084
      %v7101 = vsel %vm3878, %v7084, %v7086
      %v7102 = vsel %vm3878, %v7086, %v7088
      %v7118 = vsel %vm4350, %v7058, 0
      %7120 = vmatpush.msra.mxu0 0.0
      %7121 = vmatpush.msra.mxu0 0.0
      %7122 = vmatpush.msra.mxu0 0.0
      %7123 = vmatpush.msra.mxu0 0.0
      %7124 = vmatpush.msra.mxu0 0.0
      %7125 = vmatpush.msra.mxu0 0.0
      %7126 = vmatpush.msra.mxu0 0.0
      %7127 = vmatpush.msra.mxu0 0.0
      %7128 = vmatpush.msra.mxu0 0.0
      %7129 = vmatpush.msra.mxu0 0.0
      %7130 = vmatpush.msra.mxu0 0.0
      %7131 = vmatpush.msra.mxu0 0.0
      %7132 = vmatpush.msra.mxu0 0.0
      %7133 = vmatpush.msra.mxu0 0.0
      %7134 = vmatpush.msra.mxu0 0.0
      %7135 = vmatpush.msra.mxu0 %v7089
      %7136 = vmatmul.f32.gmra.mxu0 %v7118
      %v7137 = vpop.f32.mrf.mxu0
      %v7138 = vadd.f32 0.0, %v7137
      %7139 = vdwg.mxu0
      %7140 = vmatpush.msra.mxu0 0.0
      %7141 = vmatpush.msra.mxu0 0.0
      %7142 = vmatpush.msra.mxu0 0.0
      %7143 = vmatpush.msra.mxu0 0.0
      %7144 = vmatpush.msra.mxu0 0.0
      %7145 = vmatpush.msra.mxu0 0.0
      %7146 = vmatpush.msra.mxu0 0.0
      %7147 = vmatpush.msra.mxu0 0.0
      %7148 = vmatpush.msra.mxu0 0.0
      %7149 = vmatpush.msra.mxu0 0.0
      %7150 = vmatpush.msra.mxu0 0.0
      %7151 = vmatpush.msra.mxu0 0.0
      %7152 = vmatpush.msra.mxu0 0.0
      %7153 = vmatpush.msra.mxu0 0.0
      %7154 = vmatpush.msra.mxu0 0.0
      %7155 = vmatpush.msra.mxu0 %v7090
      %7156 = vmatmul.f32.gmra.mxu0 %v7118
      %v7157 = vpop.f32.mrf.mxu0
      %v7158 = vadd.f32 0.0, %v7157
      %7159 = vdwg.mxu0
      %7160 = vmatpush.msra.mxu0 0.0
      %7161 = vmatpush.msra.mxu0 0.0
      %7162 = vmatpush.msra.mxu0 0.0
      %7163 = vmatpush.msra.mxu0 0.0
      %7164 = vmatpush.msra.mxu0 0.0
      %7165 = vmatpush.msra.mxu0 0.0
      %7166 = vmatpush.msra.mxu0 0.0
      %7167 = vmatpush.msra.mxu0 0.0
      %7168 = vmatpush.msra.mxu0 0.0
      %7169 = vmatpush.msra.mxu0 0.0
      %7170 = vmatpush.msra.mxu0 0.0
      %7171 = vmatpush.msra.mxu0 0.0
      %7172 = vmatpush.msra.mxu0 0.0
      %7173 = vmatpush.msra.mxu0 0.0
      %7174 = vmatpush.msra.mxu0 0.0
      %7175 = vmatpush.msra.mxu0 %v7091
      %7176 = vmatmul.f32.gmra.mxu0 %v7118
      %v7177 = vpop.f32.mrf.mxu0
      %v7178 = vadd.f32 0.0, %v7177
      %7179 = vdwg.mxu0
      %7180 = vmatpush.msra.mxu0 0.0
      %7181 = vmatpush.msra.mxu0 0.0
      %7182 = vmatpush.msra.mxu0 0.0
      %7183 = vmatpush.msra.mxu0 0.0
      %7184 = vmatpush.msra.mxu0 0.0
      %7185 = vmatpush.msra.mxu0 0.0
      %7186 = vmatpush.msra.mxu0 0.0
      %7187 = vmatpush.msra.mxu0 0.0
      %7188 = vmatpush.msra.mxu0 0.0
      %7189 = vmatpush.msra.mxu0 0.0
      %7190 = vmatpush.msra.mxu0 0.0
      %7191 = vmatpush.msra.mxu0 0.0
      %7192 = vmatpush.msra.mxu0 0.0
      %7193 = vmatpush.msra.mxu0 0.0
      %7194 = vmatpush.msra.mxu0 0.0
      %7195 = vmatpush.msra.mxu0 %v7092
      %7196 = vmatmul.f32.gmra.mxu0 %v7118
      %v7197 = vpop.f32.mrf.mxu0
      %v7198 = vadd.f32 0.0, %v7197
      %7199 = vdwg.mxu0
      %7200 = vmatpush.msra.mxu0 0.0
      %7201 = vmatpush.msra.mxu0 0.0
      %7202 = vmatpush.msra.mxu0 0.0
      %7203 = vmatpush.msra.mxu0 0.0
      %7204 = vmatpush.msra.mxu0 0.0
      %7205 = vmatpush.msra.mxu0 0.0
      %7206 = vmatpush.msra.mxu0 0.0
      %7207 = vmatpush.msra.mxu0 0.0
      %7208 = vmatpush.msra.mxu0 0.0
      %7209 = vmatpush.msra.mxu0 0.0
      %7210 = vmatpush.msra.mxu0 0.0
      %7211 = vmatpush.msra.mxu0 0.0
      %7212 = vmatpush.msra.mxu0 0.0
      %7213 = vmatpush.msra.mxu0 0.0
      %7214 = vmatpush.msra.mxu0 0.0
      %7215 = vmatpush.msra.mxu0 %v7093
      %7216 = vmatmul.f32.gmra.mxu0 %v7118
      %v7217 = vpop.f32.mrf.mxu0
      %v7218 = vadd.f32 0.0, %v7217
      %7219 = vdwg.mxu0
      %7220 = vmatpush.msra.mxu0 0.0
      %7221 = vmatpush.msra.mxu0 0.0
      %7222 = vmatpush.msra.mxu0 0.0
      %7223 = vmatpush.msra.mxu0 0.0
      %7224 = vmatpush.msra.mxu0 0.0
      %7225 = vmatpush.msra.mxu0 0.0
      %7226 = vmatpush.msra.mxu0 0.0
      %7227 = vmatpush.msra.mxu0 0.0
      %7228 = vmatpush.msra.mxu0 0.0
      %7229 = vmatpush.msra.mxu0 0.0
      %7230 = vmatpush.msra.mxu0 0.0
      %7231 = vmatpush.msra.mxu0 0.0
      %7232 = vmatpush.msra.mxu0 0.0
      %7233 = vmatpush.msra.mxu0 0.0
      %7234 = vmatpush.msra.mxu0 0.0
      %7235 = vmatpush.msra.mxu0 %v7094
      %7236 = vmatmul.f32.gmra.mxu0 %v7118
      %v7237 = vpop.f32.mrf.mxu0
      %v7238 = vadd.f32 0.0, %v7237
      %7239 = vdwg.mxu0
      %7240 = vmatpush.msra.mxu0 0.0
      %7241 = vmatpush.msra.mxu0 0.0
      %7242 = vmatpush.msra.mxu0 0.0
      %7243 = vmatpush.msra.mxu0 0.0
      %7244 = vmatpush.msra.mxu0 0.0
      %7245 = vmatpush.msra.mxu0 0.0
      %7246 = vmatpush.msra.mxu0 0.0
      %7247 = vmatpush.msra.mxu0 0.0
      %7248 = vmatpush.msra.mxu0 0.0
      %7249 = vmatpush.msra.mxu0 0.0
      %7250 = vmatpush.msra.mxu0 0.0
      %7251 = vmatpush.msra.mxu0 0.0
      %7252 = vmatpush.msra.mxu0 0.0
      %7253 = vmatpush.msra.mxu0 0.0
      %7254 = vmatpush.msra.mxu0 0.0
      %7255 = vmatpush.msra.mxu0 %v7095
      %7256 = vmatmul.f32.gmra.mxu0 %v7118
      %v7257 = vpop.f32.mrf.mxu0
      %v7258 = vadd.f32 0.0, %v7257
      %7259 = vdwg.mxu0
      %7260 = vmatpush.msra.mxu0 0.0
      %7261 = vmatpush.msra.mxu0 0.0
      %7262 = vmatpush.msra.mxu0 0.0
      %7263 = vmatpush.msra.mxu0 0.0
      %7264 = vmatpush.msra.mxu0 0.0
      %7265 = vmatpush.msra.mxu0 0.0
      %7266 = vmatpush.msra.mxu0 0.0
      %7267 = vmatpush.msra.mxu0 0.0
      %7268 = vmatpush.msra.mxu0 0.0
      %7269 = vmatpush.msra.mxu0 0.0
      %7270 = vmatpush.msra.mxu0 0.0
      %7271 = vmatpush.msra.mxu0 0.0
      %7272 = vmatpush.msra.mxu0 0.0
      %7273 = vmatpush.msra.mxu0 0.0
      %7274 = vmatpush.msra.mxu0 0.0
      %7275 = vmatpush.msra.mxu0 %v7096
      %7276 = vmatmul.f32.gmra.mxu0 %v7118
      %v7277 = vpop.f32.mrf.mxu0
      %v7278 = vadd.f32 0.0, %v7277
      %7279 = vdwg.mxu0
      %7280 = vmatpush.msra.mxu0 0.0
      %7281 = vmatpush.msra.mxu0 0.0
      %7282 = vmatpush.msra.mxu0 0.0
      %7283 = vmatpush.msra.mxu0 0.0
      %7284 = vmatpush.msra.mxu0 0.0
      %7285 = vmatpush.msra.mxu0 0.0
      %7286 = vmatpush.msra.mxu0 0.0
      %7287 = vmatpush.msra.mxu0 0.0
      %7288 = vmatpush.msra.mxu0 0.0
      %7289 = vmatpush.msra.mxu0 0.0
      %7290 = vmatpush.msra.mxu0 0.0
      %7291 = vmatpush.msra.mxu0 0.0
      %7292 = vmatpush.msra.mxu0 0.0
      %7293 = vmatpush.msra.mxu0 0.0
      %7294 = vmatpush.msra.mxu0 0.0
      %7295 = vmatpush.msra.mxu0 %v7097
      %7296 = vmatmul.f32.gmra.mxu0 %v7118
      %v7297 = vpop.f32.mrf.mxu0
      %v7298 = vadd.f32 0.0, %v7297
      %7299 = vdwg.mxu0
      %7300 = vmatpush.msra.mxu0 0.0
      %7301 = vmatpush.msra.mxu0 0.0
      %7302 = vmatpush.msra.mxu0 0.0
      %7303 = vmatpush.msra.mxu0 0.0
      %7304 = vmatpush.msra.mxu0 0.0
      %7305 = vmatpush.msra.mxu0 0.0
      %7306 = vmatpush.msra.mxu0 0.0
      %7307 = vmatpush.msra.mxu0 0.0
      %7308 = vmatpush.msra.mxu0 0.0
      %7309 = vmatpush.msra.mxu0 0.0
      %7310 = vmatpush.msra.mxu0 0.0
      %7311 = vmatpush.msra.mxu0 0.0
      %7312 = vmatpush.msra.mxu0 0.0
      %7313 = vmatpush.msra.mxu0 0.0
      %7314 = vmatpush.msra.mxu0 0.0
      %7315 = vmatpush.msra.mxu0 %v7098
      %7316 = vmatmul.f32.gmra.mxu0 %v7118
      %v7317 = vpop.f32.mrf.mxu0
      %v7318 = vadd.f32 0.0, %v7317
      %7319 = vdwg.mxu0
      %7320 = vmatpush.msra.mxu0 0.0
      %7321 = vmatpush.msra.mxu0 0.0
      %7322 = vmatpush.msra.mxu0 0.0
      %7323 = vmatpush.msra.mxu0 0.0
      %7324 = vmatpush.msra.mxu0 0.0
      %7325 = vmatpush.msra.mxu0 0.0
      %7326 = vmatpush.msra.mxu0 0.0
      %7327 = vmatpush.msra.mxu0 0.0
      %7328 = vmatpush.msra.mxu0 0.0
      %7329 = vmatpush.msra.mxu0 0.0
      %7330 = vmatpush.msra.mxu0 0.0
      %7331 = vmatpush.msra.mxu0 0.0
      %7332 = vmatpush.msra.mxu0 0.0
      %7333 = vmatpush.msra.mxu0 0.0
      %7334 = vmatpush.msra.mxu0 0.0
      %7335 = vmatpush.msra.mxu0 %v7099
      %7336 = vmatmul.f32.gmra.mxu0 %v7118
      %v7337 = vpop.f32.mrf.mxu0
      %v7338 = vadd.f32 0.0, %v7337
      %7339 = vdwg.mxu0
      %7340 = vmatpush.msra.mxu0 0.0
      %7341 = vmatpush.msra.mxu0 0.0
      %7342 = vmatpush.msra.mxu0 0.0
      %7343 = vmatpush.msra.mxu0 0.0
      %7344 = vmatpush.msra.mxu0 0.0
      %7345 = vmatpush.msra.mxu0 0.0
      %7346 = vmatpush.msra.mxu0 0.0
      %7347 = vmatpush.msra.mxu0 0.0
      %7348 = vmatpush.msra.mxu0 0.0
      %7349 = vmatpush.msra.mxu0 0.0
      %7350 = vmatpush.msra.mxu0 0.0
      %7351 = vmatpush.msra.mxu0 0.0
      %7352 = vmatpush.msra.mxu0 0.0
      %7353 = vmatpush.msra.mxu0 0.0
      %7354 = vmatpush.msra.mxu0 0.0
      %7355 = vmatpush.msra.mxu0 %v7100
      %7356 = vmatmul.f32.gmra.mxu0 %v7118
      %v7357 = vpop.f32.mrf.mxu0
      %v7358 = vadd.f32 0.0, %v7357
      %7359 = vdwg.mxu0
      %7360 = vmatpush.msra.mxu0 0.0
      %7361 = vmatpush.msra.mxu0 0.0
      %7362 = vmatpush.msra.mxu0 0.0
      %7363 = vmatpush.msra.mxu0 0.0
      %7364 = vmatpush.msra.mxu0 0.0
      %7365 = vmatpush.msra.mxu0 0.0
      %7366 = vmatpush.msra.mxu0 0.0
      %7367 = vmatpush.msra.mxu0 0.0
      %7368 = vmatpush.msra.mxu0 0.0
      %7369 = vmatpush.msra.mxu0 0.0
      %7370 = vmatpush.msra.mxu0 0.0
      %7371 = vmatpush.msra.mxu0 0.0
      %7372 = vmatpush.msra.mxu0 0.0
      %7373 = vmatpush.msra.mxu0 0.0
      %7374 = vmatpush.msra.mxu0 0.0
      %7375 = vmatpush.msra.mxu0 %v7101
      %7376 = vmatmul.f32.gmra.mxu0 %v7118
      %v7377 = vpop.f32.mrf.mxu0
      %v7378 = vadd.f32 0.0, %v7377
      %7379 = vdwg.mxu0
      %7380 = vmatpush.msra.mxu0 0.0
      %7381 = vmatpush.msra.mxu0 0.0
      %7382 = vmatpush.msra.mxu0 0.0
      %7383 = vmatpush.msra.mxu0 0.0
      %7384 = vmatpush.msra.mxu0 0.0
      %7385 = vmatpush.msra.mxu0 0.0
      %7386 = vmatpush.msra.mxu0 0.0
      %7387 = vmatpush.msra.mxu0 0.0
      %7388 = vmatpush.msra.mxu0 0.0
      %7389 = vmatpush.msra.mxu0 0.0
      %7390 = vmatpush.msra.mxu0 0.0
      %7391 = vmatpush.msra.mxu0 0.0
      %7392 = vmatpush.msra.mxu0 0.0
      %7393 = vmatpush.msra.mxu0 0.0
      %7394 = vmatpush.msra.mxu0 0.0
      %7395 = vmatpush.msra.mxu0 %v7102
      %7396 = vmatmul.f32.gmra.mxu0 %v7118
      %v7397 = vpop.f32.mrf.mxu0
      %v7398 = vadd.f32 0.0, %v7397
      %7399 = vdwg.mxu0
      %v7400 = vadd.f32 %v7043, %v7138
      %v7401 = vadd.f32 %v7044, %v7158
      %v7402 = vadd.f32 %v7045, %v7178
      %v7403 = vadd.f32 %v7046, %v7198
      %v7404 = vadd.f32 %v7047, %v7218
      %v7405 = vadd.f32 %v7048, %v7238
      %v7406 = vadd.f32 %v7049, %v7258
      %v7407 = vadd.f32 %v7050, %v7278
      %v7408 = vadd.f32 %v7051, %v7298
      %v7409 = vadd.f32 %v7052, %v7318
      %v7410 = vadd.f32 %v7053, %v7338
      %v7411 = vadd.f32 %v7054, %v7358
      %v7412 = vadd.f32 %v7055, %v7378
      %v7413 = vadd.f32 %v7056, %v7398
      %v7414 = vld [vmem:[%s4] sm:$0xff]
      %7416 = vset.pattern.permute.xlu0 0
      %7417 = vperm.xlu0 %7416, %v7414
      %v7418 = vpop.permute.xlu0 %7417
      %v7420 = vadd.f32 %v7400, %v7418
      %v7421 = vadd.f32 %v7401, %v7418
      %v7422 = vadd.f32 %v7402, %v7418
      %v7423 = vadd.f32 %v7403, %v7418
      %v7424 = vadd.f32 %v7404, %v7418
      %v7425 = vadd.f32 %v7405, %v7418
      %v7426 = vadd.f32 %v7406, %v7418
      %v7427 = vadd.f32 %v7407, %v7418
      %v7428 = vadd.f32 %v7408, %v7418
      %v7429 = vadd.f32 %v7409, %v7418
      %v7430 = vadd.f32 %v7410, %v7418
      %v7431 = vadd.f32 %v7411, %v7418
      %v7432 = vadd.f32 %v7412, %v7418
      %v7433 = vadd.f32 %v7413, %v7418
      %v7434 = vmax.f32 %v7420, 0.0
      %v7435 = vmax.f32 %v7421, 0.0
      %v7436 = vmax.f32 %v7422, 0.0
      %v7437 = vmax.f32 %v7423, 0.0
      %v7438 = vmax.f32 %v7424, 0.0
      %v7439 = vmax.f32 %v7425, 0.0
      %v7440 = vmax.f32 %v7426, 0.0
      %v7441 = vmax.f32 %v7427, 0.0
      %v7442 = vmax.f32 %v7428, 0.0
      %v7443 = vmax.f32 %v7429, 0.0
      %v7444 = vmax.f32 %v7430, 0.0
      %v7445 = vmax.f32 %v7431, 0.0
      %v7446 = vmax.f32 %v7432, 0.0
      %v7447 = vmax.f32 %v7433, 0.0
      %7462 = vrot.lane.b32.xlu0 %v7434, 84
      %v7463 = vpop.permute.xlu0 %7462
      %7464 = vrot.lane.b32.xlu0 %v7435, 84
      %v7465 = vpop.permute.xlu0 %7464
      %7466 = vrot.lane.b32.xlu0 %v7436, 84
      %v7467 = vpop.permute.xlu0 %7466
      %7468 = vrot.lane.b32.xlu0 %v7437, 84
      %v7469 = vpop.permute.xlu0 %7468
      %7470 = vrot.lane.b32.xlu0 %v7438, 84
      %v7471 = vpop.permute.xlu0 %7470
      %7472 = vrot.lane.b32.xlu0 %v7439, 84
      %v7473 = vpop.permute.xlu0 %7472
      %7474 = vrot.lane.b32.xlu0 %v7440, 84
      %v7475 = vpop.permute.xlu0 %7474
      %7476 = vrot.lane.b32.xlu0 %v7441, 84
      %v7477 = vpop.permute.xlu0 %7476
      %7478 = vrot.lane.b32.xlu0 %v7442, 84
      %v7479 = vpop.permute.xlu0 %7478
      %7480 = vrot.lane.b32.xlu0 %v7443, 84
      %v7481 = vpop.permute.xlu0 %7480
      %7482 = vrot.lane.b32.xlu0 %v7444, 84
      %v7483 = vpop.permute.xlu0 %7482
      %7484 = vrot.lane.b32.xlu0 %v7445, 84
      %v7485 = vpop.permute.xlu0 %7484
      %7486 = vrot.lane.b32.xlu0 %v7446, 84
      %v7487 = vpop.permute.xlu0 %7486
      %7488 = vrot.lane.b32.xlu0 %v7447, 84
      %v7489 = vpop.permute.xlu0 %7488
      %v7490 = vsel %vm1762, %v7463, %v7465
      %v7491 = vsel %vm1762, %v7465, %v7467
      %v7492 = vsel %vm1762, %v7467, %v7469
      %v7493 = vsel %vm1762, %v7469, %v7471
      %v7494 = vsel %vm1762, %v7471, %v7473
      %v7495 = vsel %vm1762, %v7473, %v7475
      %v7496 = vsel %vm1762, %v7475, %v7477
      %v7497 = vsel %vm1762, %v7477, %v7479
      %v7498 = vsel %vm1762, %v7479, %v7481
      %v7499 = vsel %vm1762, %v7481, %v7483
      %v7500 = vsel %vm1762, %v7483, %v7485
      %v7501 = vsel %vm1762, %v7485, %v7487
      %v7502 = vsel %vm1762, %v7487, %v7489
      %v7517 = vmax.f32 %v7434, %v7490
      %v7518 = vmax.f32 %v7435, %v7491
      %v7519 = vmax.f32 %v7436, %v7492
      %v7520 = vmax.f32 %v7437, %v7493
      %v7521 = vmax.f32 %v7438, %v7494
      %v7522 = vmax.f32 %v7439, %v7495
      %v7523 = vmax.f32 %v7440, %v7496
      %v7524 = vmax.f32 %v7441, %v7497
      %v7525 = vmax.f32 %v7442, %v7498
      %v7526 = vmax.f32 %v7443, %v7499
      %v7527 = vmax.f32 %v7444, %v7500
      %v7528 = vmax.f32 %v7445, %v7501
      %v7529 = vmax.f32 %v7446, %v7502
      %v7530 = vmax.f32 %v7447, %v7489
      %7545 = vrot.lane.b32.xlu0 %v7517, 127
      %v7546 = vpop.permute.xlu0 %7545
      %7547 = vrot.lane.b32.xlu0 %v7518, 127
      %v7548 = vpop.permute.xlu0 %7547
      %7549 = vrot.lane.b32.xlu0 %v7519, 127
      %v7550 = vpop.permute.xlu0 %7549
      %7551 = vrot.lane.b32.xlu0 %v7520, 127
      %v7552 = vpop.permute.xlu0 %7551
      %7553 = vrot.lane.b32.xlu0 %v7521, 127
      %v7554 = vpop.permute.xlu0 %7553
      %7555 = vrot.lane.b32.xlu0 %v7522, 127
      %v7556 = vpop.permute.xlu0 %7555
      %7557 = vrot.lane.b32.xlu0 %v7523, 127
      %v7558 = vpop.permute.xlu0 %7557
      %7559 = vrot.lane.b32.xlu0 %v7524, 127
      %v7560 = vpop.permute.xlu0 %7559
      %7561 = vrot.lane.b32.xlu0 %v7525, 127
      %v7562 = vpop.permute.xlu0 %7561
      %7563 = vrot.lane.b32.xlu0 %v7526, 127
      %v7564 = vpop.permute.xlu0 %7563
      %7565 = vrot.lane.b32.xlu0 %v7527, 127
      %v7566 = vpop.permute.xlu0 %7565
      %7567 = vrot.lane.b32.xlu0 %v7528, 127
      %v7568 = vpop.permute.xlu0 %7567
      %7569 = vrot.lane.b32.xlu0 %v7529, 127
      %v7570 = vpop.permute.xlu0 %7569
      %7571 = vrot.lane.b32.xlu0 %v7530, 127
      %v7572 = vpop.permute.xlu0 %7571
      %v7573 = vsel %vm574, %v7546, %v7548
      %v7574 = vsel %vm574, %v7548, %v7550
      %v7575 = vsel %vm574, %v7550, %v7552
      %v7576 = vsel %vm574, %v7552, %v7554
      %v7577 = vsel %vm574, %v7554, %v7556
      %v7578 = vsel %vm574, %v7556, %v7558
      %v7579 = vsel %vm574, %v7558, %v7560
      %v7580 = vsel %vm574, %v7560, %v7562
      %v7581 = vsel %vm574, %v7562, %v7564
      %v7582 = vsel %vm574, %v7564, %v7566
      %v7583 = vsel %vm574, %v7566, %v7568
      %v7584 = vsel %vm574, %v7568, %v7570
      %v7585 = vsel %vm574, %v7570, %v7572
      %v7600 = vmax.f32 %v7517, %v7573
      %v7601 = vmax.f32 %v7518, %v7574
      %v7602 = vmax.f32 %v7519, %v7575
      %v7603 = vmax.f32 %v7520, %v7576
      %v7604 = vmax.f32 %v7521, %v7577
      %v7605 = vmax.f32 %v7522, %v7578
      %v7606 = vmax.f32 %v7523, %v7579
      %v7607 = vmax.f32 %v7524, %v7580
      %v7608 = vmax.f32 %v7525, %v7581
      %v7609 = vmax.f32 %v7526, %v7582
      %v7610 = vmax.f32 %v7527, %v7583
      %v7611 = vmax.f32 %v7528, %v7584
      %v7612 = vmax.f32 %v7529, %v7585
      %v7613 = vmax.f32 %v7530, %v7572
      %v7614 = vlaneseq
      %v7615 = vshrl.u32 %v7614, 7
      %v7616 = vadd.s32 %v7615, 8
      %v7617 = vadd.s32 %v7615, 16
      %v7618 = vadd.s32 %v7615, 24
      %v7619 = vadd.s32 %v7615, 32
      %v7620 = vlaneseq
      %v7621 = vand.u32 %v7620, 127
      %v7622 = vmul.u32 %v7621, 2
      %vm7623 = vcmp.eq.s32.totalorder %v7615, %v7622
      %vm7624 = vcmp.eq.s32.totalorder %v7616, %v7622
      %vm7625 = vcmp.eq.s32.totalorder %v7617, %v7622
      %vm7626 = vcmp.eq.s32.totalorder %v7618, %v7622
      %vm7627 = vcmp.eq.s32.totalorder %v7619, %v7622
      %v7628 = vsel %vm7623, 1, 0
      %v7629 = vsel %vm7624, 1, 0
      %v7630 = vsel %vm7625, 1, 0
      %v7631 = vsel %vm7626, 1, 0
      %v7632 = vsel %vm7627, 1, 0
      %v7633 = vcvt.s32.f32 %v7628
      %v7634 = vcvt.s32.f32 %v7629
      %v7635 = vcvt.s32.f32 %v7630
      %v7636 = vcvt.s32.f32 %v7631
      %v7637 = vcvt.s32.f32 %v7632
      %v7639 = vsel %vm3453, %v7600, 0
      %vm7641 = vcmask 1046528
      %v7643 = vsel %vm7641, %v7637, 0
      %7645 = vmatpush.msra.mxu0 0.0
      %7646 = vmatpush.msra.mxu0 0.0
      %7647 = vmatpush.msra.mxu0 0.0
      %7648 = vmatpush.msra.mxu0 0.0
      %7649 = vmatpush.msra.mxu0 0.0
      %7650 = vmatpush.msra.mxu0 0.0
      %7651 = vmatpush.msra.mxu0 0.0
      %7652 = vmatpush.msra.mxu0 0.0
      %7653 = vmatpush.msra.mxu0 0.0
      %7654 = vmatpush.msra.mxu0 0.0
      %7655 = vmatpush.msra.mxu0 0.0
      %7656 = vmatpush.msra.mxu0 %v7643
      %7657 = vmatpush.msra.mxu0 %v7636
      %7658 = vmatpush.msra.mxu0 %v7635
      %7659 = vmatpush.msra.mxu0 %v7634
      %7660 = vmatpush.msra.mxu0 %v7633
      %7661 = vmatmul.f32.gmra.mxu0 %v7639
      %v7662 = vpop.f32.mrf.mxu0
      %v7663 = vadd.f32 0.0, %v7662
      %7664 = vdwg.mxu0
      %vm7665 = vcmask 162816
      %7666 = vst.msk [vmem:[#allocation2] sm:$0xff] %vm7665, %v7663
      %7667 = vrot.lane.b32.xlu0 %v7600, 40
      %v7668 = vpop.permute.xlu0 %7667
      %v7669 = vsel %vm3453, %v7668, 0
      %7671 = vmatpush.msra.mxu0 0.0
      %7672 = vmatpush.msra.mxu0 0.0
      %7673 = vmatpush.msra.mxu0 0.0
      %7674 = vmatpush.msra.mxu0 0.0
      %7675 = vmatpush.msra.mxu0 0.0
      %7676 = vmatpush.msra.mxu0 0.0
      %7677 = vmatpush.msra.mxu0 0.0
      %7678 = vmatpush.msra.mxu0 0.0
      %7679 = vmatpush.msra.mxu0 0.0
      %7680 = vmatpush.msra.mxu0 0.0
      %7681 = vmatpush.msra.mxu0 0.0
      %7682 = vmatpush.msra.mxu0 %v7643
      %7683 = vmatpush.msra.mxu0 %v7636
      %7684 = vmatpush.msra.mxu0 %v7635
      %7685 = vmatpush.msra.mxu0 %v7634
      %7686 = vmatpush.msra.mxu0 %v7633
      %7687 = vmatmul.f32.gmra.mxu0 %v7669
      %v7688 = vpop.f32.mrf.mxu0
      %v7689 = vadd.f32 0.0, %v7688
      %7690 = vdwg.mxu0
      %7692 = vrot.lane.b32.xlu0 %v7689, 20
      %v7693 = vpop.permute.xlu0 %7692
      %vm7695 = vcmask 326816
      %7696 = vst.msk [vmem:[#allocation2] sm:$0xff] %vm7695, %v7693
      %7698 = vrot.lane.b32.xlu0 %v7601, 80
      %v7699 = vpop.permute.xlu0 %7698
      %v7700 = vsel %vm3453, %v7699, 0
      %7702 = vmatpush.msra.mxu0 0.0
      %7703 = vmatpush.msra.mxu0 0.0
      %7704 = vmatpush.msra.mxu0 0.0
      %7705 = vmatpush.msra.mxu0 0.0
      %7706 = vmatpush.msra.mxu0 0.0
      %7707 = vmatpush.msra.mxu0 0.0
      %7708 = vmatpush.msra.mxu0 0.0
      %7709 = vmatpush.msra.mxu0 0.0
      %7710 = vmatpush.msra.mxu0 0.0
      %7711 = vmatpush.msra.mxu0 0.0
      %7712 = vmatpush.msra.mxu0 0.0
      %7713 = vmatpush.msra.mxu0 %v7643
      %7714 = vmatpush.msra.mxu0 %v7636
      %7715 = vmatpush.msra.mxu0 %v7635
      %7716 = vmatpush.msra.mxu0 %v7634
      %7717 = vmatpush.msra.mxu0 %v7633
      %7718 = vmatmul.f32.gmra.mxu0 %v7700
      %v7719 = vpop.f32.mrf.mxu0
      %v7720 = vadd.f32 0.0, %v7719
      %7721 = vdwg.mxu0
      %7723 = vrot.lane.b32.xlu0 %v7720, 40
      %v7724 = vpop.permute.xlu0 %7723
      %vm7726 = vcmask 490816
      %7727 = vst.msk [vmem:[#allocation2] sm:$0xff] %vm7726, %v7724
      %7729 = vrot.lane.b32.xlu0 %v7602, 120
      %v7730 = vpop.permute.xlu0 %7729
      %v7731 = vsel %vm3453, %v7730, 0
      %7733 = vmatpush.msra.mxu0 0.0
      %7734 = vmatpush.msra.mxu0 0.0
      %7735 = vmatpush.msra.mxu0 0.0
      %7736 = vmatpush.msra.mxu0 0.0
      %7737 = vmatpush.msra.mxu0 0.0
      %7738 = vmatpush.msra.mxu0 0.0
      %7739 = vmatpush.msra.mxu0 0.0
      %7740 = vmatpush.msra.mxu0 0.0
      %7741 = vmatpush.msra.mxu0 0.0
      %7742 = vmatpush.msra.mxu0 0.0
      %7743 = vmatpush.msra.mxu0 0.0
      %7744 = vmatpush.msra.mxu0 %v7643
      %7745 = vmatpush.msra.mxu0 %v7636
      %7746 = vmatpush.msra.mxu0 %v7635
      %7747 = vmatpush.msra.mxu0 %v7634
      %7748 = vmatpush.msra.mxu0 %v7633
      %7749 = vmatmul.f32.gmra.mxu0 %v7731
      %v7750 = vpop.f32.mrf.mxu0
      %v7751 = vadd.f32 0.0, %v7750
      %7752 = vdwg.mxu0
      %7754 = vrot.lane.b32.xlu0 %v7751, 60
      %v7755 = vpop.permute.xlu0 %7754
      %vm7757 = vcmask 654816
      %7758 = vst.msk [vmem:[#allocation2] sm:$0xff] %vm7757, %v7755
      %7760 = vrot.lane.b32.xlu0 %v7602, 32
      %v7761 = vpop.permute.xlu0 %7760
      %7762 = vrot.lane.b32.xlu0 %v7603, 32
      %v7763 = vpop.permute.xlu0 %7762
      %vm7764 = vcmask 261120
      %v7765 = vsel %vm7764, %v7761, %v7763
      %v7766 = vsel %vm3453, %v7765, 0
      %7768 = vmatpush.msra.mxu0 0.0
      %7769 = vmatpush.msra.mxu0 0.0
      %7770 = vmatpush.msra.mxu0 0.0
      %7771 = vmatpush.msra.mxu0 0.0
      %7772 = vmatpush.msra.mxu0 0.0
      %7773 = vmatpush.msra.mxu0 0.0
      %7774 = vmatpush.msra.mxu0 0.0
      %7775 = vmatpush.msra.mxu0 0.0
      %7776 = vmatpush.msra.mxu0 0.0
      %7777 = vmatpush.msra.mxu0 0.0
      %7778 = vmatpush.msra.mxu0 0.0
      %7779 = vmatpush.msra.mxu0 %v7643
      %7780 = vmatpush.msra.mxu0 %v7636
      %7781 = vmatpush.msra.mxu0 %v7635
      %7782 = vmatpush.msra.mxu0 %v7634
      %7783 = vmatpush.msra.mxu0 %v7633
      %7784 = vmatmul.f32.gmra.mxu0 %v7766
      %v7785 = vpop.f32.mrf.mxu0
      %v7786 = vadd.f32 0.0, %v7785
      %7787 = vdwg.mxu0
      %7789 = vrot.lane.b32.xlu0 %v7786, 80
      %v7790 = vpop.permute.xlu0 %7789
      %vm7792 = vcmask 818816
      %7793 = vst.msk [vmem:[#allocation2] sm:$0xff] %vm7792, %v7790
      %7794 = vrot.lane.b32.xlu0 %v7603, 72
      %v7795 = vpop.permute.xlu0 %7794
      %v7796 = vsel %vm3453, %v7795, 0
      %7798 = vmatpush.msra.mxu0 0.0
      %7799 = vmatpush.msra.mxu0 0.0
      %7800 = vmatpush.msra.mxu0 0.0
      %7801 = vmatpush.msra.mxu0 0.0
      %7802 = vmatpush.msra.mxu0 0.0
      %7803 = vmatpush.msra.mxu0 0.0
      %7804 = vmatpush.msra.mxu0 0.0
      %7805 = vmatpush.msra.mxu0 0.0
      %7806 = vmatpush.msra.mxu0 0.0
      %7807 = vmatpush.msra.mxu0 0.0
      %7808 = vmatpush.msra.mxu0 0.0
      %7809 = vmatpush.msra.mxu0 %v7643
      %7810 = vmatpush.msra.mxu0 %v7636
      %7811 = vmatpush.msra.mxu0 %v7635
      %7812 = vmatpush.msra.mxu0 %v7634
      %7813 = vmatpush.msra.mxu0 %v7633
      %7814 = vmatmul.f32.gmra.mxu0 %v7796
      %v7815 = vpop.f32.mrf.mxu0
      %v7816 = vadd.f32 0.0, %v7815
      %7817 = vdwg.mxu0
      %7819 = vrot.lane.b32.xlu0 %v7816, 100
      %v7820 = vpop.permute.xlu0 %7819
      %vm7822 = vcmask 982816
      %7823 = vst.msk [vmem:[#allocation2] sm:$0xff] %vm7822, %v7820
      %7825 = vrot.lane.b32.xlu0 %v7604, 112
      %v7826 = vpop.permute.xlu0 %7825
      %v7827 = vsel %vm3453, %v7826, 0
      %7829 = vmatpush.msra.mxu0 0.0
      %7830 = vmatpush.msra.mxu0 0.0
      %7831 = vmatpush.msra.mxu0 0.0
      %7832 = vmatpush.msra.mxu0 0.0
      %7833 = vmatpush.msra.mxu0 0.0
      %7834 = vmatpush.msra.mxu0 0.0
      %7835 = vmatpush.msra.mxu0 0.0
      %7836 = vmatpush.msra.mxu0 0.0
      %7837 = vmatpush.msra.mxu0 0.0
      %7838 = vmatpush.msra.mxu0 0.0
      %7839 = vmatpush.msra.mxu0 0.0
      %7840 = vmatpush.msra.mxu0 %v7643
      %7841 = vmatpush.msra.mxu0 %v7636
      %7842 = vmatpush.msra.mxu0 %v7635
      %7843 = vmatpush.msra.mxu0 %v7634
      %7844 = vmatpush.msra.mxu0 %v7633
      %7845 = vmatmul.f32.gmra.mxu0 %v7827
      %v7846 = vpop.f32.mrf.mxu0
      %v7847 = vadd.f32 0.0, %v7846
      %7848 = vdwg.mxu0
      %7850 = vrot.lane.b32.xlu0 %v7847, 120
      %v7851 = vpop.permute.xlu0 %7850
      %vm7853 = vcmask 1048512
      %7854 = vst.msk [vmem:[#allocation2] sm:$0xff] %vm7853, %v7851
      %vm7855 = vcmask 97280
      %7856 = vst.msk [vmem:[#allocation2 + $0x8] sm:$0xff] %vm7855, %v7851
      %7858 = vrot.lane.b32.xlu0 %v7604, 24
      %v7859 = vpop.permute.xlu0 %7858
      %7860 = vrot.lane.b32.xlu0 %v7605, 24
      %v7861 = vpop.permute.xlu0 %7860
      %vm7862 = vcmask 195584
      %v7863 = vsel %vm7862, %v7859, %v7861
      %v7864 = vsel %vm3453, %v7863, 0
      %7866 = vmatpush.msra.mxu0 0.0
      %7867 = vmatpush.msra.mxu0 0.0
      %7868 = vmatpush.msra.mxu0 0.0
      %7869 = vmatpush.msra.mxu0 0.0
      %7870 = vmatpush.msra.mxu0 0.0
      %7871 = vmatpush.msra.mxu0 0.0
      %7872 = vmatpush.msra.mxu0 0.0
      %7873 = vmatpush.msra.mxu0 0.0
      %7874 = vmatpush.msra.mxu0 0.0
      %7875 = vmatpush.msra.mxu0 0.0
      %7876 = vmatpush.msra.mxu0 0.0
      %7877 = vmatpush.msra.mxu0 %v7643
      %7878 = vmatpush.msra.mxu0 %v7636
      %7879 = vmatpush.msra.mxu0 %v7635
      %7880 = vmatpush.msra.mxu0 %v7634
      %7881 = vmatpush.msra.mxu0 %v7633
      %7882 = vmatmul.f32.gmra.mxu0 %v7864
      %v7883 = vpop.f32.mrf.mxu0
      %v7884 = vadd.f32 0.0, %v7883
      %7885 = vdwg.mxu0
      %7887 = vrot.lane.b32.xlu0 %v7884, 12
      %v7888 = vpop.permute.xlu0 %7887
      %vm7890 = vcmask 261216
      %7891 = vst.msk [vmem:[#allocation2 + $0x8] sm:$0xff] %vm7890, %v7888
      %7892 = vrot.lane.b32.xlu0 %v7605, 64
      %v7893 = vpop.permute.xlu0 %7892
      %v7894 = vsel %vm3453, %v7893, 0
      %7896 = vmatpush.msra.mxu0 0.0
      %7897 = vmatpush.msra.mxu0 0.0
      %7898 = vmatpush.msra.mxu0 0.0
      %7899 = vmatpush.msra.mxu0 0.0
      %7900 = vmatpush.msra.mxu0 0.0
      %7901 = vmatpush.msra.mxu0 0.0
      %7902 = vmatpush.msra.mxu0 0.0
      %7903 = vmatpush.msra.mxu0 0.0
      %7904 = vmatpush.msra.mxu0 0.0
      %7905 = vmatpush.msra.mxu0 0.0
      %7906 = vmatpush.msra.mxu0 0.0
      %7907 = vmatpush.msra.mxu0 %v7643
      %7908 = vmatpush.msra.mxu0 %v7636
      %7909 = vmatpush.msra.mxu0 %v7635
      %7910 = vmatpush.msra.mxu0 %v7634
      %7911 = vmatpush.msra.mxu0 %v7633
      %7912 = vmatmul.f32.gmra.mxu0 %v7894
      %v7913 = vpop.f32.mrf.mxu0
      %v7914 = vadd.f32 0.0, %v7913
      %7915 = vdwg.mxu0
      %7917 = vrot.lane.b32.xlu0 %v7914, 32
      %v7918 = vpop.permute.xlu0 %7917
      %vm7920 = vcmask 425216
      %7921 = vst.msk [vmem:[#allocation2 + $0x8] sm:$0xff] %vm7920, %v7918
      %7923 = vrot.lane.b32.xlu0 %v7606, 104
      %v7924 = vpop.permute.xlu0 %7923
      %v7925 = vsel %vm3453, %v7924, 0
      %7927 = vmatpush.msra.mxu0 0.0
      %7928 = vmatpush.msra.mxu0 0.0
      %7929 = vmatpush.msra.mxu0 0.0
      %7930 = vmatpush.msra.mxu0 0.0
      %7931 = vmatpush.msra.mxu0 0.0
      %7932 = vmatpush.msra.mxu0 0.0
      %7933 = vmatpush.msra.mxu0 0.0
      %7934 = vmatpush.msra.mxu0 0.0
      %7935 = vmatpush.msra.mxu0 0.0
      %7936 = vmatpush.msra.mxu0 0.0
      %7937 = vmatpush.msra.mxu0 0.0
      %7938 = vmatpush.msra.mxu0 %v7643
      %7939 = vmatpush.msra.mxu0 %v7636
      %7940 = vmatpush.msra.mxu0 %v7635
      %7941 = vmatpush.msra.mxu0 %v7634
      %7942 = vmatpush.msra.mxu0 %v7633
      %7943 = vmatmul.f32.gmra.mxu0 %v7925
      %v7944 = vpop.f32.mrf.mxu0
      %v7945 = vadd.f32 0.0, %v7944
      %7946 = vdwg.mxu0
      %7948 = vrot.lane.b32.xlu0 %v7945, 52
      %v7949 = vpop.permute.xlu0 %7948
      %vm7951 = vcmask 589216
      %7952 = vst.msk [vmem:[#allocation2 + $0x8] sm:$0xff] %vm7951, %v7949
      %7954 = vrot.lane.b32.xlu0 %v7606, 16
      %v7955 = vpop.permute.xlu0 %7954
      %7956 = vrot.lane.b32.xlu0 %v7607, 16
      %v7957 = vpop.permute.xlu0 %7956
      %vm7958 = vcmask 130048
      %v7959 = vsel %vm7958, %v7955, %v7957
      %v7960 = vsel %vm3453, %v7959, 0
      %7962 = vmatpush.msra.mxu0 0.0
      %7963 = vmatpush.msra.mxu0 0.0
      %7964 = vmatpush.msra.mxu0 0.0
      %7965 = vmatpush.msra.mxu0 0.0
      %7966 = vmatpush.msra.mxu0 0.0
      %7967 = vmatpush.msra.mxu0 0.0
      %7968 = vmatpush.msra.mxu0 0.0
      %7969 = vmatpush.msra.mxu0 0.0
      %7970 = vmatpush.msra.mxu0 0.0
      %7971 = vmatpush.msra.mxu0 0.0
      %7972 = vmatpush.msra.mxu0 0.0
      %7973 = vmatpush.msra.mxu0 %v7643
      %7974 = vmatpush.msra.mxu0 %v7636
      %7975 = vmatpush.msra.mxu0 %v7635
      %7976 = vmatpush.msra.mxu0 %v7634
      %7977 = vmatpush.msra.mxu0 %v7633
      %7978 = vmatmul.f32.gmra.mxu0 %v7960
      %v7979 = vpop.f32.mrf.mxu0
      %v7980 = vadd.f32 0.0, %v7979
      %7981 = vdwg.mxu0
      %7983 = vrot.lane.b32.xlu0 %v7980, 72
      %v7984 = vpop.permute.xlu0 %7983
      %vm7986 = vcmask 753216
      %7987 = vst.msk [vmem:[#allocation2 + $0x8] sm:$0xff] %vm7986, %v7984
      %7988 = vrot.lane.b32.xlu0 %v7607, 56
      %v7989 = vpop.permute.xlu0 %7988
      %v7990 = vsel %vm3453, %v7989, 0
      %7992 = vmatpush.msra.mxu0 0.0
      %7993 = vmatpush.msra.mxu0 0.0
      %7994 = vmatpush.msra.mxu0 0.0
      %7995 = vmatpush.msra.mxu0 0.0
      %7996 = vmatpush.msra.mxu0 0.0
      %7997 = vmatpush.msra.mxu0 0.0
      %7998 = vmatpush.msra.mxu0 0.0
      %7999 = vmatpush.msra.mxu0 0.0
      %8000 = vmatpush.msra.mxu0 0.0
      %8001 = vmatpush.msra.mxu0 0.0
      %8002 = vmatpush.msra.mxu0 0.0
      %8003 = vmatpush.msra.mxu0 %v7643
      %8004 = vmatpush.msra.mxu0 %v7636
      %8005 = vmatpush.msra.mxu0 %v7635
      %8006 = vmatpush.msra.mxu0 %v7634
      %8007 = vmatpush.msra.mxu0 %v7633
      %8008 = vmatmul.f32.gmra.mxu0 %v7990
      %v8009 = vpop.f32.mrf.mxu0
      %v8010 = vadd.f32 0.0, %v8009
      %8011 = vdwg.mxu0
      %8013 = vrot.lane.b32.xlu0 %v8010, 92
      %v8014 = vpop.permute.xlu0 %8013
      %vm8016 = vcmask 917216
      %8017 = vst.msk [vmem:[#allocation2 + $0x8] sm:$0xff] %vm8016, %v8014
      %8019 = vrot.lane.b32.xlu0 %v7608, 96
      %v8020 = vpop.permute.xlu0 %8019
      %v8021 = vsel %vm3453, %v8020, 0
      %8023 = vmatpush.msra.mxu0 0.0
      %8024 = vmatpush.msra.mxu0 0.0
      %8025 = vmatpush.msra.mxu0 0.0
      %8026 = vmatpush.msra.mxu0 0.0
      %8027 = vmatpush.msra.mxu0 0.0
      %8028 = vmatpush.msra.mxu0 0.0
      %8029 = vmatpush.msra.mxu0 0.0
      %8030 = vmatpush.msra.mxu0 0.0
      %8031 = vmatpush.msra.mxu0 0.0
      %8032 = vmatpush.msra.mxu0 0.0
      %8033 = vmatpush.msra.mxu0 0.0
      %8034 = vmatpush.msra.mxu0 %v7643
      %8035 = vmatpush.msra.mxu0 %v7636
      %8036 = vmatpush.msra.mxu0 %v7635
      %8037 = vmatpush.msra.mxu0 %v7634
      %8038 = vmatpush.msra.mxu0 %v7633
      %8039 = vmatmul.f32.gmra.mxu0 %v8021
      %v8040 = vpop.f32.mrf.mxu0
      %v8041 = vadd.f32 0.0, %v8040
      %8042 = vdwg.mxu0
      %8044 = vrot.lane.b32.xlu0 %v8041, 112
      %v8045 = vpop.permute.xlu0 %8044
      %vm8047 = vcmask 1048448
      %8048 = vst.msk [vmem:[#allocation2 + $0x8] sm:$0xff] %vm8047, %v8045
      %vm8049 = vcmask 31744
      %8050 = vst.msk [vmem:[#allocation2 + $0x10] sm:$0xff] %vm8049, %v8045
      %8052 = vrot.lane.b32.xlu0 %v7608, 8
      %v8053 = vpop.permute.xlu0 %8052
      %8054 = vrot.lane.b32.xlu0 %v7609, 8
      %v8055 = vpop.permute.xlu0 %8054
      %v8056 = vsel %vm4350, %v8053, %v8055
      %v8057 = vsel %vm3453, %v8056, 0
      %8059 = vmatpush.msra.mxu0 0.0
      %8060 = vmatpush.msra.mxu0 0.0
      %8061 = vmatpush.msra.mxu0 0.0
      %8062 = vmatpush.msra.mxu0 0.0
      %8063 = vmatpush.msra.mxu0 0.0
      %8064 = vmatpush.msra.mxu0 0.0
      %8065 = vmatpush.msra.mxu0 0.0
      %8066 = vmatpush.msra.mxu0 0.0
      %8067 = vmatpush.msra.mxu0 0.0
      %8068 = vmatpush.msra.mxu0 0.0
      %8069 = vmatpush.msra.mxu0 0.0
      %8070 = vmatpush.msra.mxu0 %v7643
      %8071 = vmatpush.msra.mxu0 %v7636
      %8072 = vmatpush.msra.mxu0 %v7635
      %8073 = vmatpush.msra.mxu0 %v7634
      %8074 = vmatpush.msra.mxu0 %v7633
      %8075 = vmatmul.f32.gmra.mxu0 %v8057
      %v8076 = vpop.f32.mrf.mxu0
      %v8077 = vadd.f32 0.0, %v8076
      %8078 = vdwg.mxu0
      %8080 = vrot.lane.b32.xlu0 %v8077, 4
      %v8081 = vpop.permute.xlu0 %8080
      %vm8083 = vcmask 195616
      %8084 = vst.msk [vmem:[#allocation2 + $0x10] sm:$0xff] %vm8083, %v8081
      %8085 = vrot.lane.b32.xlu0 %v7609, 48
      %v8086 = vpop.permute.xlu0 %8085
      %v8087 = vsel %vm3453, %v8086, 0
      %8089 = vmatpush.msra.mxu0 0.0
      %8090 = vmatpush.msra.mxu0 0.0
      %8091 = vmatpush.msra.mxu0 0.0
      %8092 = vmatpush.msra.mxu0 0.0
      %8093 = vmatpush.msra.mxu0 0.0
      %8094 = vmatpush.msra.mxu0 0.0
      %8095 = vmatpush.msra.mxu0 0.0
      %8096 = vmatpush.msra.mxu0 0.0
      %8097 = vmatpush.msra.mxu0 0.0
      %8098 = vmatpush.msra.mxu0 0.0
      %8099 = vmatpush.msra.mxu0 0.0
      %8100 = vmatpush.msra.mxu0 %v7643
      %8101 = vmatpush.msra.mxu0 %v7636
      %8102 = vmatpush.msra.mxu0 %v7635
      %8103 = vmatpush.msra.mxu0 %v7634
      %8104 = vmatpush.msra.mxu0 %v7633
      %8105 = vmatmul.f32.gmra.mxu0 %v8087
      %v8106 = vpop.f32.mrf.mxu0
      %v8107 = vadd.f32 0.0, %v8106
      %8108 = vdwg.mxu0
      %8110 = vrot.lane.b32.xlu0 %v8107, 24
      %v8111 = vpop.permute.xlu0 %8110
      %vm8113 = vcmask 359616
      %8114 = vst.msk [vmem:[#allocation2 + $0x10] sm:$0xff] %vm8113, %v8111
      %8116 = vrot.lane.b32.xlu0 %v7610, 88
      %v8117 = vpop.permute.xlu0 %8116
      %v8118 = vsel %vm3453, %v8117, 0
      %8120 = vmatpush.msra.mxu0 0.0
      %8121 = vmatpush.msra.mxu0 0.0
      %8122 = vmatpush.msra.mxu0 0.0
      %8123 = vmatpush.msra.mxu0 0.0
      %8124 = vmatpush.msra.mxu0 0.0
      %8125 = vmatpush.msra.mxu0 0.0
      %8126 = vmatpush.msra.mxu0 0.0
      %8127 = vmatpush.msra.mxu0 0.0
      %8128 = vmatpush.msra.mxu0 0.0
      %8129 = vmatpush.msra.mxu0 0.0
      %8130 = vmatpush.msra.mxu0 0.0
      %8131 = vmatpush.msra.mxu0 %v7643
      %8132 = vmatpush.msra.mxu0 %v7636
      %8133 = vmatpush.msra.mxu0 %v7635
      %8134 = vmatpush.msra.mxu0 %v7634
      %8135 = vmatpush.msra.mxu0 %v7633
      %8136 = vmatmul.f32.gmra.mxu0 %v8118
      %v8137 = vpop.f32.mrf.mxu0
      %v8138 = vadd.f32 0.0, %v8137
      %8139 = vdwg.mxu0
      %8141 = vrot.lane.b32.xlu0 %v8138, 44
      %v8142 = vpop.permute.xlu0 %8141
      %vm8144 = vcmask 523616
      %8145 = vst.msk [vmem:[#allocation2 + $0x10] sm:$0xff] %vm8144, %v8142
      %v8147 = vsel %vm3453, %v7611, 0
      %8149 = vmatpush.msra.mxu0 0.0
      %8150 = vmatpush.msra.mxu0 0.0
      %8151 = vmatpush.msra.mxu0 0.0
      %8152 = vmatpush.msra.mxu0 0.0
      %8153 = vmatpush.msra.mxu0 0.0
      %8154 = vmatpush.msra.mxu0 0.0
      %8155 = vmatpush.msra.mxu0 0.0
      %8156 = vmatpush.msra.mxu0 0.0
      %8157 = vmatpush.msra.mxu0 0.0
      %8158 = vmatpush.msra.mxu0 0.0
      %8159 = vmatpush.msra.mxu0 0.0
      %8160 = vmatpush.msra.mxu0 %v7643
      %8161 = vmatpush.msra.mxu0 %v7636
      %8162 = vmatpush.msra.mxu0 %v7635
      %8163 = vmatpush.msra.mxu0 %v7634
      %8164 = vmatpush.msra.mxu0 %v7633
      %8165 = vmatmul.f32.gmra.mxu0 %v8147
      %v8166 = vpop.f32.mrf.mxu0
      %v8167 = vadd.f32 0.0, %v8166
      %8168 = vdwg.mxu0
      %8170 = vrot.lane.b32.xlu0 %v8167, 64
      %v8171 = vpop.permute.xlu0 %8170
      %vm8173 = vcmask 687616
      %8174 = vst.msk [vmem:[#allocation2 + $0x10] sm:$0xff] %vm8173, %v8171
      %8175 = vrot.lane.b32.xlu0 %v7611, 40
      %v8176 = vpop.permute.xlu0 %8175
      %v8177 = vsel %vm3453, %v8176, 0
      %8179 = vmatpush.msra.mxu0 0.0
      %8180 = vmatpush.msra.mxu0 0.0
      %8181 = vmatpush.msra.mxu0 0.0
      %8182 = vmatpush.msra.mxu0 0.0
      %8183 = vmatpush.msra.mxu0 0.0
      %8184 = vmatpush.msra.mxu0 0.0
      %8185 = vmatpush.msra.mxu0 0.0
      %8186 = vmatpush.msra.mxu0 0.0
      %8187 = vmatpush.msra.mxu0 0.0
      %8188 = vmatpush.msra.mxu0 0.0
      %8189 = vmatpush.msra.mxu0 0.0
      %8190 = vmatpush.msra.mxu0 %v7643
      %8191 = vmatpush.msra.mxu0 %v7636
      %8192 = vmatpush.msra.mxu0 %v7635
      %8193 = vmatpush.msra.mxu0 %v7634
      %8194 = vmatpush.msra.mxu0 %v7633
      %8195 = vmatmul.f32.gmra.mxu0 %v8177
      %v8196 = vpop.f32.mrf.mxu0
      %v8197 = vadd.f32 0.0, %v8196
      %8198 = vdwg.mxu0
      %8200 = vrot.lane.b32.xlu0 %v8197, 84
      %v8201 = vpop.permute.xlu0 %8200
      %vm8203 = vcmask 851616
      %8204 = vst.msk [vmem:[#allocation2 + $0x10] sm:$0xff] %vm8203, %v8201
      %8206 = vrot.lane.b32.xlu0 %v7612, 80
      %v8207 = vpop.permute.xlu0 %8206
      %v8208 = vsel %vm3453, %v8207, 0
      %8210 = vmatpush.msra.mxu0 0.0
      %8211 = vmatpush.msra.mxu0 0.0
      %8212 = vmatpush.msra.mxu0 0.0
      %8213 = vmatpush.msra.mxu0 0.0
      %8214 = vmatpush.msra.mxu0 0.0
      %8215 = vmatpush.msra.mxu0 0.0
      %8216 = vmatpush.msra.mxu0 0.0
      %8217 = vmatpush.msra.mxu0 0.0
      %8218 = vmatpush.msra.mxu0 0.0
      %8219 = vmatpush.msra.mxu0 0.0
      %8220 = vmatpush.msra.mxu0 0.0
      %8221 = vmatpush.msra.mxu0 %v7643
      %8222 = vmatpush.msra.mxu0 %v7636
      %8223 = vmatpush.msra.mxu0 %v7635
      %8224 = vmatpush.msra.mxu0 %v7634
      %8225 = vmatpush.msra.mxu0 %v7633
      %8226 = vmatmul.f32.gmra.mxu0 %v8208
      %v8227 = vpop.f32.mrf.mxu0
      %v8228 = vadd.f32 0.0, %v8227
      %8229 = vdwg.mxu0
      %8231 = vrot.lane.b32.xlu0 %v8228, 104
      %v8232 = vpop.permute.xlu0 %8231
      %vm8234 = vcmask 1015616
      %8235 = vst.msk [vmem:[#allocation2 + $0x10] sm:$0xff] %vm8234, %v8232
      %8237 = vrot.lane.b32.xlu0 %v7613, 120
      %v8238 = vpop.permute.xlu0 %8237
      %v8239 = vsel %vm3453, %v8238, 0
      %8241 = vmatpush.msra.mxu0 0.0
      %8242 = vmatpush.msra.mxu0 0.0
      %8243 = vmatpush.msra.mxu0 0.0
      %8244 = vmatpush.msra.mxu0 0.0
      %8245 = vmatpush.msra.mxu0 0.0
      %8246 = vmatpush.msra.mxu0 0.0
      %8247 = vmatpush.msra.mxu0 0.0
      %8248 = vmatpush.msra.mxu0 0.0
      %8249 = vmatpush.msra.mxu0 0.0
      %8250 = vmatpush.msra.mxu0 0.0
      %8251 = vmatpush.msra.mxu0 0.0
      %8252 = vmatpush.msra.mxu0 %v7643
      %8253 = vmatpush.msra.mxu0 %v7636
      %8254 = vmatpush.msra.mxu0 %v7635
      %8255 = vmatpush.msra.mxu0 %v7634
      %8256 = vmatpush.msra.mxu0 %v7633
      %8257 = vmatmul.f32.gmra.mxu0 %v8239
      %v8258 = vpop.f32.mrf.mxu0
      %v8259 = vadd.f32 0.0, %v8258
      %8260 = vdwg.mxu0
      %8262 = vrot.lane.b32.xlu0 %v8259, 124
      %v8263 = vpop.permute.xlu0 %8262
      %vm8265 = vcmask 1048544
      %8266 = vst.msk [vmem:[#allocation2 + $0x10] sm:$0xff] %vm8265, %v8263
      %8267 = vst.msk [vmem:[#allocation2 + $0x18] sm:$0xff] %vm7958, %v8263
      %v8268 = vld [vmem:[#allocation2] sm:$0xff]
      %v8269 = vld [vmem:[#allocation2 + $0x8] sm:$0xff]
      %v8270 = vld [vmem:[#allocation2 + $0x10] sm:$0xff]
      %v8271 = vld [vmem:[#allocation2 + $0x18] sm:$0xff]
      %v8272 = vld [vmem:[%s5] sm:$0xff]
      %s8273 = scalar_lea.vmem %s5, 8
      %v8274 = vld [vmem:[%s8273] sm:$0xff]
      %8278 = vrot.lane.b32.xlu0 %v8268, 127
      %v8279 = vpop.permute.xlu0 %8278
      %8280 = vrot.lane.b32.xlu0 %v8269, 127
      %v8281 = vpop.permute.xlu0 %8280
      %8282 = vrot.lane.b32.xlu0 %v8270, 127
      %v8283 = vpop.permute.xlu0 %8282
      %v8284 = vsel %vm574, %v8279, %v8281
      %v8285 = vsel %vm574, %v8281, %v8283
      %v8290 = vsel %vm4350, %v8274, 0
      %8292 = vmatpush.msra.mxu0 0.0
      %8293 = vmatpush.msra.mxu0 0.0
      %8294 = vmatpush.msra.mxu0 0.0
      %8295 = vmatpush.msra.mxu0 0.0
      %8296 = vmatpush.msra.mxu0 0.0
      %8297 = vmatpush.msra.mxu0 0.0
      %8298 = vmatpush.msra.mxu0 0.0
      %8299 = vmatpush.msra.mxu0 0.0
      %8300 = vmatpush.msra.mxu0 0.0
      %8301 = vmatpush.msra.mxu0 0.0
      %8302 = vmatpush.msra.mxu0 0.0
      %8303 = vmatpush.msra.mxu0 0.0
      %8304 = vmatpush.msra.mxu0 0.0
      %8305 = vmatpush.msra.mxu0 0.0
      %8306 = vmatpush.msra.mxu0 0.0
      %8307 = vmatpush.msra.mxu0 %v8284
      %8308 = vmatmul.f32.gmra.mxu0 %v8290
      %v8309 = vpop.f32.mrf.mxu0
      %v8310 = vadd.f32 0.0, %v8309
      %8311 = vdwg.mxu0
      %8312 = vmatpush.msra.mxu0 0.0
      %8313 = vmatpush.msra.mxu0 0.0
      %8314 = vmatpush.msra.mxu0 0.0
      %8315 = vmatpush.msra.mxu0 0.0
      %8316 = vmatpush.msra.mxu0 0.0
      %8317 = vmatpush.msra.mxu0 0.0
      %8318 = vmatpush.msra.mxu0 0.0
      %8319 = vmatpush.msra.mxu0 0.0
      %8320 = vmatpush.msra.mxu0 0.0
      %8321 = vmatpush.msra.mxu0 0.0
      %8322 = vmatpush.msra.mxu0 0.0
      %8323 = vmatpush.msra.mxu0 0.0
      %8324 = vmatpush.msra.mxu0 0.0
      %8325 = vmatpush.msra.mxu0 0.0
      %8326 = vmatpush.msra.mxu0 0.0
      %8327 = vmatpush.msra.mxu0 %v8285
      %8328 = vmatmul.f32.gmra.mxu0 %v8290
      %v8329 = vpop.f32.mrf.mxu0
      %v8330 = vadd.f32 0.0, %v8329
      %8331 = vdwg.mxu0
      %8332 = vmatpush.msra.mxu0 0.0
      %8333 = vmatpush.msra.mxu0 0.0
      %8334 = vmatpush.msra.mxu0 0.0
      %8335 = vmatpush.msra.mxu0 0.0
      %8336 = vmatpush.msra.mxu0 0.0
      %8337 = vmatpush.msra.mxu0 0.0
      %8338 = vmatpush.msra.mxu0 0.0
      %8339 = vmatpush.msra.mxu0 0.0
      %8340 = vmatpush.msra.mxu0 0.0
      %8341 = vmatpush.msra.mxu0 0.0
      %8342 = vmatpush.msra.mxu0 0.0
      %8343 = vmatpush.msra.mxu0 0.0
      %8344 = vmatpush.msra.mxu0 0.0
      %8345 = vmatpush.msra.mxu0 0.0
      %8346 = vmatpush.msra.mxu0 0.0
      %8347 = vmatpush.msra.mxu0 %v8283
      %8348 = vmatmul.f32.gmra.mxu0 %v8290
      %v8349 = vpop.f32.mrf.mxu0
      %v8350 = vadd.f32 0.0, %v8349
      %8351 = vdwg.mxu0
      %v8353 = vsel %vm4350, %v8272, 0
      %8355 = vmatpush.msra.mxu0 0.0
      %8356 = vmatpush.msra.mxu0 0.0
      %8357 = vmatpush.msra.mxu0 0.0
      %8358 = vmatpush.msra.mxu0 0.0
      %8359 = vmatpush.msra.mxu0 0.0
      %8360 = vmatpush.msra.mxu0 0.0
      %8361 = vmatpush.msra.mxu0 0.0
      %8362 = vmatpush.msra.mxu0 0.0
      %8363 = vmatpush.msra.mxu0 0.0
      %8364 = vmatpush.msra.mxu0 0.0
      %8365 = vmatpush.msra.mxu0 0.0
      %8366 = vmatpush.msra.mxu0 0.0
      %8367 = vmatpush.msra.mxu0 0.0
      %8368 = vmatpush.msra.mxu0 0.0
      %8369 = vmatpush.msra.mxu0 0.0
      %8370 = vmatpush.msra.mxu0 %v8268
      %8371 = vmatmul.f32.gmra.mxu0 %v8353
      %v8372 = vpop.f32.mrf.mxu0
      %v8373 = vadd.f32 %v8310, %v8372
      %8374 = vdwg.mxu0
      %8375 = vmatpush.msra.mxu0 0.0
      %8376 = vmatpush.msra.mxu0 0.0
      %8377 = vmatpush.msra.mxu0 0.0
      %8378 = vmatpush.msra.mxu0 0.0
      %8379 = vmatpush.msra.mxu0 0.0
      %8380 = vmatpush.msra.mxu0 0.0
      %8381 = vmatpush.msra.mxu0 0.0
      %8382 = vmatpush.msra.mxu0 0.0
      %8383 = vmatpush.msra.mxu0 0.0
      %8384 = vmatpush.msra.mxu0 0.0
      %8385 = vmatpush.msra.mxu0 0.0
      %8386 = vmatpush.msra.mxu0 0.0
      %8387 = vmatpush.msra.mxu0 0.0
      %8388 = vmatpush.msra.mxu0 0.0
      %8389 = vmatpush.msra.mxu0 0.0
      %8390 = vmatpush.msra.mxu0 %v8269
      %8391 = vmatmul.f32.gmra.mxu0 %v8353
      %v8392 = vpop.f32.mrf.mxu0
      %v8393 = vadd.f32 %v8330, %v8392
      %8394 = vdwg.mxu0
      %8395 = vmatpush.msra.mxu0 0.0
      %8396 = vmatpush.msra.mxu0 0.0
      %8397 = vmatpush.msra.mxu0 0.0
      %8398 = vmatpush.msra.mxu0 0.0
      %8399 = vmatpush.msra.mxu0 0.0
      %8400 = vmatpush.msra.mxu0 0.0
      %8401 = vmatpush.msra.mxu0 0.0
      %8402 = vmatpush.msra.mxu0 0.0
      %8403 = vmatpush.msra.mxu0 0.0
      %8404 = vmatpush.msra.mxu0 0.0
      %8405 = vmatpush.msra.mxu0 0.0
      %8406 = vmatpush.msra.mxu0 0.0
      %8407 = vmatpush.msra.mxu0 0.0
      %8408 = vmatpush.msra.mxu0 0.0
      %8409 = vmatpush.msra.mxu0 0.0
      %8410 = vmatpush.msra.mxu0 %v8270
      %8411 = vmatmul.f32.gmra.mxu0 %v8353
      %v8412 = vpop.f32.mrf.mxu0
      %v8413 = vadd.f32 %v8350, %v8412
      %8414 = vdwg.mxu0
      %s8415 = scalar_lea.vmem %s5, 16
      %v8416 = vld [vmem:[%s8415] sm:$0xff]
      %8417 = vrot.lane.b32.xlu0 %v8268, 126
      %v8418 = vpop.permute.xlu0 %8417
      %8419 = vrot.lane.b32.xlu0 %v8269, 126
      %v8420 = vpop.permute.xlu0 %8419
      %8421 = vrot.lane.b32.xlu0 %v8270, 126
      %v8422 = vpop.permute.xlu0 %8421
      %v8423 = vsel %vm1341, %v8418, %v8420
      %v8424 = vsel %vm1341, %v8420, %v8422
      %v8429 = vsel %vm4350, %v8416, 0
      %8431 = vmatpush.msra.mxu0 0.0
      %8432 = vmatpush.msra.mxu0 0.0
      %8433 = vmatpush.msra.mxu0 0.0
      %8434 = vmatpush.msra.mxu0 0.0
      %8435 = vmatpush.msra.mxu0 0.0
      %8436 = vmatpush.msra.mxu0 0.0
      %8437 = vmatpush.msra.mxu0 0.0
      %8438 = vmatpush.msra.mxu0 0.0
      %8439 = vmatpush.msra.mxu0 0.0
      %8440 = vmatpush.msra.mxu0 0.0
      %8441 = vmatpush.msra.mxu0 0.0
      %8442 = vmatpush.msra.mxu0 0.0
      %8443 = vmatpush.msra.mxu0 0.0
      %8444 = vmatpush.msra.mxu0 0.0
      %8445 = vmatpush.msra.mxu0 0.0
      %8446 = vmatpush.msra.mxu0 %v8423
      %8447 = vmatmul.f32.gmra.mxu0 %v8429
      %v8448 = vpop.f32.mrf.mxu0
      %v8449 = vadd.f32 0.0, %v8448
      %8450 = vdwg.mxu0
      %8451 = vmatpush.msra.mxu0 0.0
      %8452 = vmatpush.msra.mxu0 0.0
      %8453 = vmatpush.msra.mxu0 0.0
      %8454 = vmatpush.msra.mxu0 0.0
      %8455 = vmatpush.msra.mxu0 0.0
      %8456 = vmatpush.msra.mxu0 0.0
      %8457 = vmatpush.msra.mxu0 0.0
      %8458 = vmatpush.msra.mxu0 0.0
      %8459 = vmatpush.msra.mxu0 0.0
      %8460 = vmatpush.msra.mxu0 0.0
      %8461 = vmatpush.msra.mxu0 0.0
      %8462 = vmatpush.msra.mxu0 0.0
      %8463 = vmatpush.msra.mxu0 0.0
      %8464 = vmatpush.msra.mxu0 0.0
      %8465 = vmatpush.msra.mxu0 0.0
      %8466 = vmatpush.msra.mxu0 %v8424
      %8467 = vmatmul.f32.gmra.mxu0 %v8429
      %v8468 = vpop.f32.mrf.mxu0
      %v8469 = vadd.f32 0.0, %v8468
      %8470 = vdwg.mxu0
      %8471 = vmatpush.msra.mxu0 0.0
      %8472 = vmatpush.msra.mxu0 0.0
      %8473 = vmatpush.msra.mxu0 0.0
      %8474 = vmatpush.msra.mxu0 0.0
      %8475 = vmatpush.msra.mxu0 0.0
      %8476 = vmatpush.msra.mxu0 0.0
      %8477 = vmatpush.msra.mxu0 0.0
      %8478 = vmatpush.msra.mxu0 0.0
      %8479 = vmatpush.msra.mxu0 0.0
      %8480 = vmatpush.msra.mxu0 0.0
      %8481 = vmatpush.msra.mxu0 0.0
      %8482 = vmatpush.msra.mxu0 0.0
      %8483 = vmatpush.msra.mxu0 0.0
      %8484 = vmatpush.msra.mxu0 0.0
      %8485 = vmatpush.msra.mxu0 0.0
      %8486 = vmatpush.msra.mxu0 %v8422
      %8487 = vmatmul.f32.gmra.mxu0 %v8429
      %v8488 = vpop.f32.mrf.mxu0
      %v8489 = vadd.f32 0.0, %v8488
      %8490 = vdwg.mxu0
      %v8491 = vadd.f32 %v8373, %v8449
      %v8492 = vadd.f32 %v8393, %v8469
      %v8493 = vadd.f32 %v8413, %v8489
      %s8494 = scalar_lea.vmem %s5, 24
      %v8495 = vld [vmem:[%s8494] sm:$0xff]
      %8496 = vrot.lane.b32.xlu0 %v8268, 108
      %v8497 = vpop.permute.xlu0 %8496
      %8498 = vrot.lane.b32.xlu0 %v8269, 108
      %v8499 = vpop.permute.xlu0 %8498
      %8500 = vrot.lane.b32.xlu0 %v8270, 108
      %v8501 = vpop.permute.xlu0 %8500
      %vm8502 = vcmask 883712
      %v8503 = vsel %vm8502, %v8497, %v8499
      %v8504 = vsel %vm8502, %v8499, %v8501
      %v8509 = vsel %vm4350, %v8495, 0
      %8511 = vmatpush.msra.mxu0 0.0
      %8512 = vmatpush.msra.mxu0 0.0
      %8513 = vmatpush.msra.mxu0 0.0
      %8514 = vmatpush.msra.mxu0 0.0
      %8515 = vmatpush.msra.mxu0 0.0
      %8516 = vmatpush.msra.mxu0 0.0
      %8517 = vmatpush.msra.mxu0 0.0
      %8518 = vmatpush.msra.mxu0 0.0
      %8519 = vmatpush.msra.mxu0 0.0
      %8520 = vmatpush.msra.mxu0 0.0
      %8521 = vmatpush.msra.mxu0 0.0
      %8522 = vmatpush.msra.mxu0 0.0
      %8523 = vmatpush.msra.mxu0 0.0
      %8524 = vmatpush.msra.mxu0 0.0
      %8525 = vmatpush.msra.mxu0 0.0
      %8526 = vmatpush.msra.mxu0 %v8503
      %8527 = vmatmul.f32.gmra.mxu0 %v8509
      %v8528 = vpop.f32.mrf.mxu0
      %v8529 = vadd.f32 0.0, %v8528
      %8530 = vdwg.mxu0
      %8531 = vmatpush.msra.mxu0 0.0
      %8532 = vmatpush.msra.mxu0 0.0
      %8533 = vmatpush.msra.mxu0 0.0
      %8534 = vmatpush.msra.mxu0 0.0
      %8535 = vmatpush.msra.mxu0 0.0
      %8536 = vmatpush.msra.mxu0 0.0
      %8537 = vmatpush.msra.mxu0 0.0
      %8538 = vmatpush.msra.mxu0 0.0
      %8539 = vmatpush.msra.mxu0 0.0
      %8540 = vmatpush.msra.mxu0 0.0
      %8541 = vmatpush.msra.mxu0 0.0
      %8542 = vmatpush.msra.mxu0 0.0
      %8543 = vmatpush.msra.mxu0 0.0
      %8544 = vmatpush.msra.mxu0 0.0
      %8545 = vmatpush.msra.mxu0 0.0
      %8546 = vmatpush.msra.mxu0 %v8504
      %8547 = vmatmul.f32.gmra.mxu0 %v8509
      %v8548 = vpop.f32.mrf.mxu0
      %v8549 = vadd.f32 0.0, %v8548
      %8550 = vdwg.mxu0
      %8551 = vmatpush.msra.mxu0 0.0
      %8552 = vmatpush.msra.mxu0 0.0
      %8553 = vmatpush.msra.mxu0 0.0
      %8554 = vmatpush.msra.mxu0 0.0
      %8555 = vmatpush.msra.mxu0 0.0
      %8556 = vmatpush.msra.mxu0 0.0
      %8557 = vmatpush.msra.mxu0 0.0
      %8558 = vmatpush.msra.mxu0 0.0
      %8559 = vmatpush.msra.mxu0 0.0
      %8560 = vmatpush.msra.mxu0 0.0
      %8561 = vmatpush.msra.mxu0 0.0
      %8562 = vmatpush.msra.mxu0 0.0
      %8563 = vmatpush.msra.mxu0 0.0
      %8564 = vmatpush.msra.mxu0 0.0
      %8565 = vmatpush.msra.mxu0 0.0
      %8566 = vmatpush.msra.mxu0 %v8501
      %8567 = vmatmul.f32.gmra.mxu0 %v8509
      %v8568 = vpop.f32.mrf.mxu0
      %v8569 = vadd.f32 0.0, %v8568
      %8570 = vdwg.mxu0
      %v8571 = vadd.f32 %v8491, %v8529
      %v8572 = vadd.f32 %v8492, %v8549
      %v8573 = vadd.f32 %v8493, %v8569
      %s8574 = scalar_lea.vmem %s5, 32
      %v8575 = vld [vmem:[%s8574] sm:$0xff]
      %8576 = vrot.lane.b32.xlu0 %v8268, 107
      %v8577 = vpop.permute.xlu0 %8576
      %8578 = vrot.lane.b32.xlu0 %v8269, 107
      %v8579 = vpop.permute.xlu0 %8578
      %8580 = vrot.lane.b32.xlu0 %v8270, 107
      %v8581 = vpop.permute.xlu0 %8580
      %vm8582 = vcmask 875520
      %v8583 = vsel %vm8582, %v8577, %v8579
      %v8584 = vsel %vm8582, %v8579, %v8581
      %v8589 = vsel %vm4350, %v8575, 0
      %8591 = vmatpush.msra.mxu0 0.0
      %8592 = vmatpush.msra.mxu0 0.0
      %8593 = vmatpush.msra.mxu0 0.0
      %8594 = vmatpush.msra.mxu0 0.0
      %8595 = vmatpush.msra.mxu0 0.0
      %8596 = vmatpush.msra.mxu0 0.0
      %8597 = vmatpush.msra.mxu0 0.0
      %8598 = vmatpush.msra.mxu0 0.0
      %8599 = vmatpush.msra.mxu0 0.0
      %8600 = vmatpush.msra.mxu0 0.0
      %8601 = vmatpush.msra.mxu0 0.0
      %8602 = vmatpush.msra.mxu0 0.0
      %8603 = vmatpush.msra.mxu0 0.0
      %8604 = vmatpush.msra.mxu0 0.0
      %8605 = vmatpush.msra.mxu0 0.0
      %8606 = vmatpush.msra.mxu0 %v8583
      %8607 = vmatmul.f32.gmra.mxu0 %v8589
      %v8608 = vpop.f32.mrf.mxu0
      %v8609 = vadd.f32 0.0, %v8608
      %8610 = vdwg.mxu0
      %8611 = vmatpush.msra.mxu0 0.0
      %8612 = vmatpush.msra.mxu0 0.0
      %8613 = vmatpush.msra.mxu0 0.0
      %8614 = vmatpush.msra.mxu0 0.0
      %8615 = vmatpush.msra.mxu0 0.0
      %8616 = vmatpush.msra.mxu0 0.0
      %8617 = vmatpush.msra.mxu0 0.0
      %8618 = vmatpush.msra.mxu0 0.0
      %8619 = vmatpush.msra.mxu0 0.0
      %8620 = vmatpush.msra.mxu0 0.0
      %8621 = vmatpush.msra.mxu0 0.0
      %8622 = vmatpush.msra.mxu0 0.0
      %8623 = vmatpush.msra.mxu0 0.0
      %8624 = vmatpush.msra.mxu0 0.0
      %8625 = vmatpush.msra.mxu0 0.0
      %8626 = vmatpush.msra.mxu0 %v8584
      %8627 = vmatmul.f32.gmra.mxu0 %v8589
      %v8628 = vpop.f32.mrf.mxu0
      %v8629 = vadd.f32 0.0, %v8628
      %8630 = vdwg.mxu0
      %8631 = vmatpush.msra.mxu0 0.0
      %8632 = vmatpush.msra.mxu0 0.0
      %8633 = vmatpush.msra.mxu0 0.0
      %8634 = vmatpush.msra.mxu0 0.0
      %8635 = vmatpush.msra.mxu0 0.0
      %8636 = vmatpush.msra.mxu0 0.0
      %8637 = vmatpush.msra.mxu0 0.0
      %8638 = vmatpush.msra.mxu0 0.0
      %8639 = vmatpush.msra.mxu0 0.0
      %8640 = vmatpush.msra.mxu0 0.0
      %8641 = vmatpush.msra.mxu0 0.0
      %8642 = vmatpush.msra.mxu0 0.0
      %8643 = vmatpush.msra.mxu0 0.0
      %8644 = vmatpush.msra.mxu0 0.0
      %8645 = vmatpush.msra.mxu0 0.0
      %8646 = vmatpush.msra.mxu0 %v8581
      %8647 = vmatmul.f32.gmra.mxu0 %v8589
      %v8648 = vpop.f32.mrf.mxu0
      %v8649 = vadd.f32 0.0, %v8648
      %8650 = vdwg.mxu0
      %v8651 = vadd.f32 %v8571, %v8609
      %v8652 = vadd.f32 %v8572, %v8629
      %v8653 = vadd.f32 %v8573, %v8649
      %s8654 = scalar_lea.vmem %s5, 40
      %v8655 = vld [vmem:[%s8654] sm:$0xff]
      %8656 = vrot.lane.b32.xlu0 %v8268, 106
      %v8657 = vpop.permute.xlu0 %8656
      %8658 = vrot.lane.b32.xlu0 %v8269, 106
      %v8659 = vpop.permute.xlu0 %8658
      %8660 = vrot.lane.b32.xlu0 %v8270, 106
      %v8661 = vpop.permute.xlu0 %8660
      %vm8662 = vcmask 867328
      %v8663 = vsel %vm8662, %v8657, %v8659
      %v8664 = vsel %vm8662, %v8659, %v8661
      %v8669 = vsel %vm4350, %v8655, 0
      %8671 = vmatpush.msra.mxu0 0.0
      %8672 = vmatpush.msra.mxu0 0.0
      %8673 = vmatpush.msra.mxu0 0.0
      %8674 = vmatpush.msra.mxu0 0.0
      %8675 = vmatpush.msra.mxu0 0.0
      %8676 = vmatpush.msra.mxu0 0.0
      %8677 = vmatpush.msra.mxu0 0.0
      %8678 = vmatpush.msra.mxu0 0.0
      %8679 = vmatpush.msra.mxu0 0.0
      %8680 = vmatpush.msra.mxu0 0.0
      %8681 = vmatpush.msra.mxu0 0.0
      %8682 = vmatpush.msra.mxu0 0.0
      %8683 = vmatpush.msra.mxu0 0.0
      %8684 = vmatpush.msra.mxu0 0.0
      %8685 = vmatpush.msra.mxu0 0.0
      %8686 = vmatpush.msra.mxu0 %v8663
      %8687 = vmatmul.f32.gmra.mxu0 %v8669
      %v8688 = vpop.f32.mrf.mxu0
      %v8689 = vadd.f32 0.0, %v8688
      %8690 = vdwg.mxu0
      %8691 = vmatpush.msra.mxu0 0.0
      %8692 = vmatpush.msra.mxu0 0.0
      %8693 = vmatpush.msra.mxu0 0.0
      %8694 = vmatpush.msra.mxu0 0.0
      %8695 = vmatpush.msra.mxu0 0.0
      %8696 = vmatpush.msra.mxu0 0.0
      %8697 = vmatpush.msra.mxu0 0.0
      %8698 = vmatpush.msra.mxu0 0.0
      %8699 = vmatpush.msra.mxu0 0.0
      %8700 = vmatpush.msra.mxu0 0.0
      %8701 = vmatpush.msra.mxu0 0.0
      %8702 = vmatpush.msra.mxu0 0.0
      %8703 = vmatpush.msra.mxu0 0.0
      %8704 = vmatpush.msra.mxu0 0.0
      %8705 = vmatpush.msra.mxu0 0.0
      %8706 = vmatpush.msra.mxu0 %v8664
      %8707 = vmatmul.f32.gmra.mxu0 %v8669
      %v8708 = vpop.f32.mrf.mxu0
      %v8709 = vadd.f32 0.0, %v8708
      %8710 = vdwg.mxu0
      %8711 = vmatpush.msra.mxu0 0.0
      %8712 = vmatpush.msra.mxu0 0.0
      %8713 = vmatpush.msra.mxu0 0.0
      %8714 = vmatpush.msra.mxu0 0.0
      %8715 = vmatpush.msra.mxu0 0.0
      %8716 = vmatpush.msra.mxu0 0.0
      %8717 = vmatpush.msra.mxu0 0.0
      %8718 = vmatpush.msra.mxu0 0.0
      %8719 = vmatpush.msra.mxu0 0.0
      %8720 = vmatpush.msra.mxu0 0.0
      %8721 = vmatpush.msra.mxu0 0.0
      %8722 = vmatpush.msra.mxu0 0.0
      %8723 = vmatpush.msra.mxu0 0.0
      %8724 = vmatpush.msra.mxu0 0.0
      %8725 = vmatpush.msra.mxu0 0.0
      %8726 = vmatpush.msra.mxu0 %v8661
      %8727 = vmatmul.f32.gmra.mxu0 %v8669
      %v8728 = vpop.f32.mrf.mxu0
      %v8729 = vadd.f32 0.0, %v8728
      %8730 = vdwg.mxu0
      %v8731 = vadd.f32 %v8651, %v8689
      %v8732 = vadd.f32 %v8652, %v8709
      %v8733 = vadd.f32 %v8653, %v8729
      %s8734 = scalar_lea.vmem %s5, 48
      %v8735 = vld [vmem:[%s8734] sm:$0xff]
      %8737 = vrot.lane.b32.xlu0 %v8268, 88
      %v8738 = vpop.permute.xlu0 %8737
      %8739 = vrot.lane.b32.xlu0 %v8269, 88
      %v8740 = vpop.permute.xlu0 %8739
      %8741 = vrot.lane.b32.xlu0 %v8270, 88
      %v8742 = vpop.permute.xlu0 %8741
      %8743 = vrot.lane.b32.xlu0 %v8271, 88
      %v8744 = vpop.permute.xlu0 %8743
      %vm8745 = vcmask 719872
      %v8746 = vsel %vm8745, %v8738, %v8740
      %v8747 = vsel %vm8745, %v8740, %v8742
      %v8748 = vsel %vm8745, %v8742, %v8744
      %v8753 = vsel %vm4350, %v8735, 0
      %8755 = vmatpush.msra.mxu0 0.0
      %8756 = vmatpush.msra.mxu0 0.0
      %8757 = vmatpush.msra.mxu0 0.0
      %8758 = vmatpush.msra.mxu0 0.0
      %8759 = vmatpush.msra.mxu0 0.0
      %8760 = vmatpush.msra.mxu0 0.0
      %8761 = vmatpush.msra.mxu0 0.0
      %8762 = vmatpush.msra.mxu0 0.0
      %8763 = vmatpush.msra.mxu0 0.0
      %8764 = vmatpush.msra.mxu0 0.0
      %8765 = vmatpush.msra.mxu0 0.0
      %8766 = vmatpush.msra.mxu0 0.0
      %8767 = vmatpush.msra.mxu0 0.0
      %8768 = vmatpush.msra.mxu0 0.0
      %8769 = vmatpush.msra.mxu0 0.0
      %8770 = vmatpush.msra.mxu0 %v8746
      %8771 = vmatmul.f32.gmra.mxu0 %v8753
      %v8772 = vpop.f32.mrf.mxu0
      %v8773 = vadd.f32 0.0, %v8772
      %8774 = vdwg.mxu0
      %8775 = vmatpush.msra.mxu0 0.0
      %8776 = vmatpush.msra.mxu0 0.0
      %8777 = vmatpush.msra.mxu0 0.0
      %8778 = vmatpush.msra.mxu0 0.0
      %8779 = vmatpush.msra.mxu0 0.0
      %8780 = vmatpush.msra.mxu0 0.0
      %8781 = vmatpush.msra.mxu0 0.0
      %8782 = vmatpush.msra.mxu0 0.0
      %8783 = vmatpush.msra.mxu0 0.0
      %8784 = vmatpush.msra.mxu0 0.0
      %8785 = vmatpush.msra.mxu0 0.0
      %8786 = vmatpush.msra.mxu0 0.0
      %8787 = vmatpush.msra.mxu0 0.0
      %8788 = vmatpush.msra.mxu0 0.0
      %8789 = vmatpush.msra.mxu0 0.0
      %8790 = vmatpush.msra.mxu0 %v8747
      %8791 = vmatmul.f32.gmra.mxu0 %v8753
      %v8792 = vpop.f32.mrf.mxu0
      %v8793 = vadd.f32 0.0, %v8792
      %8794 = vdwg.mxu0
      %8795 = vmatpush.msra.mxu0 0.0
      %8796 = vmatpush.msra.mxu0 0.0
      %8797 = vmatpush.msra.mxu0 0.0
      %8798 = vmatpush.msra.mxu0 0.0
      %8799 = vmatpush.msra.mxu0 0.0
      %8800 = vmatpush.msra.mxu0 0.0
      %8801 = vmatpush.msra.mxu0 0.0
      %8802 = vmatpush.msra.mxu0 0.0
      %8803 = vmatpush.msra.mxu0 0.0
      %8804 = vmatpush.msra.mxu0 0.0
      %8805 = vmatpush.msra.mxu0 0.0
      %8806 = vmatpush.msra.mxu0 0.0
      %8807 = vmatpush.msra.mxu0 0.0
      %8808 = vmatpush.msra.mxu0 0.0
      %8809 = vmatpush.msra.mxu0 0.0
      %8810 = vmatpush.msra.mxu0 %v8748
      %8811 = vmatmul.f32.gmra.mxu0 %v8753
      %v8812 = vpop.f32.mrf.mxu0
      %v8813 = vadd.f32 0.0, %v8812
      %8814 = vdwg.mxu0
      %v8815 = vadd.f32 %v8731, %v8773
      %v8816 = vadd.f32 %v8732, %v8793
      %v8817 = vadd.f32 %v8733, %v8813
      %s8818 = scalar_lea.vmem %s5, 56
      %v8819 = vld [vmem:[%s8818] sm:$0xff]
      %8820 = vrot.lane.b32.xlu0 %v8268, 87
      %v8821 = vpop.permute.xlu0 %8820
      %8822 = vrot.lane.b32.xlu0 %v8269, 87
      %v8823 = vpop.permute.xlu0 %8822
      %8824 = vrot.lane.b32.xlu0 %v8270, 87
      %v8825 = vpop.permute.xlu0 %8824
      %8826 = vrot.lane.b32.xlu0 %v8271, 87
      %v8827 = vpop.permute.xlu0 %8826
      %vm8828 = vcmask 711680
      %v8829 = vsel %vm8828, %v8821, %v8823
      %v8830 = vsel %vm8828, %v8823, %v8825
      %v8831 = vsel %vm8828, %v8825, %v8827
      %v8836 = vsel %vm4350, %v8819, 0
      %8838 = vmatpush.msra.mxu0 0.0
      %8839 = vmatpush.msra.mxu0 0.0
      %8840 = vmatpush.msra.mxu0 0.0
      %8841 = vmatpush.msra.mxu0 0.0
      %8842 = vmatpush.msra.mxu0 0.0
      %8843 = vmatpush.msra.mxu0 0.0
      %8844 = vmatpush.msra.mxu0 0.0
      %8845 = vmatpush.msra.mxu0 0.0
      %8846 = vmatpush.msra.mxu0 0.0
      %8847 = vmatpush.msra.mxu0 0.0
      %8848 = vmatpush.msra.mxu0 0.0
      %8849 = vmatpush.msra.mxu0 0.0
      %8850 = vmatpush.msra.mxu0 0.0
      %8851 = vmatpush.msra.mxu0 0.0
      %8852 = vmatpush.msra.mxu0 0.0
      %8853 = vmatpush.msra.mxu0 %v8829
      %8854 = vmatmul.f32.gmra.mxu0 %v8836
      %v8855 = vpop.f32.mrf.mxu0
      %v8856 = vadd.f32 0.0, %v8855
      %8857 = vdwg.mxu0
      %8858 = vmatpush.msra.mxu0 0.0
      %8859 = vmatpush.msra.mxu0 0.0
      %8860 = vmatpush.msra.mxu0 0.0
      %8861 = vmatpush.msra.mxu0 0.0
      %8862 = vmatpush.msra.mxu0 0.0
      %8863 = vmatpush.msra.mxu0 0.0
      %8864 = vmatpush.msra.mxu0 0.0
      %8865 = vmatpush.msra.mxu0 0.0
      %8866 = vmatpush.msra.mxu0 0.0
      %8867 = vmatpush.msra.mxu0 0.0
      %8868 = vmatpush.msra.mxu0 0.0
      %8869 = vmatpush.msra.mxu0 0.0
      %8870 = vmatpush.msra.mxu0 0.0
      %8871 = vmatpush.msra.mxu0 0.0
      %8872 = vmatpush.msra.mxu0 0.0
      %8873 = vmatpush.msra.mxu0 %v8830
      %8874 = vmatmul.f32.gmra.mxu0 %v8836
      %v8875 = vpop.f32.mrf.mxu0
      %v8876 = vadd.f32 0.0, %v8875
      %8877 = vdwg.mxu0
      %8878 = vmatpush.msra.mxu0 0.0
      %8879 = vmatpush.msra.mxu0 0.0
      %8880 = vmatpush.msra.mxu0 0.0
      %8881 = vmatpush.msra.mxu0 0.0
      %8882 = vmatpush.msra.mxu0 0.0
      %8883 = vmatpush.msra.mxu0 0.0
      %8884 = vmatpush.msra.mxu0 0.0
      %8885 = vmatpush.msra.mxu0 0.0
      %8886 = vmatpush.msra.mxu0 0.0
      %8887 = vmatpush.msra.mxu0 0.0
      %8888 = vmatpush.msra.mxu0 0.0
      %8889 = vmatpush.msra.mxu0 0.0
      %8890 = vmatpush.msra.mxu0 0.0
      %8891 = vmatpush.msra.mxu0 0.0
      %8892 = vmatpush.msra.mxu0 0.0
      %8893 = vmatpush.msra.mxu0 %v8831
      %8894 = vmatmul.f32.gmra.mxu0 %v8836
      %v8895 = vpop.f32.mrf.mxu0
      %v8896 = vadd.f32 0.0, %v8895
      %8897 = vdwg.mxu0
      %v8898 = vadd.f32 %v8815, %v8856
      %v8899 = vadd.f32 %v8816, %v8876
      %v8900 = vadd.f32 %v8817, %v8896
      %s8901 = scalar_lea.vmem %s5, 64
      %v8902 = vld [vmem:[%s8901] sm:$0xff]
      %8903 = vrot.lane.b32.xlu0 %v8268, 86
      %v8904 = vpop.permute.xlu0 %8903
      %8905 = vrot.lane.b32.xlu0 %v8269, 86
      %v8906 = vpop.permute.xlu0 %8905
      %8907 = vrot.lane.b32.xlu0 %v8270, 86
      %v8908 = vpop.permute.xlu0 %8907
      %8909 = vrot.lane.b32.xlu0 %v8271, 86
      %v8910 = vpop.permute.xlu0 %8909
      %vm8911 = vcmask 703488
      %v8912 = vsel %vm8911, %v8904, %v8906
      %v8913 = vsel %vm8911, %v8906, %v8908
      %v8914 = vsel %vm8911, %v8908, %v8910
      %v8919 = vsel %vm4350, %v8902, 0
      %8921 = vmatpush.msra.mxu0 0.0
      %8922 = vmatpush.msra.mxu0 0.0
      %8923 = vmatpush.msra.mxu0 0.0
      %8924 = vmatpush.msra.mxu0 0.0
      %8925 = vmatpush.msra.mxu0 0.0
      %8926 = vmatpush.msra.mxu0 0.0
      %8927 = vmatpush.msra.mxu0 0.0
      %8928 = vmatpush.msra.mxu0 0.0
      %8929 = vmatpush.msra.mxu0 0.0
      %8930 = vmatpush.msra.mxu0 0.0
      %8931 = vmatpush.msra.mxu0 0.0
      %8932 = vmatpush.msra.mxu0 0.0
      %8933 = vmatpush.msra.mxu0 0.0
      %8934 = vmatpush.msra.mxu0 0.0
      %8935 = vmatpush.msra.mxu0 0.0
      %8936 = vmatpush.msra.mxu0 %v8912
      %8937 = vmatmul.f32.gmra.mxu0 %v8919
      %v8938 = vpop.f32.mrf.mxu0
      %v8939 = vadd.f32 0.0, %v8938
      %8940 = vdwg.mxu0
      %8941 = vmatpush.msra.mxu0 0.0
      %8942 = vmatpush.msra.mxu0 0.0
      %8943 = vmatpush.msra.mxu0 0.0
      %8944 = vmatpush.msra.mxu0 0.0
      %8945 = vmatpush.msra.mxu0 0.0
      %8946 = vmatpush.msra.mxu0 0.0
      %8947 = vmatpush.msra.mxu0 0.0
      %8948 = vmatpush.msra.mxu0 0.0
      %8949 = vmatpush.msra.mxu0 0.0
      %8950 = vmatpush.msra.mxu0 0.0
      %8951 = vmatpush.msra.mxu0 0.0
      %8952 = vmatpush.msra.mxu0 0.0
      %8953 = vmatpush.msra.mxu0 0.0
      %8954 = vmatpush.msra.mxu0 0.0
      %8955 = vmatpush.msra.mxu0 0.0
      %8956 = vmatpush.msra.mxu0 %v8913
      %8957 = vmatmul.f32.gmra.mxu0 %v8919
      %v8958 = vpop.f32.mrf.mxu0
      %v8959 = vadd.f32 0.0, %v8958
      %8960 = vdwg.mxu0
      %8961 = vmatpush.msra.mxu0 0.0
      %8962 = vmatpush.msra.mxu0 0.0
      %8963 = vmatpush.msra.mxu0 0.0
      %8964 = vmatpush.msra.mxu0 0.0
      %8965 = vmatpush.msra.mxu0 0.0
      %8966 = vmatpush.msra.mxu0 0.0
      %8967 = vmatpush.msra.mxu0 0.0
      %8968 = vmatpush.msra.mxu0 0.0
      %8969 = vmatpush.msra.mxu0 0.0
      %8970 = vmatpush.msra.mxu0 0.0
      %8971 = vmatpush.msra.mxu0 0.0
      %8972 = vmatpush.msra.mxu0 0.0
      %8973 = vmatpush.msra.mxu0 0.0
      %8974 = vmatpush.msra.mxu0 0.0
      %8975 = vmatpush.msra.mxu0 0.0
      %8976 = vmatpush.msra.mxu0 %v8914
      %8977 = vmatmul.f32.gmra.mxu0 %v8919
      %v8978 = vpop.f32.mrf.mxu0
      %v8979 = vadd.f32 0.0, %v8978
      %8980 = vdwg.mxu0
      %v8981 = vadd.f32 %v8898, %v8939
      %v8982 = vadd.f32 %v8899, %v8959
      %v8983 = vadd.f32 %v8900, %v8979
      %v8984 = vld [vmem:[%s6] sm:$0xff]
      %8986 = vset.pattern.permute.xlu0 0
      %8987 = vperm.xlu0 %8986, %v8984
      %v8988 = vpop.permute.xlu0 %8987
      %v8990 = vadd.f32 %v8981, %v8988
      %v8991 = vadd.f32 %v8982, %v8988
      %v8992 = vadd.f32 %v8983, %v8988
      %v8993 = vmax.f32 %v8990, 0.0
      %v8994 = vmax.f32 %v8991, 0.0
      %v8995 = vmax.f32 %v8992, 0.0
      %v8996 = vld [vmem:[%s7] sm:$0xff]
      %s8997 = scalar_lea.vmem %s7, 8
      %v8998 = vld [vmem:[%s8997] sm:$0xff]
      %9002 = vrot.lane.b32.xlu0 %v8993, 127
      %v9003 = vpop.permute.xlu0 %9002
      %9004 = vrot.lane.b32.xlu0 %v8994, 127
      %v9005 = vpop.permute.xlu0 %9004
      %9006 = vrot.lane.b32.xlu0 %v8995, 127
      %v9007 = vpop.permute.xlu0 %9006
      %v9008 = vsel %vm574, %v9003, %v9005
      %v9009 = vsel %vm574, %v9005, %v9007
      %v9014 = vsel %vm4350, %v8998, 0
      %9016 = vmatpush.msra.mxu0 0.0
      %9017 = vmatpush.msra.mxu0 0.0
      %9018 = vmatpush.msra.mxu0 0.0
      %9019 = vmatpush.msra.mxu0 0.0
      %9020 = vmatpush.msra.mxu0 0.0
      %9021 = vmatpush.msra.mxu0 0.0
      %9022 = vmatpush.msra.mxu0 0.0
      %9023 = vmatpush.msra.mxu0 0.0
      %9024 = vmatpush.msra.mxu0 0.0
      %9025 = vmatpush.msra.mxu0 0.0
      %9026 = vmatpush.msra.mxu0 0.0
      %9027 = vmatpush.msra.mxu0 0.0
      %9028 = vmatpush.msra.mxu0 0.0
      %9029 = vmatpush.msra.mxu0 0.0
      %9030 = vmatpush.msra.mxu0 0.0
      %9031 = vmatpush.msra.mxu0 %v9008
      %9032 = vmatmul.f32.gmra.mxu0 %v9014
      %v9033 = vpop.f32.mrf.mxu0
      %v9034 = vadd.f32 0.0, %v9033
      %9035 = vdwg.mxu0
      %9036 = vmatpush.msra.mxu0 0.0
      %9037 = vmatpush.msra.mxu0 0.0
      %9038 = vmatpush.msra.mxu0 0.0
      %9039 = vmatpush.msra.mxu0 0.0
      %9040 = vmatpush.msra.mxu0 0.0
      %9041 = vmatpush.msra.mxu0 0.0
      %9042 = vmatpush.msra.mxu0 0.0
      %9043 = vmatpush.msra.mxu0 0.0
      %9044 = vmatpush.msra.mxu0 0.0
      %9045 = vmatpush.msra.mxu0 0.0
      %9046 = vmatpush.msra.mxu0 0.0
      %9047 = vmatpush.msra.mxu0 0.0
      %9048 = vmatpush.msra.mxu0 0.0
      %9049 = vmatpush.msra.mxu0 0.0
      %9050 = vmatpush.msra.mxu0 0.0
      %9051 = vmatpush.msra.mxu0 %v9009
      %9052 = vmatmul.f32.gmra.mxu0 %v9014
      %v9053 = vpop.f32.mrf.mxu0
      %v9054 = vadd.f32 0.0, %v9053
      %9055 = vdwg.mxu0
      %9056 = vmatpush.msra.mxu0 0.0
      %9057 = vmatpush.msra.mxu0 0.0
      %9058 = vmatpush.msra.mxu0 0.0
      %9059 = vmatpush.msra.mxu0 0.0
      %9060 = vmatpush.msra.mxu0 0.0
      %9061 = vmatpush.msra.mxu0 0.0
      %9062 = vmatpush.msra.mxu0 0.0
      %9063 = vmatpush.msra.mxu0 0.0
      %9064 = vmatpush.msra.mxu0 0.0
      %9065 = vmatpush.msra.mxu0 0.0
      %9066 = vmatpush.msra.mxu0 0.0
      %9067 = vmatpush.msra.mxu0 0.0
      %9068 = vmatpush.msra.mxu0 0.0
      %9069 = vmatpush.msra.mxu0 0.0
      %9070 = vmatpush.msra.mxu0 0.0
      %9071 = vmatpush.msra.mxu0 %v9007
      %9072 = vmatmul.f32.gmra.mxu0 %v9014
      %v9073 = vpop.f32.mrf.mxu0
      %v9074 = vadd.f32 0.0, %v9073
      %9075 = vdwg.mxu0
      %v9077 = vsel %vm4350, %v8996, 0
      %9079 = vmatpush.msra.mxu0 0.0
      %9080 = vmatpush.msra.mxu0 0.0
      %9081 = vmatpush.msra.mxu0 0.0
      %9082 = vmatpush.msra.mxu0 0.0
      %9083 = vmatpush.msra.mxu0 0.0
      %9084 = vmatpush.msra.mxu0 0.0
      %9085 = vmatpush.msra.mxu0 0.0
      %9086 = vmatpush.msra.mxu0 0.0
      %9087 = vmatpush.msra.mxu0 0.0
      %9088 = vmatpush.msra.mxu0 0.0
      %9089 = vmatpush.msra.mxu0 0.0
      %9090 = vmatpush.msra.mxu0 0.0
      %9091 = vmatpush.msra.mxu0 0.0
      %9092 = vmatpush.msra.mxu0 0.0
      %9093 = vmatpush.msra.mxu0 0.0
      %9094 = vmatpush.msra.mxu0 %v8993
      %9095 = vmatmul.f32.gmra.mxu0 %v9077
      %v9096 = vpop.f32.mrf.mxu0
      %v9097 = vadd.f32 %v9034, %v9096
      %9098 = vdwg.mxu0
      %9099 = vmatpush.msra.mxu0 0.0
      %9100 = vmatpush.msra.mxu0 0.0
      %9101 = vmatpush.msra.mxu0 0.0
      %9102 = vmatpush.msra.mxu0 0.0
      %9103 = vmatpush.msra.mxu0 0.0
      %9104 = vmatpush.msra.mxu0 0.0
      %9105 = vmatpush.msra.mxu0 0.0
      %9106 = vmatpush.msra.mxu0 0.0
      %9107 = vmatpush.msra.mxu0 0.0
      %9108 = vmatpush.msra.mxu0 0.0
      %9109 = vmatpush.msra.mxu0 0.0
      %9110 = vmatpush.msra.mxu0 0.0
      %9111 = vmatpush.msra.mxu0 0.0
      %9112 = vmatpush.msra.mxu0 0.0
      %9113 = vmatpush.msra.mxu0 0.0
      %9114 = vmatpush.msra.mxu0 %v8994
      %9115 = vmatmul.f32.gmra.mxu0 %v9077
      %v9116 = vpop.f32.mrf.mxu0
      %v9117 = vadd.f32 %v9054, %v9116
      %9118 = vdwg.mxu0
      %9119 = vmatpush.msra.mxu0 0.0
      %9120 = vmatpush.msra.mxu0 0.0
      %9121 = vmatpush.msra.mxu0 0.0
      %9122 = vmatpush.msra.mxu0 0.0
      %9123 = vmatpush.msra.mxu0 0.0
      %9124 = vmatpush.msra.mxu0 0.0
      %9125 = vmatpush.msra.mxu0 0.0
      %9126 = vmatpush.msra.mxu0 0.0
      %9127 = vmatpush.msra.mxu0 0.0
      %9128 = vmatpush.msra.mxu0 0.0
      %9129 = vmatpush.msra.mxu0 0.0
      %9130 = vmatpush.msra.mxu0 0.0
      %9131 = vmatpush.msra.mxu0 0.0
      %9132 = vmatpush.msra.mxu0 0.0
      %9133 = vmatpush.msra.mxu0 0.0
      %9134 = vmatpush.msra.mxu0 %v8995
      %9135 = vmatmul.f32.gmra.mxu0 %v9077
      %v9136 = vpop.f32.mrf.mxu0
      %v9137 = vadd.f32 %v9074, %v9136
      %9138 = vdwg.mxu0
      %s9139 = scalar_lea.vmem %s7, 16
      %v9140 = vld [vmem:[%s9139] sm:$0xff]
      %9141 = vrot.lane.b32.xlu0 %v8993, 126
      %v9142 = vpop.permute.xlu0 %9141
      %9143 = vrot.lane.b32.xlu0 %v8994, 126
      %v9144 = vpop.permute.xlu0 %9143
      %9145 = vrot.lane.b32.xlu0 %v8995, 126
      %v9146 = vpop.permute.xlu0 %9145
      %v9147 = vsel %vm1341, %v9142, %v9144
      %v9148 = vsel %vm1341, %v9144, %v9146
      %v9153 = vsel %vm4350, %v9140, 0
      %9155 = vmatpush.msra.mxu0 0.0
      %9156 = vmatpush.msra.mxu0 0.0
      %9157 = vmatpush.msra.mxu0 0.0
      %9158 = vmatpush.msra.mxu0 0.0
      %9159 = vmatpush.msra.mxu0 0.0
      %9160 = vmatpush.msra.mxu0 0.0
      %9161 = vmatpush.msra.mxu0 0.0
      %9162 = vmatpush.msra.mxu0 0.0
      %9163 = vmatpush.msra.mxu0 0.0
      %9164 = vmatpush.msra.mxu0 0.0
      %9165 = vmatpush.msra.mxu0 0.0
      %9166 = vmatpush.msra.mxu0 0.0
      %9167 = vmatpush.msra.mxu0 0.0
      %9168 = vmatpush.msra.mxu0 0.0
      %9169 = vmatpush.msra.mxu0 0.0
      %9170 = vmatpush.msra.mxu0 %v9147
      %9171 = vmatmul.f32.gmra.mxu0 %v9153
      %v9172 = vpop.f32.mrf.mxu0
      %v9173 = vadd.f32 0.0, %v9172
      %9174 = vdwg.mxu0
      %9175 = vmatpush.msra.mxu0 0.0
      %9176 = vmatpush.msra.mxu0 0.0
      %9177 = vmatpush.msra.mxu0 0.0
      %9178 = vmatpush.msra.mxu0 0.0
      %9179 = vmatpush.msra.mxu0 0.0
      %9180 = vmatpush.msra.mxu0 0.0
      %9181 = vmatpush.msra.mxu0 0.0
      %9182 = vmatpush.msra.mxu0 0.0
      %9183 = vmatpush.msra.mxu0 0.0
      %9184 = vmatpush.msra.mxu0 0.0
      %9185 = vmatpush.msra.mxu0 0.0
      %9186 = vmatpush.msra.mxu0 0.0
      %9187 = vmatpush.msra.mxu0 0.0
      %9188 = vmatpush.msra.mxu0 0.0
      %9189 = vmatpush.msra.mxu0 0.0
      %9190 = vmatpush.msra.mxu0 %v9148
      %9191 = vmatmul.f32.gmra.mxu0 %v9153
      %v9192 = vpop.f32.mrf.mxu0
      %v9193 = vadd.f32 0.0, %v9192
      %9194 = vdwg.mxu0
      %9195 = vmatpush.msra.mxu0 0.0
      %9196 = vmatpush.msra.mxu0 0.0
      %9197 = vmatpush.msra.mxu0 0.0
      %9198 = vmatpush.msra.mxu0 0.0
      %9199 = vmatpush.msra.mxu0 0.0
      %9200 = vmatpush.msra.mxu0 0.0
      %9201 = vmatpush.msra.mxu0 0.0
      %9202 = vmatpush.msra.mxu0 0.0
      %9203 = vmatpush.msra.mxu0 0.0
      %9204 = vmatpush.msra.mxu0 0.0
      %9205 = vmatpush.msra.mxu0 0.0
      %9206 = vmatpush.msra.mxu0 0.0
      %9207 = vmatpush.msra.mxu0 0.0
      %9208 = vmatpush.msra.mxu0 0.0
      %9209 = vmatpush.msra.mxu0 0.0
      %9210 = vmatpush.msra.mxu0 %v9146
      %9211 = vmatmul.f32.gmra.mxu0 %v9153
      %v9212 = vpop.f32.mrf.mxu0
      %v9213 = vadd.f32 0.0, %v9212
      %9214 = vdwg.mxu0
      %v9215 = vadd.f32 %v9097, %v9173
      %v9216 = vadd.f32 %v9117, %v9193
      %v9217 = vadd.f32 %v9137, %v9213
      %s9218 = scalar_lea.vmem %s7, 24
      %v9219 = vld [vmem:[%s9218] sm:$0xff]
      %9220 = vrot.lane.b32.xlu0 %v8993, 108
      %v9221 = vpop.permute.xlu0 %9220
      %9222 = vrot.lane.b32.xlu0 %v8994, 108
      %v9223 = vpop.permute.xlu0 %9222
      %9224 = vrot.lane.b32.xlu0 %v8995, 108
      %v9225 = vpop.permute.xlu0 %9224
      %v9226 = vsel %vm8502, %v9221, %v9223
      %v9227 = vsel %vm8502, %v9223, %v9225
      %v9232 = vsel %vm4350, %v9219, 0
      %9234 = vmatpush.msra.mxu0 0.0
      %9235 = vmatpush.msra.mxu0 0.0
      %9236 = vmatpush.msra.mxu0 0.0
      %9237 = vmatpush.msra.mxu0 0.0
      %9238 = vmatpush.msra.mxu0 0.0
      %9239 = vmatpush.msra.mxu0 0.0
      %9240 = vmatpush.msra.mxu0 0.0
      %9241 = vmatpush.msra.mxu0 0.0
      %9242 = vmatpush.msra.mxu0 0.0
      %9243 = vmatpush.msra.mxu0 0.0
      %9244 = vmatpush.msra.mxu0 0.0
      %9245 = vmatpush.msra.mxu0 0.0
      %9246 = vmatpush.msra.mxu0 0.0
      %9247 = vmatpush.msra.mxu0 0.0
      %9248 = vmatpush.msra.mxu0 0.0
      %9249 = vmatpush.msra.mxu0 %v9226
      %9250 = vmatmul.f32.gmra.mxu0 %v9232
      %v9251 = vpop.f32.mrf.mxu0
      %v9252 = vadd.f32 0.0, %v9251
      %9253 = vdwg.mxu0
      %9254 = vmatpush.msra.mxu0 0.0
      %9255 = vmatpush.msra.mxu0 0.0
      %9256 = vmatpush.msra.mxu0 0.0
      %9257 = vmatpush.msra.mxu0 0.0
      %9258 = vmatpush.msra.mxu0 0.0
      %9259 = vmatpush.msra.mxu0 0.0
      %9260 = vmatpush.msra.mxu0 0.0
      %9261 = vmatpush.msra.mxu0 0.0
      %9262 = vmatpush.msra.mxu0 0.0
      %9263 = vmatpush.msra.mxu0 0.0
      %9264 = vmatpush.msra.mxu0 0.0
      %9265 = vmatpush.msra.mxu0 0.0
      %9266 = vmatpush.msra.mxu0 0.0
      %9267 = vmatpush.msra.mxu0 0.0
      %9268 = vmatpush.msra.mxu0 0.0
      %9269 = vmatpush.msra.mxu0 %v9227
      %9270 = vmatmul.f32.gmra.mxu0 %v9232
      %v9271 = vpop.f32.mrf.mxu0
      %v9272 = vadd.f32 0.0, %v9271
      %9273 = vdwg.mxu0
      %9274 = vmatpush.msra.mxu0 0.0
      %9275 = vmatpush.msra.mxu0 0.0
      %9276 = vmatpush.msra.mxu0 0.0
      %9277 = vmatpush.msra.mxu0 0.0
      %9278 = vmatpush.msra.mxu0 0.0
      %9279 = vmatpush.msra.mxu0 0.0
      %9280 = vmatpush.msra.mxu0 0.0
      %9281 = vmatpush.msra.mxu0 0.0
      %9282 = vmatpush.msra.mxu0 0.0
      %9283 = vmatpush.msra.mxu0 0.0
      %9284 = vmatpush.msra.mxu0 0.0
      %9285 = vmatpush.msra.mxu0 0.0
      %9286 = vmatpush.msra.mxu0 0.0
      %9287 = vmatpush.msra.mxu0 0.0
      %9288 = vmatpush.msra.mxu0 0.0
      %9289 = vmatpush.msra.mxu0 %v9225
      %9290 = vmatmul.f32.gmra.mxu0 %v9232
      %v9291 = vpop.f32.mrf.mxu0
      %v9292 = vadd.f32 0.0, %v9291
      %9293 = vdwg.mxu0
      %v9294 = vadd.f32 %v9215, %v9252
      %v9295 = vadd.f32 %v9216, %v9272
      %v9296 = vadd.f32 %v9217, %v9292
      %s9297 = scalar_lea.vmem %s7, 32
      %v9298 = vld [vmem:[%s9297] sm:$0xff]
      %9299 = vrot.lane.b32.xlu0 %v8993, 107
      %v9300 = vpop.permute.xlu0 %9299
      %9301 = vrot.lane.b32.xlu0 %v8994, 107
      %v9302 = vpop.permute.xlu0 %9301
      %9303 = vrot.lane.b32.xlu0 %v8995, 107
      %v9304 = vpop.permute.xlu0 %9303
      %v9305 = vsel %vm8582, %v9300, %v9302
      %v9306 = vsel %vm8582, %v9302, %v9304
      %v9311 = vsel %vm4350, %v9298, 0
      %9313 = vmatpush.msra.mxu0 0.0
      %9314 = vmatpush.msra.mxu0 0.0
      %9315 = vmatpush.msra.mxu0 0.0
      %9316 = vmatpush.msra.mxu0 0.0
      %9317 = vmatpush.msra.mxu0 0.0
      %9318 = vmatpush.msra.mxu0 0.0
      %9319 = vmatpush.msra.mxu0 0.0
      %9320 = vmatpush.msra.mxu0 0.0
      %9321 = vmatpush.msra.mxu0 0.0
      %9322 = vmatpush.msra.mxu0 0.0
      %9323 = vmatpush.msra.mxu0 0.0
      %9324 = vmatpush.msra.mxu0 0.0
      %9325 = vmatpush.msra.mxu0 0.0
      %9326 = vmatpush.msra.mxu0 0.0
      %9327 = vmatpush.msra.mxu0 0.0
      %9328 = vmatpush.msra.mxu0 %v9305
      %9329 = vmatmul.f32.gmra.mxu0 %v9311
      %v9330 = vpop.f32.mrf.mxu0
      %v9331 = vadd.f32 0.0, %v9330
      %9332 = vdwg.mxu0
      %9333 = vmatpush.msra.mxu0 0.0
      %9334 = vmatpush.msra.mxu0 0.0
      %9335 = vmatpush.msra.mxu0 0.0
      %9336 = vmatpush.msra.mxu0 0.0
      %9337 = vmatpush.msra.mxu0 0.0
      %9338 = vmatpush.msra.mxu0 0.0
      %9339 = vmatpush.msra.mxu0 0.0
      %9340 = vmatpush.msra.mxu0 0.0
      %9341 = vmatpush.msra.mxu0 0.0
      %9342 = vmatpush.msra.mxu0 0.0
      %9343 = vmatpush.msra.mxu0 0.0
      %9344 = vmatpush.msra.mxu0 0.0
      %9345 = vmatpush.msra.mxu0 0.0
      %9346 = vmatpush.msra.mxu0 0.0
      %9347 = vmatpush.msra.mxu0 0.0
      %9348 = vmatpush.msra.mxu0 %v9306
      %9349 = vmatmul.f32.gmra.mxu0 %v9311
      %v9350 = vpop.f32.mrf.mxu0
      %v9351 = vadd.f32 0.0, %v9350
      %9352 = vdwg.mxu0
      %9353 = vmatpush.msra.mxu0 0.0
      %9354 = vmatpush.msra.mxu0 0.0
      %9355 = vmatpush.msra.mxu0 0.0
      %9356 = vmatpush.msra.mxu0 0.0
      %9357 = vmatpush.msra.mxu0 0.0
      %9358 = vmatpush.msra.mxu0 0.0
      %9359 = vmatpush.msra.mxu0 0.0
      %9360 = vmatpush.msra.mxu0 0.0
      %9361 = vmatpush.msra.mxu0 0.0
      %9362 = vmatpush.msra.mxu0 0.0
      %9363 = vmatpush.msra.mxu0 0.0
      %9364 = vmatpush.msra.mxu0 0.0
      %9365 = vmatpush.msra.mxu0 0.0
      %9366 = vmatpush.msra.mxu0 0.0
      %9367 = vmatpush.msra.mxu0 0.0
      %9368 = vmatpush.msra.mxu0 %v9304
      %9369 = vmatmul.f32.gmra.mxu0 %v9311
      %v9370 = vpop.f32.mrf.mxu0
      %v9371 = vadd.f32 0.0, %v9370
      %9372 = vdwg.mxu0
      %v9373 = vadd.f32 %v9294, %v9331
      %v9374 = vadd.f32 %v9295, %v9351
      %v9375 = vadd.f32 %v9296, %v9371
      %s9376 = scalar_lea.vmem %s7, 40
      %v9377 = vld [vmem:[%s9376] sm:$0xff]
      %9378 = vrot.lane.b32.xlu0 %v8993, 106
      %v9379 = vpop.permute.xlu0 %9378
      %9380 = vrot.lane.b32.xlu0 %v8994, 106
      %v9381 = vpop.permute.xlu0 %9380
      %9382 = vrot.lane.b32.xlu0 %v8995, 106
      %v9383 = vpop.permute.xlu0 %9382
      %v9384 = vsel %vm8662, %v9379, %v9381
      %v9385 = vsel %vm8662, %v9381, %v9383
      %v9390 = vsel %vm4350, %v9377, 0
      %9392 = vmatpush.msra.mxu0 0.0
      %9393 = vmatpush.msra.mxu0 0.0
      %9394 = vmatpush.msra.mxu0 0.0
      %9395 = vmatpush.msra.mxu0 0.0
      %9396 = vmatpush.msra.mxu0 0.0
      %9397 = vmatpush.msra.mxu0 0.0
      %9398 = vmatpush.msra.mxu0 0.0
      %9399 = vmatpush.msra.mxu0 0.0
      %9400 = vmatpush.msra.mxu0 0.0
      %9401 = vmatpush.msra.mxu0 0.0
      %9402 = vmatpush.msra.mxu0 0.0
      %9403 = vmatpush.msra.mxu0 0.0
      %9404 = vmatpush.msra.mxu0 0.0
      %9405 = vmatpush.msra.mxu0 0.0
      %9406 = vmatpush.msra.mxu0 0.0
      %9407 = vmatpush.msra.mxu0 %v9384
      %9408 = vmatmul.f32.gmra.mxu0 %v9390
      %v9409 = vpop.f32.mrf.mxu0
      %v9410 = vadd.f32 0.0, %v9409
      %9411 = vdwg.mxu0
      %9412 = vmatpush.msra.mxu0 0.0
      %9413 = vmatpush.msra.mxu0 0.0
      %9414 = vmatpush.msra.mxu0 0.0
      %9415 = vmatpush.msra.mxu0 0.0
      %9416 = vmatpush.msra.mxu0 0.0
      %9417 = vmatpush.msra.mxu0 0.0
      %9418 = vmatpush.msra.mxu0 0.0
      %9419 = vmatpush.msra.mxu0 0.0
      %9420 = vmatpush.msra.mxu0 0.0
      %9421 = vmatpush.msra.mxu0 0.0
      %9422 = vmatpush.msra.mxu0 0.0
      %9423 = vmatpush.msra.mxu0 0.0
      %9424 = vmatpush.msra.mxu0 0.0
      %9425 = vmatpush.msra.mxu0 0.0
      %9426 = vmatpush.msra.mxu0 0.0
      %9427 = vmatpush.msra.mxu0 %v9385
      %9428 = vmatmul.f32.gmra.mxu0 %v9390
      %v9429 = vpop.f32.mrf.mxu0
      %v9430 = vadd.f32 0.0, %v9429
      %9431 = vdwg.mxu0
      %9432 = vmatpush.msra.mxu0 0.0
      %9433 = vmatpush.msra.mxu0 0.0
      %9434 = vmatpush.msra.mxu0 0.0
      %9435 = vmatpush.msra.mxu0 0.0
      %9436 = vmatpush.msra.mxu0 0.0
      %9437 = vmatpush.msra.mxu0 0.0
      %9438 = vmatpush.msra.mxu0 0.0
      %9439 = vmatpush.msra.mxu0 0.0
      %9440 = vmatpush.msra.mxu0 0.0
      %9441 = vmatpush.msra.mxu0 0.0
      %9442 = vmatpush.msra.mxu0 0.0
      %9443 = vmatpush.msra.mxu0 0.0
      %9444 = vmatpush.msra.mxu0 0.0
      %9445 = vmatpush.msra.mxu0 0.0
      %9446 = vmatpush.msra.mxu0 0.0
      %9447 = vmatpush.msra.mxu0 %v9383
      %9448 = vmatmul.f32.gmra.mxu0 %v9390
      %v9449 = vpop.f32.mrf.mxu0
      %v9450 = vadd.f32 0.0, %v9449
      %9451 = vdwg.mxu0
      %v9452 = vadd.f32 %v9373, %v9410
      %v9453 = vadd.f32 %v9374, %v9430
      %v9454 = vadd.f32 %v9375, %v9450
      %s9455 = scalar_lea.vmem %s7, 48
      %v9456 = vld [vmem:[%s9455] sm:$0xff]
      %9457 = vrot.lane.b32.xlu0 %v8993, 88
      %v9458 = vpop.permute.xlu0 %9457
      %9459 = vrot.lane.b32.xlu0 %v8994, 88
      %v9460 = vpop.permute.xlu0 %9459
      %9461 = vrot.lane.b32.xlu0 %v8995, 88
      %v9462 = vpop.permute.xlu0 %9461
      %v9463 = vsel %vm8745, %v9458, %v9460
      %v9464 = vsel %vm8745, %v9460, %v9462
      %v9469 = vsel %vm4350, %v9456, 0
      %9471 = vmatpush.msra.mxu0 0.0
      %9472 = vmatpush.msra.mxu0 0.0
      %9473 = vmatpush.msra.mxu0 0.0
      %9474 = vmatpush.msra.mxu0 0.0
      %9475 = vmatpush.msra.mxu0 0.0
      %9476 = vmatpush.msra.mxu0 0.0
      %9477 = vmatpush.msra.mxu0 0.0
      %9478 = vmatpush.msra.mxu0 0.0
      %9479 = vmatpush.msra.mxu0 0.0
      %9480 = vmatpush.msra.mxu0 0.0
      %9481 = vmatpush.msra.mxu0 0.0
      %9482 = vmatpush.msra.mxu0 0.0
      %9483 = vmatpush.msra.mxu0 0.0
      %9484 = vmatpush.msra.mxu0 0.0
      %9485 = vmatpush.msra.mxu0 0.0
      %9486 = vmatpush.msra.mxu0 %v9463
      %9487 = vmatmul.f32.gmra.mxu0 %v9469
      %v9488 = vpop.f32.mrf.mxu0
      %v9489 = vadd.f32 0.0, %v9488
      %9490 = vdwg.mxu0
      %9491 = vmatpush.msra.mxu0 0.0
      %9492 = vmatpush.msra.mxu0 0.0
      %9493 = vmatpush.msra.mxu0 0.0
      %9494 = vmatpush.msra.mxu0 0.0
      %9495 = vmatpush.msra.mxu0 0.0
      %9496 = vmatpush.msra.mxu0 0.0
      %9497 = vmatpush.msra.mxu0 0.0
      %9498 = vmatpush.msra.mxu0 0.0
      %9499 = vmatpush.msra.mxu0 0.0
      %9500 = vmatpush.msra.mxu0 0.0
      %9501 = vmatpush.msra.mxu0 0.0
      %9502 = vmatpush.msra.mxu0 0.0
      %9503 = vmatpush.msra.mxu0 0.0
      %9504 = vmatpush.msra.mxu0 0.0
      %9505 = vmatpush.msra.mxu0 0.0
      %9506 = vmatpush.msra.mxu0 %v9464
      %9507 = vmatmul.f32.gmra.mxu0 %v9469
      %v9508 = vpop.f32.mrf.mxu0
      %v9509 = vadd.f32 0.0, %v9508
      %9510 = vdwg.mxu0
      %9511 = vmatpush.msra.mxu0 0.0
      %9512 = vmatpush.msra.mxu0 0.0
      %9513 = vmatpush.msra.mxu0 0.0
      %9514 = vmatpush.msra.mxu0 0.0
      %9515 = vmatpush.msra.mxu0 0.0
      %9516 = vmatpush.msra.mxu0 0.0
      %9517 = vmatpush.msra.mxu0 0.0
      %9518 = vmatpush.msra.mxu0 0.0
      %9519 = vmatpush.msra.mxu0 0.0
      %9520 = vmatpush.msra.mxu0 0.0
      %9521 = vmatpush.msra.mxu0 0.0
      %9522 = vmatpush.msra.mxu0 0.0
      %9523 = vmatpush.msra.mxu0 0.0
      %9524 = vmatpush.msra.mxu0 0.0
      %9525 = vmatpush.msra.mxu0 0.0
      %9526 = vmatpush.msra.mxu0 %v9462
      %9527 = vmatmul.f32.gmra.mxu0 %v9469
      %v9528 = vpop.f32.mrf.mxu0
      %v9529 = vadd.f32 0.0, %v9528
      %9530 = vdwg.mxu0
      %v9531 = vadd.f32 %v9452, %v9489
      %v9532 = vadd.f32 %v9453, %v9509
      %v9533 = vadd.f32 %v9454, %v9529
      %s9534 = scalar_lea.vmem %s7, 56
      %v9535 = vld [vmem:[%s9534] sm:$0xff]
      %9536 = vrot.lane.b32.xlu0 %v8993, 87
      %v9537 = vpop.permute.xlu0 %9536
      %9538 = vrot.lane.b32.xlu0 %v8994, 87
      %v9539 = vpop.permute.xlu0 %9538
      %9540 = vrot.lane.b32.xlu0 %v8995, 87
      %v9541 = vpop.permute.xlu0 %9540
      %v9542 = vsel %vm8828, %v9537, %v9539
      %v9543 = vsel %vm8828, %v9539, %v9541
      %v9548 = vsel %vm4350, %v9535, 0
      %9550 = vmatpush.msra.mxu0 0.0
      %9551 = vmatpush.msra.mxu0 0.0
      %9552 = vmatpush.msra.mxu0 0.0
      %9553 = vmatpush.msra.mxu0 0.0
      %9554 = vmatpush.msra.mxu0 0.0
      %9555 = vmatpush.msra.mxu0 0.0
      %9556 = vmatpush.msra.mxu0 0.0
      %9557 = vmatpush.msra.mxu0 0.0
      %9558 = vmatpush.msra.mxu0 0.0
      %9559 = vmatpush.msra.mxu0 0.0
      %9560 = vmatpush.msra.mxu0 0.0
      %9561 = vmatpush.msra.mxu0 0.0
      %9562 = vmatpush.msra.mxu0 0.0
      %9563 = vmatpush.msra.mxu0 0.0
      %9564 = vmatpush.msra.mxu0 0.0
      %9565 = vmatpush.msra.mxu0 %v9542
      %9566 = vmatmul.f32.gmra.mxu0 %v9548
      %v9567 = vpop.f32.mrf.mxu0
      %v9568 = vadd.f32 0.0, %v9567
      %9569 = vdwg.mxu0
      %9570 = vmatpush.msra.mxu0 0.0
      %9571 = vmatpush.msra.mxu0 0.0
      %9572 = vmatpush.msra.mxu0 0.0
      %9573 = vmatpush.msra.mxu0 0.0
      %9574 = vmatpush.msra.mxu0 0.0
      %9575 = vmatpush.msra.mxu0 0.0
      %9576 = vmatpush.msra.mxu0 0.0
      %9577 = vmatpush.msra.mxu0 0.0
      %9578 = vmatpush.msra.mxu0 0.0
      %9579 = vmatpush.msra.mxu0 0.0
      %9580 = vmatpush.msra.mxu0 0.0
      %9581 = vmatpush.msra.mxu0 0.0
      %9582 = vmatpush.msra.mxu0 0.0
      %9583 = vmatpush.msra.mxu0 0.0
      %9584 = vmatpush.msra.mxu0 0.0
      %9585 = vmatpush.msra.mxu0 %v9543
      %9586 = vmatmul.f32.gmra.mxu0 %v9548
      %v9587 = vpop.f32.mrf.mxu0
      %v9588 = vadd.f32 0.0, %v9587
      %9589 = vdwg.mxu0
      %9590 = vmatpush.msra.mxu0 0.0
      %9591 = vmatpush.msra.mxu0 0.0
      %9592 = vmatpush.msra.mxu0 0.0
      %9593 = vmatpush.msra.mxu0 0.0
      %9594 = vmatpush.msra.mxu0 0.0
      %9595 = vmatpush.msra.mxu0 0.0
      %9596 = vmatpush.msra.mxu0 0.0
      %9597 = vmatpush.msra.mxu0 0.0
      %9598 = vmatpush.msra.mxu0 0.0
      %9599 = vmatpush.msra.mxu0 0.0
      %9600 = vmatpush.msra.mxu0 0.0
      %9601 = vmatpush.msra.mxu0 0.0
      %9602 = vmatpush.msra.mxu0 0.0
      %9603 = vmatpush.msra.mxu0 0.0
      %9604 = vmatpush.msra.mxu0 0.0
      %9605 = vmatpush.msra.mxu0 %v9541
      %9606 = vmatmul.f32.gmra.mxu0 %v9548
      %v9607 = vpop.f32.mrf.mxu0
      %v9608 = vadd.f32 0.0, %v9607
      %9609 = vdwg.mxu0
      %v9610 = vadd.f32 %v9531, %v9568
      %v9611 = vadd.f32 %v9532, %v9588
      %v9612 = vadd.f32 %v9533, %v9608
      %s9613 = scalar_lea.vmem %s7, 64
      %v9614 = vld [vmem:[%s9613] sm:$0xff]
      %9615 = vrot.lane.b32.xlu0 %v8993, 86
      %v9616 = vpop.permute.xlu0 %9615
      %9617 = vrot.lane.b32.xlu0 %v8994, 86
      %v9618 = vpop.permute.xlu0 %9617
      %9619 = vrot.lane.b32.xlu0 %v8995, 86
      %v9620 = vpop.permute.xlu0 %9619
      %v9621 = vsel %vm8911, %v9616, %v9618
      %v9622 = vsel %vm8911, %v9618, %v9620
      %v9627 = vsel %vm4350, %v9614, 0
      %9629 = vmatpush.msra.mxu0 0.0
      %9630 = vmatpush.msra.mxu0 0.0
      %9631 = vmatpush.msra.mxu0 0.0
      %9632 = vmatpush.msra.mxu0 0.0
      %9633 = vmatpush.msra.mxu0 0.0
      %9634 = vmatpush.msra.mxu0 0.0
      %9635 = vmatpush.msra.mxu0 0.0
      %9636 = vmatpush.msra.mxu0 0.0
      %9637 = vmatpush.msra.mxu0 0.0
      %9638 = vmatpush.msra.mxu0 0.0
      %9639 = vmatpush.msra.mxu0 0.0
      %9640 = vmatpush.msra.mxu0 0.0
      %9641 = vmatpush.msra.mxu0 0.0
      %9642 = vmatpush.msra.mxu0 0.0
      %9643 = vmatpush.msra.mxu0 0.0
      %9644 = vmatpush.msra.mxu0 %v9621
      %9645 = vmatmul.f32.gmra.mxu0 %v9627
      %v9646 = vpop.f32.mrf.mxu0
      %v9647 = vadd.f32 0.0, %v9646
      %9648 = vdwg.mxu0
      %9649 = vmatpush.msra.mxu0 0.0
      %9650 = vmatpush.msra.mxu0 0.0
      %9651 = vmatpush.msra.mxu0 0.0
      %9652 = vmatpush.msra.mxu0 0.0
      %9653 = vmatpush.msra.mxu0 0.0
      %9654 = vmatpush.msra.mxu0 0.0
      %9655 = vmatpush.msra.mxu0 0.0
      %9656 = vmatpush.msra.mxu0 0.0
      %9657 = vmatpush.msra.mxu0 0.0
      %9658 = vmatpush.msra.mxu0 0.0
      %9659 = vmatpush.msra.mxu0 0.0
      %9660 = vmatpush.msra.mxu0 0.0
      %9661 = vmatpush.msra.mxu0 0.0
      %9662 = vmatpush.msra.mxu0 0.0
      %9663 = vmatpush.msra.mxu0 0.0
      %9664 = vmatpush.msra.mxu0 %v9622
      %9665 = vmatmul.f32.gmra.mxu0 %v9627
      %v9666 = vpop.f32.mrf.mxu0
      %v9667 = vadd.f32 0.0, %v9666
      %9668 = vdwg.mxu0
      %9669 = vmatpush.msra.mxu0 0.0
      %9670 = vmatpush.msra.mxu0 0.0
      %9671 = vmatpush.msra.mxu0 0.0
      %9672 = vmatpush.msra.mxu0 0.0
      %9673 = vmatpush.msra.mxu0 0.0
      %9674 = vmatpush.msra.mxu0 0.0
      %9675 = vmatpush.msra.mxu0 0.0
      %9676 = vmatpush.msra.mxu0 0.0
      %9677 = vmatpush.msra.mxu0 0.0
      %9678 = vmatpush.msra.mxu0 0.0
      %9679 = vmatpush.msra.mxu0 0.0
      %9680 = vmatpush.msra.mxu0 0.0
      %9681 = vmatpush.msra.mxu0 0.0
      %9682 = vmatpush.msra.mxu0 0.0
      %9683 = vmatpush.msra.mxu0 0.0
      %9684 = vmatpush.msra.mxu0 %v9620
      %9685 = vmatmul.f32.gmra.mxu0 %v9627
      %v9686 = vpop.f32.mrf.mxu0
      %v9687 = vadd.f32 0.0, %v9686
      %9688 = vdwg.mxu0
      %v9689 = vadd.f32 %v9610, %v9647
      %v9690 = vadd.f32 %v9611, %v9667
      %v9691 = vadd.f32 %v9612, %v9687
      %v9692 = vld [vmem:[%s8] sm:$0xff]
      %9694 = vset.pattern.permute.xlu0 0
      %9695 = vperm.xlu0 %9694, %v9692
      %v9696 = vpop.permute.xlu0 %9695
      %v9698 = vadd.f32 %v9689, %v9696
      %v9699 = vadd.f32 %v9690, %v9696
      %v9700 = vadd.f32 %v9691, %v9696
      %v9701 = vmax.f32 %v9698, 0.0
      %v9702 = vmax.f32 %v9699, 0.0
      %v9703 = vmax.f32 %v9700, 0.0
      %9707 = vrot.lane.b32.xlu0 %v9701, 108
      %v9708 = vpop.permute.xlu0 %9707
      %9709 = vrot.lane.b32.xlu0 %v9702, 108
      %v9710 = vpop.permute.xlu0 %9709
      %9711 = vrot.lane.b32.xlu0 %v9703, 108
      %v9712 = vpop.permute.xlu0 %9711
      %v9713 = vsel %vm8502, %v9708, %v9710
      %v9714 = vsel %vm8502, %v9710, %v9712
      %v9718 = vmax.f32 %v9701, %v9713
      %v9719 = vmax.f32 %v9702, %v9714
      %v9720 = vmax.f32 %v9703, %v9712
      %9724 = vrot.lane.b32.xlu0 %v9718, 127
      %v9725 = vpop.permute.xlu0 %9724
      %9726 = vrot.lane.b32.xlu0 %v9719, 127
      %v9727 = vpop.permute.xlu0 %9726
      %9728 = vrot.lane.b32.xlu0 %v9720, 127
      %v9729 = vpop.permute.xlu0 %9728
      %v9730 = vsel %vm574, %v9725, %v9727
      %v9731 = vsel %vm574, %v9727, %v9729
      %v9735 = vmax.f32 %v9718, %v9730
      %v9736 = vmax.f32 %v9719, %v9731
      %v9737 = vmax.f32 %v9720, %v9729
      %vm9738 = vcmask 121856
      %v9740 = vsel %vm9738, %v9735, 0
      %v9743 = vsel %vm7641, %v7634, 0
      %9745 = vmatpush.msra.mxu0 0.0
      %9746 = vmatpush.msra.mxu0 0.0
      %9747 = vmatpush.msra.mxu0 0.0
      %9748 = vmatpush.msra.mxu0 0.0
      %9749 = vmatpush.msra.mxu0 0.0
      %9750 = vmatpush.msra.mxu0 0.0
      %9751 = vmatpush.msra.mxu0 0.0
      %9752 = vmatpush.msra.mxu0 0.0
      %9753 = vmatpush.msra.mxu0 0.0
      %9754 = vmatpush.msra.mxu0 0.0
      %9755 = vmatpush.msra.mxu0 0.0
      %9756 = vmatpush.msra.mxu0 0.0
      %9757 = vmatpush.msra.mxu0 0.0
      %9758 = vmatpush.msra.mxu0 0.0
      %9759 = vmatpush.msra.mxu0 %v9743
      %9760 = vmatpush.msra.mxu0 %v7633
      %9761 = vmatmul.f32.gmra.mxu0 %v9740
      %v9762 = vpop.f32.mrf.mxu0
      %v9763 = vadd.f32 0.0, %v9762
      %9764 = vdwg.mxu0
      %9765 = vst.msk [vmem:[#allocation2] sm:$0xff] %vm4350, %v9763
      %9766 = vrot.lane.b32.xlu0 %v9735, 88
      %v9767 = vpop.permute.xlu0 %9766
      %v9768 = vsel %vm9738, %v9767, 0
      %9770 = vmatpush.msra.mxu0 0.0
      %9771 = vmatpush.msra.mxu0 0.0
      %9772 = vmatpush.msra.mxu0 0.0
      %9773 = vmatpush.msra.mxu0 0.0
      %9774 = vmatpush.msra.mxu0 0.0
      %9775 = vmatpush.msra.mxu0 0.0
      %9776 = vmatpush.msra.mxu0 0.0
      %9777 = vmatpush.msra.mxu0 0.0
      %9778 = vmatpush.msra.mxu0 0.0
      %9779 = vmatpush.msra.mxu0 0.0
      %9780 = vmatpush.msra.mxu0 0.0
      %9781 = vmatpush.msra.mxu0 0.0
      %9782 = vmatpush.msra.mxu0 0.0
      %9783 = vmatpush.msra.mxu0 0.0
      %9784 = vmatpush.msra.mxu0 %v9743
      %9785 = vmatpush.msra.mxu0 %v7633
      %9786 = vmatmul.f32.gmra.mxu0 %v9768
      %v9787 = vpop.f32.mrf.mxu0
      %v9788 = vadd.f32 0.0, %v9787
      %9789 = vdwg.mxu0
      %9791 = vrot.lane.b32.xlu0 %v9788, 8
      %v9792 = vpop.permute.xlu0 %9791
      %vm9794 = vcmask 130112
      %9795 = vst.msk [vmem:[#allocation2] sm:$0xff] %vm9794, %v9792
      %9796 = vrot.lane.b32.xlu0 %v9735, 48
      %v9797 = vpop.permute.xlu0 %9796
      %v9798 = vsel %vm9738, %v9797, 0
      %9800 = vmatpush.msra.mxu0 0.0
      %9801 = vmatpush.msra.mxu0 0.0
      %9802 = vmatpush.msra.mxu0 0.0
      %9803 = vmatpush.msra.mxu0 0.0
      %9804 = vmatpush.msra.mxu0 0.0
      %9805 = vmatpush.msra.mxu0 0.0
      %9806 = vmatpush.msra.mxu0 0.0
      %9807 = vmatpush.msra.mxu0 0.0
      %9808 = vmatpush.msra.mxu0 0.0
      %9809 = vmatpush.msra.mxu0 0.0
      %9810 = vmatpush.msra.mxu0 0.0
      %9811 = vmatpush.msra.mxu0 0.0
      %9812 = vmatpush.msra.mxu0 0.0
      %9813 = vmatpush.msra.mxu0 0.0
      %9814 = vmatpush.msra.mxu0 %v9743
      %9815 = vmatpush.msra.mxu0 %v7633
      %9816 = vmatmul.f32.gmra.mxu0 %v9798
      %v9817 = vpop.f32.mrf.mxu0
      %v9818 = vadd.f32 0.0, %v9817
      %9819 = vdwg.mxu0
      %9821 = vrot.lane.b32.xlu0 %v9818, 16
      %v9822 = vpop.permute.xlu0 %9821
      %vm9824 = vcmask 195712
      %9825 = vst.msk [vmem:[#allocation2] sm:$0xff] %vm9824, %v9822
      %9827 = vrot.lane.b32.xlu0 %v9735, 8
      %v9828 = vpop.permute.xlu0 %9827
      %9829 = vrot.lane.b32.xlu0 %v9736, 8
      %v9830 = vpop.permute.xlu0 %9829
      %v9831 = vsel %vm4350, %v9828, %v9830
      %v9832 = vsel %vm9738, %v9831, 0
      %9834 = vmatpush.msra.mxu0 0.0
      %9835 = vmatpush.msra.mxu0 0.0
      %9836 = vmatpush.msra.mxu0 0.0
      %9837 = vmatpush.msra.mxu0 0.0
      %9838 = vmatpush.msra.mxu0 0.0
      %9839 = vmatpush.msra.mxu0 0.0
      %9840 = vmatpush.msra.mxu0 0.0
      %9841 = vmatpush.msra.mxu0 0.0
      %9842 = vmatpush.msra.mxu0 0.0
      %9843 = vmatpush.msra.mxu0 0.0
      %9844 = vmatpush.msra.mxu0 0.0
      %9845 = vmatpush.msra.mxu0 0.0
      %9846 = vmatpush.msra.mxu0 0.0
      %9847 = vmatpush.msra.mxu0 0.0
      %9848 = vmatpush.msra.mxu0 %v9743
      %9849 = vmatpush.msra.mxu0 %v7633
      %9850 = vmatmul.f32.gmra.mxu0 %v9832
      %v9851 = vpop.f32.mrf.mxu0
      %v9852 = vadd.f32 0.0, %v9851
      %9853 = vdwg.mxu0
      %9855 = vrot.lane.b32.xlu0 %v9852, 24
      %v9856 = vpop.permute.xlu0 %9855
      %vm9858 = vcmask 261312
      %9859 = vst.msk [vmem:[#allocation2] sm:$0xff] %vm9858, %v9856
      %9860 = vrot.lane.b32.xlu0 %v9736, 96
      %v9861 = vpop.permute.xlu0 %9860
      %v9862 = vsel %vm9738, %v9861, 0
      %9864 = vmatpush.msra.mxu0 0.0
      %9865 = vmatpush.msra.mxu0 0.0
      %9866 = vmatpush.msra.mxu0 0.0
      %9867 = vmatpush.msra.mxu0 0.0
      %9868 = vmatpush.msra.mxu0 0.0
      %9869 = vmatpush.msra.mxu0 0.0
      %9870 = vmatpush.msra.mxu0 0.0
      %9871 = vmatpush.msra.mxu0 0.0
      %9872 = vmatpush.msra.mxu0 0.0
      %9873 = vmatpush.msra.mxu0 0.0
      %9874 = vmatpush.msra.mxu0 0.0
      %9875 = vmatpush.msra.mxu0 0.0
      %9876 = vmatpush.msra.mxu0 0.0
      %9877 = vmatpush.msra.mxu0 0.0
      %9878 = vmatpush.msra.mxu0 %v9743
      %9879 = vmatpush.msra.mxu0 %v7633
      %9880 = vmatmul.f32.gmra.mxu0 %v9862
      %v9881 = vpop.f32.mrf.mxu0
      %v9882 = vadd.f32 0.0, %v9881
      %9883 = vdwg.mxu0
      %9885 = vrot.lane.b32.xlu0 %v9882, 32
      %v9886 = vpop.permute.xlu0 %9885
      %vm9888 = vcmask 326912
      %9889 = vst.msk [vmem:[#allocation2] sm:$0xff] %vm9888, %v9886
      %9890 = vrot.lane.b32.xlu0 %v9736, 56
      %v9891 = vpop.permute.xlu0 %9890
      %v9892 = vsel %vm9738, %v9891, 0
      %9894 = vmatpush.msra.mxu0 0.0
      %9895 = vmatpush.msra.mxu0 0.0
      %9896 = vmatpush.msra.mxu0 0.0
      %9897 = vmatpush.msra.mxu0 0.0
      %9898 = vmatpush.msra.mxu0 0.0
      %9899 = vmatpush.msra.mxu0 0.0
      %9900 = vmatpush.msra.mxu0 0.0
      %9901 = vmatpush.msra.mxu0 0.0
      %9902 = vmatpush.msra.mxu0 0.0
      %9903 = vmatpush.msra.mxu0 0.0
      %9904 = vmatpush.msra.mxu0 0.0
      %9905 = vmatpush.msra.mxu0 0.0
      %9906 = vmatpush.msra.mxu0 0.0
      %9907 = vmatpush.msra.mxu0 0.0
      %9908 = vmatpush.msra.mxu0 %v9743
      %9909 = vmatpush.msra.mxu0 %v7633
      %9910 = vmatmul.f32.gmra.mxu0 %v9892
      %v9911 = vpop.f32.mrf.mxu0
      %v9912 = vadd.f32 0.0, %v9911
      %9913 = vdwg.mxu0
      %9915 = vrot.lane.b32.xlu0 %v9912, 40
      %v9916 = vpop.permute.xlu0 %9915
      %vm9918 = vcmask 392512
      %9919 = vst.msk [vmem:[#allocation2] sm:$0xff] %vm9918, %v9916
      %9920 = vrot.lane.b32.xlu0 %v9736, 16
      %v9921 = vpop.permute.xlu0 %9920
      %v9922 = vsel %vm9738, %v9921, 0
      %9924 = vmatpush.msra.mxu0 0.0
      %9925 = vmatpush.msra.mxu0 0.0
      %9926 = vmatpush.msra.mxu0 0.0
      %9927 = vmatpush.msra.mxu0 0.0
      %9928 = vmatpush.msra.mxu0 0.0
      %9929 = vmatpush.msra.mxu0 0.0
      %9930 = vmatpush.msra.mxu0 0.0
      %9931 = vmatpush.msra.mxu0 0.0
      %9932 = vmatpush.msra.mxu0 0.0
      %9933 = vmatpush.msra.mxu0 0.0
      %9934 = vmatpush.msra.mxu0 0.0
      %9935 = vmatpush.msra.mxu0 0.0
      %9936 = vmatpush.msra.mxu0 0.0
      %9937 = vmatpush.msra.mxu0 0.0
      %9938 = vmatpush.msra.mxu0 %v9743
      %9939 = vmatpush.msra.mxu0 %v7633
      %9940 = vmatmul.f32.gmra.mxu0 %v9922
      %v9941 = vpop.f32.mrf.mxu0
      %v9942 = vadd.f32 0.0, %v9941
      %9943 = vdwg.mxu0
      %9945 = vrot.lane.b32.xlu0 %v9942, 48
      %v9946 = vpop.permute.xlu0 %9945
      %vm9948 = vcmask 458112
      %9949 = vst.msk [vmem:[#allocation2] sm:$0xff] %vm9948, %v9946
      %9951 = vrot.lane.b32.xlu0 %v9737, 104
      %v9952 = vpop.permute.xlu0 %9951
      %v9953 = vsel %vm9738, %v9952, 0
      %9955 = vmatpush.msra.mxu0 0.0
      %9956 = vmatpush.msra.mxu0 0.0
      %9957 = vmatpush.msra.mxu0 0.0
      %9958 = vmatpush.msra.mxu0 0.0
      %9959 = vmatpush.msra.mxu0 0.0
      %9960 = vmatpush.msra.mxu0 0.0
      %9961 = vmatpush.msra.mxu0 0.0
      %9962 = vmatpush.msra.mxu0 0.0
      %9963 = vmatpush.msra.mxu0 0.0
      %9964 = vmatpush.msra.mxu0 0.0
      %9965 = vmatpush.msra.mxu0 0.0
      %9966 = vmatpush.msra.mxu0 0.0
      %9967 = vmatpush.msra.mxu0 0.0
      %9968 = vmatpush.msra.mxu0 0.0
      %9969 = vmatpush.msra.mxu0 %v9743
      %9970 = vmatpush.msra.mxu0 %v7633
      %9971 = vmatmul.f32.gmra.mxu0 %v9953
      %v9972 = vpop.f32.mrf.mxu0
      %v9973 = vadd.f32 0.0, %v9972
      %9974 = vdwg.mxu0
      %9976 = vrot.lane.b32.xlu0 %v9973, 56
      %v9977 = vpop.permute.xlu0 %9976
      %vm9979 = vcmask 523712
      %9980 = vst.msk [vmem:[#allocation2] sm:$0xff] %vm9979, %v9977
      %v9981 = vld [vmem:[#allocation2] sm:$0xff]
      %v9982 = vld [vmem:[%s9] sm:$0xff]
      %s9983 = scalar_lea.vmem %s9, 8
      %v9984 = vld [vmem:[%s9983] sm:$0xff]
      %9986 = vrot.lane.b32.xlu0 %v9981, 127
      %v9987 = vpop.permute.xlu0 %9986
      %v9990 = vsel %vm4350, %v9984, 0
      %9992 = vmatpush.msra.mxu0 0.0
      %9993 = vmatpush.msra.mxu0 0.0
      %9994 = vmatpush.msra.mxu0 0.0
      %9995 = vmatpush.msra.mxu0 0.0
      %9996 = vmatpush.msra.mxu0 0.0
      %9997 = vmatpush.msra.mxu0 0.0
      %9998 = vmatpush.msra.mxu0 0.0
      %9999 = vmatpush.msra.mxu0 0.0
      %10000 = vmatpush.msra.mxu0 0.0
      %10001 = vmatpush.msra.mxu0 0.0
      %10002 = vmatpush.msra.mxu0 0.0
      %10003 = vmatpush.msra.mxu0 0.0
      %10004 = vmatpush.msra.mxu0 0.0
      %10005 = vmatpush.msra.mxu0 0.0
      %10006 = vmatpush.msra.mxu0 0.0
      %10007 = vmatpush.msra.mxu0 %v9987
      %10008 = vmatmul.f32.gmra.mxu0 %v9990
      %v10009 = vpop.f32.mrf.mxu0
      %v10010 = vadd.f32 0.0, %v10009
      %10011 = vdwg.mxu0
      %v10013 = vsel %vm4350, %v9982, 0
      %10015 = vmatpush.msra.mxu0 0.0
      %10016 = vmatpush.msra.mxu0 0.0
      %10017 = vmatpush.msra.mxu0 0.0
      %10018 = vmatpush.msra.mxu0 0.0
      %10019 = vmatpush.msra.mxu0 0.0
      %10020 = vmatpush.msra.mxu0 0.0
      %10021 = vmatpush.msra.mxu0 0.0
      %10022 = vmatpush.msra.mxu0 0.0
      %10023 = vmatpush.msra.mxu0 0.0
      %10024 = vmatpush.msra.mxu0 0.0
      %10025 = vmatpush.msra.mxu0 0.0
      %10026 = vmatpush.msra.mxu0 0.0
      %10027 = vmatpush.msra.mxu0 0.0
      %10028 = vmatpush.msra.mxu0 0.0
      %10029 = vmatpush.msra.mxu0 0.0
      %10030 = vmatpush.msra.mxu0 %v9981
      %10031 = vmatmul.f32.gmra.mxu0 %v10013
      %v10032 = vpop.f32.mrf.mxu0
      %v10033 = vadd.f32 %v10010, %v10032
      %10034 = vdwg.mxu0
      %s10035 = scalar_lea.vmem %s9, 16
      %v10036 = vld [vmem:[%s10035] sm:$0xff]
      %10037 = vrot.lane.b32.xlu0 %v9981, 126
      %v10038 = vpop.permute.xlu0 %10037
      %v10041 = vsel %vm4350, %v10036, 0
      %10043 = vmatpush.msra.mxu0 0.0
      %10044 = vmatpush.msra.mxu0 0.0
      %10045 = vmatpush.msra.mxu0 0.0
      %10046 = vmatpush.msra.mxu0 0.0
      %10047 = vmatpush.msra.mxu0 0.0
      %10048 = vmatpush.msra.mxu0 0.0
      %10049 = vmatpush.msra.mxu0 0.0
      %10050 = vmatpush.msra.mxu0 0.0
      %10051 = vmatpush.msra.mxu0 0.0
      %10052 = vmatpush.msra.mxu0 0.0
      %10053 = vmatpush.msra.mxu0 0.0
      %10054 = vmatpush.msra.mxu0 0.0
      %10055 = vmatpush.msra.mxu0 0.0
      %10056 = vmatpush.msra.mxu0 0.0
      %10057 = vmatpush.msra.mxu0 0.0
      %10058 = vmatpush.msra.mxu0 %v10038
      %10059 = vmatmul.f32.gmra.mxu0 %v10041
      %v10060 = vpop.f32.mrf.mxu0
      %v10061 = vadd.f32 0.0, %v10060
      %10062 = vdwg.mxu0
      %v10063 = vadd.f32 %v10033, %v10061
      %s10064 = scalar_lea.vmem %s9, 24
      %v10065 = vld [vmem:[%s10064] sm:$0xff]
      %10066 = vrot.lane.b32.xlu0 %v9981, 120
      %v10067 = vpop.permute.xlu0 %10066
      %v10070 = vsel %vm4350, %v10065, 0
      %10072 = vmatpush.msra.mxu0 0.0
      %10073 = vmatpush.msra.mxu0 0.0
      %10074 = vmatpush.msra.mxu0 0.0
      %10075 = vmatpush.msra.mxu0 0.0
      %10076 = vmatpush.msra.mxu0 0.0
      %10077 = vmatpush.msra.mxu0 0.0
      %10078 = vmatpush.msra.mxu0 0.0
      %10079 = vmatpush.msra.mxu0 0.0
      %10080 = vmatpush.msra.mxu0 0.0
      %10081 = vmatpush.msra.mxu0 0.0
      %10082 = vmatpush.msra.mxu0 0.0
      %10083 = vmatpush.msra.mxu0 0.0
      %10084 = vmatpush.msra.mxu0 0.0
      %10085 = vmatpush.msra.mxu0 0.0
      %10086 = vmatpush.msra.mxu0 0.0
      %10087 = vmatpush.msra.mxu0 %v10067
      %10088 = vmatmul.f32.gmra.mxu0 %v10070
      %v10089 = vpop.f32.mrf.mxu0
      %v10090 = vadd.f32 0.0, %v10089
      %10091 = vdwg.mxu0
      %v10092 = vadd.f32 %v10063, %v10090
      %s10093 = scalar_lea.vmem %s9, 32
      %v10094 = vld [vmem:[%s10093] sm:$0xff]
      %10095 = vrot.lane.b32.xlu0 %v9981, 119
      %v10096 = vpop.permute.xlu0 %10095
      %v10099 = vsel %vm4350, %v10094, 0
      %10101 = vmatpush.msra.mxu0 0.0
      %10102 = vmatpush.msra.mxu0 0.0
      %10103 = vmatpush.msra.mxu0 0.0
      %10104 = vmatpush.msra.mxu0 0.0
      %10105 = vmatpush.msra.mxu0 0.0
      %10106 = vmatpush.msra.mxu0 0.0
      %10107 = vmatpush.msra.mxu0 0.0
      %10108 = vmatpush.msra.mxu0 0.0
      %10109 = vmatpush.msra.mxu0 0.0
      %10110 = vmatpush.msra.mxu0 0.0
      %10111 = vmatpush.msra.mxu0 0.0
      %10112 = vmatpush.msra.mxu0 0.0
      %10113 = vmatpush.msra.mxu0 0.0
      %10114 = vmatpush.msra.mxu0 0.0
      %10115 = vmatpush.msra.mxu0 0.0
      %10116 = vmatpush.msra.mxu0 %v10096
      %10117 = vmatmul.f32.gmra.mxu0 %v10099
      %v10118 = vpop.f32.mrf.mxu0
      %v10119 = vadd.f32 0.0, %v10118
      %10120 = vdwg.mxu0
      %v10121 = vadd.f32 %v10092, %v10119
      %s10122 = scalar_lea.vmem %s9, 40
      %v10123 = vld [vmem:[%s10122] sm:$0xff]
      %10124 = vrot.lane.b32.xlu0 %v9981, 118
      %v10125 = vpop.permute.xlu0 %10124
      %v10128 = vsel %vm4350, %v10123, 0
      %10130 = vmatpush.msra.mxu0 0.0
      %10131 = vmatpush.msra.mxu0 0.0
      %10132 = vmatpush.msra.mxu0 0.0
      %10133 = vmatpush.msra.mxu0 0.0
      %10134 = vmatpush.msra.mxu0 0.0
      %10135 = vmatpush.msra.mxu0 0.0
      %10136 = vmatpush.msra.mxu0 0.0
      %10137 = vmatpush.msra.mxu0 0.0
      %10138 = vmatpush.msra.mxu0 0.0
      %10139 = vmatpush.msra.mxu0 0.0
      %10140 = vmatpush.msra.mxu0 0.0
      %10141 = vmatpush.msra.mxu0 0.0
      %10142 = vmatpush.msra.mxu0 0.0
      %10143 = vmatpush.msra.mxu0 0.0
      %10144 = vmatpush.msra.mxu0 0.0
      %10145 = vmatpush.msra.mxu0 %v10125
      %10146 = vmatmul.f32.gmra.mxu0 %v10128
      %v10147 = vpop.f32.mrf.mxu0
      %v10148 = vadd.f32 0.0, %v10147
      %10149 = vdwg.mxu0
      %v10150 = vadd.f32 %v10121, %v10148
      %s10151 = scalar_lea.vmem %s9, 48
      %v10152 = vld [vmem:[%s10151] sm:$0xff]
      %10153 = vrot.lane.b32.xlu0 %v9981, 112
      %v10154 = vpop.permute.xlu0 %10153
      %v10157 = vsel %vm4350, %v10152, 0
      %10159 = vmatpush.msra.mxu0 0.0
      %10160 = vmatpush.msra.mxu0 0.0
      %10161 = vmatpush.msra.mxu0 0.0
      %10162 = vmatpush.msra.mxu0 0.0
      %10163 = vmatpush.msra.mxu0 0.0
      %10164 = vmatpush.msra.mxu0 0.0
      %10165 = vmatpush.msra.mxu0 0.0
      %10166 = vmatpush.msra.mxu0 0.0
      %10167 = vmatpush.msra.mxu0 0.0
      %10168 = vmatpush.msra.mxu0 0.0
      %10169 = vmatpush.msra.mxu0 0.0
      %10170 = vmatpush.msra.mxu0 0.0
      %10171 = vmatpush.msra.mxu0 0.0
      %10172 = vmatpush.msra.mxu0 0.0
      %10173 = vmatpush.msra.mxu0 0.0
      %10174 = vmatpush.msra.mxu0 %v10154
      %10175 = vmatmul.f32.gmra.mxu0 %v10157
      %v10176 = vpop.f32.mrf.mxu0
      %v10177 = vadd.f32 0.0, %v10176
      %10178 = vdwg.mxu0
      %v10179 = vadd.f32 %v10150, %v10177
      %s10180 = scalar_lea.vmem %s9, 56
      %v10181 = vld [vmem:[%s10180] sm:$0xff]
      %10182 = vrot.lane.b32.xlu0 %v9981, 111
      %v10183 = vpop.permute.xlu0 %10182
      %v10186 = vsel %vm4350, %v10181, 0
      %10188 = vmatpush.msra.mxu0 0.0
      %10189 = vmatpush.msra.mxu0 0.0
      %10190 = vmatpush.msra.mxu0 0.0
      %10191 = vmatpush.msra.mxu0 0.0
      %10192 = vmatpush.msra.mxu0 0.0
      %10193 = vmatpush.msra.mxu0 0.0
      %10194 = vmatpush.msra.mxu0 0.0
      %10195 = vmatpush.msra.mxu0 0.0
      %10196 = vmatpush.msra.mxu0 0.0
      %10197 = vmatpush.msra.mxu0 0.0
      %10198 = vmatpush.msra.mxu0 0.0
      %10199 = vmatpush.msra.mxu0 0.0
      %10200 = vmatpush.msra.mxu0 0.0
      %10201 = vmatpush.msra.mxu0 0.0
      %10202 = vmatpush.msra.mxu0 0.0
      %10203 = vmatpush.msra.mxu0 %v10183
      %10204 = vmatmul.f32.gmra.mxu0 %v10186
      %v10205 = vpop.f32.mrf.mxu0
      %v10206 = vadd.f32 0.0, %v10205
      %10207 = vdwg.mxu0
      %v10208 = vadd.f32 %v10179, %v10206
      %s10209 = scalar_lea.vmem %s9, 64
      %v10210 = vld [vmem:[%s10209] sm:$0xff]
      %10211 = vrot.lane.b32.xlu0 %v9981, 110
      %v10212 = vpop.permute.xlu0 %10211
      %v10215 = vsel %vm4350, %v10210, 0
      %10217 = vmatpush.msra.mxu0 0.0
      %10218 = vmatpush.msra.mxu0 0.0
      %10219 = vmatpush.msra.mxu0 0.0
      %10220 = vmatpush.msra.mxu0 0.0
      %10221 = vmatpush.msra.mxu0 0.0
      %10222 = vmatpush.msra.mxu0 0.0
      %10223 = vmatpush.msra.mxu0 0.0
      %10224 = vmatpush.msra.mxu0 0.0
      %10225 = vmatpush.msra.mxu0 0.0
      %10226 = vmatpush.msra.mxu0 0.0
      %10227 = vmatpush.msra.mxu0 0.0
      %10228 = vmatpush.msra.mxu0 0.0
      %10229 = vmatpush.msra.mxu0 0.0
      %10230 = vmatpush.msra.mxu0 0.0
      %10231 = vmatpush.msra.mxu0 0.0
      %10232 = vmatpush.msra.mxu0 %v10212
      %10233 = vmatmul.f32.gmra.mxu0 %v10215
      %v10234 = vpop.f32.mrf.mxu0
      %v10235 = vadd.f32 0.0, %v10234
      %10236 = vdwg.mxu0
      %v10237 = vadd.f32 %v10208, %v10235
      %v10238 = vld [vmem:[%s10] sm:$0xff]
      %10240 = vset.pattern.permute.xlu0 0
      %10241 = vperm.xlu0 %10240, %v10238
      %v10242 = vpop.permute.xlu0 %10241
      %v10244 = vadd.f32 %v10237, %v10242
      %v10245 = vmax.f32 %v10244, 0.0
      %v10246 = vld [vmem:[%s11] sm:$0xff]
      %s10247 = scalar_lea.vmem %s11, 8
      %v10248 = vld [vmem:[%s10247] sm:$0xff]
      %10250 = vrot.lane.b32.xlu0 %v10245, 127
      %v10251 = vpop.permute.xlu0 %10250
      %v10254 = vsel %vm4350, %v10248, 0
      %10256 = vmatpush.msra.mxu0 0.0
      %10257 = vmatpush.msra.mxu0 0.0
      %10258 = vmatpush.msra.mxu0 0.0
      %10259 = vmatpush.msra.mxu0 0.0
      %10260 = vmatpush.msra.mxu0 0.0
      %10261 = vmatpush.msra.mxu0 0.0
      %10262 = vmatpush.msra.mxu0 0.0
      %10263 = vmatpush.msra.mxu0 0.0
      %10264 = vmatpush.msra.mxu0 0.0
      %10265 = vmatpush.msra.mxu0 0.0
      %10266 = vmatpush.msra.mxu0 0.0
      %10267 = vmatpush.msra.mxu0 0.0
      %10268 = vmatpush.msra.mxu0 0.0
      %10269 = vmatpush.msra.mxu0 0.0
      %10270 = vmatpush.msra.mxu0 0.0
      %10271 = vmatpush.msra.mxu0 %v10251
      %10272 = vmatmul.f32.gmra.mxu0 %v10254
      %v10273 = vpop.f32.mrf.mxu0
      %v10274 = vadd.f32 0.0, %v10273
      %10275 = vdwg.mxu0
      %v10277 = vsel %vm4350, %v10246, 0
      %10279 = vmatpush.msra.mxu0 0.0
      %10280 = vmatpush.msra.mxu0 0.0
      %10281 = vmatpush.msra.mxu0 0.0
      %10282 = vmatpush.msra.mxu0 0.0
      %10283 = vmatpush.msra.mxu0 0.0
      %10284 = vmatpush.msra.mxu0 0.0
      %10285 = vmatpush.msra.mxu0 0.0
      %10286 = vmatpush.msra.mxu0 0.0
      %10287 = vmatpush.msra.mxu0 0.0
      %10288 = vmatpush.msra.mxu0 0.0
      %10289 = vmatpush.msra.mxu0 0.0
      %10290 = vmatpush.msra.mxu0 0.0
      %10291 = vmatpush.msra.mxu0 0.0
      %10292 = vmatpush.msra.mxu0 0.0
      %10293 = vmatpush.msra.mxu0 0.0
      %10294 = vmatpush.msra.mxu0 %v10245
      %10295 = vmatmul.f32.gmra.mxu0 %v10277
      %v10296 = vpop.f32.mrf.mxu0
      %v10297 = vadd.f32 %v10274, %v10296
      %10298 = vdwg.mxu0
      %s10299 = scalar_lea.vmem %s11, 16
      %v10300 = vld [vmem:[%s10299] sm:$0xff]
      %10301 = vrot.lane.b32.xlu0 %v10245, 126
      %v10302 = vpop.permute.xlu0 %10301
      %v10305 = vsel %vm4350, %v10300, 0
      %10307 = vmatpush.msra.mxu0 0.0
      %10308 = vmatpush.msra.mxu0 0.0
      %10309 = vmatpush.msra.mxu0 0.0
      %10310 = vmatpush.msra.mxu0 0.0
      %10311 = vmatpush.msra.mxu0 0.0
      %10312 = vmatpush.msra.mxu0 0.0
      %10313 = vmatpush.msra.mxu0 0.0
      %10314 = vmatpush.msra.mxu0 0.0
      %10315 = vmatpush.msra.mxu0 0.0
      %10316 = vmatpush.msra.mxu0 0.0
      %10317 = vmatpush.msra.mxu0 0.0
      %10318 = vmatpush.msra.mxu0 0.0
      %10319 = vmatpush.msra.mxu0 0.0
      %10320 = vmatpush.msra.mxu0 0.0
      %10321 = vmatpush.msra.mxu0 0.0
      %10322 = vmatpush.msra.mxu0 %v10302
      %10323 = vmatmul.f32.gmra.mxu0 %v10305
      %v10324 = vpop.f32.mrf.mxu0
      %v10325 = vadd.f32 0.0, %v10324
      %10326 = vdwg.mxu0
      %v10327 = vadd.f32 %v10297, %v10325
      %s10328 = scalar_lea.vmem %s11, 24
      %v10329 = vld [vmem:[%s10328] sm:$0xff]
      %10330 = vrot.lane.b32.xlu0 %v10245, 120
      %v10331 = vpop.permute.xlu0 %10330
      %v10334 = vsel %vm4350, %v10329, 0
      %10336 = vmatpush.msra.mxu0 0.0
      %10337 = vmatpush.msra.mxu0 0.0
      %10338 = vmatpush.msra.mxu0 0.0
      %10339 = vmatpush.msra.mxu0 0.0
      %10340 = vmatpush.msra.mxu0 0.0
      %10341 = vmatpush.msra.mxu0 0.0
      %10342 = vmatpush.msra.mxu0 0.0
      %10343 = vmatpush.msra.mxu0 0.0
      %10344 = vmatpush.msra.mxu0 0.0
      %10345 = vmatpush.msra.mxu0 0.0
      %10346 = vmatpush.msra.mxu0 0.0
      %10347 = vmatpush.msra.mxu0 0.0
      %10348 = vmatpush.msra.mxu0 0.0
      %10349 = vmatpush.msra.mxu0 0.0
      %10350 = vmatpush.msra.mxu0 0.0
      %10351 = vmatpush.msra.mxu0 %v10331
      %10352 = vmatmul.f32.gmra.mxu0 %v10334
      %v10353 = vpop.f32.mrf.mxu0
      %v10354 = vadd.f32 0.0, %v10353
      %10355 = vdwg.mxu0
      %v10356 = vadd.f32 %v10327, %v10354
      %s10357 = scalar_lea.vmem %s11, 32
      %v10358 = vld [vmem:[%s10357] sm:$0xff]
      %10359 = vrot.lane.b32.xlu0 %v10245, 119
      %v10360 = vpop.permute.xlu0 %10359
      %v10363 = vsel %vm4350, %v10358, 0
      %10365 = vmatpush.msra.mxu0 0.0
      %10366 = vmatpush.msra.mxu0 0.0
      %10367 = vmatpush.msra.mxu0 0.0
      %10368 = vmatpush.msra.mxu0 0.0
      %10369 = vmatpush.msra.mxu0 0.0
      %10370 = vmatpush.msra.mxu0 0.0
      %10371 = vmatpush.msra.mxu0 0.0
      %10372 = vmatpush.msra.mxu0 0.0
      %10373 = vmatpush.msra.mxu0 0.0
      %10374 = vmatpush.msra.mxu0 0.0
      %10375 = vmatpush.msra.mxu0 0.0
      %10376 = vmatpush.msra.mxu0 0.0
      %10377 = vmatpush.msra.mxu0 0.0
      %10378 = vmatpush.msra.mxu0 0.0
      %10379 = vmatpush.msra.mxu0 0.0
      %10380 = vmatpush.msra.mxu0 %v10360
      %10381 = vmatmul.f32.gmra.mxu0 %v10363
      %v10382 = vpop.f32.mrf.mxu0
      %v10383 = vadd.f32 0.0, %v10382
      %10384 = vdwg.mxu0
      %v10385 = vadd.f32 %v10356, %v10383
      %s10386 = scalar_lea.vmem %s11, 40
      %v10387 = vld [vmem:[%s10386] sm:$0xff]
      %10388 = vrot.lane.b32.xlu0 %v10245, 118
      %v10389 = vpop.permute.xlu0 %10388
      %v10392 = vsel %vm4350, %v10387, 0
      %10394 = vmatpush.msra.mxu0 0.0
      %10395 = vmatpush.msra.mxu0 0.0
      %10396 = vmatpush.msra.mxu0 0.0
      %10397 = vmatpush.msra.mxu0 0.0
      %10398 = vmatpush.msra.mxu0 0.0
      %10399 = vmatpush.msra.mxu0 0.0
      %10400 = vmatpush.msra.mxu0 0.0
      %10401 = vmatpush.msra.mxu0 0.0
      %10402 = vmatpush.msra.mxu0 0.0
      %10403 = vmatpush.msra.mxu0 0.0
      %10404 = vmatpush.msra.mxu0 0.0
      %10405 = vmatpush.msra.mxu0 0.0
      %10406 = vmatpush.msra.mxu0 0.0
      %10407 = vmatpush.msra.mxu0 0.0
      %10408 = vmatpush.msra.mxu0 0.0
      %10409 = vmatpush.msra.mxu0 %v10389
      %10410 = vmatmul.f32.gmra.mxu0 %v10392
      %v10411 = vpop.f32.mrf.mxu0
      %v10412 = vadd.f32 0.0, %v10411
      %10413 = vdwg.mxu0
      %v10414 = vadd.f32 %v10385, %v10412
      %s10415 = scalar_lea.vmem %s11, 48
      %v10416 = vld [vmem:[%s10415] sm:$0xff]
      %10417 = vrot.lane.b32.xlu0 %v10245, 112
      %v10418 = vpop.permute.xlu0 %10417
      %v10421 = vsel %vm4350, %v10416, 0
      %10423 = vmatpush.msra.mxu0 0.0
      %10424 = vmatpush.msra.mxu0 0.0
      %10425 = vmatpush.msra.mxu0 0.0
      %10426 = vmatpush.msra.mxu0 0.0
      %10427 = vmatpush.msra.mxu0 0.0
      %10428 = vmatpush.msra.mxu0 0.0
      %10429 = vmatpush.msra.mxu0 0.0
      %10430 = vmatpush.msra.mxu0 0.0
      %10431 = vmatpush.msra.mxu0 0.0
      %10432 = vmatpush.msra.mxu0 0.0
      %10433 = vmatpush.msra.mxu0 0.0
      %10434 = vmatpush.msra.mxu0 0.0
      %10435 = vmatpush.msra.mxu0 0.0
      %10436 = vmatpush.msra.mxu0 0.0
      %10437 = vmatpush.msra.mxu0 0.0
      %10438 = vmatpush.msra.mxu0 %v10418
      %10439 = vmatmul.f32.gmra.mxu0 %v10421
      %v10440 = vpop.f32.mrf.mxu0
      %v10441 = vadd.f32 0.0, %v10440
      %10442 = vdwg.mxu0
      %v10443 = vadd.f32 %v10414, %v10441
      %s10444 = scalar_lea.vmem %s11, 56
      %v10445 = vld [vmem:[%s10444] sm:$0xff]
      %10446 = vrot.lane.b32.xlu0 %v10245, 111
      %v10447 = vpop.permute.xlu0 %10446
      %v10450 = vsel %vm4350, %v10445, 0
      %10452 = vmatpush.msra.mxu0 0.0
      %10453 = vmatpush.msra.mxu0 0.0
      %10454 = vmatpush.msra.mxu0 0.0
      %10455 = vmatpush.msra.mxu0 0.0
      %10456 = vmatpush.msra.mxu0 0.0
      %10457 = vmatpush.msra.mxu0 0.0
      %10458 = vmatpush.msra.mxu0 0.0
      %10459 = vmatpush.msra.mxu0 0.0
      %10460 = vmatpush.msra.mxu0 0.0
      %10461 = vmatpush.msra.mxu0 0.0
      %10462 = vmatpush.msra.mxu0 0.0
      %10463 = vmatpush.msra.mxu0 0.0
      %10464 = vmatpush.msra.mxu0 0.0
      %10465 = vmatpush.msra.mxu0 0.0
      %10466 = vmatpush.msra.mxu0 0.0
      %10467 = vmatpush.msra.mxu0 %v10447
      %10468 = vmatmul.f32.gmra.mxu0 %v10450
      %v10469 = vpop.f32.mrf.mxu0
      %v10470 = vadd.f32 0.0, %v10469
      %10471 = vdwg.mxu0
      %v10472 = vadd.f32 %v10443, %v10470
      %s10473 = scalar_lea.vmem %s11, 64
      %v10474 = vld [vmem:[%s10473] sm:$0xff]
      %10475 = vrot.lane.b32.xlu0 %v10245, 110
      %v10476 = vpop.permute.xlu0 %10475
      %v10479 = vsel %vm4350, %v10474, 0
      %10481 = vmatpush.msra.mxu0 0.0
      %10482 = vmatpush.msra.mxu0 0.0
      %10483 = vmatpush.msra.mxu0 0.0
      %10484 = vmatpush.msra.mxu0 0.0
      %10485 = vmatpush.msra.mxu0 0.0
      %10486 = vmatpush.msra.mxu0 0.0
      %10487 = vmatpush.msra.mxu0 0.0
      %10488 = vmatpush.msra.mxu0 0.0
      %10489 = vmatpush.msra.mxu0 0.0
      %10490 = vmatpush.msra.mxu0 0.0
      %10491 = vmatpush.msra.mxu0 0.0
      %10492 = vmatpush.msra.mxu0 0.0
      %10493 = vmatpush.msra.mxu0 0.0
      %10494 = vmatpush.msra.mxu0 0.0
      %10495 = vmatpush.msra.mxu0 0.0
      %10496 = vmatpush.msra.mxu0 %v10476
      %10497 = vmatmul.f32.gmra.mxu0 %v10479
      %v10498 = vpop.f32.mrf.mxu0
      %v10499 = vadd.f32 0.0, %v10498
      %10500 = vdwg.mxu0
      %v10501 = vadd.f32 %v10472, %v10499
      %v10502 = vld [vmem:[%s12] sm:$0xff]
      %10504 = vset.pattern.permute.xlu0 0
      %10505 = vperm.xlu0 %10504, %v10502
      %v10506 = vpop.permute.xlu0 %10505
      %v10508 = vadd.f32 %v10501, %v10506
      %v10509 = vmax.f32 %v10508, 0.0
      %10511 = vrot.lane.b32.xlu0 %v10509, 120
      %v10512 = vpop.permute.xlu0 %10511
      %v10514 = vmax.f32 %v10509, %v10512
      %10516 = vrot.lane.b32.xlu0 %v10514, 127
      %v10517 = vpop.permute.xlu0 %10516
      %v10519 = vmax.f32 %v10514, %v10517
      %v10521 = vsel %vm589, %v10519, 0
      %v10524 = vsel %vm593, %v7633, 0
      %10526 = vmatpush.msra.mxu0 0.0
      %10527 = vmatpush.msra.mxu0 0.0
      %10528 = vmatpush.msra.mxu0 0.0
      %10529 = vmatpush.msra.mxu0 0.0
      %10530 = vmatpush.msra.mxu0 0.0
      %10531 = vmatpush.msra.mxu0 0.0
      %10532 = vmatpush.msra.mxu0 0.0
      %10533 = vmatpush.msra.mxu0 0.0
      %10534 = vmatpush.msra.mxu0 0.0
      %10535 = vmatpush.msra.mxu0 0.0
      %10536 = vmatpush.msra.mxu0 0.0
      %10537 = vmatpush.msra.mxu0 0.0
      %10538 = vmatpush.msra.mxu0 0.0
      %10539 = vmatpush.msra.mxu0 0.0
      %10540 = vmatpush.msra.mxu0 0.0
      %10541 = vmatpush.msra.mxu0 %v10524
      %10542 = vmatmul.f32.gmra.mxu0 %v10521
      %v10543 = vpop.f32.mrf.mxu0
      %v10544 = vadd.f32 0.0, %v10543
      %10545 = vdwg.mxu0
      %vm10546 = vcmask 15360
      %10547 = vst.msk [vmem:[#allocation2] sm:$0xff] %vm10546, %v10544
      %10548 = vrot.lane.b32.xlu0 %v10519, 112
      %v10549 = vpop.permute.xlu0 %10548
      %v10550 = vsel %vm589, %v10549, 0
      %10552 = vmatpush.msra.mxu0 0.0
      %10553 = vmatpush.msra.mxu0 0.0
      %10554 = vmatpush.msra.mxu0 0.0
      %10555 = vmatpush.msra.mxu0 0.0
      %10556 = vmatpush.msra.mxu0 0.0
      %10557 = vmatpush.msra.mxu0 0.0
      %10558 = vmatpush.msra.mxu0 0.0
      %10559 = vmatpush.msra.mxu0 0.0
      %10560 = vmatpush.msra.mxu0 0.0
      %10561 = vmatpush.msra.mxu0 0.0
      %10562 = vmatpush.msra.mxu0 0.0
      %10563 = vmatpush.msra.mxu0 0.0
      %10564 = vmatpush.msra.mxu0 0.0
      %10565 = vmatpush.msra.mxu0 0.0
      %10566 = vmatpush.msra.mxu0 0.0
      %10567 = vmatpush.msra.mxu0 %v10524
      %10568 = vmatmul.f32.gmra.mxu0 %v10550
      %v10569 = vpop.f32.mrf.mxu0
      %v10570 = vadd.f32 0.0, %v10569
      %10571 = vdwg.mxu0
      %10573 = vrot.lane.b32.xlu0 %v10570, 2
      %v10574 = vpop.permute.xlu0 %10573
      %vm10576 = vcmask 31760
      %10577 = vst.msk [vmem:[#allocation2] sm:$0xff] %vm10576, %v10574
      %v10578 = vld [vmem:[#allocation2] sm:$0xff]
      %v10579 = vld [vmem:[%s14] sm:$0xff]
      %v10580 = vld [vmem:[%s14 + $0x8] sm:$0x3]
      %v10581 = vld [vmem:[%s13] sm:$0xff]
      %v10582 = vld [vmem:[%s13 + $0x8] sm:$0x3]
      %v10584 = vsel %vm4350, %v10581, 0
      %v10587 = vsel %vm4350, %v10582, 0
      %10589 = vmatpush.msra.mxu0 0.0
      %10590 = vmatpush.msra.mxu0 0.0
      %10591 = vmatpush.msra.mxu0 0.0
      %10592 = vmatpush.msra.mxu0 0.0
      %10593 = vmatpush.msra.mxu0 0.0
      %10594 = vmatpush.msra.mxu0 0.0
      %10595 = vmatpush.msra.mxu0 0.0
      %10596 = vmatpush.msra.mxu0 0.0
      %10597 = vmatpush.msra.mxu0 0.0
      %10598 = vmatpush.msra.mxu0 0.0
      %10599 = vmatpush.msra.mxu0 0.0
      %10600 = vmatpush.msra.mxu0 0.0
      %10601 = vmatpush.msra.mxu0 0.0
      %10602 = vmatpush.msra.mxu0 0.0
      %10603 = vmatpush.msra.mxu0 0.0
      %10604 = vmatpush.msra.mxu0 %v10578
      %10605 = vmatmul.f32.gmra.mxu0 %v10584
      %v10606 = vpop.f32.mrf.mxu0
      %v10607 = vadd.f32 0.0, %v10606
      %10608 = vmatmul.f32.gmra.mxu0 %v10587
      %v10609 = vpop.f32.mrf.mxu0
      %v10610 = vadd.f32 0.0, %v10609
      %10611 = vdwg.mxu0
      %v10612 = vadd.f32 %v10579, %v10607
      %v10613 = vadd.f32 %v10580, %v10610
      %s10614 = scalar_lea.vmem %s13, 16
      %v10615 = vld [vmem:[%s10614] sm:$0xff]
      %v10616 = vld [vmem:[%s10614 + $0x8] sm:$0x3]
      %10618 = vrot.lane.b32.xlu0 %v10578, 127
      %v10619 = vpop.permute.xlu0 %10618
      %v10622 = vsel %vm4350, %v10615, 0
      %v10625 = vsel %vm4350, %v10616, 0
      %10627 = vmatpush.msra.mxu0 0.0
      %10628 = vmatpush.msra.mxu0 0.0
      %10629 = vmatpush.msra.mxu0 0.0
      %10630 = vmatpush.msra.mxu0 0.0
      %10631 = vmatpush.msra.mxu0 0.0
      %10632 = vmatpush.msra.mxu0 0.0
      %10633 = vmatpush.msra.mxu0 0.0
      %10634 = vmatpush.msra.mxu0 0.0
      %10635 = vmatpush.msra.mxu0 0.0
      %10636 = vmatpush.msra.mxu0 0.0
      %10637 = vmatpush.msra.mxu0 0.0
      %10638 = vmatpush.msra.mxu0 0.0
      %10639 = vmatpush.msra.mxu0 0.0
      %10640 = vmatpush.msra.mxu0 0.0
      %10641 = vmatpush.msra.mxu0 0.0
      %10642 = vmatpush.msra.mxu0 %v10619
      %10643 = vmatmul.f32.gmra.mxu0 %v10622
      %v10644 = vpop.f32.mrf.mxu0
      %v10645 = vadd.f32 0.0, %v10644
      %10646 = vmatmul.f32.gmra.mxu0 %v10625
      %v10647 = vpop.f32.mrf.mxu0
      %v10648 = vadd.f32 0.0, %v10647
      %10649 = vdwg.mxu0
      %v10650 = vadd.f32 %v10612, %v10645
      %v10651 = vadd.f32 %v10613, %v10648
      %s10652 = scalar_lea.vmem %s13, 32
      %v10653 = vld [vmem:[%s10652] sm:$0xff]
      %v10654 = vld [vmem:[%s10652 + $0x8] sm:$0x3]
      %10655 = vrot.lane.b32.xlu0 %v10578, 126
      %v10656 = vpop.permute.xlu0 %10655
      %v10659 = vsel %vm4350, %v10653, 0
      %v10662 = vsel %vm4350, %v10654, 0
      %10664 = vmatpush.msra.mxu0 0.0
      %10665 = vmatpush.msra.mxu0 0.0
      %10666 = vmatpush.msra.mxu0 0.0
      %10667 = vmatpush.msra.mxu0 0.0
      %10668 = vmatpush.msra.mxu0 0.0
      %10669 = vmatpush.msra.mxu0 0.0
      %10670 = vmatpush.msra.mxu0 0.0
      %10671 = vmatpush.msra.mxu0 0.0
      %10672 = vmatpush.msra.mxu0 0.0
      %10673 = vmatpush.msra.mxu0 0.0
      %10674 = vmatpush.msra.mxu0 0.0
      %10675 = vmatpush.msra.mxu0 0.0
      %10676 = vmatpush.msra.mxu0 0.0
      %10677 = vmatpush.msra.mxu0 0.0
      %10678 = vmatpush.msra.mxu0 0.0
      %10679 = vmatpush.msra.mxu0 %v10656
      %10680 = vmatmul.f32.gmra.mxu0 %v10659
      %v10681 = vpop.f32.mrf.mxu0
      %v10682 = vadd.f32 0.0, %v10681
      %10683 = vmatmul.f32.gmra.mxu0 %v10662
      %v10684 = vpop.f32.mrf.mxu0
      %v10685 = vadd.f32 0.0, %v10684
      %10686 = vdwg.mxu0
      %v10687 = vadd.f32 %v10650, %v10682
      %v10688 = vadd.f32 %v10651, %v10685
      %s10689 = scalar_lea.vmem %s13, 48
      %v10690 = vld [vmem:[%s10689] sm:$0xff]
      %v10691 = vld [vmem:[%s10689 + $0x8] sm:$0x3]
      %10692 = vrot.lane.b32.xlu0 %v10578, 125
      %v10693 = vpop.permute.xlu0 %10692
      %v10696 = vsel %vm4350, %v10690, 0
      %v10699 = vsel %vm4350, %v10691, 0
      %10701 = vmatpush.msra.mxu0 0.0
      %10702 = vmatpush.msra.mxu0 0.0
      %10703 = vmatpush.msra.mxu0 0.0
      %10704 = vmatpush.msra.mxu0 0.0
      %10705 = vmatpush.msra.mxu0 0.0
      %10706 = vmatpush.msra.mxu0 0.0
      %10707 = vmatpush.msra.mxu0 0.0
      %10708 = vmatpush.msra.mxu0 0.0
      %10709 = vmatpush.msra.mxu0 0.0
      %10710 = vmatpush.msra.mxu0 0.0
      %10711 = vmatpush.msra.mxu0 0.0
      %10712 = vmatpush.msra.mxu0 0.0
      %10713 = vmatpush.msra.mxu0 0.0
      %10714 = vmatpush.msra.mxu0 0.0
      %10715 = vmatpush.msra.mxu0 0.0
      %10716 = vmatpush.msra.mxu0 %v10693
      %10717 = vmatmul.f32.gmra.mxu0 %v10696
      %v10718 = vpop.f32.mrf.mxu0
      %v10719 = vadd.f32 0.0, %v10718
      %10720 = vmatmul.f32.gmra.mxu0 %v10699
      %v10721 = vpop.f32.mrf.mxu0
      %v10722 = vadd.f32 0.0, %v10721
      %10723 = vdwg.mxu0
      %v10724 = vadd.f32 %v10687, %v10719
      %v10725 = vadd.f32 %v10688, %v10722
      %vm10726 = vcmask 7168
      %10727 = vst.msk [vmem:[%s494] sm:$0xff] %vm10726, %v10724
      %vm10728 = vcmask 1024
      %10729 = vst.msk [vmem:[%s494 + $0x8] sm:$0x3] %vm10728, %v10725
      %p10730 = scmp.lt.s32.totalorder %s26, 1
      %s10731 = scalar_select %p10730, %s26, 1
      %s10732 = smul.addr %s10731, 2
      %s10733 = smul.addr %s10732, 8
      %s10734 = scalar_lea.vmem %s15, %s10733
      // Predicated region
      $region81: #{tinyvgg_forward.1} parent=79 // pred_check
        %p10735 = pneg %p364
      $region82: #{tinyvgg_forward.1} parent=79 // pred_check_branch
        %10737 = sbr.rel (%p10735) target = $region84
      $region83: #{tinyvgg_forward.1} parent=79 // pred_region
        _
      $region84: #{tinyvgg_forward.1} parent=79 // pred_fallthru
        _
    $region80: #{tinyvgg_forward.1} parent=5 // pred_fallthru
      _
    %p10738 = scmp.le.s32.totalorder 2, %s21
    // Predicated region
    $region85: #{tinyvgg_forward.1} parent=5 // pred_check
      %p10739 = pneg %p10738
    $region86: #{tinyvgg_forward.1} parent=5 // pred_check_branch
      %10741 = sbr.rel (%p10739) target = $region88
    $region87: #{tinyvgg_forward.1} parent=5 // pred_region
      %s10742 = ssub.s32 %s21, 2
      // Predicated region
      $region89: #{tinyvgg_forward.1} parent=87 // pred_check
        %p10743 = pneg %p370
      $region90: #{tinyvgg_forward.1} parent=87 // pred_check_branch
        %10745 = sbr.rel (%p10743) target = $region92
      $region91: #{tinyvgg_forward.1} parent=87 // pred_region
        %p10746 = scmp.lt.s32.totalorder %s27, 1
        %s10747 = scalar_select %p10746, %s27, 1
        %s10748 = smul.addr %s10747, 2
        %s10749 = smul.addr %s10748, 8
        %s10750 = scalar_lea.vmem %s15, %s10749
      $region92: #{tinyvgg_forward.1} parent=87 // pred_fallthru
        _
    $region88: #{tinyvgg_forward.1} parent=5 // pred_fallthru
      _
  $region6: #{tinyvgg_forward.1} parent=0 // loop_footer
    %s25 = sadd.s32 1, %s21
  $region7: #{tinyvgg_forward.1} parent=0 // loop_footer_branch
    %20 = sbr.rel target = $region3
  $region8: #{tinyvgg_forward.1} parent=0 // loop_exit
    _

</llo_original>
